<compile_context>
chip_gen: v7x
topology: tpu7x:2x2x1
jax: 0.10.0
libtpu: 0.0.40
codegen_flags: <defaults>
</compile_context>

<pallas_src>
import functools
import math

import jax
import jax.numpy as jnp
from jax.experimental import pallas as pl
from jax.experimental.pallas import tpu as pltpu

# MXU operand dtype (accumulation stays f32 via preferred_element_type).
MXU_DTYPE = jnp.bfloat16


# ----------------------------------------------------------------------------
# tile-size helpers (largest divisor <= target respecting the (8,128) constraint)
# ----------------------------------------------------------------------------

def _pick_row_tile(total, target):
    if total <= target:
        return total
    t = (target // 8) * 8
    while t >= 8:
        if total % t == 0:
            return t
        t -= 8
    return total


def _pick_lane_tile(total, target):
    if total <= target:
        return total
    t = (target // 128) * 128
    while t >= 128:
        if total % t == 0:
            return t
        t -= 128
    return total


# ----------------------------------------------------------------------------
# Fused multi-head-attention block kernel
#   out = LayerNorm(x + MHA(x, kv, kv))          (dropout = identity)
#   optionally: x = tok_emb * embed_scale + pos  (embedding combine prologue)
#   optionally: emit attention weights [n_heads, tile_q, Lk] for this (batch, q-tile)
# ----------------------------------------------------------------------------

def _mha_block_kernel(*refs, n_heads, head_dim, inv_scale, eps,
                      self_attn, embed_scale, return_attn, causal, tile_q):
    it = iter(refs)
    x_ref = next(it)                                       # self: [Lq,H]  cross: [tile_q,H]
    pos_ref = next(it) if embed_scale is not None else None
    kv_ref = None if self_attn else next(it)               # cross: [Lk, H]
    mask_ref = None if causal else next(it)                # [tile_q,Lk] or [1,1,Lk]
    wq_ref = next(it); bq_ref = next(it)
    wkv_ref = next(it); bkv_ref = next(it)
    wo_ref = next(it); bo_ref = next(it)
    g_ref = next(it); beta_ref = next(it)
    out_ref = next(it)                                     # [tile_q, H]
    attn_ref = next(it) if return_attn else None           # [n_heads, tile_q, Lk]

    cd = MXU_DTYPE
    qi = pl.program_id(1)
    q_start = qi * tile_q
    H = out_ref.shape[-1]

    if self_attn:
        x_full = x_ref[...]                                # full sequence (keys need it)
        if embed_scale is not None:                        # layer-0 embedding combine
            x_full = x_full * jnp.float32(embed_scale) + pos_ref[...]
        kv_src = x_full
        if tile_q == x_full.shape[0]:
            x_q = x_full
        else:                                              # general q-tiling path
            x_q = jax.lax.dynamic_slice_in_dim(x_full, q_start, tile_q, axis=0)
    else:
        x_q = x_ref[...]                                   # [tile_q, H]
        kv_src = kv_ref[...]                               # [Lk, H]

    Lk = kv_src.shape[0]

    # Projections (bf16 MXU operands, f32 accumulation); scale folded into q.
    q = jnp.dot(x_q.astype(cd), wq_ref[...].astype(cd),
                preferred_element_type=jnp.float32) + bq_ref[...]
    q = q * jnp.float32(inv_scale)
    kvp = jnp.dot(kv_src.astype(cd), wkv_ref[...].astype(cd),
                  preferred_element_type=jnp.float32) + bkv_ref[...]
    q16 = q.astype(cd)
    k16 = kvp[:, :H].astype(cd)
    v16 = kvp[:, H:].astype(cd)

    # Mask (no HBM slab for the causal path; [1,Lk] key-validity broadcasts).
    if causal:
        rows = jax.lax.broadcasted_iota(jnp.int32, (tile_q, Lk), 0) + q_start
        cols = jax.lax.broadcasted_iota(jnp.int32, (tile_q, Lk), 1)
        keep = rows >= cols
    elif len(mask_ref.shape) == 3:
        keep = mask_ref[0] > 0.0                           # [1, Lk]
    else:
        keep = mask_ref[...] > 0.0                         # [tile_q, Lk]

    ctx_parts = []
    for h in range(n_heads):
        sl = slice(h * head_dim, (h + 1) * head_dim)
        energy = jnp.einsum("qd,kd->qk", q16[:, sl], k16[:, sl],
                            preferred_element_type=jnp.float32)
        energy = jnp.where(keep, energy, jnp.float32(-1e10))
        m = jnp.max(energy, axis=-1, keepdims=True)
        p = jnp.exp(energy - m)
        denom = jnp.sum(p, axis=-1, keepdims=True)
        if return_attn:
            attn = p / denom                               # exact softmax (module output)
            attn_ref[h] = attn
        else:
            attn = p * pl.reciprocal(denom, approx=True)   # EUP slot
        ctx_parts.append(jnp.dot(attn.astype(cd), v16[:, sl],
                                 preferred_element_type=jnp.float32))

    ctx = jnp.concatenate(ctx_parts, axis=-1)              # [tile_q, H]
    proj = jnp.dot(ctx.astype(cd), wo_ref[...].astype(cd),  # single K=H out-proj matmul
                   preferred_element_type=jnp.float32)

    y = x_q + proj + bo_ref[...]                           # residual (dropout = identity)
    mean = jnp.mean(y, axis=-1, keepdims=True)
    var = jnp.mean((y - mean) ** 2, axis=-1, keepdims=True)
    out_ref[...] = ((y - mean) * jax.lax.rsqrt(var + eps)) * g_ref[...] + beta_ref[...]


def mha_block(x2d, kv2d, mask, p, gamma, beta, *, B, Lq, Lk, n_heads, head_dim,
              self_attn, causal, return_attn, pos2d=None, embed_scale=None,
              q_tile_target=512):
    """x2d: [B*Lq, H]; kv2d: [B*Lk, H] (cross-attn); mask: [B*Lq, Lk] or [B, Lk] or None."""
    H = x2d.shape[1]
    inv_scale = 1.0 / math.sqrt(float(head_dim))
    tile_q = _pick_row_tile(Lq, q_tile_target)
    nq = Lq // tile_q

    inputs = []
    in_specs = []
    if self_attn:
        # Full sequence per batch (keys need all rows); q tile sliced in-kernel.
        inputs.append(x2d)
        in_specs.append(pl.BlockSpec((Lq, H), lambda b, qi: (b, 0)))
    else:
        inputs.append(x2d)
        in_specs.append(pl.BlockSpec((tile_q, H), lambda b, qi: (b * nq + qi, 0)))
    if embed_scale is not None:
        inputs.append(pos2d)                                   # [Lq, H], shared by batches
        in_specs.append(pl.BlockSpec((Lq, H), lambda b, qi: (0, 0)))
    if not self_attn:
        inputs.append(kv2d)
        in_specs.append(pl.BlockSpec((Lk, H), lambda b, qi: (b, 0)))
    if not causal:
        if self_attn:
            inputs.append(mask)                                # [B*Lq, Lk] full mask
            in_specs.append(pl.BlockSpec((tile_q, Lk), lambda b, qi: (b * nq + qi, 0)))
        else:
            inputs.append(mask.reshape(B, 1, Lk))              # [B,1,Lk] key validity
            in_specs.append(pl.BlockSpec((1, 1, Lk), lambda b, qi: (b, 0, 0)))

    weights = [
        (p["wq"], (H, H)), (p["bq"].reshape(1, H), (1, H)),
        (p["wkv"], (H, 2 * H)), (p["bkv"].reshape(1, 2 * H), (1, 2 * H)),
        (p["wo"], (H, H)), (p["bo"].reshape(1, H), (1, H)),
        (gamma.reshape(1, H), (1, H)), (beta.reshape(1, H), (1, H)),
    ]
    for arr, shp in weights:
        inputs.append(arr)
        in_specs.append(pl.BlockSpec(shp, lambda b, qi: (0, 0)))

    out_shapes = [jax.ShapeDtypeStruct((B * Lq, H), jnp.float32)]
    out_specs = [pl.BlockSpec((tile_q, H), lambda b, qi: (b * nq + qi, 0))]
    if return_attn:
        out_shapes.append(jax.ShapeDtypeStruct((B * n_heads, Lq, Lk), jnp.float32))
        out_specs.append(pl.BlockSpec((n_heads, tile_q, Lk), lambda b, qi: (b, qi, 0)))

    kern = functools.partial(
        _mha_block_kernel, n_heads=n_heads, head_dim=head_dim, inv_scale=inv_scale,
        eps=1e-5, self_attn=self_attn, embed_scale=embed_scale,
        return_attn=return_attn, causal=causal, tile_q=tile_q)
    cparams = pltpu.CompilerParams(dimension_semantics=("parallel", "parallel"))

    if return_attn:
        out, attn3d = pl.pallas_call(
            kern, out_shape=tuple(out_shapes), grid=(B, nq),
            in_specs=in_specs, out_specs=tuple(out_specs),
            compiler_params=cparams)(*inputs)
        return out, attn3d.reshape(B, n_heads, Lq, Lk)
    out = pl.pallas_call(
        kern, out_shape=out_shapes[0], grid=(B, nq),
        in_specs=in_specs, out_specs=out_specs[0],
        compiler_params=cparams)(*inputs)
    return out, None


# ----------------------------------------------------------------------------
# Fused position-wise feed-forward block: LayerNorm(x + FF2(relu(FF1(x))))
# PF (reduction) is a tiled grid axis with a VMEM accumulator.
# ----------------------------------------------------------------------------

def _ffn_block_kernel(x_ref, w1_ref, b1_ref, w2_ref, b2_ref, g_ref, beta_ref,
                      out_ref, acc_ref, *, eps):
    j = pl.program_id(1)

    @pl.when(j == 0)
    def _():
        acc_ref[...] = jnp.zeros_like(acc_ref)

    cd = MXU_DTYPE
    x = x_ref[...]
    h = jnp.dot(x.astype(cd), w1_ref[...].astype(cd),
                preferred_element_type=jnp.float32) + b1_ref[...]
    h = jnp.maximum(h, 0.0)
    acc_ref[...] += jnp.dot(h.astype(cd), w2_ref[...].astype(cd),
                            preferred_element_type=jnp.float32)

    @pl.when(j == pl.num_programs(1) - 1)
    def _():
        y = x + acc_ref[...] + b2_ref[...]                 # residual (dropout = identity)
        mean = jnp.mean(y, axis=-1, keepdims=True)
        var = jnp.mean((y - mean) ** 2, axis=-1, keepdims=True)
        out_ref[...] = ((y - mean) * jax.lax.rsqrt(var + eps)) * g_ref[...] + beta_ref[...]


def ffn_block(x2d, lp, *, eps=1e-5, row_tile_target=256, pf_tile_target=2048):
    M, H = x2d.shape
    PF = lp["ff_w1"].shape[1]
    tile_r = _pick_row_tile(M, row_tile_target)
    tile_pf = _pick_lane_tile(PF, pf_tile_target)
    nr, npf = M // tile_r, PF // tile_pf
    return pl.pallas_call(
        functools.partial(_ffn_block_kernel, eps=eps),
        out_shape=jax.ShapeDtypeStruct((M, H), jnp.float32),
        grid=(nr, npf),
        in_specs=[pl.BlockSpec((tile_r, H), lambda i, j: (i, 0)),
                  pl.BlockSpec((H, tile_pf), lambda i, j: (0, j)),
                  pl.BlockSpec((1, tile_pf), lambda i, j: (0, j)),
                  pl.BlockSpec((tile_pf, H), lambda i, j: (j, 0)),
                  pl.BlockSpec((1, H), lambda i, j: (0, 0)),
                  pl.BlockSpec((1, H), lambda i, j: (0, 0)),
                  pl.BlockSpec((1, H), lambda i, j: (0, 0))],
        out_specs=pl.BlockSpec((tile_r, H), lambda i, j: (i, 0)),
        scratch_shapes=[pltpu.VMEM((tile_r, H), jnp.float32)],
        compiler_params=pltpu.CompilerParams(
            dimension_semantics=("parallel", "arbitrary")),
    )(x2d, lp["ff_w1"], lp["ff_b1"].reshape(1, PF), lp["ff_w2"],
      lp["ff_b2"].reshape(1, H), lp["ln3_g"].reshape(1, H), lp["ln3_b"].reshape(1, H))


# ----------------------------------------------------------------------------
# Final projection (vocab padded to 128 lanes in init_params; tiled over rows x vocab)
# ----------------------------------------------------------------------------

def _fc_kernel(x_ref, w_ref, b_ref, o_ref):
    cd = MXU_DTYPE
    o_ref[...] = (jnp.dot(x_ref[...].astype(cd), w_ref[...].astype(cd),
                          preferred_element_type=jnp.float32) + b_ref[...])


def fc_out(x2d, w_pad, b_pad, *, row_tile_target=256, n_tile_target=512):
    M, H = x2d.shape
    Npad = w_pad.shape[1]
    tile_r = _pick_row_tile(M, row_tile_target)
    tile_n = _pick_lane_tile(Npad, n_tile_target)
    nr, nn = M // tile_r, Npad // tile_n
    return pl.pallas_call(
        _fc_kernel,
        out_shape=jax.ShapeDtypeStruct((M, Npad), jnp.float32),
        grid=(nr, nn),
        in_specs=[pl.BlockSpec((tile_r, H), lambda i, j: (i, 0)),
                  pl.BlockSpec((H, tile_n), lambda i, j: (0, j)),
                  pl.BlockSpec((1, tile_n), lambda i, j: (0, j))],
        out_specs=pl.BlockSpec((tile_r, tile_n), lambda i, j: (i, j)),
        compiler_params=pltpu.CompilerParams(
            dimension_semantics=("parallel", "parallel")),
    )(x2d, w_pad, b_pad.reshape(1, Npad))


# ----------------------------------------------------------------------------
# Decoder forward (glue: token-embedding gather + mask compaction in plain JAX)
# ----------------------------------------------------------------------------

def decoder_forward(params, trg_tokens, enc_src, trg_mask, src_mask, *,
                    n_heads, output_dim, causal_trg_mask=True):
    B, Lt = trg_tokens.shape
    H = params["tok_emb"].shape[1]
    Ls = enc_src.shape[1]
    head_dim = H // n_heads
    n_layers = len(params["layers"])
    embed_scale = math.sqrt(float(H))

    # Data-dependent gather: kept in plain JAX (glue).
    tok = jnp.take(params["tok_emb"], trg_tokens, axis=0).reshape(B * Lt, H)
    tok = tok.astype(jnp.float32)
    pos = params["pos_emb"][:Lt].astype(jnp.float32)              # [Lt, H] (same per batch)
    enc2d = enc_src.reshape(B * Ls, H).astype(jnp.float32)

    # Compact masks: causal trg mask is generated in-kernel (no HBM slab);
    # encoder mask is a per-batch key-validity vector.
    if causal_trg_mask:
        trg_mask2d = None
    else:
        trg_mask2d = trg_mask.reshape(B, Lt, Lt).reshape(B * Lt, Lt).astype(jnp.float32)
    src_keyvalid = src_mask.reshape(B, Ls).astype(jnp.float32)    # [B, Ls]

    attention = None
    if n_layers == 0:
        x = tok * embed_scale + jnp.tile(pos, (B, 1))
    else:
        x = tok    # embedding scale + pos fused into layer 0's first kernel
        for li, lp in enumerate(params["layers"]):
            is_first = li == 0
            is_last = li == n_layers - 1
            # self attention + add & norm (embed-combine prologue on layer 0)
            x, _ = mha_block(x, None, trg_mask2d, lp["self_attn"],
                             lp["ln1_g"], lp["ln1_b"],
                             B=B, Lq=Lt, Lk=Lt, n_heads=n_heads, head_dim=head_dim,
                             self_attn=True, causal=causal_trg_mask, return_attn=False,
                             pos2d=pos if is_first else None,
                             embed_scale=embed_scale if is_first else None)
            # encoder attention + add & norm (weights emitted only for the last layer)
            x, attn = mha_block(x, enc2d, src_keyvalid, lp["enc_attn"],
                                lp["ln2_g"], lp["ln2_b"],
                                B=B, Lq=Lt, Lk=Ls, n_heads=n_heads, head_dim=head_dim,
                                self_attn=False, causal=False, return_attn=is_last)
            if is_last:
                attention = attn
            # position-wise feed-forward + add & norm
            x = ffn_block(x, lp)

    out_pad = fc_out(x, params["fc_w"], params["fc_b"])
    output = out_pad.reshape(B, Lt, -1)[:, :, :output_dim]
    return output, attention


# ----------------------------------------------------------------------------
# Deterministic parameter init (fc weights pre-padded to 128-lane vocab)
# ----------------------------------------------------------------------------

def _dense(key, k_in, k_out):
    kw, kb = jax.random.split(key)
    w = jax.random.normal(kw, (k_in, k_out), jnp.float32) * 0.02
    b = jax.random.normal(kb, (k_out,), jnp.float32) * 0.02
    return w, b


def init_params(key, output_dim, hid_dim, n_layers, n_heads, pf_dim, max_length=500):
    keys = jax.random.split(key, 4 + n_layers)
    params = {
        "tok_emb": jax.random.normal(keys[0], (output_dim, hid_dim), jnp.float32) * 0.02,
        "pos_emb": jax.random.normal(keys[1], (max_length, hid_dim), jnp.float32) * 0.02,
    }
    fc_w, fc_b = _dense(keys[2], hid_dim, output_dim)
    n_pad = ((output_dim + 127) // 128) * 128
    params["fc_w"] = jnp.pad(fc_w, ((0, 0), (0, n_pad - output_dim)))   # padded once, outside jit
    params["fc_b"] = jnp.pad(fc_b, (0, n_pad - output_dim))

    def mha_params(ks):
        wq, bq = _dense(ks[0], hid_dim, hid_dim)
        wk, bk = _dense(ks[1], hid_dim, hid_dim)
        wv, bv = _dense(ks[2], hid_dim, hid_dim)
        wo, bo = _dense(ks[3], hid_dim, hid_dim)
        return {"wq": wq, "bq": bq,
                "wkv": jnp.concatenate([wk, wv], axis=1),      # fused K/V projection
                "bkv": jnp.concatenate([bk, bv], axis=0),
                "wo": wo, "bo": bo}

    layers = []
    for li in range(n_layers):
        lk = jax.random.split(keys[4 + li], 12)
        ff_w1, ff_b1 = _dense(lk[8], hid_dim, pf_dim)
        ff_w2, ff_b2 = _dense(lk[9], pf_dim, hid_dim)
        layers.append({
            "self_attn": mha_params(lk[0:4]),
            "enc_attn": mha_params(lk[4:8]),
            "ff_w1": ff_w1, "ff_b1": ff_b1,
            "ff_w2": ff_w2, "ff_b2": ff_b2,
            "ln1_g": jnp.ones((hid_dim,), jnp.float32), "ln1_b": jnp.zeros((hid_dim,), jnp.float32),
            "ln2_g": jnp.ones((hid_dim,), jnp.float32), "ln2_b": jnp.zeros((hid_dim,), jnp.float32),
            "ln3_g": jnp.ones((hid_dim,), jnp.float32), "ln3_b": jnp.zeros((hid_dim,), jnp.float32),
        })
    params["layers"] = layers
    return params


# ----------------------------------------------------------------------------
# Main
# ----------------------------------------------------------------------------

if __name__ == "__main__":
    OUTPUT_DIM = 50
    HID_DIM = 32
    N_LAYERS = 2
    N_HEADS = 4
    PF_DIM = 64
    B, TRG_LEN, SRC_LEN = 2, 8, 8

    root = jax.random.PRNGKey(0)
    kp, kt, ke = jax.random.split(root, 3)

    params = init_params(kp, OUTPUT_DIM, HID_DIM, N_LAYERS, N_HEADS, PF_DIM)

    trg_tokens = jax.random.randint(kt, (B, TRG_LEN), 0, OUTPUT_DIM, dtype=jnp.int32)
    enc_src = jax.random.normal(ke, (B, SRC_LEN, HID_DIM), jnp.float32)

    # trg_mask: causal [B, 1, Lt, Lt] (regenerated in-kernel); src_mask: all-keep [B, 1, 1, Ls]
    causal = jnp.tril(jnp.ones((TRG_LEN, TRG_LEN), jnp.float32))
    trg_mask = jnp.broadcast_to(causal[None, None], (B, 1, TRG_LEN, TRG_LEN))
    src_mask = jnp.ones((B, 1, 1, SRC_LEN), jnp.float32)

    fwd = jax.jit(functools.partial(decoder_forward, n_heads=N_HEADS,
                                    output_dim=OUTPUT_DIM, causal_trg_mask=True))
    output, attention = fwd(params, trg_tokens, enc_src, trg_mask, src_mask)
    jax.block_until_ready((output, attention))

    assert output.shape == (B, TRG_LEN, OUTPUT_DIM)
    assert attention.shape == (B, N_HEADS, TRG_LEN, SRC_LEN)
    assert bool(jnp.all(jnp.isfinite(output)))
    assert bool(jnp.all(jnp.isfinite(attention)))
    print("KERNEL_OK")
</pallas_src>

<mosaic_0001>
module attributes {stable_mosaic.version = 11 : i64} {
  func.func @_mha_block_kernel(%arg0: i32, %arg1: i32, %arg2: memref<8x32xf32, #tpu.memory_space<vmem>>, %arg3: memref<8x32xf32, #tpu.memory_space<vmem>>, %arg4: memref<32x32xf32, #tpu.memory_space<vmem>>, %arg5: memref<1x32xf32, #tpu.memory_space<vmem>>, %arg6: memref<32x64xf32, #tpu.memory_space<vmem>>, %arg7: memref<1x64xf32, #tpu.memory_space<vmem>>, %arg8: memref<32x32xf32, #tpu.memory_space<vmem>>, %arg9: memref<1x32xf32, #tpu.memory_space<vmem>>, %arg10: memref<1x32xf32, #tpu.memory_space<vmem>>, %arg11: memref<1x32xf32, #tpu.memory_space<vmem>>, %arg12: memref<8x32xf32, #tpu.memory_space<vmem>>) attributes {dimension_semantics = [#tpu.dimension_semantics<parallel>, #tpu.dimension_semantics<parallel>], iteration_bounds = array<i64: 2, 1>, scalar_prefetch = 0 : i64, scratch_operands = 0 : i64, tpu.core_type = #tpu.core_type<tc>, window_params = [{transform_indices = @transform_0, window_bounds = array<i64: 8, 32>}, {pipeline_mode = #tpu.pipeline_mode<synchronous>, transform_indices = @transform_1, window_bounds = array<i64: 8, 32>}, {pipeline_mode = #tpu.pipeline_mode<synchronous>, transform_indices = @transform_2, window_bounds = array<i64: 32, 32>}, {pipeline_mode = #tpu.pipeline_mode<synchronous>, transform_indices = @transform_3, window_bounds = array<i64: 1, 32>}, {pipeline_mode = #tpu.pipeline_mode<synchronous>, transform_indices = @transform_4, window_bounds = array<i64: 32, 64>}, {pipeline_mode = #tpu.pipeline_mode<synchronous>, transform_indices = @transform_5, window_bounds = array<i64: 1, 64>}, {pipeline_mode = #tpu.pipeline_mode<synchronous>, transform_indices = @transform_6, window_bounds = array<i64: 32, 32>}, {pipeline_mode = #tpu.pipeline_mode<synchronous>, transform_indices = @transform_7, window_bounds = array<i64: 1, 32>}, {pipeline_mode = #tpu.pipeline_mode<synchronous>, transform_indices = @transform_8, window_bounds = array<i64: 1, 32>}, {pipeline_mode = #tpu.pipeline_mode<synchronous>, transform_indices = @transform_9, window_bounds = array<i64: 1, 32>}, {transform_indices = @transform_10, window_bounds = array<i64: 8, 32>}]} {
    %c8_i32 = arith.constant 8 : i32
    %0 = arith.muli %arg1, %c8_i32 : i32
    %c0 = arith.constant 0 : index
    %c0_0 = arith.constant 0 : index
    %1 = vector.load %arg2[%c0, %c0_0] : memref<8x32xf32, #tpu.memory_space<vmem>>, vector<8x32xf32>
    %cst = arith.constant 5.65685415 : f32
    %2 = vector.broadcast %cst : f32 to vector<8x32xf32>
    %3 = arith.mulf %1, %2 : vector<8x32xf32>
    %c0_1 = arith.constant 0 : index
    %c0_2 = arith.constant 0 : index
    %4 = vector.load %arg3[%c0_1, %c0_2] : memref<8x32xf32, #tpu.memory_space<vmem>>, vector<8x32xf32>
    %5 = arith.addf %3, %4 : vector<8x32xf32>
    %6 = arith.truncf %5 : vector<8x32xf32> to vector<8x32xbf16>
    %c0_3 = arith.constant 0 : index
    %c0_4 = arith.constant 0 : index
    %7 = vector.load %arg4[%c0_3, %c0_4] : memref<32x32xf32, #tpu.memory_space<vmem>>, vector<32x32xf32>
    %8 = arith.truncf %7 : vector<32x32xf32> to vector<32x32xbf16>
    %cst_5 = arith.constant dense<0.000000e+00> : vector<8x32xf32>
    %9 = tpu.matmul %6, %8, %cst_5 {dimension_numbers = #tpu.dot_dimension_numbers<[1], [0], [0], [1], [0, 0, 1, 1], [], []>} : vector<8x32xbf16>, vector<32x32xbf16>, vector<8x32xf32> -> vector<8x32xf32>
    %c0_6 = arith.constant 0 : index
    %c0_7 = arith.constant 0 : index
    %10 = vector.load %arg5[%c0_6, %c0_7] : memref<1x32xf32, #tpu.memory_space<vmem>>, vector<1x32xf32>
    %11 = vector.broadcast %10 : vector<1x32xf32> to vector<8x32xf32>
    %12 = arith.addf %9, %11 : vector<8x32xf32>
    %cst_8 = arith.constant 0.353553385 : f32
    %13 = vector.broadcast %cst_8 : f32 to vector<8x32xf32>
    %14 = arith.mulf %12, %13 : vector<8x32xf32>
    %15 = arith.truncf %5 : vector<8x32xf32> to vector<8x32xbf16>
    %c0_9 = arith.constant 0 : index
    %c0_10 = arith.constant 0 : index
    %16 = vector.load %arg6[%c0_9, %c0_10] : memref<32x64xf32, #tpu.memory_space<vmem>>, vector<32x64xf32>
    %17 = arith.truncf %16 : vector<32x64xf32> to vector<32x64xbf16>
    %cst_11 = arith.constant dense<0.000000e+00> : vector<8x64xf32>
    %18 = tpu.matmul %15, %17, %cst_11 {dimension_numbers = #tpu.dot_dimension_numbers<[1], [0], [0], [1], [0, 0, 1, 1], [], []>} : vector<8x32xbf16>, vector<32x64xbf16>, vector<8x64xf32> -> vector<8x64xf32>
    %c0_12 = arith.constant 0 : index
    %c0_13 = arith.constant 0 : index
    %19 = vector.load %arg7[%c0_12, %c0_13] : memref<1x64xf32, #tpu.memory_space<vmem>>, vector<1x64xf32>
    %20 = vector.broadcast %19 : vector<1x64xf32> to vector<8x64xf32>
    %21 = arith.addf %18, %20 : vector<8x64xf32>
    %22 = arith.truncf %14 : vector<8x32xf32> to vector<8x32xbf16>
    %23 = vector.extract_strided_slice %21 {offsets = [0, 0], sizes = [8, 32], strides = [1, 1]} : vector<8x64xf32> to vector<8x32xf32>
    %24 = arith.truncf %23 : vector<8x32xf32> to vector<8x32xbf16>
    %25 = vector.extract_strided_slice %21 {offsets = [0, 32], sizes = [8, 32], strides = [1, 1]} : vector<8x64xf32> to vector<8x32xf32>
    %26 = arith.truncf %25 : vector<8x32xf32> to vector<8x32xbf16>
    %27 = tpu.iota {dimensions = array<i32: 0>} : vector<8x8xi32>
    %28 = vector.broadcast %0 : i32 to vector<8x8xi32>
    %29 = arith.addi %27, %28 : vector<8x8xi32>
    %30 = tpu.iota {dimensions = array<i32: 1>} : vector<8x8xi32>
    %31 = arith.cmpi sge, %29, %30 : vector<8x8xi32>
    %32 = vector.extract_strided_slice %22 {offsets = [0, 0], sizes = [8, 8], strides = [1, 1]} : vector<8x32xbf16> to vector<8x8xbf16>
    %33 = vector.extract_strided_slice %24 {offsets = [0, 0], sizes = [8, 8], strides = [1, 1]} : vector<8x32xbf16> to vector<8x8xbf16>
    "tpu.trace_start"() <{level = 10 : i32, message = "qd,kd->qk"}> : () -> ()
    %cst_14 = arith.constant dense<0.000000e+00> : vector<8x8xf32>
    %34 = tpu.matmul %32, %33, %cst_14 {dimension_numbers = #tpu.dot_dimension_numbers<[1], [1], [0], [0], [0, 0, 1, 0], [], []>} : vector<8x8xbf16>, vector<8x8xbf16>, vector<8x8xf32> -> vector<8x8xf32>
    %cst_15 = arith.constant -1.000000e+10 : f32
    "tpu.trace_stop"() : () -> ()
    %35 = vector.broadcast %cst_15 : f32 to vector<8x8xf32>
    %36 = arith.select %31, %34, %35 : vector<8x8xi1>, vector<8x8xf32>
    %cst_16 = arith.constant dense<0xFF800000> : vector<8xf32>
    %37 = vector.multi_reduction <maximumf>, %36, %cst_16 [1] : vector<8x8xf32> to vector<8xf32>
    %38 = vector.shape_cast %37 : vector<8xf32> to vector<8x1xf32>
    %39 = vector.broadcast %38 : vector<8x1xf32> to vector<8x8xf32>
    %40 = arith.subf %36, %39 : vector<8x8xf32>
    %41 = math.exp %40 : vector<8x8xf32>
    %cst_17 = arith.constant dense<0.000000e+00> : vector<8xf32>
    %42 = vector.multi_reduction <add>, %41, %cst_17 [1] : vector<8x8xf32> to vector<8xf32>
    %43 = vector.shape_cast %42 : vector<8xf32> to vector<8x1xf32>
    %44 = tpu.reciprocal %43 {approx = true} : vector<8x1xf32> -> vector<8x1xf32>
    %45 = vector.broadcast %44 : vector<8x1xf32> to vector<8x8xf32>
    %46 = arith.mulf %41, %45 : vector<8x8xf32>
    %47 = arith.truncf %46 : vector<8x8xf32> to vector<8x8xbf16>
    %48 = vector.extract_strided_slice %26 {offsets = [0, 0], sizes = [8, 8], strides = [1, 1]} : vector<8x32xbf16> to vector<8x8xbf16>
    %cst_18 = arith.constant dense<0.000000e+00> : vector<8x8xf32>
    %49 = tpu.matmul %47, %48, %cst_18 {dimension_numbers = #tpu.dot_dimension_numbers<[1], [0], [0], [1], [0, 0, 1, 1], [], []>} : vector<8x8xbf16>, vector<8x8xbf16>, vector<8x8xf32> -> vector<8x8xf32>
    %50 = vector.extract_strided_slice %22 {offsets = [0, 8], sizes = [8, 8], strides = [1, 1]} : vector<8x32xbf16> to vector<8x8xbf16>
    %51 = vector.extract_strided_slice %24 {offsets = [0, 8], sizes = [8, 8], strides = [1, 1]} : vector<8x32xbf16> to vector<8x8xbf16>
    "tpu.trace_start"() <{level = 10 : i32, message = "qd,kd->qk"}> : () -> ()
    %cst_19 = arith.constant dense<0.000000e+00> : vector<8x8xf32>
    %52 = tpu.matmul %50, %51, %cst_19 {dimension_numbers = #tpu.dot_dimension_numbers<[1], [1], [0], [0], [0, 0, 1, 0], [], []>} : vector<8x8xbf16>, vector<8x8xbf16>, vector<8x8xf32> -> vector<8x8xf32>
    %cst_20 = arith.constant -1.000000e+10 : f32
    "tpu.trace_stop"() : () -> ()
    %53 = vector.broadcast %cst_20 : f32 to vector<8x8xf32>
    %54 = arith.select %31, %52, %53 : vector<8x8xi1>, vector<8x8xf32>
    %cst_21 = arith.constant dense<0xFF800000> : vector<8xf32>
    %55 = vector.multi_reduction <maximumf>, %54, %cst_21 [1] : vector<8x8xf32> to vector<8xf32>
    %56 = vector.shape_cast %55 : vector<8xf32> to vector<8x1xf32>
    %57 = vector.broadcast %56 : vector<8x1xf32> to vector<8x8xf32>
    %58 = arith.subf %54, %57 : vector<8x8xf32>
    %59 = math.exp %58 : vector<8x8xf32>
    %cst_22 = arith.constant dense<0.000000e+00> : vector<8xf32>
    %60 = vector.multi_reduction <add>, %59, %cst_22 [1] : vector<8x8xf32> to vector<8xf32>
    %61 = vector.shape_cast %60 : vector<8xf32> to vector<8x1xf32>
    %62 = tpu.reciprocal %61 {approx = true} : vector<8x1xf32> -> vector<8x1xf32>
    %63 = vector.broadcast %62 : vector<8x1xf32> to vector<8x8xf32>
    %64 = arith.mulf %59, %63 : vector<8x8xf32>
    %65 = arith.truncf %64 : vector<8x8xf32> to vector<8x8xbf16>
    %66 = vector.extract_strided_slice %26 {offsets = [0, 8], sizes = [8, 8], strides = [1, 1]} : vector<8x32xbf16> to vector<8x8xbf16>
    %cst_23 = arith.constant dense<0.000000e+00> : vector<8x8xf32>
    %67 = tpu.matmul %65, %66, %cst_23 {dimension_numbers = #tpu.dot_dimension_numbers<[1], [0], [0], [1], [0, 0, 1, 1], [], []>} : vector<8x8xbf16>, vector<8x8xbf16>, vector<8x8xf32> -> vector<8x8xf32>
    %68 = vector.extract_strided_slice %22 {offsets = [0, 16], sizes = [8, 8], strides = [1, 1]} : vector<8x32xbf16> to vector<8x8xbf16>
    %69 = vector.extract_strided_slice %24 {offsets = [0, 16], sizes = [8, 8], strides = [1, 1]} : vector<8x32xbf16> to vector<8x8xbf16>
    "tpu.trace_start"() <{level = 10 : i32, message = "qd,kd->qk"}> : () -> ()
    %cst_24 = arith.constant dense<0.000000e+00> : vector<8x8xf32>
    %70 = tpu.matmul %68, %69, %cst_24 {dimension_numbers = #tpu.dot_dimension_numbers<[1], [1], [0], [0], [0, 0, 1, 0], [], []>} : vector<8x8xbf16>, vector<8x8xbf16>, vector<8x8xf32> -> vector<8x8xf32>
    %cst_25 = arith.constant -1.000000e+10 : f32
    "tpu.trace_stop"() : () -> ()
    %71 = vector.broadcast %cst_25 : f32 to vector<8x8xf32>
    %72 = arith.select %31, %70, %71 : vector<8x8xi1>, vector<8x8xf32>
    %cst_26 = arith.constant dense<0xFF800000> : vector<8xf32>
    %73 = vector.multi_reduction <maximumf>, %72, %cst_26 [1] : vector<8x8xf32> to vector<8xf32>
    %74 = vector.shape_cast %73 : vector<8xf32> to vector<8x1xf32>
    %75 = vector.broadcast %74 : vector<8x1xf32> to vector<8x8xf32>
    %76 = arith.subf %72, %75 : vector<8x8xf32>
    %77 = math.exp %76 : vector<8x8xf32>
    %cst_27 = arith.constant dense<0.000000e+00> : vector<8xf32>
    %78 = vector.multi_reduction <add>, %77, %cst_27 [1] : vector<8x8xf32> to vector<8xf32>
    %79 = vector.shape_cast %78 : vector<8xf32> to vector<8x1xf32>
    %80 = tpu.reciprocal %79 {approx = true} : vector<8x1xf32> -> vector<8x1xf32>
    %81 = vector.broadcast %80 : vector<8x1xf32> to vector<8x8xf32>
    %82 = arith.mulf %77, %81 : vector<8x8xf32>
    %83 = arith.truncf %82 : vector<8x8xf32> to vector<8x8xbf16>
    %84 = vector.extract_strided_slice %26 {offsets = [0, 16], sizes = [8, 8], strides = [1, 1]} : vector<8x32xbf16> to vector<8x8xbf16>
    %cst_28 = arith.constant dense<0.000000e+00> : vector<8x8xf32>
    %85 = tpu.matmul %83, %84, %cst_28 {dimension_numbers = #tpu.dot_dimension_numbers<[1], [0], [0], [1], [0, 0, 1, 1], [], []>} : vector<8x8xbf16>, vector<8x8xbf16>, vector<8x8xf32> -> vector<8x8xf32>
    %86 = vector.extract_strided_slice %22 {offsets = [0, 24], sizes = [8, 8], strides = [1, 1]} : vector<8x32xbf16> to vector<8x8xbf16>
    %87 = vector.extract_strided_slice %24 {offsets = [0, 24], sizes = [8, 8], strides = [1, 1]} : vector<8x32xbf16> to vector<8x8xbf16>
    "tpu.trace_start"() <{level = 10 : i32, message = "qd,kd->qk"}> : () -> ()
    %cst_29 = arith.constant dense<0.000000e+00> : vector<8x8xf32>
    %88 = tpu.matmul %86, %87, %cst_29 {dimension_numbers = #tpu.dot_dimension_numbers<[1], [1], [0], [0], [0, 0, 1, 0], [], []>} : vector<8x8xbf16>, vector<8x8xbf16>, vector<8x8xf32> -> vector<8x8xf32>
    %cst_30 = arith.constant -1.000000e+10 : f32
    "tpu.trace_stop"() : () -> ()
    %89 = vector.broadcast %cst_30 : f32 to vector<8x8xf32>
    %90 = arith.select %31, %88, %89 : vector<8x8xi1>, vector<8x8xf32>
    %cst_31 = arith.constant dense<0xFF800000> : vector<8xf32>
    %91 = vector.multi_reduction <maximumf>, %90, %cst_31 [1] : vector<8x8xf32> to vector<8xf32>
    %92 = vector.shape_cast %91 : vector<8xf32> to vector<8x1xf32>
    %93 = vector.broadcast %92 : vector<8x1xf32> to vector<8x8xf32>
    %94 = arith.subf %90, %93 : vector<8x8xf32>
    %95 = math.exp %94 : vector<8x8xf32>
    %cst_32 = arith.constant dense<0.000000e+00> : vector<8xf32>
    %96 = vector.multi_reduction <add>, %95, %cst_32 [1] : vector<8x8xf32> to vector<8xf32>
    %97 = vector.shape_cast %96 : vector<8xf32> to vector<8x1xf32>
    %98 = tpu.reciprocal %97 {approx = true} : vector<8x1xf32> -> vector<8x1xf32>
    %99 = vector.broadcast %98 : vector<8x1xf32> to vector<8x8xf32>
    %100 = arith.mulf %95, %99 : vector<8x8xf32>
    %101 = arith.truncf %100 : vector<8x8xf32> to vector<8x8xbf16>
    %102 = vector.extract_strided_slice %26 {offsets = [0, 24], sizes = [8, 8], strides = [1, 1]} : vector<8x32xbf16> to vector<8x8xbf16>
    %cst_33 = arith.constant dense<0.000000e+00> : vector<8x8xf32>
    %103 = tpu.matmul %101, %102, %cst_33 {dimension_numbers = #tpu.dot_dimension_numbers<[1], [0], [0], [1], [0, 0, 1, 1], [], []>} : vector<8x8xbf16>, vector<8x8xbf16>, vector<8x8xf32> -> vector<8x8xf32>
    %104 = tpu.concatenate %49, %67, %85, %103 in 1 : vector<8x8xf32>, vector<8x8xf32>, vector<8x8xf32>, vector<8x8xf32> -> vector<8x32xf32>
    %105 = arith.truncf %104 : vector<8x32xf32> to vector<8x32xbf16>
    %c0_34 = arith.constant 0 : index
    %c0_35 = arith.constant 0 : index
    %106 = vector.load %arg8[%c0_34, %c0_35] : memref<32x32xf32, #tpu.memory_space<vmem>>, vector<32x32xf32>
    %107 = arith.truncf %106 : vector<32x32xf32> to vector<32x32xbf16>
    %cst_36 = arith.constant dense<0.000000e+00> : vector<8x32xf32>
    %108 = tpu.matmul %105, %107, %cst_36 {dimension_numbers = #tpu.dot_dimension_numbers<[1], [0], [0], [1], [0, 0, 1, 1], [], []>} : vector<8x32xbf16>, vector<32x32xbf16>, vector<8x32xf32> -> vector<8x32xf32>
    %109 = arith.addf %5, %108 : vector<8x32xf32>
    %c0_37 = arith.constant 0 : index
    %c0_38 = arith.constant 0 : index
    %110 = vector.load %arg9[%c0_37, %c0_38] : memref<1x32xf32, #tpu.memory_space<vmem>>, vector<1x32xf32>
    %111 = vector.broadcast %110 : vector<1x32xf32> to vector<8x32xf32>
    %112 = arith.addf %109, %111 : vector<8x32xf32>
    %cst_39 = arith.constant dense<0.000000e+00> : vector<8xf32>
    %113 = vector.multi_reduction <add>, %112, %cst_39 [1] : vector<8x32xf32> to vector<8xf32>
    %114 = vector.shape_cast %113 : vector<8xf32> to vector<8x1xf32>
    %cst_40 = arith.constant 3.200000e+01 : f32
    %115 = vector.broadcast %cst_40 : f32 to vector<8x1xf32>
    %116 = arith.divf %114, %115 : vector<8x1xf32>
    %117 = vector.broadcast %116 : vector<8x1xf32> to vector<8x32xf32>
    %118 = arith.subf %112, %117 : vector<8x32xf32>
    %119 = arith.mulf %118, %118 : vector<8x32xf32>
    %cst_41 = arith.constant dense<0.000000e+00> : vector<8xf32>
    %120 = vector.multi_reduction <add>, %119, %cst_41 [1] : vector<8x32xf32> to vector<8xf32>
    %121 = vector.shape_cast %120 : vector<8xf32> to vector<8x1xf32>
    %cst_42 = arith.constant 3.200000e+01 : f32
    %122 = vector.broadcast %cst_42 : f32 to vector<8x1xf32>
    %123 = arith.divf %121, %122 : vector<8x1xf32>
    %124 = vector.broadcast %116 : vector<8x1xf32> to vector<8x32xf32>
    %125 = arith.subf %112, %124 : vector<8x32xf32>
    %cst_43 = arith.constant 9.99999974E-6 : f32
    %126 = vector.broadcast %cst_43 : f32 to vector<8x1xf32>
    %127 = arith.addf %123, %126 : vector<8x1xf32>
    %128 = math.rsqrt %127 : vector<8x1xf32>
    %129 = vector.broadcast %128 : vector<8x1xf32> to vector<8x32xf32>
    %130 = arith.mulf %125, %129 : vector<8x32xf32>
    %c0_44 = arith.constant 0 : index
    %c0_45 = arith.constant 0 : index
    %131 = vector.load %arg10[%c0_44, %c0_45] : memref<1x32xf32, #tpu.memory_space<vmem>>, vector<1x32xf32>
    %132 = vector.broadcast %131 : vector<1x32xf32> to vector<8x32xf32>
    %133 = arith.mulf %130, %132 : vector<8x32xf32>
    %c0_46 = arith.constant 0 : index
    %c0_47 = arith.constant 0 : index
    %134 = vector.load %arg11[%c0_46, %c0_47] : memref<1x32xf32, #tpu.memory_space<vmem>>, vector<1x32xf32>
    %135 = vector.broadcast %134 : vector<1x32xf32> to vector<8x32xf32>
    %136 = arith.addf %133, %135 : vector<8x32xf32>
    %c0_48 = arith.constant 0 : index
    %c0_49 = arith.constant 0 : index
    %137 = vector.load %arg12[%c0_48, %c0_49] : memref<8x32xf32, #tpu.memory_space<vmem>>, vector<8x32xf32>
    tpu.vector_store %arg12[%c0_48, %c0_49], %136 {strides = array<i32>} : memref<8x32xf32, #tpu.memory_space<vmem>>, vector<8x32xf32>,
    return
  }
  func.func @transform_0(%arg0: i32, %arg1: i32) -> (i32, i32) {
    %c0_i32 = arith.constant 0 : i32
    %c0_i32_0 = arith.constant 0 : i32
    return %arg0, %c0_i32 : i32, i32
  }
  func.func @transform_1(%arg0: i32, %arg1: i32) -> (i32, i32) {
    %c0_i32 = arith.constant 0 : i32
    %c0_i32_0 = arith.constant 0 : i32
    %c0_i32_1 = arith.constant 0 : i32
    return %c0_i32, %c0_i32_0 : i32, i32
  }
  func.func @transform_2(%arg0: i32, %arg1: i32) -> (i32, i32) {
    %c0_i32 = arith.constant 0 : i32
    %c0_i32_0 = arith.constant 0 : i32
    %c0_i32_1 = arith.constant 0 : i32
    return %c0_i32, %c0_i32_0 : i32, i32
  }
  func.func @transform_3(%arg0: i32, %arg1: i32) -> (i32, i32) {
    %c0_i32 = arith.constant 0 : i32
    %c0_i32_0 = arith.constant 0 : i32
    %c0_i32_1 = arith.constant 0 : i32
    return %c0_i32, %c0_i32_0 : i32, i32
  }
  func.func @transform_4(%arg0: i32, %arg1: i32) -> (i32, i32) {
    %c0_i32 = arith.constant 0 : i32
    %c0_i32_0 = arith.constant 0 : i32
    %c0_i32_1 = arith.constant 0 : i32
    return %c0_i32, %c0_i32_0 : i32, i32
  }
  func.func @transform_5(%arg0: i32, %arg1: i32) -> (i32, i32) {
    %c0_i32 = arith.constant 0 : i32
    %c0_i32_0 = arith.constant 0 : i32
    %c0_i32_1 = arith.constant 0 : i32
    return %c0_i32, %c0_i32_0 : i32, i32
  }
  func.func @transform_6(%arg0: i32, %arg1: i32) -> (i32, i32) {
    %c0_i32 = arith.constant 0 : i32
    %c0_i32_0 = arith.constant 0 : i32
    %c0_i32_1 = arith.constant 0 : i32
    return %c0_i32, %c0_i32_0 : i32, i32
  }
  func.func @transform_7(%arg0: i32, %arg1: i32) -> (i32, i32) {
    %c0_i32 = arith.constant 0 : i32
    %c0_i32_0 = arith.constant 0 : i32
    %c0_i32_1 = arith.constant 0 : i32
    return %c0_i32, %c0_i32_0 : i32, i32
  }
  func.func @transform_8(%arg0: i32, %arg1: i32) -> (i32, i32) {
    %c0_i32 = arith.constant 0 : i32
    %c0_i32_0 = arith.constant 0 : i32
    %c0_i32_1 = arith.constant 0 : i32
    return %c0_i32, %c0_i32_0 : i32, i32
  }
  func.func @transform_9(%arg0: i32, %arg1: i32) -> (i32, i32) {
    %c0_i32 = arith.constant 0 : i32
    %c0_i32_0 = arith.constant 0 : i32
    %c0_i32_1 = arith.constant 0 : i32
    return %c0_i32, %c0_i32_0 : i32, i32
  }
  func.func @transform_10(%arg0: i32, %arg1: i32) -> (i32, i32) {
    %c1_i32 = arith.constant 1 : i32
    %0 = arith.muli %arg0, %c1_i32 : i32
    %1 = arith.addi %0, %arg1 : i32
    %c0_i32 = arith.constant 0 : i32
    %c0_i32_0 = arith.constant 0 : i32
    return %1, %c0_i32 : i32, i32
  }
}

module attributes {stable_mosaic.version = 11 : i64} {
  func.func @_ffn_block_kernel(%arg0: i32, %arg1: i32, %arg2: memref<16x32xf32, #tpu.memory_space<vmem>>, %arg3: memref<32x64xf32, #tpu.memory_space<vmem>>, %arg4: memref<1x64xf32, #tpu.memory_space<vmem>>, %arg5: memref<64x32xf32, #tpu.memory_space<vmem>>, %arg6: memref<1x32xf32, #tpu.memory_space<vmem>>, %arg7: memref<1x32xf32, #tpu.memory_space<vmem>>, %arg8: memref<1x32xf32, #tpu.memory_space<vmem>>, %arg9: memref<16x32xf32, #tpu.memory_space<vmem>>, %arg10: memref<16x32xf32, #tpu.memory_space<vmem>>) attributes {dimension_semantics = [#tpu.dimension_semantics<parallel>, #tpu.dimension_semantics<arbitrary>], iteration_bounds = array<i64: 1, 1>, scalar_prefetch = 0 : i64, scratch_operands = 1 : i64, tpu.core_type = #tpu.core_type<tc>, window_params = [{transform_indices = @transform_0, window_bounds = array<i64: 16, 32>}, {transform_indices = @transform_1, window_bounds = array<i64: 32, 64>}, {transform_indices = @transform_2, window_bounds = array<i64: 1, 64>}, {transform_indices = @transform_3, window_bounds = array<i64: 64, 32>}, {pipeline_mode = #tpu.pipeline_mode<synchronous>, transform_indices = @transform_4, window_bounds = array<i64: 1, 32>}, {pipeline_mode = #tpu.pipeline_mode<synchronous>, transform_indices = @transform_5, window_bounds = array<i64: 1, 32>}, {pipeline_mode = #tpu.pipeline_mode<synchronous>, transform_indices = @transform_6, window_bounds = array<i64: 1, 32>}, {transform_indices = @transform_7, window_bounds = array<i64: 16, 32>}]} {
    %c0_i32 = arith.constant 0 : i32
    %0 = arith.cmpi eq, %arg1, %c0_i32 : i32
    %1 = arith.extui %0 : i1 to i32
    %c0_i32_0 = arith.constant 0 : i32
    %2 = arith.cmpi ne, %1, %c0_i32_0 : i32
    scf.if %2 {
      %cst_16 = arith.constant 0.000000e+00 : f32
      %23 = vector.broadcast %cst_16 : f32 to vector<16x32xf32>
      %c0_17 = arith.constant 0 : index
      %c0_18 = arith.constant 0 : index
      %24 = vector.load %arg10[%c0_17, %c0_18] : memref<16x32xf32, #tpu.memory_space<vmem>>, vector<16x32xf32>
      tpu.vector_store %arg10[%c0_17, %c0_18], %23 {strides = array<i32>} : memref<16x32xf32, #tpu.memory_space<vmem>>, vector<16x32xf32>,
    } else {
    }
    %c0 = arith.constant 0 : index
    %c0_1 = arith.constant 0 : index
    %3 = vector.load %arg2[%c0, %c0_1] : memref<16x32xf32, #tpu.memory_space<vmem>>, vector<16x32xf32>
    %4 = arith.truncf %3 : vector<16x32xf32> to vector<16x32xbf16>
    %c0_2 = arith.constant 0 : index
    %c0_3 = arith.constant 0 : index
    %5 = vector.load %arg3[%c0_2, %c0_3] : memref<32x64xf32, #tpu.memory_space<vmem>>, vector<32x64xf32>
    %6 = arith.truncf %5 : vector<32x64xf32> to vector<32x64xbf16>
    %cst = arith.constant dense<0.000000e+00> : vector<16x64xf32>
    %7 = tpu.matmul %4, %6, %cst {dimension_numbers = #tpu.dot_dimension_numbers<[1], [0], [0], [1], [0, 0, 1, 1], [], []>} : vector<16x32xbf16>, vector<32x64xbf16>, vector<16x64xf32> -> vector<16x64xf32>
    %c0_4 = arith.constant 0 : index
    %c0_5 = arith.constant 0 : index
    %8 = vector.load %arg4[%c0_4, %c0_5] : memref<1x64xf32, #tpu.memory_space<vmem>>, vector<1x64xf32>
    %9 = vector.broadcast %8 : vector<1x64xf32> to vector<16x64xf32>
    %10 = arith.addf %7, %9 : vector<16x64xf32>
    %cst_6 = arith.constant 0.000000e+00 : f32
    %11 = vector.broadcast %cst_6 : f32 to vector<16x64xf32>
    %12 = arith.maximumf %10, %11 : vector<16x64xf32>
    %c0_7 = arith.constant 0 : index
    %c0_8 = arith.constant 0 : index
    %13 = vector.load %arg10[%c0_7, %c0_8] : memref<16x32xf32, #tpu.memory_space<vmem>>, vector<16x32xf32>
    %14 = arith.truncf %12 : vector<16x64xf32> to vector<16x64xbf16>
    %c0_9 = arith.constant 0 : index
    %c0_10 = arith.constant 0 : index
    %15 = vector.load %arg5[%c0_9, %c0_10] : memref<64x32xf32, #tpu.memory_space<vmem>>, vector<64x32xf32>
    %16 = arith.truncf %15 : vector<64x32xf32> to vector<64x32xbf16>
    %cst_11 = arith.constant dense<0.000000e+00> : vector<16x32xf32>
    %17 = tpu.matmul %14, %16, %cst_11 {dimension_numbers = #tpu.dot_dimension_numbers<[1], [0], [0], [1], [0, 0, 1, 1], [], []>} : vector<16x64xbf16>, vector<64x32xbf16>, vector<16x32xf32> -> vector<16x32xf32>
    %18 = arith.addf %13, %17 : vector<16x32xf32>
    %c0_12 = arith.constant 0 : index
    %c0_13 = arith.constant 0 : index
    %19 = vector.load %arg10[%c0_12, %c0_13] : memref<16x32xf32, #tpu.memory_space<vmem>>, vector<16x32xf32>
    tpu.vector_store %arg10[%c0_12, %c0_13], %18 {strides = array<i32>} : memref<16x32xf32, #tpu.memory_space<vmem>>, vector<16x32xf32>,
    %c0_i32_14 = arith.constant 0 : i32
    %20 = arith.cmpi eq, %arg1, %c0_i32_14 : i32
    %21 = arith.extui %20 : i1 to i32
    %c0_i32_15 = arith.constant 0 : i32
    %22 = arith.cmpi ne, %21, %c0_i32_15 : i32
    scf.if %22 {
      %c0_16 = arith.constant 0 : index
      %c0_17 = arith.constant 0 : index
      %23 = vector.load %arg10[%c0_16, %c0_17] : memref<16x32xf32, #tpu.memory_space<vmem>>, vector<16x32xf32>
      %24 = arith.addf %3, %23 : vector<16x32xf32>
      %c0_18 = arith.constant 0 : index
      %c0_19 = arith.constant 0 : index
      %25 = vector.load %arg6[%c0_18, %c0_19] : memref<1x32xf32, #tpu.memory_space<vmem>>, vector<1x32xf32>
      %26 = vector.broadcast %25 : vector<1x32xf32> to vector<16x32xf32>
      %27 = arith.addf %24, %26 : vector<16x32xf32>
      %cst_20 = arith.constant dense<0.000000e+00> : vector<16xf32>
      %28 = vector.multi_reduction <add>, %27, %cst_20 [1] : vector<16x32xf32> to vector<16xf32>
      %29 = vector.shape_cast %28 : vector<16xf32> to vector<16x1xf32>
      %cst_21 = arith.constant 3.200000e+01 : f32
      %30 = vector.broadcast %cst_21 : f32 to vector<16x1xf32>
      %31 = arith.divf %29, %30 : vector<16x1xf32>
      %32 = vector.broadcast %31 : vector<16x1xf32> to vector<16x32xf32>
      %33 = arith.subf %27, %32 : vector<16x32xf32>
      %34 = arith.mulf %33, %33 : vector<16x32xf32>
      %cst_22 = arith.constant dense<0.000000e+00> : vector<16xf32>
      %35 = vector.multi_reduction <add>, %34, %cst_22 [1] : vector<16x32xf32> to vector<16xf32>
      %36 = vector.shape_cast %35 : vector<16xf32> to vector<16x1xf32>
      %cst_23 = arith.constant 3.200000e+01 : f32
      %37 = vector.broadcast %cst_23 : f32 to vector<16x1xf32>
      %38 = arith.divf %36, %37 : vector<16x1xf32>
      %39 = vector.broadcast %31 : vector<16x1xf32> to vector<16x32xf32>
      %40 = arith.subf %27, %39 : vector<16x32xf32>
      %cst_24 = arith.constant 9.99999974E-6 : f32
      %41 = vector.broadcast %cst_24 : f32 to vector<16x1xf32>
      %42 = arith.addf %38, %41 : vector<16x1xf32>
      %43 = math.rsqrt %42 : vector<16x1xf32>
      %44 = vector.broadcast %43 : vector<16x1xf32> to vector<16x32xf32>
      %45 = arith.mulf %40, %44 : vector<16x32xf32>
      %c0_25 = arith.constant 0 : index
      %c0_26 = arith.constant 0 : index
      %46 = vector.load %arg7[%c0_25, %c0_26] : memref<1x32xf32, #tpu.memory_space<vmem>>, vector<1x32xf32>
      %47 = vector.broadcast %46 : vector<1x32xf32> to vector<16x32xf32>
      %48 = arith.mulf %45, %47 : vector<16x32xf32>
      %c0_27 = arith.constant 0 : index
      %c0_28 = arith.constant 0 : index
      %49 = vector.load %arg8[%c0_27, %c0_28] : memref<1x32xf32, #tpu.memory_space<vmem>>, vector<1x32xf32>
      %50 = vector.broadcast %49 : vector<1x32xf32> to vector<16x32xf32>
      %51 = arith.addf %48, %50 : vector<16x32xf32>
      %c0_29 = arith.constant 0 : index
      %c0_30 = arith.constant 0 : index
      %52 = vector.load %arg9[%c0_29, %c0_30] : memref<16x32xf32, #tpu.memory_space<vmem>>, vector<16x32xf32>
      tpu.vector_store %arg9[%c0_29, %c0_30], %51 {strides = array<i32>} : memref<16x32xf32, #tpu.memory_space<vmem>>, vector<16x32xf32>,
    } else {
    }
    return
  }
  func.func @transform_0(%arg0: i32, %arg1: i32) -> (i32, i32) {
    %c0_i32 = arith.constant 0 : i32
    %c0_i32_0 = arith.constant 0 : i32
    return %arg0, %c0_i32 : i32, i32
  }
  func.func @transform_1(%arg0: i32, %arg1: i32) -> (i32, i32) {
    %c0_i32 = arith.constant 0 : i32
    %c0_i32_0 = arith.constant 0 : i32
    return %c0_i32, %arg1 : i32, i32
  }
  func.func @transform_2(%arg0: i32, %arg1: i32) -> (i32, i32) {
    %c0_i32 = arith.constant 0 : i32
    %c0_i32_0 = arith.constant 0 : i32
    return %c0_i32, %arg1 : i32, i32
  }
  func.func @transform_3(%arg0: i32, %arg1: i32) -> (i32, i32) {
    %c0_i32 = arith.constant 0 : i32
    %c0_i32_0 = arith.constant 0 : i32
    return %arg1, %c0_i32 : i32, i32
  }
  func.func @transform_4(%arg0: i32, %arg1: i32) -> (i32, i32) {
    %c0_i32 = arith.constant 0 : i32
    %c0_i32_0 = arith.constant 0 : i32
    %c0_i32_1 = arith.constant 0 : i32
    return %c0_i32, %c0_i32_0 : i32, i32
  }
  func.func @transform_5(%arg0: i32, %arg1: i32) -> (i32, i32) {
    %c0_i32 = arith.constant 0 : i32
    %c0_i32_0 = arith.constant 0 : i32
    %c0_i32_1 = arith.constant 0 : i32
    return %c0_i32, %c0_i32_0 : i32, i32
  }
  func.func @transform_6(%arg0: i32, %arg1: i32) -> (i32, i32) {
    %c0_i32 = arith.constant 0 : i32
    %c0_i32_0 = arith.constant 0 : i32
    %c0_i32_1 = arith.constant 0 : i32
    return %c0_i32, %c0_i32_0 : i32, i32
  }
  func.func @transform_7(%arg0: i32, %arg1: i32) -> (i32, i32) {
    %c0_i32 = arith.constant 0 : i32
    %c0_i32_0 = arith.constant 0 : i32
    return %arg0, %c0_i32 : i32, i32
  }
}

module attributes {stable_mosaic.version = 11 : i64} {
  func.func @_mha_block_kernel(%arg0: i32, %arg1: i32, %arg2: memref<8x32xf32, #tpu.memory_space<vmem>>, %arg3: memref<8x32xf32, #tpu.memory_space<vmem>>, %arg4: memref<1x1x8xf32, #tpu.memory_space<vmem>>, %arg5: memref<32x32xf32, #tpu.memory_space<vmem>>, %arg6: memref<1x32xf32, #tpu.memory_space<vmem>>, %arg7: memref<32x64xf32, #tpu.memory_space<vmem>>, %arg8: memref<1x64xf32, #tpu.memory_space<vmem>>, %arg9: memref<32x32xf32, #tpu.memory_space<vmem>>, %arg10: memref<1x32xf32, #tpu.memory_space<vmem>>, %arg11: memref<1x32xf32, #tpu.memory_space<vmem>>, %arg12: memref<1x32xf32, #tpu.memory_space<vmem>>, %arg13: memref<8x32xf32, #tpu.memory_space<vmem>>) attributes {dimension_semantics = [#tpu.dimension_semantics<parallel>, #tpu.dimension_semantics<parallel>], iteration_bounds = array<i64: 2, 1>, scalar_prefetch = 0 : i64, scratch_operands = 0 : i64, tpu.core_type = #tpu.core_type<tc>, window_params = [{transform_indices = @transform_0, window_bounds = array<i64: 8, 32>}, {transform_indices = @transform_1, window_bounds = array<i64: 8, 32>}, {transform_indices = @transform_2, window_bounds = array<i64: 1, 1, 8>}, {pipeline_mode = #tpu.pipeline_mode<synchronous>, transform_indices = @transform_3, window_bounds = array<i64: 32, 32>}, {pipeline_mode = #tpu.pipeline_mode<synchronous>, transform_indices = @transform_4, window_bounds = array<i64: 1, 32>}, {pipeline_mode = #tpu.pipeline_mode<synchronous>, transform_indices = @transform_5, window_bounds = array<i64: 32, 64>}, {pipeline_mode = #tpu.pipeline_mode<synchronous>, transform_indices = @transform_6, window_bounds = array<i64: 1, 64>}, {pipeline_mode = #tpu.pipeline_mode<synchronous>, transform_indices = @transform_7, window_bounds = array<i64: 32, 32>}, {pipeline_mode = #tpu.pipeline_mode<synchronous>, transform_indices = @transform_8, window_bounds = array<i64: 1, 32>}, {pipeline_mode = #tpu.pipeline_mode<synchronous>, transform_indices = @transform_9, window_bounds = array<i64: 1, 32>}, {pipeline_mode = #tpu.pipeline_mode<synchronous>, transform_indices = @transform_10, window_bounds = array<i64: 1, 32>}, {transform_indices = @transform_11, window_bounds = array<i64: 8, 32>}]} {
    %c0 = arith.constant 0 : index
    %c0_0 = arith.constant 0 : index
    %0 = vector.load %arg2[%c0, %c0_0] : memref<8x32xf32, #tpu.memory_space<vmem>>, vector<8x32xf32>
    %c0_1 = arith.constant 0 : index
    %c0_2 = arith.constant 0 : index
    %1 = vector.load %arg3[%c0_1, %c0_2] : memref<8x32xf32, #tpu.memory_space<vmem>>, vector<8x32xf32>
    %2 = arith.truncf %0 : vector<8x32xf32> to vector<8x32xbf16>
    %c0_3 = arith.constant 0 : index
    %c0_4 = arith.constant 0 : index
    %3 = vector.load %arg5[%c0_3, %c0_4] : memref<32x32xf32, #tpu.memory_space<vmem>>, vector<32x32xf32>
    %4 = arith.truncf %3 : vector<32x32xf32> to vector<32x32xbf16>
    %cst = arith.constant dense<0.000000e+00> : vector<8x32xf32>
    %5 = tpu.matmul %2, %4, %cst {dimension_numbers = #tpu.dot_dimension_numbers<[1], [0], [0], [1], [0, 0, 1, 1], [], []>} : vector<8x32xbf16>, vector<32x32xbf16>, vector<8x32xf32> -> vector<8x32xf32>
    %c0_5 = arith.constant 0 : index
    %c0_6 = arith.constant 0 : index
    %6 = vector.load %arg6[%c0_5, %c0_6] : memref<1x32xf32, #tpu.memory_space<vmem>>, vector<1x32xf32>
    %7 = vector.broadcast %6 : vector<1x32xf32> to vector<8x32xf32>
    %8 = arith.addf %5, %7 : vector<8x32xf32>
    %cst_7 = arith.constant 0.353553385 : f32
    %9 = vector.broadcast %cst_7 : f32 to vector<8x32xf32>
    %10 = arith.mulf %8, %9 : vector<8x32xf32>
    %11 = arith.truncf %1 : vector<8x32xf32> to vector<8x32xbf16>
    %c0_8 = arith.constant 0 : index
    %c0_9 = arith.constant 0 : index
    %12 = vector.load %arg7[%c0_8, %c0_9] : memref<32x64xf32, #tpu.memory_space<vmem>>, vector<32x64xf32>
    %13 = arith.truncf %12 : vector<32x64xf32> to vector<32x64xbf16>
    %cst_10 = arith.constant dense<0.000000e+00> : vector<8x64xf32>
    %14 = tpu.matmul %11, %13, %cst_10 {dimension_numbers = #tpu.dot_dimension_numbers<[1], [0], [0], [1], [0, 0, 1, 1], [], []>} : vector<8x32xbf16>, vector<32x64xbf16>, vector<8x64xf32> -> vector<8x64xf32>
    %c0_11 = arith.constant 0 : index
    %c0_12 = arith.constant 0 : index
    %15 = vector.load %arg8[%c0_11, %c0_12] : memref<1x64xf32, #tpu.memory_space<vmem>>, vector<1x64xf32>
    %16 = vector.broadcast %15 : vector<1x64xf32> to vector<8x64xf32>
    %17 = arith.addf %14, %16 : vector<8x64xf32>
    %18 = arith.truncf %10 : vector<8x32xf32> to vector<8x32xbf16>
    %19 = vector.extract_strided_slice %17 {offsets = [0, 0], sizes = [8, 32], strides = [1, 1]} : vector<8x64xf32> to vector<8x32xf32>
    %20 = arith.truncf %19 : vector<8x32xf32> to vector<8x32xbf16>
    %21 = vector.extract_strided_slice %17 {offsets = [0, 32], sizes = [8, 32], strides = [1, 1]} : vector<8x64xf32> to vector<8x32xf32>
    %22 = arith.truncf %21 : vector<8x32xf32> to vector<8x32xbf16>
    %c0_13 = arith.constant 0 : index
    %c0_14 = arith.constant 0 : index
    %c0_15 = arith.constant 0 : index
    %23 = vector.load %arg4[%c0_13, %c0_14, %c0_15] : memref<1x1x8xf32, #tpu.memory_space<vmem>>, vector<1x1x8xf32>
    %24 = vector.shape_cast %23 : vector<1x1x8xf32> to vector<1x8xf32>
    %cst_16 = arith.constant 0.000000e+00 : f32
    %25 = vector.broadcast %cst_16 : f32 to vector<1x8xf32>
    %26 = arith.cmpf ogt, %24, %25 : vector<1x8xf32>
    %27 = vector.extract_strided_slice %18 {offsets = [0, 0], sizes = [8, 8], strides = [1, 1]} : vector<8x32xbf16> to vector<8x8xbf16>
    %28 = vector.extract_strided_slice %20 {offsets = [0, 0], sizes = [8, 8], strides = [1, 1]} : vector<8x32xbf16> to vector<8x8xbf16>
    "tpu.trace_start"() <{level = 10 : i32, message = "qd,kd->qk"}> : () -> ()
    %cst_17 = arith.constant dense<0.000000e+00> : vector<8x8xf32>
    %29 = tpu.matmul %27, %28, %cst_17 {dimension_numbers = #tpu.dot_dimension_numbers<[1], [1], [0], [0], [0, 0, 1, 0], [], []>} : vector<8x8xbf16>, vector<8x8xbf16>, vector<8x8xf32> -> vector<8x8xf32>
    %cst_18 = arith.constant -1.000000e+10 : f32
    "tpu.trace_stop"() : () -> ()
    %30 = vector.shape_cast %26 : vector<1x8xi1> to vector<1x8xi1>
    %31 = vector.broadcast %30 : vector<1x8xi1> to vector<8x8xi1>
    %32 = vector.broadcast %cst_18 : f32 to vector<8x8xf32>
    %33 = arith.select %31, %29, %32 : vector<8x8xi1>, vector<8x8xf32>
    %cst_19 = arith.constant dense<0xFF800000> : vector<8xf32>
    %34 = vector.multi_reduction <maximumf>, %33, %cst_19 [1] : vector<8x8xf32> to vector<8xf32>
    %35 = vector.shape_cast %34 : vector<8xf32> to vector<8x1xf32>
    %36 = vector.broadcast %35 : vector<8x1xf32> to vector<8x8xf32>
    %37 = arith.subf %33, %36 : vector<8x8xf32>
    %38 = math.exp %37 : vector<8x8xf32>
    %cst_20 = arith.constant dense<0.000000e+00> : vector<8xf32>
    %39 = vector.multi_reduction <add>, %38, %cst_20 [1] : vector<8x8xf32> to vector<8xf32>
    %40 = vector.shape_cast %39 : vector<8xf32> to vector<8x1xf32>
    %41 = tpu.reciprocal %40 {approx = true} : vector<8x1xf32> -> vector<8x1xf32>
    %42 = vector.broadcast %41 : vector<8x1xf32> to vector<8x8xf32>
    %43 = arith.mulf %38, %42 : vector<8x8xf32>
    %44 = arith.truncf %43 : vector<8x8xf32> to vector<8x8xbf16>
    %45 = vector.extract_strided_slice %22 {offsets = [0, 0], sizes = [8, 8], strides = [1, 1]} : vector<8x32xbf16> to vector<8x8xbf16>
    %cst_21 = arith.constant dense<0.000000e+00> : vector<8x8xf32>
    %46 = tpu.matmul %44, %45, %cst_21 {dimension_numbers = #tpu.dot_dimension_numbers<[1], [0], [0], [1], [0, 0, 1, 1], [], []>} : vector<8x8xbf16>, vector<8x8xbf16>, vector<8x8xf32> -> vector<8x8xf32>
    %47 = vector.extract_strided_slice %18 {offsets = [0, 8], sizes = [8, 8], strides = [1, 1]} : vector<8x32xbf16> to vector<8x8xbf16>
    %48 = vector.extract_strided_slice %20 {offsets = [0, 8], sizes = [8, 8], strides = [1, 1]} : vector<8x32xbf16> to vector<8x8xbf16>
    "tpu.trace_start"() <{level = 10 : i32, message = "qd,kd->qk"}> : () -> ()
    %cst_22 = arith.constant dense<0.000000e+00> : vector<8x8xf32>
    %49 = tpu.matmul %47, %48, %cst_22 {dimension_numbers = #tpu.dot_dimension_numbers<[1], [1], [0], [0], [0, 0, 1, 0], [], []>} : vector<8x8xbf16>, vector<8x8xbf16>, vector<8x8xf32> -> vector<8x8xf32>
    %cst_23 = arith.constant -1.000000e+10 : f32
    "tpu.trace_stop"() : () -> ()
    %50 = vector.shape_cast %26 : vector<1x8xi1> to vector<1x8xi1>
    %51 = vector.broadcast %50 : vector<1x8xi1> to vector<8x8xi1>
    %52 = vector.broadcast %cst_23 : f32 to vector<8x8xf32>
    %53 = arith.select %51, %49, %52 : vector<8x8xi1>, vector<8x8xf32>
    %cst_24 = arith.constant dense<0xFF800000> : vector<8xf32>
    %54 = vector.multi_reduction <maximumf>, %53, %cst_24 [1] : vector<8x8xf32> to vector<8xf32>
    %55 = vector.shape_cast %54 : vector<8xf32> to vector<8x1xf32>
    %56 = vector.broadcast %55 : vector<8x1xf32> to vector<8x8xf32>
    %57 = arith.subf %53, %56 : vector<8x8xf32>
    %58 = math.exp %57 : vector<8x8xf32>
    %cst_25 = arith.constant dense<0.000000e+00> : vector<8xf32>
    %59 = vector.multi_reduction <add>, %58, %cst_25 [1] : vector<8x8xf32> to vector<8xf32>
    %60 = vector.shape_cast %59 : vector<8xf32> to vector<8x1xf32>
    %61 = tpu.reciprocal %60 {approx = true} : vector<8x1xf32> -> vector<8x1xf32>
    %62 = vector.broadcast %61 : vector<8x1xf32> to vector<8x8xf32>
    %63 = arith.mulf %58, %62 : vector<8x8xf32>
    %64 = arith.truncf %63 : vector<8x8xf32> to vector<8x8xbf16>
    %65 = vector.extract_strided_slice %22 {offsets = [0, 8], sizes = [8, 8], strides = [1, 1]} : vector<8x32xbf16> to vector<8x8xbf16>
    %cst_26 = arith.constant dense<0.000000e+00> : vector<8x8xf32>
    %66 = tpu.matmul %64, %65, %cst_26 {dimension_numbers = #tpu.dot_dimension_numbers<[1], [0], [0], [1], [0, 0, 1, 1], [], []>} : vector<8x8xbf16>, vector<8x8xbf16>, vector<8x8xf32> -> vector<8x8xf32>
    %67 = vector.extract_strided_slice %18 {offsets = [0, 16], sizes = [8, 8], strides = [1, 1]} : vector<8x32xbf16> to vector<8x8xbf16>
    %68 = vector.extract_strided_slice %20 {offsets = [0, 16], sizes = [8, 8], strides = [1, 1]} : vector<8x32xbf16> to vector<8x8xbf16>
    "tpu.trace_start"() <{level = 10 : i32, message = "qd,kd->qk"}> : () -> ()
    %cst_27 = arith.constant dense<0.000000e+00> : vector<8x8xf32>
    %69 = tpu.matmul %67, %68, %cst_27 {dimension_numbers = #tpu.dot_dimension_numbers<[1], [1], [0], [0], [0, 0, 1, 0], [], []>} : vector<8x8xbf16>, vector<8x8xbf16>, vector<8x8xf32> -> vector<8x8xf32>
    %cst_28 = arith.constant -1.000000e+10 : f32
    "tpu.trace_stop"() : () -> ()
    %70 = vector.shape_cast %26 : vector<1x8xi1> to vector<1x8xi1>
    %71 = vector.broadcast %70 : vector<1x8xi1> to vector<8x8xi1>
    %72 = vector.broadcast %cst_28 : f32 to vector<8x8xf32>
    %73 = arith.select %71, %69, %72 : vector<8x8xi1>, vector<8x8xf32>
    %cst_29 = arith.constant dense<0xFF800000> : vector<8xf32>
    %74 = vector.multi_reduction <maximumf>, %73, %cst_29 [1] : vector<8x8xf32> to vector<8xf32>
    %75 = vector.shape_cast %74 : vector<8xf32> to vector<8x1xf32>
    %76 = vector.broadcast %75 : vector<8x1xf32> to vector<8x8xf32>
    %77 = arith.subf %73, %76 : vector<8x8xf32>
    %78 = math.exp %77 : vector<8x8xf32>
    %cst_30 = arith.constant dense<0.000000e+00> : vector<8xf32>
    %79 = vector.multi_reduction <add>, %78, %cst_30 [1] : vector<8x8xf32> to vector<8xf32>
    %80 = vector.shape_cast %79 : vector<8xf32> to vector<8x1xf32>
    %81 = tpu.reciprocal %80 {approx = true} : vector<8x1xf32> -> vector<8x1xf32>
    %82 = vector.broadcast %81 : vector<8x1xf32> to vector<8x8xf32>
    %83 = arith.mulf %78, %82 : vector<8x8xf32>
    %84 = arith.truncf %83 : vector<8x8xf32> to vector<8x8xbf16>
    %85 = vector.extract_strided_slice %22 {offsets = [0, 16], sizes = [8, 8], strides = [1, 1]} : vector<8x32xbf16> to vector<8x8xbf16>
    %cst_31 = arith.constant dense<0.000000e+00> : vector<8x8xf32>
    %86 = tpu.matmul %84, %85, %cst_31 {dimension_numbers = #tpu.dot_dimension_numbers<[1], [0], [0], [1], [0, 0, 1, 1], [], []>} : vector<8x8xbf16>, vector<8x8xbf16>, vector<8x8xf32> -> vector<8x8xf32>
    %87 = vector.extract_strided_slice %18 {offsets = [0, 24], sizes = [8, 8], strides = [1, 1]} : vector<8x32xbf16> to vector<8x8xbf16>
    %88 = vector.extract_strided_slice %20 {offsets = [0, 24], sizes = [8, 8], strides = [1, 1]} : vector<8x32xbf16> to vector<8x8xbf16>
    "tpu.trace_start"() <{level = 10 : i32, message = "qd,kd->qk"}> : () -> ()
    %cst_32 = arith.constant dense<0.000000e+00> : vector<8x8xf32>
    %89 = tpu.matmul %87, %88, %cst_32 {dimension_numbers = #tpu.dot_dimension_numbers<[1], [1], [0], [0], [0, 0, 1, 0], [], []>} : vector<8x8xbf16>, vector<8x8xbf16>, vector<8x8xf32> -> vector<8x8xf32>
    %cst_33 = arith.constant -1.000000e+10 : f32
    "tpu.trace_stop"() : () -> ()
    %90 = vector.shape_cast %26 : vector<1x8xi1> to vector<1x8xi1>
    %91 = vector.broadcast %90 : vector<1x8xi1> to vector<8x8xi1>
    %92 = vector.broadcast %cst_33 : f32 to vector<8x8xf32>
    %93 = arith.select %91, %89, %92 : vector<8x8xi1>, vector<8x8xf32>
    %cst_34 = arith.constant dense<0xFF800000> : vector<8xf32>
    %94 = vector.multi_reduction <maximumf>, %93, %cst_34 [1] : vector<8x8xf32> to vector<8xf32>
    %95 = vector.shape_cast %94 : vector<8xf32> to vector<8x1xf32>
    %96 = vector.broadcast %95 : vector<8x1xf32> to vector<8x8xf32>
    %97 = arith.subf %93, %96 : vector<8x8xf32>
    %98 = math.exp %97 : vector<8x8xf32>
    %cst_35 = arith.constant dense<0.000000e+00> : vector<8xf32>
    %99 = vector.multi_reduction <add>, %98, %cst_35 [1] : vector<8x8xf32> to vector<8xf32>
    %100 = vector.shape_cast %99 : vector<8xf32> to vector<8x1xf32>
    %101 = tpu.reciprocal %100 {approx = true} : vector<8x1xf32> -> vector<8x1xf32>
    %102 = vector.broadcast %101 : vector<8x1xf32> to vector<8x8xf32>
    %103 = arith.mulf %98, %102 : vector<8x8xf32>
    %104 = arith.truncf %103 : vector<8x8xf32> to vector<8x8xbf16>
    %105 = vector.extract_strided_slice %22 {offsets = [0, 24], sizes = [8, 8], strides = [1, 1]} : vector<8x32xbf16> to vector<8x8xbf16>
    %cst_36 = arith.constant dense<0.000000e+00> : vector<8x8xf32>
    %106 = tpu.matmul %104, %105, %cst_36 {dimension_numbers = #tpu.dot_dimension_numbers<[1], [0], [0], [1], [0, 0, 1, 1], [], []>} : vector<8x8xbf16>, vector<8x8xbf16>, vector<8x8xf32> -> vector<8x8xf32>
    %107 = tpu.concatenate %46, %66, %86, %106 in 1 : vector<8x8xf32>, vector<8x8xf32>, vector<8x8xf32>, vector<8x8xf32> -> vector<8x32xf32>
    %108 = arith.truncf %107 : vector<8x32xf32> to vector<8x32xbf16>
    %c0_37 = arith.constant 0 : index
    %c0_38 = arith.constant 0 : index
    %109 = vector.load %arg9[%c0_37, %c0_38] : memref<32x32xf32, #tpu.memory_space<vmem>>, vector<32x32xf32>
    %110 = arith.truncf %109 : vector<32x32xf32> to vector<32x32xbf16>
    %cst_39 = arith.constant dense<0.000000e+00> : vector<8x32xf32>
    %111 = tpu.matmul %108, %110, %cst_39 {dimension_numbers = #tpu.dot_dimension_numbers<[1], [0], [0], [1], [0, 0, 1, 1], [], []>} : vector<8x32xbf16>, vector<32x32xbf16>, vector<8x32xf32> -> vector<8x32xf32>
    %112 = arith.addf %0, %111 : vector<8x32xf32>
    %c0_40 = arith.constant 0 : index
    %c0_41 = arith.constant 0 : index
    %113 = vector.load %arg10[%c0_40, %c0_41] : memref<1x32xf32, #tpu.memory_space<vmem>>, vector<1x32xf32>
    %114 = vector.broadcast %113 : vector<1x32xf32> to vector<8x32xf32>
    %115 = arith.addf %112, %114 : vector<8x32xf32>
    %cst_42 = arith.constant dense<0.000000e+00> : vector<8xf32>
    %116 = vector.multi_reduction <add>, %115, %cst_42 [1] : vector<8x32xf32> to vector<8xf32>
    %117 = vector.shape_cast %116 : vector<8xf32> to vector<8x1xf32>
    %cst_43 = arith.constant 3.200000e+01 : f32
    %118 = vector.broadcast %cst_43 : f32 to vector<8x1xf32>
    %119 = arith.divf %117, %118 : vector<8x1xf32>
    %120 = vector.broadcast %119 : vector<8x1xf32> to vector<8x32xf32>
    %121 = arith.subf %115, %120 : vector<8x32xf32>
    %122 = arith.mulf %121, %121 : vector<8x32xf32>
    %cst_44 = arith.constant dense<0.000000e+00> : vector<8xf32>
    %123 = vector.multi_reduction <add>, %122, %cst_44 [1] : vector<8x32xf32> to vector<8xf32>
    %124 = vector.shape_cast %123 : vector<8xf32> to vector<8x1xf32>
    %cst_45 = arith.constant 3.200000e+01 : f32
    %125 = vector.broadcast %cst_45 : f32 to vector<8x1xf32>
    %126 = arith.divf %124, %125 : vector<8x1xf32>
    %127 = vector.broadcast %119 : vector<8x1xf32> to vector<8x32xf32>
    %128 = arith.subf %115, %127 : vector<8x32xf32>
    %cst_46 = arith.constant 9.99999974E-6 : f32
    %129 = vector.broadcast %cst_46 : f32 to vector<8x1xf32>
    %130 = arith.addf %126, %129 : vector<8x1xf32>
    %131 = math.rsqrt %130 : vector<8x1xf32>
    %132 = vector.broadcast %131 : vector<8x1xf32> to vector<8x32xf32>
    %133 = arith.mulf %128, %132 : vector<8x32xf32>
    %c0_47 = arith.constant 0 : index
    %c0_48 = arith.constant 0 : index
    %134 = vector.load %arg11[%c0_47, %c0_48] : memref<1x32xf32, #tpu.memory_space<vmem>>, vector<1x32xf32>
    %135 = vector.broadcast %134 : vector<1x32xf32> to vector<8x32xf32>
    %136 = arith.mulf %133, %135 : vector<8x32xf32>
    %c0_49 = arith.constant 0 : index
    %c0_50 = arith.constant 0 : index
    %137 = vector.load %arg12[%c0_49, %c0_50] : memref<1x32xf32, #tpu.memory_space<vmem>>, vector<1x32xf32>
    %138 = vector.broadcast %137 : vector<1x32xf32> to vector<8x32xf32>
    %139 = arith.addf %136, %138 : vector<8x32xf32>
    %c0_51 = arith.constant 0 : index
    %c0_52 = arith.constant 0 : index
    %140 = vector.load %arg13[%c0_51, %c0_52] : memref<8x32xf32, #tpu.memory_space<vmem>>, vector<8x32xf32>
    tpu.vector_store %arg13[%c0_51, %c0_52], %139 {strides = array<i32>} : memref<8x32xf32, #tpu.memory_space<vmem>>, vector<8x32xf32>,
    return
  }
  func.func @transform_0(%arg0: i32, %arg1: i32) -> (i32, i32) {
    %c1_i32 = arith.constant 1 : i32
    %0 = arith.muli %arg0, %c1_i32 : i32
    %1 = arith.addi %0, %arg1 : i32
    %c0_i32 = arith.constant 0 : i32
    %c0_i32_0 = arith.constant 0 : i32
    return %1, %c0_i32 : i32, i32
  }
  func.func @transform_1(%arg0: i32, %arg1: i32) -> (i32, i32) {
    %c0_i32 = arith.constant 0 : i32
    %c0_i32_0 = arith.constant 0 : i32
    return %arg0, %c0_i32 : i32, i32
  }
  func.func @transform_2(%arg0: i32, %arg1: i32) -> (i32, i32, i32) {
    %c0_i32 = arith.constant 0 : i32
    %c0_i32_0 = arith.constant 0 : i32
    %c0_i32_1 = arith.constant 0 : i32
    return %arg0, %c0_i32, %c0_i32_0 : i32, i32, i32
  }
  func.func @transform_3(%arg0: i32, %arg1: i32) -> (i32, i32) {
    %c0_i32 = arith.constant 0 : i32
    %c0_i32_0 = arith.constant 0 : i32
    %c0_i32_1 = arith.constant 0 : i32
    return %c0_i32, %c0_i32_0 : i32, i32
  }
  func.func @transform_4(%arg0: i32, %arg1: i32) -> (i32, i32) {
    %c0_i32 = arith.constant 0 : i32
    %c0_i32_0 = arith.constant 0 : i32
    %c0_i32_1 = arith.constant 0 : i32
    return %c0_i32, %c0_i32_0 : i32, i32
  }
  func.func @transform_5(%arg0: i32, %arg1: i32) -> (i32, i32) {
    %c0_i32 = arith.constant 0 : i32
    %c0_i32_0 = arith.constant 0 : i32
    %c0_i32_1 = arith.constant 0 : i32
    return %c0_i32, %c0_i32_0 : i32, i32
  }
  func.func @transform_6(%arg0: i32, %arg1: i32) -> (i32, i32) {
    %c0_i32 = arith.constant 0 : i32
    %c0_i32_0 = arith.constant 0 : i32
    %c0_i32_1 = arith.constant 0 : i32
    return %c0_i32, %c0_i32_0 : i32, i32
  }
  func.func @transform_7(%arg0: i32, %arg1: i32) -> (i32, i32) {
    %c0_i32 = arith.constant 0 : i32
    %c0_i32_0 = arith.constant 0 : i32
    %c0_i32_1 = arith.constant 0 : i32
    return %c0_i32, %c0_i32_0 : i32, i32
  }
  func.func @transform_8(%arg0: i32, %arg1: i32) -> (i32, i32) {
    %c0_i32 = arith.constant 0 : i32
    %c0_i32_0 = arith.constant 0 : i32
    %c0_i32_1 = arith.constant 0 : i32
    return %c0_i32, %c0_i32_0 : i32, i32
  }
  func.func @transform_9(%arg0: i32, %arg1: i32) -> (i32, i32) {
    %c0_i32 = arith.constant 0 : i32
    %c0_i32_0 = arith.constant 0 : i32
    %c0_i32_1 = arith.constant 0 : i32
    return %c0_i32, %c0_i32_0 : i32, i32
  }
  func.func @transform_10(%arg0: i32, %arg1: i32) -> (i32, i32) {
    %c0_i32 = arith.constant 0 : i32
    %c0_i32_0 = arith.constant 0 : i32
    %c0_i32_1 = arith.constant 0 : i32
    return %c0_i32, %c0_i32_0 : i32, i32
  }
  func.func @transform_11(%arg0: i32, %arg1: i32) -> (i32, i32) {
    %c1_i32 = arith.constant 1 : i32
    %0 = arith.muli %arg0, %c1_i32 : i32
    %1 = arith.addi %0, %arg1 : i32
    %c0_i32 = arith.constant 0 : i32
    %c0_i32_0 = arith.constant 0 : i32
    return %1, %c0_i32 : i32, i32
  }
}

module attributes {stable_mosaic.version = 11 : i64} {
  func.func @_mha_block_kernel(%arg0: i32, %arg1: i32, %arg2: memref<8x32xf32, #tpu.memory_space<vmem>>, %arg3: memref<32x32xf32, #tpu.memory_space<vmem>>, %arg4: memref<1x32xf32, #tpu.memory_space<vmem>>, %arg5: memref<32x64xf32, #tpu.memory_space<vmem>>, %arg6: memref<1x64xf32, #tpu.memory_space<vmem>>, %arg7: memref<32x32xf32, #tpu.memory_space<vmem>>, %arg8: memref<1x32xf32, #tpu.memory_space<vmem>>, %arg9: memref<1x32xf32, #tpu.memory_space<vmem>>, %arg10: memref<1x32xf32, #tpu.memory_space<vmem>>, %arg11: memref<8x32xf32, #tpu.memory_space<vmem>>) attributes {dimension_semantics = [#tpu.dimension_semantics<parallel>, #tpu.dimension_semantics<parallel>], iteration_bounds = array<i64: 2, 1>, scalar_prefetch = 0 : i64, scratch_operands = 0 : i64, tpu.core_type = #tpu.core_type<tc>, window_params = [{transform_indices = @transform_0, window_bounds = array<i64: 8, 32>}, {pipeline_mode = #tpu.pipeline_mode<synchronous>, transform_indices = @transform_1, window_bounds = array<i64: 32, 32>}, {pipeline_mode = #tpu.pipeline_mode<synchronous>, transform_indices = @transform_2, window_bounds = array<i64: 1, 32>}, {pipeline_mode = #tpu.pipeline_mode<synchronous>, transform_indices = @transform_3, window_bounds = array<i64: 32, 64>}, {pipeline_mode = #tpu.pipeline_mode<synchronous>, transform_indices = @transform_4, window_bounds = array<i64: 1, 64>}, {pipeline_mode = #tpu.pipeline_mode<synchronous>, transform_indices = @transform_5, window_bounds = array<i64: 32, 32>}, {pipeline_mode = #tpu.pipeline_mode<synchronous>, transform_indices = @transform_6, window_bounds = array<i64: 1, 32>}, {pipeline_mode = #tpu.pipeline_mode<synchronous>, transform_indices = @transform_7, window_bounds = array<i64: 1, 32>}, {pipeline_mode = #tpu.pipeline_mode<synchronous>, transform_indices = @transform_8, window_bounds = array<i64: 1, 32>}, {transform_indices = @transform_9, window_bounds = array<i64: 8, 32>}]} {
    %c8_i32 = arith.constant 8 : i32
    %0 = arith.muli %arg1, %c8_i32 : i32
    %c0 = arith.constant 0 : index
    %c0_0 = arith.constant 0 : index
    %1 = vector.load %arg2[%c0, %c0_0] : memref<8x32xf32, #tpu.memory_space<vmem>>, vector<8x32xf32>
    %2 = arith.truncf %1 : vector<8x32xf32> to vector<8x32xbf16>
    %c0_1 = arith.constant 0 : index
    %c0_2 = arith.constant 0 : index
    %3 = vector.load %arg3[%c0_1, %c0_2] : memref<32x32xf32, #tpu.memory_space<vmem>>, vector<32x32xf32>
    %4 = arith.truncf %3 : vector<32x32xf32> to vector<32x32xbf16>
    %cst = arith.constant dense<0.000000e+00> : vector<8x32xf32>
    %5 = tpu.matmul %2, %4, %cst {dimension_numbers = #tpu.dot_dimension_numbers<[1], [0], [0], [1], [0, 0, 1, 1], [], []>} : vector<8x32xbf16>, vector<32x32xbf16>, vector<8x32xf32> -> vector<8x32xf32>
    %c0_3 = arith.constant 0 : index
    %c0_4 = arith.constant 0 : index
    %6 = vector.load %arg4[%c0_3, %c0_4] : memref<1x32xf32, #tpu.memory_space<vmem>>, vector<1x32xf32>
    %7 = vector.broadcast %6 : vector<1x32xf32> to vector<8x32xf32>
    %8 = arith.addf %5, %7 : vector<8x32xf32>
    %cst_5 = arith.constant 0.353553385 : f32
    %9 = vector.broadcast %cst_5 : f32 to vector<8x32xf32>
    %10 = arith.mulf %8, %9 : vector<8x32xf32>
    %11 = arith.truncf %1 : vector<8x32xf32> to vector<8x32xbf16>
    %c0_6 = arith.constant 0 : index
    %c0_7 = arith.constant 0 : index
    %12 = vector.load %arg5[%c0_6, %c0_7] : memref<32x64xf32, #tpu.memory_space<vmem>>, vector<32x64xf32>
    %13 = arith.truncf %12 : vector<32x64xf32> to vector<32x64xbf16>
    %cst_8 = arith.constant dense<0.000000e+00> : vector<8x64xf32>
    %14 = tpu.matmul %11, %13, %cst_8 {dimension_numbers = #tpu.dot_dimension_numbers<[1], [0], [0], [1], [0, 0, 1, 1], [], []>} : vector<8x32xbf16>, vector<32x64xbf16>, vector<8x64xf32> -> vector<8x64xf32>
    %c0_9 = arith.constant 0 : index
    %c0_10 = arith.constant 0 : index
    %15 = vector.load %arg6[%c0_9, %c0_10] : memref<1x64xf32, #tpu.memory_space<vmem>>, vector<1x64xf32>
    %16 = vector.broadcast %15 : vector<1x64xf32> to vector<8x64xf32>
    %17 = arith.addf %14, %16 : vector<8x64xf32>
    %18 = arith.truncf %10 : vector<8x32xf32> to vector<8x32xbf16>
    %19 = vector.extract_strided_slice %17 {offsets = [0, 0], sizes = [8, 32], strides = [1, 1]} : vector<8x64xf32> to vector<8x32xf32>
    %20 = arith.truncf %19 : vector<8x32xf32> to vector<8x32xbf16>
    %21 = vector.extract_strided_slice %17 {offsets = [0, 32], sizes = [8, 32], strides = [1, 1]} : vector<8x64xf32> to vector<8x32xf32>
    %22 = arith.truncf %21 : vector<8x32xf32> to vector<8x32xbf16>
    %23 = tpu.iota {dimensions = array<i32: 0>} : vector<8x8xi32>
    %24 = vector.broadcast %0 : i32 to vector<8x8xi32>
    %25 = arith.addi %23, %24 : vector<8x8xi32>
    %26 = tpu.iota {dimensions = array<i32: 1>} : vector<8x8xi32>
    %27 = arith.cmpi sge, %25, %26 : vector<8x8xi32>
    %28 = vector.extract_strided_slice %18 {offsets = [0, 0], sizes = [8, 8], strides = [1, 1]} : vector<8x32xbf16> to vector<8x8xbf16>
    %29 = vector.extract_strided_slice %20 {offsets = [0, 0], sizes = [8, 8], strides = [1, 1]} : vector<8x32xbf16> to vector<8x8xbf16>
    "tpu.trace_start"() <{level = 10 : i32, message = "qd,kd->qk"}> : () -> ()
    %cst_11 = arith.constant dense<0.000000e+00> : vector<8x8xf32>
    %30 = tpu.matmul %28, %29, %cst_11 {dimension_numbers = #tpu.dot_dimension_numbers<[1], [1], [0], [0], [0, 0, 1, 0], [], []>} : vector<8x8xbf16>, vector<8x8xbf16>, vector<8x8xf32> -> vector<8x8xf32>
    %cst_12 = arith.constant -1.000000e+10 : f32
    "tpu.trace_stop"() : () -> ()
    %31 = vector.broadcast %cst_12 : f32 to vector<8x8xf32>
    %32 = arith.select %27, %30, %31 : vector<8x8xi1>, vector<8x8xf32>
    %cst_13 = arith.constant dense<0xFF800000> : vector<8xf32>
    %33 = vector.multi_reduction <maximumf>, %32, %cst_13 [1] : vector<8x8xf32> to vector<8xf32>
    %34 = vector.shape_cast %33 : vector<8xf32> to vector<8x1xf32>
    %35 = vector.broadcast %34 : vector<8x1xf32> to vector<8x8xf32>
    %36 = arith.subf %32, %35 : vector<8x8xf32>
    %37 = math.exp %36 : vector<8x8xf32>
    %cst_14 = arith.constant dense<0.000000e+00> : vector<8xf32>
    %38 = vector.multi_reduction <add>, %37, %cst_14 [1] : vector<8x8xf32> to vector<8xf32>
    %39 = vector.shape_cast %38 : vector<8xf32> to vector<8x1xf32>
    %40 = tpu.reciprocal %39 {approx = true} : vector<8x1xf32> -> vector<8x1xf32>
    %41 = vector.broadcast %40 : vector<8x1xf32> to vector<8x8xf32>
    %42 = arith.mulf %37, %41 : vector<8x8xf32>
    %43 = arith.truncf %42 : vector<8x8xf32> to vector<8x8xbf16>
    %44 = vector.extract_strided_slice %22 {offsets = [0, 0], sizes = [8, 8], strides = [1, 1]} : vector<8x32xbf16> to vector<8x8xbf16>
    %cst_15 = arith.constant dense<0.000000e+00> : vector<8x8xf32>
    %45 = tpu.matmul %43, %44, %cst_15 {dimension_numbers = #tpu.dot_dimension_numbers<[1], [0], [0], [1], [0, 0, 1, 1], [], []>} : vector<8x8xbf16>, vector<8x8xbf16>, vector<8x8xf32> -> vector<8x8xf32>
    %46 = vector.extract_strided_slice %18 {offsets = [0, 8], sizes = [8, 8], strides = [1, 1]} : vector<8x32xbf16> to vector<8x8xbf16>
    %47 = vector.extract_strided_slice %20 {offsets = [0, 8], sizes = [8, 8], strides = [1, 1]} : vector<8x32xbf16> to vector<8x8xbf16>
    "tpu.trace_start"() <{level = 10 : i32, message = "qd,kd->qk"}> : () -> ()
    %cst_16 = arith.constant dense<0.000000e+00> : vector<8x8xf32>
    %48 = tpu.matmul %46, %47, %cst_16 {dimension_numbers = #tpu.dot_dimension_numbers<[1], [1], [0], [0], [0, 0, 1, 0], [], []>} : vector<8x8xbf16>, vector<8x8xbf16>, vector<8x8xf32> -> vector<8x8xf32>
    %cst_17 = arith.constant -1.000000e+10 : f32
    "tpu.trace_stop"() : () -> ()
    %49 = vector.broadcast %cst_17 : f32 to vector<8x8xf32>
    %50 = arith.select %27, %48, %49 : vector<8x8xi1>, vector<8x8xf32>
    %cst_18 = arith.constant dense<0xFF800000> : vector<8xf32>
    %51 = vector.multi_reduction <maximumf>, %50, %cst_18 [1] : vector<8x8xf32> to vector<8xf32>
    %52 = vector.shape_cast %51 : vector<8xf32> to vector<8x1xf32>
    %53 = vector.broadcast %52 : vector<8x1xf32> to vector<8x8xf32>
    %54 = arith.subf %50, %53 : vector<8x8xf32>
    %55 = math.exp %54 : vector<8x8xf32>
    %cst_19 = arith.constant dense<0.000000e+00> : vector<8xf32>
    %56 = vector.multi_reduction <add>, %55, %cst_19 [1] : vector<8x8xf32> to vector<8xf32>
    %57 = vector.shape_cast %56 : vector<8xf32> to vector<8x1xf32>
    %58 = tpu.reciprocal %57 {approx = true} : vector<8x1xf32> -> vector<8x1xf32>
    %59 = vector.broadcast %58 : vector<8x1xf32> to vector<8x8xf32>
    %60 = arith.mulf %55, %59 : vector<8x8xf32>
    %61 = arith.truncf %60 : vector<8x8xf32> to vector<8x8xbf16>
    %62 = vector.extract_strided_slice %22 {offsets = [0, 8], sizes = [8, 8], strides = [1, 1]} : vector<8x32xbf16> to vector<8x8xbf16>
    %cst_20 = arith.constant dense<0.000000e+00> : vector<8x8xf32>
    %63 = tpu.matmul %61, %62, %cst_20 {dimension_numbers = #tpu.dot_dimension_numbers<[1], [0], [0], [1], [0, 0, 1, 1], [], []>} : vector<8x8xbf16>, vector<8x8xbf16>, vector<8x8xf32> -> vector<8x8xf32>
    %64 = vector.extract_strided_slice %18 {offsets = [0, 16], sizes = [8, 8], strides = [1, 1]} : vector<8x32xbf16> to vector<8x8xbf16>
    %65 = vector.extract_strided_slice %20 {offsets = [0, 16], sizes = [8, 8], strides = [1, 1]} : vector<8x32xbf16> to vector<8x8xbf16>
    "tpu.trace_start"() <{level = 10 : i32, message = "qd,kd->qk"}> : () -> ()
    %cst_21 = arith.constant dense<0.000000e+00> : vector<8x8xf32>
    %66 = tpu.matmul %64, %65, %cst_21 {dimension_numbers = #tpu.dot_dimension_numbers<[1], [1], [0], [0], [0, 0, 1, 0], [], []>} : vector<8x8xbf16>, vector<8x8xbf16>, vector<8x8xf32> -> vector<8x8xf32>
    %cst_22 = arith.constant -1.000000e+10 : f32
    "tpu.trace_stop"() : () -> ()
    %67 = vector.broadcast %cst_22 : f32 to vector<8x8xf32>
    %68 = arith.select %27, %66, %67 : vector<8x8xi1>, vector<8x8xf32>
    %cst_23 = arith.constant dense<0xFF800000> : vector<8xf32>
    %69 = vector.multi_reduction <maximumf>, %68, %cst_23 [1] : vector<8x8xf32> to vector<8xf32>
    %70 = vector.shape_cast %69 : vector<8xf32> to vector<8x1xf32>
    %71 = vector.broadcast %70 : vector<8x1xf32> to vector<8x8xf32>
    %72 = arith.subf %68, %71 : vector<8x8xf32>
    %73 = math.exp %72 : vector<8x8xf32>
    %cst_24 = arith.constant dense<0.000000e+00> : vector<8xf32>
    %74 = vector.multi_reduction <add>, %73, %cst_24 [1] : vector<8x8xf32> to vector<8xf32>
    %75 = vector.shape_cast %74 : vector<8xf32> to vector<8x1xf32>
    %76 = tpu.reciprocal %75 {approx = true} : vector<8x1xf32> -> vector<8x1xf32>
    %77 = vector.broadcast %76 : vector<8x1xf32> to vector<8x8xf32>
    %78 = arith.mulf %73, %77 : vector<8x8xf32>
    %79 = arith.truncf %78 : vector<8x8xf32> to vector<8x8xbf16>
    %80 = vector.extract_strided_slice %22 {offsets = [0, 16], sizes = [8, 8], strides = [1, 1]} : vector<8x32xbf16> to vector<8x8xbf16>
    %cst_25 = arith.constant dense<0.000000e+00> : vector<8x8xf32>
    %81 = tpu.matmul %79, %80, %cst_25 {dimension_numbers = #tpu.dot_dimension_numbers<[1], [0], [0], [1], [0, 0, 1, 1], [], []>} : vector<8x8xbf16>, vector<8x8xbf16>, vector<8x8xf32> -> vector<8x8xf32>
    %82 = vector.extract_strided_slice %18 {offsets = [0, 24], sizes = [8, 8], strides = [1, 1]} : vector<8x32xbf16> to vector<8x8xbf16>
    %83 = vector.extract_strided_slice %20 {offsets = [0, 24], sizes = [8, 8], strides = [1, 1]} : vector<8x32xbf16> to vector<8x8xbf16>
    "tpu.trace_start"() <{level = 10 : i32, message = "qd,kd->qk"}> : () -> ()
    %cst_26 = arith.constant dense<0.000000e+00> : vector<8x8xf32>
    %84 = tpu.matmul %82, %83, %cst_26 {dimension_numbers = #tpu.dot_dimension_numbers<[1], [1], [0], [0], [0, 0, 1, 0], [], []>} : vector<8x8xbf16>, vector<8x8xbf16>, vector<8x8xf32> -> vector<8x8xf32>
    %cst_27 = arith.constant -1.000000e+10 : f32
    "tpu.trace_stop"() : () -> ()
    %85 = vector.broadcast %cst_27 : f32 to vector<8x8xf32>
    %86 = arith.select %27, %84, %85 : vector<8x8xi1>, vector<8x8xf32>
    %cst_28 = arith.constant dense<0xFF800000> : vector<8xf32>
    %87 = vector.multi_reduction <maximumf>, %86, %cst_28 [1] : vector<8x8xf32> to vector<8xf32>
    %88 = vector.shape_cast %87 : vector<8xf32> to vector<8x1xf32>
    %89 = vector.broadcast %88 : vector<8x1xf32> to vector<8x8xf32>
    %90 = arith.subf %86, %89 : vector<8x8xf32>
    %91 = math.exp %90 : vector<8x8xf32>
    %cst_29 = arith.constant dense<0.000000e+00> : vector<8xf32>
    %92 = vector.multi_reduction <add>, %91, %cst_29 [1] : vector<8x8xf32> to vector<8xf32>
    %93 = vector.shape_cast %92 : vector<8xf32> to vector<8x1xf32>
    %94 = tpu.reciprocal %93 {approx = true} : vector<8x1xf32> -> vector<8x1xf32>
    %95 = vector.broadcast %94 : vector<8x1xf32> to vector<8x8xf32>
    %96 = arith.mulf %91, %95 : vector<8x8xf32>
    %97 = arith.truncf %96 : vector<8x8xf32> to vector<8x8xbf16>
    %98 = vector.extract_strided_slice %22 {offsets = [0, 24], sizes = [8, 8], strides = [1, 1]} : vector<8x32xbf16> to vector<8x8xbf16>
    %cst_30 = arith.constant dense<0.000000e+00> : vector<8x8xf32>
    %99 = tpu.matmul %97, %98, %cst_30 {dimension_numbers = #tpu.dot_dimension_numbers<[1], [0], [0], [1], [0, 0, 1, 1], [], []>} : vector<8x8xbf16>, vector<8x8xbf16>, vector<8x8xf32> -> vector<8x8xf32>
    %100 = tpu.concatenate %45, %63, %81, %99 in 1 : vector<8x8xf32>, vector<8x8xf32>, vector<8x8xf32>, vector<8x8xf32> -> vector<8x32xf32>
    %101 = arith.truncf %100 : vector<8x32xf32> to vector<8x32xbf16>
    %c0_31 = arith.constant 0 : index
    %c0_32 = arith.constant 0 : index
    %102 = vector.load %arg7[%c0_31, %c0_32] : memref<32x32xf32, #tpu.memory_space<vmem>>, vector<32x32xf32>
    %103 = arith.truncf %102 : vector<32x32xf32> to vector<32x32xbf16>
    %cst_33 = arith.constant dense<0.000000e+00> : vector<8x32xf32>
    %104 = tpu.matmul %101, %103, %cst_33 {dimension_numbers = #tpu.dot_dimension_numbers<[1], [0], [0], [1], [0, 0, 1, 1], [], []>} : vector<8x32xbf16>, vector<32x32xbf16>, vector<8x32xf32> -> vector<8x32xf32>
    %105 = arith.addf %1, %104 : vector<8x32xf32>
    %c0_34 = arith.constant 0 : index
    %c0_35 = arith.constant 0 : index
    %106 = vector.load %arg8[%c0_34, %c0_35] : memref<1x32xf32, #tpu.memory_space<vmem>>, vector<1x32xf32>
    %107 = vector.broadcast %106 : vector<1x32xf32> to vector<8x32xf32>
    %108 = arith.addf %105, %107 : vector<8x32xf32>
    %cst_36 = arith.constant dense<0.000000e+00> : vector<8xf32>
    %109 = vector.multi_reduction <add>, %108, %cst_36 [1] : vector<8x32xf32> to vector<8xf32>
    %110 = vector.shape_cast %109 : vector<8xf32> to vector<8x1xf32>
    %cst_37 = arith.constant 3.200000e+01 : f32
    %111 = vector.broadcast %cst_37 : f32 to vector<8x1xf32>
    %112 = arith.divf %110, %111 : vector<8x1xf32>
    %113 = vector.broadcast %112 : vector<8x1xf32> to vector<8x32xf32>
    %114 = arith.subf %108, %113 : vector<8x32xf32>
    %115 = arith.mulf %114, %114 : vector<8x32xf32>
    %cst_38 = arith.constant dense<0.000000e+00> : vector<8xf32>
    %116 = vector.multi_reduction <add>, %115, %cst_38 [1] : vector<8x32xf32> to vector<8xf32>
    %117 = vector.shape_cast %116 : vector<8xf32> to vector<8x1xf32>
    %cst_39 = arith.constant 3.200000e+01 : f32
    %118 = vector.broadcast %cst_39 : f32 to vector<8x1xf32>
    %119 = arith.divf %117, %118 : vector<8x1xf32>
    %120 = vector.broadcast %112 : vector<8x1xf32> to vector<8x32xf32>
    %121 = arith.subf %108, %120 : vector<8x32xf32>
    %cst_40 = arith.constant 9.99999974E-6 : f32
    %122 = vector.broadcast %cst_40 : f32 to vector<8x1xf32>
    %123 = arith.addf %119, %122 : vector<8x1xf32>
    %124 = math.rsqrt %123 : vector<8x1xf32>
    %125 = vector.broadcast %124 : vector<8x1xf32> to vector<8x32xf32>
    %126 = arith.mulf %121, %125 : vector<8x32xf32>
    %c0_41 = arith.constant 0 : index
    %c0_42 = arith.constant 0 : index
    %127 = vector.load %arg9[%c0_41, %c0_42] : memref<1x32xf32, #tpu.memory_space<vmem>>, vector<1x32xf32>
    %128 = vector.broadcast %127 : vector<1x32xf32> to vector<8x32xf32>
    %129 = arith.mulf %126, %128 : vector<8x32xf32>
    %c0_43 = arith.constant 0 : index
    %c0_44 = arith.constant 0 : index
    %130 = vector.load %arg10[%c0_43, %c0_44] : memref<1x32xf32, #tpu.memory_space<vmem>>, vector<1x32xf32>
    %131 = vector.broadcast %130 : vector<1x32xf32> to vector<8x32xf32>
    %132 = arith.addf %129, %131 : vector<8x32xf32>
    %c0_45 = arith.constant 0 : index
    %c0_46 = arith.constant 0 : index
    %133 = vector.load %arg11[%c0_45, %c0_46] : memref<8x32xf32, #tpu.memory_space<vmem>>, vector<8x32xf32>
    tpu.vector_store %arg11[%c0_45, %c0_46], %132 {strides = array<i32>} : memref<8x32xf32, #tpu.memory_space<vmem>>, vector<8x32xf32>,
    return
  }
  func.func @transform_0(%arg0: i32, %arg1: i32) -> (i32, i32) {
    %c0_i32 = arith.constant 0 : i32
    %c0_i32_0 = arith.constant 0 : i32
    return %arg0, %c0_i32 : i32, i32
  }
  func.func @transform_1(%arg0: i32, %arg1: i32) -> (i32, i32) {
    %c0_i32 = arith.constant 0 : i32
    %c0_i32_0 = arith.constant 0 : i32
    %c0_i32_1 = arith.constant 0 : i32
    return %c0_i32, %c0_i32_0 : i32, i32
  }
  func.func @transform_2(%arg0: i32, %arg1: i32) -> (i32, i32) {
    %c0_i32 = arith.constant 0 : i32
    %c0_i32_0 = arith.constant 0 : i32
    %c0_i32_1 = arith.constant 0 : i32
    return %c0_i32, %c0_i32_0 : i32, i32
  }
  func.func @transform_3(%arg0: i32, %arg1: i32) -> (i32, i32) {
    %c0_i32 = arith.constant 0 : i32
    %c0_i32_0 = arith.constant 0 : i32
    %c0_i32_1 = arith.constant 0 : i32
    return %c0_i32, %c0_i32_0 : i32, i32
  }
  func.func @transform_4(%arg0: i32, %arg1: i32) -> (i32, i32) {
    %c0_i32 = arith.constant 0 : i32
    %c0_i32_0 = arith.constant 0 : i32
    %c0_i32_1 = arith.constant 0 : i32
    return %c0_i32, %c0_i32_0 : i32, i32
  }
  func.func @transform_5(%arg0: i32, %arg1: i32) -> (i32, i32) {
    %c0_i32 = arith.constant 0 : i32
    %c0_i32_0 = arith.constant 0 : i32
    %c0_i32_1 = arith.constant 0 : i32
    return %c0_i32, %c0_i32_0 : i32, i32
  }
  func.func @transform_6(%arg0: i32, %arg1: i32) -> (i32, i32) {
    %c0_i32 = arith.constant 0 : i32
    %c0_i32_0 = arith.constant 0 : i32
    %c0_i32_1 = arith.constant 0 : i32
    return %c0_i32, %c0_i32_0 : i32, i32
  }
  func.func @transform_7(%arg0: i32, %arg1: i32) -> (i32, i32) {
    %c0_i32 = arith.constant 0 : i32
    %c0_i32_0 = arith.constant 0 : i32
    %c0_i32_1 = arith.constant 0 : i32
    return %c0_i32, %c0_i32_0 : i32, i32
  }
  func.func @transform_8(%arg0: i32, %arg1: i32) -> (i32, i32) {
    %c0_i32 = arith.constant 0 : i32
    %c0_i32_0 = arith.constant 0 : i32
    %c0_i32_1 = arith.constant 0 : i32
    return %c0_i32, %c0_i32_0 : i32, i32
  }
  func.func @transform_9(%arg0: i32, %arg1: i32) -> (i32, i32) {
    %c1_i32 = arith.constant 1 : i32
    %0 = arith.muli %arg0, %c1_i32 : i32
    %1 = arith.addi %0, %arg1 : i32
    %c0_i32 = arith.constant 0 : i32
    %c0_i32_0 = arith.constant 0 : i32
    return %1, %c0_i32 : i32, i32
  }
}

module attributes {stable_mosaic.version = 11 : i64} {
  func.func @_mha_block_kernel(%arg0: i32, %arg1: i32, %arg2: memref<8x32xf32, #tpu.memory_space<vmem>>, %arg3: memref<8x32xf32, #tpu.memory_space<vmem>>, %arg4: memref<1x1x8xf32, #tpu.memory_space<vmem>>, %arg5: memref<32x32xf32, #tpu.memory_space<vmem>>, %arg6: memref<1x32xf32, #tpu.memory_space<vmem>>, %arg7: memref<32x64xf32, #tpu.memory_space<vmem>>, %arg8: memref<1x64xf32, #tpu.memory_space<vmem>>, %arg9: memref<32x32xf32, #tpu.memory_space<vmem>>, %arg10: memref<1x32xf32, #tpu.memory_space<vmem>>, %arg11: memref<1x32xf32, #tpu.memory_space<vmem>>, %arg12: memref<1x32xf32, #tpu.memory_space<vmem>>, %arg13: memref<8x32xf32, #tpu.memory_space<vmem>>, %arg14: memref<4x8x8xf32, #tpu.memory_space<vmem>>) attributes {dimension_semantics = [#tpu.dimension_semantics<parallel>, #tpu.dimension_semantics<parallel>], iteration_bounds = array<i64: 2, 1>, scalar_prefetch = 0 : i64, scratch_operands = 0 : i64, tpu.core_type = #tpu.core_type<tc>, window_params = [{transform_indices = @transform_0, window_bounds = array<i64: 8, 32>}, {transform_indices = @transform_1, window_bounds = array<i64: 8, 32>}, {transform_indices = @transform_2, window_bounds = array<i64: 1, 1, 8>}, {pipeline_mode = #tpu.pipeline_mode<synchronous>, transform_indices = @transform_3, window_bounds = array<i64: 32, 32>}, {pipeline_mode = #tpu.pipeline_mode<synchronous>, transform_indices = @transform_4, window_bounds = array<i64: 1, 32>}, {pipeline_mode = #tpu.pipeline_mode<synchronous>, transform_indices = @transform_5, window_bounds = array<i64: 32, 64>}, {pipeline_mode = #tpu.pipeline_mode<synchronous>, transform_indices = @transform_6, window_bounds = array<i64: 1, 64>}, {pipeline_mode = #tpu.pipeline_mode<synchronous>, transform_indices = @transform_7, window_bounds = array<i64: 32, 32>}, {pipeline_mode = #tpu.pipeline_mode<synchronous>, transform_indices = @transform_8, window_bounds = array<i64: 1, 32>}, {pipeline_mode = #tpu.pipeline_mode<synchronous>, transform_indices = @transform_9, window_bounds = array<i64: 1, 32>}, {pipeline_mode = #tpu.pipeline_mode<synchronous>, transform_indices = @transform_10, window_bounds = array<i64: 1, 32>}, {transform_indices = @transform_11, window_bounds = array<i64: 8, 32>}, {transform_indices = @transform_12, window_bounds = array<i64: 4, 8, 8>}]} {
    %c0 = arith.constant 0 : index
    %c0_0 = arith.constant 0 : index
    %0 = vector.load %arg2[%c0, %c0_0] : memref<8x32xf32, #tpu.memory_space<vmem>>, vector<8x32xf32>
    %c0_1 = arith.constant 0 : index
    %c0_2 = arith.constant 0 : index
    %1 = vector.load %arg3[%c0_1, %c0_2] : memref<8x32xf32, #tpu.memory_space<vmem>>, vector<8x32xf32>
    %2 = arith.truncf %0 : vector<8x32xf32> to vector<8x32xbf16>
    %c0_3 = arith.constant 0 : index
    %c0_4 = arith.constant 0 : index
    %3 = vector.load %arg5[%c0_3, %c0_4] : memref<32x32xf32, #tpu.memory_space<vmem>>, vector<32x32xf32>
    %4 = arith.truncf %3 : vector<32x32xf32> to vector<32x32xbf16>
    %cst = arith.constant dense<0.000000e+00> : vector<8x32xf32>
    %5 = tpu.matmul %2, %4, %cst {dimension_numbers = #tpu.dot_dimension_numbers<[1], [0], [0], [1], [0, 0, 1, 1], [], []>} : vector<8x32xbf16>, vector<32x32xbf16>, vector<8x32xf32> -> vector<8x32xf32>
    %c0_5 = arith.constant 0 : index
    %c0_6 = arith.constant 0 : index
    %6 = vector.load %arg6[%c0_5, %c0_6] : memref<1x32xf32, #tpu.memory_space<vmem>>, vector<1x32xf32>
    %7 = vector.broadcast %6 : vector<1x32xf32> to vector<8x32xf32>
    %8 = arith.addf %5, %7 : vector<8x32xf32>
    %cst_7 = arith.constant 0.353553385 : f32
    %9 = vector.broadcast %cst_7 : f32 to vector<8x32xf32>
    %10 = arith.mulf %8, %9 : vector<8x32xf32>
    %11 = arith.truncf %1 : vector<8x32xf32> to vector<8x32xbf16>
    %c0_8 = arith.constant 0 : index
    %c0_9 = arith.constant 0 : index
    %12 = vector.load %arg7[%c0_8, %c0_9] : memref<32x64xf32, #tpu.memory_space<vmem>>, vector<32x64xf32>
    %13 = arith.truncf %12 : vector<32x64xf32> to vector<32x64xbf16>
    %cst_10 = arith.constant dense<0.000000e+00> : vector<8x64xf32>
    %14 = tpu.matmul %11, %13, %cst_10 {dimension_numbers = #tpu.dot_dimension_numbers<[1], [0], [0], [1], [0, 0, 1, 1], [], []>} : vector<8x32xbf16>, vector<32x64xbf16>, vector<8x64xf32> -> vector<8x64xf32>
    %c0_11 = arith.constant 0 : index
    %c0_12 = arith.constant 0 : index
    %15 = vector.load %arg8[%c0_11, %c0_12] : memref<1x64xf32, #tpu.memory_space<vmem>>, vector<1x64xf32>
    %16 = vector.broadcast %15 : vector<1x64xf32> to vector<8x64xf32>
    %17 = arith.addf %14, %16 : vector<8x64xf32>
    %18 = arith.truncf %10 : vector<8x32xf32> to vector<8x32xbf16>
    %19 = vector.extract_strided_slice %17 {offsets = [0, 0], sizes = [8, 32], strides = [1, 1]} : vector<8x64xf32> to vector<8x32xf32>
    %20 = arith.truncf %19 : vector<8x32xf32> to vector<8x32xbf16>
    %21 = vector.extract_strided_slice %17 {offsets = [0, 32], sizes = [8, 32], strides = [1, 1]} : vector<8x64xf32> to vector<8x32xf32>
    %22 = arith.truncf %21 : vector<8x32xf32> to vector<8x32xbf16>
    %c0_13 = arith.constant 0 : index
    %c0_14 = arith.constant 0 : index
    %c0_15 = arith.constant 0 : index
    %23 = vector.load %arg4[%c0_13, %c0_14, %c0_15] : memref<1x1x8xf32, #tpu.memory_space<vmem>>, vector<1x1x8xf32>
    %24 = vector.shape_cast %23 : vector<1x1x8xf32> to vector<1x8xf32>
    %cst_16 = arith.constant 0.000000e+00 : f32
    %25 = vector.broadcast %cst_16 : f32 to vector<1x8xf32>
    %26 = arith.cmpf ogt, %24, %25 : vector<1x8xf32>
    %27 = vector.extract_strided_slice %18 {offsets = [0, 0], sizes = [8, 8], strides = [1, 1]} : vector<8x32xbf16> to vector<8x8xbf16>
    %28 = vector.extract_strided_slice %20 {offsets = [0, 0], sizes = [8, 8], strides = [1, 1]} : vector<8x32xbf16> to vector<8x8xbf16>
    "tpu.trace_start"() <{level = 10 : i32, message = "qd,kd->qk"}> : () -> ()
    %cst_17 = arith.constant dense<0.000000e+00> : vector<8x8xf32>
    %29 = tpu.matmul %27, %28, %cst_17 {dimension_numbers = #tpu.dot_dimension_numbers<[1], [1], [0], [0], [0, 0, 1, 0], [], []>} : vector<8x8xbf16>, vector<8x8xbf16>, vector<8x8xf32> -> vector<8x8xf32>
    %cst_18 = arith.constant -1.000000e+10 : f32
    "tpu.trace_stop"() : () -> ()
    %30 = vector.shape_cast %26 : vector<1x8xi1> to vector<1x8xi1>
    %31 = vector.broadcast %30 : vector<1x8xi1> to vector<8x8xi1>
    %32 = vector.broadcast %cst_18 : f32 to vector<8x8xf32>
    %33 = arith.select %31, %29, %32 : vector<8x8xi1>, vector<8x8xf32>
    %cst_19 = arith.constant dense<0xFF800000> : vector<8xf32>
    %34 = vector.multi_reduction <maximumf>, %33, %cst_19 [1] : vector<8x8xf32> to vector<8xf32>
    %35 = vector.shape_cast %34 : vector<8xf32> to vector<8x1xf32>
    %36 = vector.broadcast %35 : vector<8x1xf32> to vector<8x8xf32>
    %37 = arith.subf %33, %36 : vector<8x8xf32>
    %38 = math.exp %37 : vector<8x8xf32>
    %cst_20 = arith.constant dense<0.000000e+00> : vector<8xf32>
    %39 = vector.multi_reduction <add>, %38, %cst_20 [1] : vector<8x8xf32> to vector<8xf32>
    %40 = vector.shape_cast %39 : vector<8xf32> to vector<8x1xf32>
    %41 = vector.broadcast %40 : vector<8x1xf32> to vector<8x8xf32>
    %42 = arith.divf %38, %41 : vector<8x8xf32>
    %c0_21 = arith.constant 0 : index
    %c0_22 = arith.constant 0 : index
    %c0_23 = arith.constant 0 : index
    %43 = vector.load %arg14[%c0_21, %c0_22, %c0_23] : memref<4x8x8xf32, #tpu.memory_space<vmem>>, vector<1x8x8xf32>
    %44 = vector.shape_cast %43 : vector<1x8x8xf32> to vector<8x8xf32>
    %45 = vector.shape_cast %42 : vector<8x8xf32> to vector<1x8x8xf32>
    tpu.vector_store %arg14[%c0_21, %c0_22, %c0_23], %45 {strides = array<i32>} : memref<4x8x8xf32, #tpu.memory_space<vmem>>, vector<1x8x8xf32>,
    %46 = arith.truncf %42 : vector<8x8xf32> to vector<8x8xbf16>
    %47 = vector.extract_strided_slice %22 {offsets = [0, 0], sizes = [8, 8], strides = [1, 1]} : vector<8x32xbf16> to vector<8x8xbf16>
    %cst_24 = arith.constant dense<0.000000e+00> : vector<8x8xf32>
    %48 = tpu.matmul %46, %47, %cst_24 {dimension_numbers = #tpu.dot_dimension_numbers<[1], [0], [0], [1], [0, 0, 1, 1], [], []>} : vector<8x8xbf16>, vector<8x8xbf16>, vector<8x8xf32> -> vector<8x8xf32>
    %49 = vector.extract_strided_slice %18 {offsets = [0, 8], sizes = [8, 8], strides = [1, 1]} : vector<8x32xbf16> to vector<8x8xbf16>
    %50 = vector.extract_strided_slice %20 {offsets = [0, 8], sizes = [8, 8], strides = [1, 1]} : vector<8x32xbf16> to vector<8x8xbf16>
    "tpu.trace_start"() <{level = 10 : i32, message = "qd,kd->qk"}> : () -> ()
    %cst_25 = arith.constant dense<0.000000e+00> : vector<8x8xf32>
    %51 = tpu.matmul %49, %50, %cst_25 {dimension_numbers = #tpu.dot_dimension_numbers<[1], [1], [0], [0], [0, 0, 1, 0], [], []>} : vector<8x8xbf16>, vector<8x8xbf16>, vector<8x8xf32> -> vector<8x8xf32>
    %cst_26 = arith.constant -1.000000e+10 : f32
    "tpu.trace_stop"() : () -> ()
    %52 = vector.shape_cast %26 : vector<1x8xi1> to vector<1x8xi1>
    %53 = vector.broadcast %52 : vector<1x8xi1> to vector<8x8xi1>
    %54 = vector.broadcast %cst_26 : f32 to vector<8x8xf32>
    %55 = arith.select %53, %51, %54 : vector<8x8xi1>, vector<8x8xf32>
    %cst_27 = arith.constant dense<0xFF800000> : vector<8xf32>
    %56 = vector.multi_reduction <maximumf>, %55, %cst_27 [1] : vector<8x8xf32> to vector<8xf32>
    %57 = vector.shape_cast %56 : vector<8xf32> to vector<8x1xf32>
    %58 = vector.broadcast %57 : vector<8x1xf32> to vector<8x8xf32>
    %59 = arith.subf %55, %58 : vector<8x8xf32>
    %60 = math.exp %59 : vector<8x8xf32>
    %cst_28 = arith.constant dense<0.000000e+00> : vector<8xf32>
    %61 = vector.multi_reduction <add>, %60, %cst_28 [1] : vector<8x8xf32> to vector<8xf32>
    %62 = vector.shape_cast %61 : vector<8xf32> to vector<8x1xf32>
    %63 = vector.broadcast %62 : vector<8x1xf32> to vector<8x8xf32>
    %64 = arith.divf %60, %63 : vector<8x8xf32>
    %c1 = arith.constant 1 : index
    %c0_29 = arith.constant 0 : index
    %c0_30 = arith.constant 0 : index
    %65 = vector.load %arg14[%c1, %c0_29, %c0_30] : memref<4x8x8xf32, #tpu.memory_space<vmem>>, vector<1x8x8xf32>
    %66 = vector.shape_cast %65 : vector<1x8x8xf32> to vector<8x8xf32>
    %67 = vector.shape_cast %64 : vector<8x8xf32> to vector<1x8x8xf32>
    tpu.vector_store %arg14[%c1, %c0_29, %c0_30], %67 {strides = array<i32>} : memref<4x8x8xf32, #tpu.memory_space<vmem>>, vector<1x8x8xf32>,
    %68 = arith.truncf %64 : vector<8x8xf32> to vector<8x8xbf16>
    %69 = vector.extract_strided_slice %22 {offsets = [0, 8], sizes = [8, 8], strides = [1, 1]} : vector<8x32xbf16> to vector<8x8xbf16>
    %cst_31 = arith.constant dense<0.000000e+00> : vector<8x8xf32>
    %70 = tpu.matmul %68, %69, %cst_31 {dimension_numbers = #tpu.dot_dimension_numbers<[1], [0], [0], [1], [0, 0, 1, 1], [], []>} : vector<8x8xbf16>, vector<8x8xbf16>, vector<8x8xf32> -> vector<8x8xf32>
    %71 = vector.extract_strided_slice %18 {offsets = [0, 16], sizes = [8, 8], strides = [1, 1]} : vector<8x32xbf16> to vector<8x8xbf16>
    %72 = vector.extract_strided_slice %20 {offsets = [0, 16], sizes = [8, 8], strides = [1, 1]} : vector<8x32xbf16> to vector<8x8xbf16>
    "tpu.trace_start"() <{level = 10 : i32, message = "qd,kd->qk"}> : () -> ()
    %cst_32 = arith.constant dense<0.000000e+00> : vector<8x8xf32>
    %73 = tpu.matmul %71, %72, %cst_32 {dimension_numbers = #tpu.dot_dimension_numbers<[1], [1], [0], [0], [0, 0, 1, 0], [], []>} : vector<8x8xbf16>, vector<8x8xbf16>, vector<8x8xf32> -> vector<8x8xf32>
    %cst_33 = arith.constant -1.000000e+10 : f32
    "tpu.trace_stop"() : () -> ()
    %74 = vector.shape_cast %26 : vector<1x8xi1> to vector<1x8xi1>
    %75 = vector.broadcast %74 : vector<1x8xi1> to vector<8x8xi1>
    %76 = vector.broadcast %cst_33 : f32 to vector<8x8xf32>
    %77 = arith.select %75, %73, %76 : vector<8x8xi1>, vector<8x8xf32>
    %cst_34 = arith.constant dense<0xFF800000> : vector<8xf32>
    %78 = vector.multi_reduction <maximumf>, %77, %cst_34 [1] : vector<8x8xf32> to vector<8xf32>
    %79 = vector.shape_cast %78 : vector<8xf32> to vector<8x1xf32>
    %80 = vector.broadcast %79 : vector<8x1xf32> to vector<8x8xf32>
    %81 = arith.subf %77, %80 : vector<8x8xf32>
    %82 = math.exp %81 : vector<8x8xf32>
    %cst_35 = arith.constant dense<0.000000e+00> : vector<8xf32>
    %83 = vector.multi_reduction <add>, %82, %cst_35 [1] : vector<8x8xf32> to vector<8xf32>
    %84 = vector.shape_cast %83 : vector<8xf32> to vector<8x1xf32>
    %85 = vector.broadcast %84 : vector<8x1xf32> to vector<8x8xf32>
    %86 = arith.divf %82, %85 : vector<8x8xf32>
    %c2 = arith.constant 2 : index
    %c0_36 = arith.constant 0 : index
    %c0_37 = arith.constant 0 : index
    %87 = vector.load %arg14[%c2, %c0_36, %c0_37] : memref<4x8x8xf32, #tpu.memory_space<vmem>>, vector<1x8x8xf32>
    %88 = vector.shape_cast %87 : vector<1x8x8xf32> to vector<8x8xf32>
    %89 = vector.shape_cast %86 : vector<8x8xf32> to vector<1x8x8xf32>
    tpu.vector_store %arg14[%c2, %c0_36, %c0_37], %89 {strides = array<i32>} : memref<4x8x8xf32, #tpu.memory_space<vmem>>, vector<1x8x8xf32>,
    %90 = arith.truncf %86 : vector<8x8xf32> to vector<8x8xbf16>
    %91 = vector.extract_strided_slice %22 {offsets = [0, 16], sizes = [8, 8], strides = [1, 1]} : vector<8x32xbf16> to vector<8x8xbf16>
    %cst_38 = arith.constant dense<0.000000e+00> : vector<8x8xf32>
    %92 = tpu.matmul %90, %91, %cst_38 {dimension_numbers = #tpu.dot_dimension_numbers<[1], [0], [0], [1], [0, 0, 1, 1], [], []>} : vector<8x8xbf16>, vector<8x8xbf16>, vector<8x8xf32> -> vector<8x8xf32>
    %93 = vector.extract_strided_slice %18 {offsets = [0, 24], sizes = [8, 8], strides = [1, 1]} : vector<8x32xbf16> to vector<8x8xbf16>
    %94 = vector.extract_strided_slice %20 {offsets = [0, 24], sizes = [8, 8], strides = [1, 1]} : vector<8x32xbf16> to vector<8x8xbf16>
    "tpu.trace_start"() <{level = 10 : i32, message = "qd,kd->qk"}> : () -> ()
    %cst_39 = arith.constant dense<0.000000e+00> : vector<8x8xf32>
    %95 = tpu.matmul %93, %94, %cst_39 {dimension_numbers = #tpu.dot_dimension_numbers<[1], [1], [0], [0], [0, 0, 1, 0], [], []>} : vector<8x8xbf16>, vector<8x8xbf16>, vector<8x8xf32> -> vector<8x8xf32>
    %cst_40 = arith.constant -1.000000e+10 : f32
    "tpu.trace_stop"() : () -> ()
    %96 = vector.shape_cast %26 : vector<1x8xi1> to vector<1x8xi1>
    %97 = vector.broadcast %96 : vector<1x8xi1> to vector<8x8xi1>
    %98 = vector.broadcast %cst_40 : f32 to vector<8x8xf32>
    %99 = arith.select %97, %95, %98 : vector<8x8xi1>, vector<8x8xf32>
    %cst_41 = arith.constant dense<0xFF800000> : vector<8xf32>
    %100 = vector.multi_reduction <maximumf>, %99, %cst_41 [1] : vector<8x8xf32> to vector<8xf32>
    %101 = vector.shape_cast %100 : vector<8xf32> to vector<8x1xf32>
    %102 = vector.broadcast %101 : vector<8x1xf32> to vector<8x8xf32>
    %103 = arith.subf %99, %102 : vector<8x8xf32>
    %104 = math.exp %103 : vector<8x8xf32>
    %cst_42 = arith.constant dense<0.000000e+00> : vector<8xf32>
    %105 = vector.multi_reduction <add>, %104, %cst_42 [1] : vector<8x8xf32> to vector<8xf32>
    %106 = vector.shape_cast %105 : vector<8xf32> to vector<8x1xf32>
    %107 = vector.broadcast %106 : vector<8x1xf32> to vector<8x8xf32>
    %108 = arith.divf %104, %107 : vector<8x8xf32>
    %c3 = arith.constant 3 : index
    %c0_43 = arith.constant 0 : index
    %c0_44 = arith.constant 0 : index
    %109 = vector.load %arg14[%c3, %c0_43, %c0_44] : memref<4x8x8xf32, #tpu.memory_space<vmem>>, vector<1x8x8xf32>
    %110 = vector.shape_cast %109 : vector<1x8x8xf32> to vector<8x8xf32>
    %111 = vector.shape_cast %108 : vector<8x8xf32> to vector<1x8x8xf32>
    tpu.vector_store %arg14[%c3, %c0_43, %c0_44], %111 {strides = array<i32>} : memref<4x8x8xf32, #tpu.memory_space<vmem>>, vector<1x8x8xf32>,
    %112 = arith.truncf %108 : vector<8x8xf32> to vector<8x8xbf16>
    %113 = vector.extract_strided_slice %22 {offsets = [0, 24], sizes = [8, 8], strides = [1, 1]} : vector<8x32xbf16> to vector<8x8xbf16>
    %cst_45 = arith.constant dense<0.000000e+00> : vector<8x8xf32>
    %114 = tpu.matmul %112, %113, %cst_45 {dimension_numbers = #tpu.dot_dimension_numbers<[1], [0], [0], [1], [0, 0, 1, 1], [], []>} : vector<8x8xbf16>, vector<8x8xbf16>, vector<8x8xf32> -> vector<8x8xf32>
    %115 = tpu.concatenate %48, %70, %92, %114 in 1 : vector<8x8xf32>, vector<8x8xf32>, vector<8x8xf32>, vector<8x8xf32> -> vector<8x32xf32>
    %116 = arith.truncf %115 : vector<8x32xf32> to vector<8x32xbf16>
    %c0_46 = arith.constant 0 : index
    %c0_47 = arith.constant 0 : index
    %117 = vector.load %arg9[%c0_46, %c0_47] : memref<32x32xf32, #tpu.memory_space<vmem>>, vector<32x32xf32>
    %118 = arith.truncf %117 : vector<32x32xf32> to vector<32x32xbf16>
    %cst_48 = arith.constant dense<0.000000e+00> : vector<8x32xf32>
    %119 = tpu.matmul %116, %118, %cst_48 {dimension_numbers = #tpu.dot_dimension_numbers<[1], [0], [0], [1], [0, 0, 1, 1], [], []>} : vector<8x32xbf16>, vector<32x32xbf16>, vector<8x32xf32> -> vector<8x32xf32>
    %120 = arith.addf %0, %119 : vector<8x32xf32>
    %c0_49 = arith.constant 0 : index
    %c0_50 = arith.constant 0 : index
    %121 = vector.load %arg10[%c0_49, %c0_50] : memref<1x32xf32, #tpu.memory_space<vmem>>, vector<1x32xf32>
    %122 = vector.broadcast %121 : vector<1x32xf32> to vector<8x32xf32>
    %123 = arith.addf %120, %122 : vector<8x32xf32>
    %cst_51 = arith.constant dense<0.000000e+00> : vector<8xf32>
    %124 = vector.multi_reduction <add>, %123, %cst_51 [1] : vector<8x32xf32> to vector<8xf32>
    %125 = vector.shape_cast %124 : vector<8xf32> to vector<8x1xf32>
    %cst_52 = arith.constant 3.200000e+01 : f32
    %126 = vector.broadcast %cst_52 : f32 to vector<8x1xf32>
    %127 = arith.divf %125, %126 : vector<8x1xf32>
    %128 = vector.broadcast %127 : vector<8x1xf32> to vector<8x32xf32>
    %129 = arith.subf %123, %128 : vector<8x32xf32>
    %130 = arith.mulf %129, %129 : vector<8x32xf32>
    %cst_53 = arith.constant dense<0.000000e+00> : vector<8xf32>
    %131 = vector.multi_reduction <add>, %130, %cst_53 [1] : vector<8x32xf32> to vector<8xf32>
    %132 = vector.shape_cast %131 : vector<8xf32> to vector<8x1xf32>
    %cst_54 = arith.constant 3.200000e+01 : f32
    %133 = vector.broadcast %cst_54 : f32 to vector<8x1xf32>
    %134 = arith.divf %132, %133 : vector<8x1xf32>
    %135 = vector.broadcast %127 : vector<8x1xf32> to vector<8x32xf32>
    %136 = arith.subf %123, %135 : vector<8x32xf32>
    %cst_55 = arith.constant 9.99999974E-6 : f32
    %137 = vector.broadcast %cst_55 : f32 to vector<8x1xf32>
    %138 = arith.addf %134, %137 : vector<8x1xf32>
    %139 = math.rsqrt %138 : vector<8x1xf32>
    %140 = vector.broadcast %139 : vector<8x1xf32> to vector<8x32xf32>
    %141 = arith.mulf %136, %140 : vector<8x32xf32>
    %c0_56 = arith.constant 0 : index
    %c0_57 = arith.constant 0 : index
    %142 = vector.load %arg11[%c0_56, %c0_57] : memref<1x32xf32, #tpu.memory_space<vmem>>, vector<1x32xf32>
    %143 = vector.broadcast %142 : vector<1x32xf32> to vector<8x32xf32>
    %144 = arith.mulf %141, %143 : vector<8x32xf32>
    %c0_58 = arith.constant 0 : index
    %c0_59 = arith.constant 0 : index
    %145 = vector.load %arg12[%c0_58, %c0_59] : memref<1x32xf32, #tpu.memory_space<vmem>>, vector<1x32xf32>
    %146 = vector.broadcast %145 : vector<1x32xf32> to vector<8x32xf32>
    %147 = arith.addf %144, %146 : vector<8x32xf32>
    %c0_60 = arith.constant 0 : index
    %c0_61 = arith.constant 0 : index
    %148 = vector.load %arg13[%c0_60, %c0_61] : memref<8x32xf32, #tpu.memory_space<vmem>>, vector<8x32xf32>
    tpu.vector_store %arg13[%c0_60, %c0_61], %147 {strides = array<i32>} : memref<8x32xf32, #tpu.memory_space<vmem>>, vector<8x32xf32>,
    return
  }
  func.func @transform_0(%arg0: i32, %arg1: i32) -> (i32, i32) {
    %c1_i32 = arith.constant 1 : i32
    %0 = arith.muli %arg0, %c1_i32 : i32
    %1 = arith.addi %0, %arg1 : i32
    %c0_i32 = arith.constant 0 : i32
    %c0_i32_0 = arith.constant 0 : i32
    return %1, %c0_i32 : i32, i32
  }
  func.func @transform_1(%arg0: i32, %arg1: i32) -> (i32, i32) {
    %c0_i32 = arith.constant 0 : i32
    %c0_i32_0 = arith.constant 0 : i32
    return %arg0, %c0_i32 : i32, i32
  }
  func.func @transform_2(%arg0: i32, %arg1: i32) -> (i32, i32, i32) {
    %c0_i32 = arith.constant 0 : i32
    %c0_i32_0 = arith.constant 0 : i32
    %c0_i32_1 = arith.constant 0 : i32
    return %arg0, %c0_i32, %c0_i32_0 : i32, i32, i32
  }
  func.func @transform_3(%arg0: i32, %arg1: i32) -> (i32, i32) {
    %c0_i32 = arith.constant 0 : i32
    %c0_i32_0 = arith.constant 0 : i32
    %c0_i32_1 = arith.constant 0 : i32
    return %c0_i32, %c0_i32_0 : i32, i32
  }
  func.func @transform_4(%arg0: i32, %arg1: i32) -> (i32, i32) {
    %c0_i32 = arith.constant 0 : i32
    %c0_i32_0 = arith.constant 0 : i32
    %c0_i32_1 = arith.constant 0 : i32
    return %c0_i32, %c0_i32_0 : i32, i32
  }
  func.func @transform_5(%arg0: i32, %arg1: i32) -> (i32, i32) {
    %c0_i32 = arith.constant 0 : i32
    %c0_i32_0 = arith.constant 0 : i32
    %c0_i32_1 = arith.constant 0 : i32
    return %c0_i32, %c0_i32_0 : i32, i32
  }
  func.func @transform_6(%arg0: i32, %arg1: i32) -> (i32, i32) {
    %c0_i32 = arith.constant 0 : i32
    %c0_i32_0 = arith.constant 0 : i32
    %c0_i32_1 = arith.constant 0 : i32
    return %c0_i32, %c0_i32_0 : i32, i32
  }
  func.func @transform_7(%arg0: i32, %arg1: i32) -> (i32, i32) {
    %c0_i32 = arith.constant 0 : i32
    %c0_i32_0 = arith.constant 0 : i32
    %c0_i32_1 = arith.constant 0 : i32
    return %c0_i32, %c0_i32_0 : i32, i32
  }
  func.func @transform_8(%arg0: i32, %arg1: i32) -> (i32, i32) {
    %c0_i32 = arith.constant 0 : i32
    %c0_i32_0 = arith.constant 0 : i32
    %c0_i32_1 = arith.constant 0 : i32
    return %c0_i32, %c0_i32_0 : i32, i32
  }
  func.func @transform_9(%arg0: i32, %arg1: i32) -> (i32, i32) {
    %c0_i32 = arith.constant 0 : i32
    %c0_i32_0 = arith.constant 0 : i32
    %c0_i32_1 = arith.constant 0 : i32
    return %c0_i32, %c0_i32_0 : i32, i32
  }
  func.func @transform_10(%arg0: i32, %arg1: i32) -> (i32, i32) {
    %c0_i32 = arith.constant 0 : i32
    %c0_i32_0 = arith.constant 0 : i32
    %c0_i32_1 = arith.constant 0 : i32
    return %c0_i32, %c0_i32_0 : i32, i32
  }
  func.func @transform_11(%arg0: i32, %arg1: i32) -> (i32, i32) {
    %c1_i32 = arith.constant 1 : i32
    %0 = arith.muli %arg0, %c1_i32 : i32
    %1 = arith.addi %0, %arg1 : i32
    %c0_i32 = arith.constant 0 : i32
    %c0_i32_0 = arith.constant 0 : i32
    return %1, %c0_i32 : i32, i32
  }
  func.func @transform_12(%arg0: i32, %arg1: i32) -> (i32, i32, i32) {
    %c0_i32 = arith.constant 0 : i32
    %c0_i32_0 = arith.constant 0 : i32
    return %arg0, %arg1, %c0_i32 : i32, i32, i32
  }
}

module attributes {stable_mosaic.version = 11 : i64} {
  func.func @_fc_kernel(%arg0: i32, %arg1: i32, %arg2: memref<16x32xf32, #tpu.memory_space<vmem>>, %arg3: memref<32x128xf32, #tpu.memory_space<vmem>>, %arg4: memref<1x128xf32, #tpu.memory_space<vmem>>, %arg5: memref<16x128xf32, #tpu.memory_space<vmem>>) attributes {dimension_semantics = [#tpu.dimension_semantics<parallel>, #tpu.dimension_semantics<parallel>], iteration_bounds = array<i64: 1, 1>, scalar_prefetch = 0 : i64, scratch_operands = 0 : i64, tpu.core_type = #tpu.core_type<tc>, window_params = [{transform_indices = @transform_0, window_bounds = array<i64: 16, 32>}, {transform_indices = @transform_1, window_bounds = array<i64: 32, 128>}, {transform_indices = @transform_2, window_bounds = array<i64: 1, 128>}, {transform_indices = @transform_3, window_bounds = array<i64: 16, 128>}]} {
    %c0 = arith.constant 0 : index
    %c0_0 = arith.constant 0 : index
    %0 = vector.load %arg2[%c0, %c0_0] : memref<16x32xf32, #tpu.memory_space<vmem>>, vector<16x32xf32>
    %1 = arith.truncf %0 : vector<16x32xf32> to vector<16x32xbf16>
    %c0_1 = arith.constant 0 : index
    %c0_2 = arith.constant 0 : index
    %2 = vector.load %arg3[%c0_1, %c0_2] : memref<32x128xf32, #tpu.memory_space<vmem>>, vector<32x128xf32>
    %3 = arith.truncf %2 : vector<32x128xf32> to vector<32x128xbf16>
    %cst = arith.constant dense<0.000000e+00> : vector<16x128xf32>
    %4 = tpu.matmul %1, %3, %cst {dimension_numbers = #tpu.dot_dimension_numbers<[1], [0], [0], [1], [0, 0, 1, 1], [], []>} : vector<16x32xbf16>, vector<32x128xbf16>, vector<16x128xf32> -> vector<16x128xf32>
    %c0_3 = arith.constant 0 : index
    %c0_4 = arith.constant 0 : index
    %5 = vector.load %arg4[%c0_3, %c0_4] : memref<1x128xf32, #tpu.memory_space<vmem>>, vector<1x128xf32>
    %6 = vector.broadcast %5 : vector<1x128xf32> to vector<16x128xf32>
    %7 = arith.addf %4, %6 : vector<16x128xf32>
    %c0_5 = arith.constant 0 : index
    %c0_6 = arith.constant 0 : index
    %8 = vector.load %arg5[%c0_5, %c0_6] : memref<16x128xf32, #tpu.memory_space<vmem>>, vector<16x128xf32>
    tpu.vector_store %arg5[%c0_5, %c0_6], %7 {strides = array<i32>} : memref<16x128xf32, #tpu.memory_space<vmem>>, vector<16x128xf32>,
    return
  }
  func.func @transform_0(%arg0: i32, %arg1: i32) -> (i32, i32) {
    %c0_i32 = arith.constant 0 : i32
    %c0_i32_0 = arith.constant 0 : i32
    return %arg0, %c0_i32 : i32, i32
  }
  func.func @transform_1(%arg0: i32, %arg1: i32) -> (i32, i32) {
    %c0_i32 = arith.constant 0 : i32
    %c0_i32_0 = arith.constant 0 : i32
    return %c0_i32, %arg1 : i32, i32
  }
  func.func @transform_2(%arg0: i32, %arg1: i32) -> (i32, i32) {
    %c0_i32 = arith.constant 0 : i32
    %c0_i32_0 = arith.constant 0 : i32
    return %c0_i32, %arg1 : i32, i32
  }
  func.func @transform_3(%arg0: i32, %arg1: i32) -> (i32, i32) {
    %c0_i32 = arith.constant 0 : i32
    return %arg0, %arg1 : i32, i32
  }
}

</mosaic_0001>

<llo_original>
// kernel: decoder_forward.9
$region0: #{decoder_forward.9}
  #allocation0 [shape = 'u32[]', space=smem, size = 0x4, offset = 0x4, fixed_abs, tag = 'smem constant byte address 0x4 - core index']
  #allocation1 [shape = 'u32[144,128]{1,0:T(1,128)}', space=vmem, size = 0x12000, scoped, tag = 'internal scratch']
  #allocation2 [shape = 'f32[16,32]{1,0:T(8,128)}', space=vmem, size = 0x2000, scoped, tag = 'scratch operand']
  %s0 = inlined_call_operand.vmem [shape: f32[16,32], index: 0, kind: input, shape index: {}]
  %s1 = inlined_call_operand.vmem [shape: f32[32,64], index: 1, kind: input, shape index: {}]
  %s2 = inlined_call_operand.vmem [shape: f32[1,64], index: 2, kind: input, shape index: {}]
  %s3 = inlined_call_operand.vmem [shape: f32[64,32], index: 3, kind: input, shape index: {}]
  %s4 = inlined_call_operand.vmem [shape: f32[1,32], index: 4, kind: input, shape index: {}]
  %s5 = inlined_call_operand.vmem [shape: f32[1,32], index: 5, kind: input, shape index: {}]
  %s6 = inlined_call_operand.vmem [shape: f32[1,32], index: 6, kind: input, shape index: {}]
  %s7 = inlined_call_operand.vmem [shape: f32[16,32], index: 7, kind: output, shape index: {}]
  %s8 = sld [smem:[#allocation0]]
  $region46: #{decoder_forward.9} parent=0
    _
  %s10 = ssub.s32 1, %s8
  %s11 = scalar_select 0, %s10, %s8
  // Predicated region
  $region2: #{decoder_forward.9} parent=0 // pred_check
    _
  $region3: #{decoder_forward.9} parent=0 // pred_check_branch
    %13 = sbr.rel (0) target = $region5
  $region4: #{decoder_forward.9} parent=0 // pred_region
    _
  $region5: #{decoder_forward.9} parent=0 // pred_fallthru
    _
  // Predicated region
  $region6: #{decoder_forward.9} parent=0 // pred_check
    _
  $region7: #{decoder_forward.9} parent=0 // pred_check_branch
    %15 = sbr.rel (0) target = $region9
  $region8: #{decoder_forward.9} parent=0 // pred_region
    _
  $region9: #{decoder_forward.9} parent=0 // pred_fallthru
    _
  // Predicated region
  $region10: #{decoder_forward.9} parent=0 // pred_check
    _
  $region11: #{decoder_forward.9} parent=0 // pred_check_branch
    %17 = sbr.rel (0) target = $region13
  $region12: #{decoder_forward.9} parent=0 // pred_region
    _
  $region13: #{decoder_forward.9} parent=0 // pred_fallthru
    _
  // Predicated region
  $region14: #{decoder_forward.9} parent=0 // pred_check
    _
  $region15: #{decoder_forward.9} parent=0 // pred_check_branch
    %19 = sbr.rel (0) target = $region17
  $region16: #{decoder_forward.9} parent=0 // pred_region
    _
  $region17: #{decoder_forward.9} parent=0 // pred_fallthru
    _
  // Predicated region
  $region18: #{decoder_forward.9} parent=0 // pred_check
    _
  $region19: #{decoder_forward.9} parent=0 // pred_check_branch
    %21 = sbr.rel (0) target = $region21
  $region20: #{decoder_forward.9} parent=0 // pred_region
    _
  $region21: #{decoder_forward.9} parent=0 // pred_fallthru
    _
  // Predicated region
  $region22: #{decoder_forward.9} parent=0 // pred_check
    _
  $region23: #{decoder_forward.9} parent=0 // pred_check_branch
    %23 = sbr.rel (0) target = $region25
  $region24: #{decoder_forward.9} parent=0 // pred_region
    _
  $region25: #{decoder_forward.9} parent=0 // pred_fallthru
    _
  // Predicated region
  $region26: #{decoder_forward.9} parent=0 // pred_check
    _
  $region27: #{decoder_forward.9} parent=0 // pred_check_branch
    %25 = sbr.rel (0) target = $region29
  $region28: #{decoder_forward.9} parent=0 // pred_region
    _
  $region29: #{decoder_forward.9} parent=0 // pred_fallthru
    _
  %p27 = scmp.eq.s32.totalorder 0, 0
  // Predicated region
  $region30: #{decoder_forward.9} parent=0 // pred_check
    %p28 = pneg %p27
  $region31: #{decoder_forward.9} parent=0 // pred_check_branch
    %30 = sbr.rel (%p28) target = $region33
  $region32: #{decoder_forward.9} parent=0 // pred_region
    %vm31 = vcmask 261120
    %32 = vst.msk [vmem:[#allocation2] sm:$0xff] %vm31, 0.0
    %33 = vst.msk [vmem:[#allocation2 + $0x8] sm:$0xff] %vm31, 0.0
  $region33: #{decoder_forward.9} parent=0 // pred_fallthru
    _
  %v34 = vld [vmem:[%s0] sm:$0xff]
  %v35 = vld [vmem:[%s0 + $0x8] sm:$0xff]
  %v36 = vpack.c.bf16 %v35, %v34
  %v37 = vld [vmem:[%s1] sm:$0xff]
  %v38 = vld [vmem:[%s1 + $0x8] sm:$0xff]
  %v39 = vld [vmem:[%s1 + $0x10] sm:$0xff]
  %v40 = vld [vmem:[%s1 + $0x18] sm:$0xff]
  %v41 = vpack.c.bf16 %v38, %v37
  %v42 = vpack.c.bf16 %v40, %v39
  %v43 = vld [vmem:[%s2] sm:$0x1]
  %v45 = vlaneseq
  %v46 = vshrl.u32 %v45, 7
  %v47 = vsub.s32 0, %v46
  %v48 = vrot.slane %v43, %v47
  %vm50 = vcmask 261120
  %v52 = vsel %vm50, %v36, 0
  %54 = vmatprep.subr.bf16.mxu0 0
  %55 = vmatpush1.bf16.msra.mxu0 %v41
  %56 = vmatprep.subr.bf16.mxu0 0
  %57 = vmatpush1.bf16.msra.mxu0 %v42
  %58 = vmatprep.subr.bf16.mxu0 0
  %59 = vmatpush1.bf16.msra.mxu0 0
  %60 = vmatprep.subr.bf16.mxu0 0
  %61 = vmatpush1.bf16.msra.mxu0 0
  %62 = vmatprep.subr.bf16.mxu0 0
  %63 = vmatpush1.bf16.msra.mxu0 0
  %64 = vmatprep.subr.bf16.mxu0 0
  %65 = vmatpush1.bf16.msra.mxu0 0
  %66 = vmatprep.subr.bf16.mxu0 0
  %67 = vmatpush1.bf16.msra.mxu0 0
  %68 = vmatprep.subr.bf16.mxu0 0
  %69 = vmatpush1.bf16.msra.mxu0 0
  %70 = vmatprep.subr.bf16.mxu0 0
  %71 = vmatpush1.bf16.msra.mxu0 0
  %72 = vmatprep.subr.bf16.mxu0 0
  %73 = vmatpush1.bf16.msra.mxu0 0
  %74 = vmatprep.subr.bf16.mxu0 0
  %75 = vmatpush1.bf16.msra.mxu0 0
  %76 = vmatprep.subr.bf16.mxu0 0
  %77 = vmatpush1.bf16.msra.mxu0 0
  %78 = vmatprep.subr.bf16.mxu0 0
  %79 = vmatpush1.bf16.msra.mxu0 0
  %80 = vmatprep.subr.bf16.mxu0 0
  %81 = vmatpush1.bf16.msra.mxu0 0
  %82 = vmatprep.subr.bf16.mxu0 0
  %83 = vmatpush1.bf16.msra.mxu0 0
  %84 = vmatprep.subr.bf16.mxu0 0
  %85 = vmatpush1.bf16.msra.mxu0 0
  %86 = vmatprep.mubr.bf16.mxu0 0
  %87 = vmatmul.mubr.bf16.gmra.mrb[0].mxu0 %v52
  %v88 = vpop.f32.mrb[0].mxu0
  %v89 = vadd.f32 %v48, %v88
  %v90 = vpop.f32.mrb[0].mxu0
  %v91 = vpop.f32.mrb[0].mxu0
  %v92 = vadd.f32 %v48, %v91
  %v93 = vpop.f32.mrb[0].mxu0
  %94 = vdwg.mxu0
  %v95 = vmax.f32 %v89, 0.0
  %v96 = vmax.f32 %v92, 0.0
  %v97 = vld [vmem:[#allocation2] sm:$0xff]
  %v98 = vld [vmem:[#allocation2 + $0x8] sm:$0xff]
  %v99 = vpack.c.bf16 %v96, %v95
  %v100 = vld [vmem:[%s3] sm:$0xff]
  %v101 = vld [vmem:[%s3 + $0x8] sm:$0xff]
  %v102 = vld [vmem:[%s3 + $0x10] sm:$0xff]
  %v103 = vld [vmem:[%s3 + $0x18] sm:$0xff]
  %v104 = vld [vmem:[%s3 + $0x20] sm:$0xff]
  %v105 = vld [vmem:[%s3 + $0x28] sm:$0xff]
  %v106 = vld [vmem:[%s3 + $0x30] sm:$0xff]
  %v107 = vld [vmem:[%s3 + $0x38] sm:$0xff]
  %v108 = vpack.c.bf16 %v101, %v100
  %v109 = vpack.c.bf16 %v103, %v102
  %v110 = vpack.c.bf16 %v105, %v104
  %v111 = vpack.c.bf16 %v107, %v106
  %vm112 = vcmask 523264
  %v114 = vsel %vm112, %v99, 0
  %116 = vmatprep.subr.bf16.mxu0 0
  %117 = vmatpush1.bf16.msra.mxu0 %v108
  %118 = vmatprep.subr.bf16.mxu0 0
  %119 = vmatpush1.bf16.msra.mxu0 %v109
  %120 = vmatprep.subr.bf16.mxu0 0
  %121 = vmatpush1.bf16.msra.mxu0 %v110
  %122 = vmatprep.subr.bf16.mxu0 0
  %123 = vmatpush1.bf16.msra.mxu0 %v111
  %124 = vmatprep.subr.bf16.mxu0 0
  %125 = vmatpush1.bf16.msra.mxu0 0
  %126 = vmatprep.subr.bf16.mxu0 0
  %127 = vmatpush1.bf16.msra.mxu0 0
  %128 = vmatprep.subr.bf16.mxu0 0
  %129 = vmatpush1.bf16.msra.mxu0 0
  %130 = vmatprep.subr.bf16.mxu0 0
  %131 = vmatpush1.bf16.msra.mxu0 0
  %132 = vmatprep.subr.bf16.mxu0 0
  %133 = vmatpush1.bf16.msra.mxu0 0
  %134 = vmatprep.subr.bf16.mxu0 0
  %135 = vmatpush1.bf16.msra.mxu0 0
  %136 = vmatprep.subr.bf16.mxu0 0
  %137 = vmatpush1.bf16.msra.mxu0 0
  %138 = vmatprep.subr.bf16.mxu0 0
  %139 = vmatpush1.bf16.msra.mxu0 0
  %140 = vmatprep.subr.bf16.mxu0 0
  %141 = vmatpush1.bf16.msra.mxu0 0
  %142 = vmatprep.subr.bf16.mxu0 0
  %143 = vmatpush1.bf16.msra.mxu0 0
  %144 = vmatprep.subr.bf16.mxu0 0
  %145 = vmatpush1.bf16.msra.mxu0 0
  %146 = vmatprep.subr.bf16.mxu0 0
  %147 = vmatpush1.bf16.msra.mxu0 0
  %148 = vmatprep.mubr.bf16.mxu0 0
  %149 = vmatmul.mubr.bf16.gmra.mrb[0].mxu0 %v114
  %v150 = vpop.f32.mrb[0].mxu0
  %v151 = vadd.f32 0.0, %v150
  %v152 = vpop.f32.mrb[0].mxu0
  %v153 = vpop.f32.mrb[0].mxu0
  %v154 = vadd.f32 0.0, %v153
  %v155 = vpop.f32.mrb[0].mxu0
  %156 = vdwg.mxu0
  %v157 = vadd.f32 %v97, %v151
  %v158 = vadd.f32 %v98, %v154
  %159 = vst.msk [vmem:[#allocation2] sm:$0xff] %vm50, %v157
  %160 = vst.msk [vmem:[#allocation2 + $0x8] sm:$0xff] %vm50, %v158
  // Predicated region
  $region34: #{decoder_forward.9} parent=0 // pred_check
    %p161 = pneg %p27
  $region35: #{decoder_forward.9} parent=0 // pred_check_branch
    %163 = sbr.rel (%p161) target = $region37
  $region36: #{decoder_forward.9} parent=0 // pred_region
    %v164 = vld [vmem:[#allocation2] sm:$0xff]
    %v165 = vld [vmem:[#allocation2 + $0x8] sm:$0xff]
    %v166 = vadd.f32 %v34, %v164
    %v167 = vadd.f32 %v35, %v165
    %v168 = vld [vmem:[%s4] sm:$0x1]
    %v170 = vlaneseq
    %v171 = vshrl.u32 %v170, 7
    %v172 = vsub.s32 0, %v171
    %v173 = vrot.slane %v168, %v172
    %v175 = vadd.f32 %v166, %v173
    %v176 = vadd.f32 %v167, %v173
    %v177 = vsel %vm50, %v175, 0.0
    %178 = vadd.xlane.f32.xlu0 %v177
    %v179 = vpop.xlane.xlu0 %178
    %v180 = vsel %vm50, %v176, 0.0
    %181 = vadd.xlane.f32.xlu0 %v180
    %v182 = vpop.xlane.xlu0 %181
    %v183 = vrcp.pop 32.0
    %v184 = vmul.f32 %v179, %v183
    %v185 = vmul.f32 %v182, %v183
    %v186 = vsub.f32 %v175, %v184
    %v187 = vsub.f32 %v176, %v185
    %v188 = vmul.f32 %v186, %v186
    %v189 = vmul.f32 %v187, %v187
    %v190 = vsel %vm50, %v188, 0.0
    %191 = vadd.xlane.f32.xlu0 %v190
    %v192 = vpop.xlane.xlu0 %191
    %v193 = vsel %vm50, %v189, 0.0
    %194 = vadd.xlane.f32.xlu0 %v193
    %v195 = vpop.xlane.xlu0 %194
    %v196 = vmul.f32 %v192, %v183
    %v197 = vmul.f32 %v195, %v183
    %v198 = vadd.f32 %v196, 1e-05
    %v199 = vadd.f32 %v197, 1e-05
    %v200 = vrsqrt.pop %v198
    %v201 = vrsqrt.pop %v199
    %v202 = vmul.f32 %v186, %v200
    %v203 = vmul.f32 %v187, %v201
    %v204 = vld [vmem:[%s5] sm:$0x1]
    %v206 = vlaneseq
    %v207 = vshrl.u32 %v206, 7
    %v208 = vsub.s32 0, %v207
    %v209 = vrot.slane %v204, %v208
    %v211 = vmul.f32 %v202, %v209
    %v212 = vmul.f32 %v203, %v209
    %v213 = vld [vmem:[%s6] sm:$0x1]
    %v215 = vlaneseq
    %v216 = vshrl.u32 %v215, 7
    %v217 = vsub.s32 0, %v216
    %v218 = vrot.slane %v213, %v217
    %v220 = vadd.f32 %v211, %v218
    %v221 = vadd.f32 %v212, %v218
    %222 = vst.msk [vmem:[%s7] sm:$0xff] %vm50, %v220
    %223 = vst.msk [vmem:[%s7 + $0x8] sm:$0xff] %vm50, %v221
  $region37: #{decoder_forward.9} parent=0 // pred_fallthru
    _
  // Predicated region
  $region38: #{decoder_forward.9} parent=0 // pred_check
    _
  $region39: #{decoder_forward.9} parent=0 // pred_check_branch
    %225 = sbr.rel (0) target = $region41
  $region40: #{decoder_forward.9} parent=0 // pred_region
    _
  $region41: #{decoder_forward.9} parent=0 // pred_fallthru
    _
  // Predicated region
  $region42: #{decoder_forward.9} parent=0 // pred_check
    _
  $region43: #{decoder_forward.9} parent=0 // pred_check_branch
    %227 = sbr.rel (0) target = $region45
  $region44: #{decoder_forward.9} parent=0 // pred_region
    _
  $region45: #{decoder_forward.9} parent=0 // pred_fallthru
    _

// kernel: decoder_forward.7
$region0: #{decoder_forward.7}
  #allocation0 [shape = 'u32[]', space=smem, size = 0x4, offset = 0x4, fixed_abs, tag = 'smem constant byte address 0x4 - core index']
  #allocation1 [shape = 'u32[144,128]{1,0:T(1,128)}', space=vmem, size = 0x12000, scoped, tag = 'internal scratch']
  %s0 = inlined_call_operand.vmem [shape: f32[16,32], index: 0, kind: input, shape index: {}]
  %s1 = inlined_call_operand.vmem [shape: f32[8,32], index: 1, kind: input, shape index: {}]
  %s2 = inlined_call_operand.vmem [shape: f32[32,32], index: 2, kind: input, shape index: {}]
  %s3 = inlined_call_operand.vmem [shape: f32[1,32], index: 3, kind: input, shape index: {}]
  %s4 = inlined_call_operand.vmem [shape: f32[32,64], index: 4, kind: input, shape index: {}]
  %s5 = inlined_call_operand.vmem [shape: f32[1,64], index: 5, kind: input, shape index: {}]
  %s6 = inlined_call_operand.vmem [shape: f32[32,32], index: 6, kind: input, shape index: {}]
  %s7 = inlined_call_operand.vmem [shape: f32[1,32], index: 7, kind: input, shape index: {}]
  %s8 = inlined_call_operand.vmem [shape: f32[1,32], index: 8, kind: input, shape index: {}]
  %s9 = inlined_call_operand.vmem [shape: f32[1,32], index: 9, kind: input, shape index: {}]
  %s10 = inlined_call_operand.vmem [shape: f32[16,32], index: 10, kind: output, shape index: {}]
  %s11 = sld [smem:[#allocation0]]
  $region73: #{decoder_forward.7} parent=0
    _
  %s13 = ssub.s32 1, %s11
  %s14 = scalar_select 0, %s13, %s11
  loop: start=0, step=1, limit=4
  $region2: #{decoder_forward.7} parent=0 // loop_pre_header
    _
  $region3: #{decoder_forward.7} parent=0 // loop_header
    %s16 = sphi 0, %s20
    %p17 = scmp.ge.s32.totalorder %s16, 4
    %s23 = sphi 0, %s35
    %s24 = sphi 0, %s31
    %s25 = sphi 0, %s23
    %s26 = sphi 0, %s24
    %s27 = sphi 0, %s25
    %s28 = sphi 0, %s26
    %s38 = sphi 0, %s40
    %s41 = sphi 0, %s38
    %s42 = sphi 0, %s41
    %s58 = sphi 0, %s42
    %s62 = sphi 0, %s62
    %s64 = sphi 0, %s62
    %s65 = sphi 0, %s64
    %s79 = sphi 0, %s65
    %s83 = sphi 0, %s83
    %s85 = sphi 0, %s83
    %s86 = sphi 0, %s85
    %s100 = sphi 0, %s86
    %s104 = sphi 0, %s104
    %s106 = sphi 0, %s104
    %s107 = sphi 0, %s106
    %s121 = sphi 0, %s107
    %s125 = sphi 0, %s125
    %s127 = sphi 0, %s125
    %s128 = sphi 0, %s127
    %s142 = sphi 0, %s128
    %s146 = sphi 0, %s146
    %s148 = sphi 0, %s146
    %s149 = sphi 0, %s148
    %s163 = sphi 0, %s149
    %s167 = sphi 0, %s167
    %s169 = sphi 0, %s167
    %s170 = sphi 0, %s169
    %s184 = sphi 0, %s170
    %s188 = sphi 0, %s188
    %s190 = sphi 0, %s188
    %s191 = sphi 0, %s190
    %s205 = sphi 0, %s191
    %s209 = sphi 0, %s209
    %s211 = sphi 0, %s209
    %s212 = sphi 0, %s211
    %s226 = sphi 0, %s212
    %s230 = sphi 0, %s230
    %s232 = sphi 0, %s230
    %s233 = sphi 0, %s232
    %s247 = sphi 0, %s233
    %s255 = sphi 0, %s257
    %s258 = sphi 0, %s255
    %s259 = sphi 0, %s258
    %s275 = sphi 0, %s259
  $region4: #{decoder_forward.7} parent=0 // loop_header_branch
    %19 = sbr.rel (%p17) target = $region8
  $region5: #{decoder_forward.7} parent=0 // loop_body
    %s21 = ssub.s32 %s16, 1
    %s22 = ssub.s32 %s16, 2
    %s29 = sadd.s32 1, %s24
    %p30 = scmp.ge.s32.totalorder %s29, 1
    %s31 = scalar_select %p30, 0, %s29
    %s32 = sadd.s32 1, %s23
    %s33 = scalar_select %p30, %s32, %s23
    %p34 = scmp.ge.s32.totalorder %s33, 2
    %s35 = scalar_select %p34, 0, %s33
    %s36 = ssub.s32 %s23, %s35
    %p37 = scmp.eq.s32.totalorder %s36, 0
    %s39 = sadd.s32 %s38, 1
    %s40 = scalar_select %p37, %s38, %s39
    %p43 = pneg %p37
    %p44 = scmp.eq.s32.totalorder %s16, 1
    %p45 = por %p43, %p44
    %p46 = scmp.ne.s32.totalorder %s38, %s41
    %p47 = scmp.eq.s32.totalorder %s16, 0
    %p48 = por %p46, %p47
    %p49 = scmp.ne.s32.totalorder %s38, %s41
    %p50 = scmp.eq.s32.totalorder %s21, 1
    %p51 = por %p49, %p50
    %p52 = scmp.ne.s32.totalorder %s41, %s42
    %p53 = scmp.eq.s32.totalorder %s21, 0
    %p54 = por %p52, %p53
    %p55 = scmp.ne.s32.totalorder %s41, %s42
    %p56 = scmp.eq.s32.totalorder %s22, 1
    %p57 = por %p55, %p56
    %p59 = scmp.ne.s32.totalorder %s42, %s58
    %p60 = scmp.eq.s32.totalorder %s22, 0
    %p61 = por %p59, %p60
    %s63 = sadd.s32 %s62, 1
    %p66 = scmp.eq.s32.totalorder %s16, 1
    %p67 = scmp.ne.s32.totalorder %s62, %s64
    %p68 = scmp.eq.s32.totalorder %s16, 0
    %p69 = por %p67, %p68
    %p70 = scmp.ne.s32.totalorder %s62, %s64
    %p71 = scmp.eq.s32.totalorder %s21, 1
    %p72 = por %p70, %p71
    %p73 = scmp.ne.s32.totalorder %s64, %s65
    %p74 = scmp.eq.s32.totalorder %s21, 0
    %p75 = por %p73, %p74
    %p76 = scmp.ne.s32.totalorder %s64, %s65
    %p77 = scmp.eq.s32.totalorder %s22, 1
    %p78 = por %p76, %p77
    %p80 = scmp.ne.s32.totalorder %s65, %s79
    %p81 = scmp.eq.s32.totalorder %s22, 0
    %p82 = por %p80, %p81
    %s84 = sadd.s32 %s83, 1
    %p87 = scmp.eq.s32.totalorder %s16, 1
    %p88 = scmp.ne.s32.totalorder %s83, %s85
    %p89 = scmp.eq.s32.totalorder %s16, 0
    %p90 = por %p88, %p89
    %p91 = scmp.ne.s32.totalorder %s83, %s85
    %p92 = scmp.eq.s32.totalorder %s21, 1
    %p93 = por %p91, %p92
    %p94 = scmp.ne.s32.totalorder %s85, %s86
    %p95 = scmp.eq.s32.totalorder %s21, 0
    %p96 = por %p94, %p95
    %p97 = scmp.ne.s32.totalorder %s85, %s86
    %p98 = scmp.eq.s32.totalorder %s22, 1
    %p99 = por %p97, %p98
    %p101 = scmp.ne.s32.totalorder %s86, %s100
    %p102 = scmp.eq.s32.totalorder %s22, 0
    %p103 = por %p101, %p102
    %s105 = sadd.s32 %s104, 1
    %p108 = scmp.eq.s32.totalorder %s16, 1
    %p109 = scmp.ne.s32.totalorder %s104, %s106
    %p110 = scmp.eq.s32.totalorder %s16, 0
    %p111 = por %p109, %p110
    %p112 = scmp.ne.s32.totalorder %s104, %s106
    %p113 = scmp.eq.s32.totalorder %s21, 1
    %p114 = por %p112, %p113
    %p115 = scmp.ne.s32.totalorder %s106, %s107
    %p116 = scmp.eq.s32.totalorder %s21, 0
    %p117 = por %p115, %p116
    %p118 = scmp.ne.s32.totalorder %s106, %s107
    %p119 = scmp.eq.s32.totalorder %s22, 1
    %p120 = por %p118, %p119
    %p122 = scmp.ne.s32.totalorder %s107, %s121
    %p123 = scmp.eq.s32.totalorder %s22, 0
    %p124 = por %p122, %p123
    %s126 = sadd.s32 %s125, 1
    %p129 = scmp.eq.s32.totalorder %s16, 1
    %p130 = scmp.ne.s32.totalorder %s125, %s127
    %p131 = scmp.eq.s32.totalorder %s16, 0
    %p132 = por %p130, %p131
    %p133 = scmp.ne.s32.totalorder %s125, %s127
    %p134 = scmp.eq.s32.totalorder %s21, 1
    %p135 = por %p133, %p134
    %p136 = scmp.ne.s32.totalorder %s127, %s128
    %p137 = scmp.eq.s32.totalorder %s21, 0
    %p138 = por %p136, %p137
    %p139 = scmp.ne.s32.totalorder %s127, %s128
    %p140 = scmp.eq.s32.totalorder %s22, 1
    %p141 = por %p139, %p140
    %p143 = scmp.ne.s32.totalorder %s128, %s142
    %p144 = scmp.eq.s32.totalorder %s22, 0
    %p145 = por %p143, %p144
    %s147 = sadd.s32 %s146, 1
    %p150 = scmp.eq.s32.totalorder %s16, 1
    %p151 = scmp.ne.s32.totalorder %s146, %s148
    %p152 = scmp.eq.s32.totalorder %s16, 0
    %p153 = por %p151, %p152
    %p154 = scmp.ne.s32.totalorder %s146, %s148
    %p155 = scmp.eq.s32.totalorder %s21, 1
    %p156 = por %p154, %p155
    %p157 = scmp.ne.s32.totalorder %s148, %s149
    %p158 = scmp.eq.s32.totalorder %s21, 0
    %p159 = por %p157, %p158
    %p160 = scmp.ne.s32.totalorder %s148, %s149
    %p161 = scmp.eq.s32.totalorder %s22, 1
    %p162 = por %p160, %p161
    %p164 = scmp.ne.s32.totalorder %s149, %s163
    %p165 = scmp.eq.s32.totalorder %s22, 0
    %p166 = por %p164, %p165
    %s168 = sadd.s32 %s167, 1
    %p171 = scmp.eq.s32.totalorder %s16, 1
    %p172 = scmp.ne.s32.totalorder %s167, %s169
    %p173 = scmp.eq.s32.totalorder %s16, 0
    %p174 = por %p172, %p173
    %p175 = scmp.ne.s32.totalorder %s167, %s169
    %p176 = scmp.eq.s32.totalorder %s21, 1
    %p177 = por %p175, %p176
    %p178 = scmp.ne.s32.totalorder %s169, %s170
    %p179 = scmp.eq.s32.totalorder %s21, 0
    %p180 = por %p178, %p179
    %p181 = scmp.ne.s32.totalorder %s169, %s170
    %p182 = scmp.eq.s32.totalorder %s22, 1
    %p183 = por %p181, %p182
    %p185 = scmp.ne.s32.totalorder %s170, %s184
    %p186 = scmp.eq.s32.totalorder %s22, 0
    %p187 = por %p185, %p186
    %s189 = sadd.s32 %s188, 1
    %p192 = scmp.eq.s32.totalorder %s16, 1
    %p193 = scmp.ne.s32.totalorder %s188, %s190
    %p194 = scmp.eq.s32.totalorder %s16, 0
    %p195 = por %p193, %p194
    %p196 = scmp.ne.s32.totalorder %s188, %s190
    %p197 = scmp.eq.s32.totalorder %s21, 1
    %p198 = por %p196, %p197
    %p199 = scmp.ne.s32.totalorder %s190, %s191
    %p200 = scmp.eq.s32.totalorder %s21, 0
    %p201 = por %p199, %p200
    %p202 = scmp.ne.s32.totalorder %s190, %s191
    %p203 = scmp.eq.s32.totalorder %s22, 1
    %p204 = por %p202, %p203
    %p206 = scmp.ne.s32.totalorder %s191, %s205
    %p207 = scmp.eq.s32.totalorder %s22, 0
    %p208 = por %p206, %p207
    %s210 = sadd.s32 %s209, 1
    %p213 = scmp.eq.s32.totalorder %s16, 1
    %p214 = scmp.ne.s32.totalorder %s209, %s211
    %p215 = scmp.eq.s32.totalorder %s16, 0
    %p216 = por %p214, %p215
    %p217 = scmp.ne.s32.totalorder %s209, %s211
    %p218 = scmp.eq.s32.totalorder %s21, 1
    %p219 = por %p217, %p218
    %p220 = scmp.ne.s32.totalorder %s211, %s212
    %p221 = scmp.eq.s32.totalorder %s21, 0
    %p222 = por %p220, %p221
    %p223 = scmp.ne.s32.totalorder %s211, %s212
    %p224 = scmp.eq.s32.totalorder %s22, 1
    %p225 = por %p223, %p224
    %p227 = scmp.ne.s32.totalorder %s212, %s226
    %p228 = scmp.eq.s32.totalorder %s22, 0
    %p229 = por %p227, %p228
    %s231 = sadd.s32 %s230, 1
    %p234 = scmp.eq.s32.totalorder %s16, 1
    %p235 = scmp.ne.s32.totalorder %s230, %s232
    %p236 = scmp.eq.s32.totalorder %s16, 0
    %p237 = por %p235, %p236
    %p238 = scmp.ne.s32.totalorder %s230, %s232
    %p239 = scmp.eq.s32.totalorder %s21, 1
    %p240 = por %p238, %p239
    %p241 = scmp.ne.s32.totalorder %s232, %s233
    %p242 = scmp.eq.s32.totalorder %s21, 0
    %p243 = por %p241, %p242
    %p244 = scmp.ne.s32.totalorder %s232, %s233
    %p245 = scmp.eq.s32.totalorder %s22, 1
    %p246 = por %p244, %p245
    %p248 = scmp.ne.s32.totalorder %s233, %s247
    %p249 = scmp.eq.s32.totalorder %s22, 0
    %p250 = por %p248, %p249
    %s251 = sadd.s32 %s23, %s24
    %s252 = sadd.s32 %s35, %s31
    %s253 = ssub.s32 %s251, %s252
    %p254 = scmp.eq.s32.totalorder %s253, 0
    %s256 = sadd.s32 %s255, 1
    %s257 = scalar_select %p254, %s255, %s256
    %p260 = pneg %p254
    %p261 = scmp.eq.s32.totalorder %s16, 1
    %p262 = por %p260, %p261
    %p263 = scmp.ne.s32.totalorder %s255, %s258
    %p264 = scmp.eq.s32.totalorder %s16, 0
    %p265 = por %p263, %p264
    %p266 = scmp.ne.s32.totalorder %s255, %s258
    %p267 = scmp.eq.s32.totalorder %s21, 1
    %p268 = por %p266, %p267
    %p269 = scmp.ne.s32.totalorder %s258, %s259
    %p270 = scmp.eq.s32.totalorder %s21, 0
    %p271 = por %p269, %p270
    %p272 = scmp.ne.s32.totalorder %s258, %s259
    %p273 = scmp.eq.s32.totalorder %s22, 1
    %p274 = por %p272, %p273
    %p276 = scmp.ne.s32.totalorder %s259, %s275
    %p277 = scmp.eq.s32.totalorder %s22, 0
    %p278 = por %p276, %p277
    %p279 = scmp.le.s32.totalorder 1, %s16
    %p280 = scmp.lt.s32.totalorder %s16, 3
    %p281 = pnand %p279, %p280
    %p282 = pneg %p281
    // Predicated region
    $region9: #{decoder_forward.7} parent=5 // pred_check
      _
    $region10: #{decoder_forward.7} parent=5 // pred_check_branch
      %284 = sbr.rel (%p281) target = $region12
    $region11: #{decoder_forward.7} parent=5 // pred_region
      %s285 = ssub.s32 %s16, 1
      // Predicated region
      $region13: #{decoder_forward.7} parent=11 // pred_check
        %p286 = pneg %p75
      $region14: #{decoder_forward.7} parent=11 // pred_check_branch
        %288 = sbr.rel (%p286) target = $region16
      $region15: #{decoder_forward.7} parent=11 // pred_region
        _
      $region16: #{decoder_forward.7} parent=11 // pred_fallthru
        _
      // Predicated region
      $region17: #{decoder_forward.7} parent=11 // pred_check
        %p289 = pneg %p96
      $region18: #{decoder_forward.7} parent=11 // pred_check_branch
        %291 = sbr.rel (%p289) target = $region20
      $region19: #{decoder_forward.7} parent=11 // pred_region
        _
      $region20: #{decoder_forward.7} parent=11 // pred_fallthru
        _
      // Predicated region
      $region21: #{decoder_forward.7} parent=11 // pred_check
        %p292 = pneg %p117
      $region22: #{decoder_forward.7} parent=11 // pred_check_branch
        %294 = sbr.rel (%p292) target = $region24
      $region23: #{decoder_forward.7} parent=11 // pred_region
        _
      $region24: #{decoder_forward.7} parent=11 // pred_fallthru
        _
      // Predicated region
      $region25: #{decoder_forward.7} parent=11 // pred_check
        %p295 = pneg %p138
      $region26: #{decoder_forward.7} parent=11 // pred_check_branch
        %297 = sbr.rel (%p295) target = $region28
      $region27: #{decoder_forward.7} parent=11 // pred_region
        _
      $region28: #{decoder_forward.7} parent=11 // pred_fallthru
        _
      // Predicated region
      $region29: #{decoder_forward.7} parent=11 // pred_check
        %p298 = pneg %p159
      $region30: #{decoder_forward.7} parent=11 // pred_check_branch
        %300 = sbr.rel (%p298) target = $region32
      $region31: #{decoder_forward.7} parent=11 // pred_region
        _
      $region32: #{decoder_forward.7} parent=11 // pred_fallthru
        _
      // Predicated region
      $region33: #{decoder_forward.7} parent=11 // pred_check
        %p301 = pneg %p180
      $region34: #{decoder_forward.7} parent=11 // pred_check_branch
        %303 = sbr.rel (%p301) target = $region36
      $region35: #{decoder_forward.7} parent=11 // pred_region
        _
      $region36: #{decoder_forward.7} parent=11 // pred_fallthru
        _
      // Predicated region
      $region37: #{decoder_forward.7} parent=11 // pred_check
        %p304 = pneg %p201
      $region38: #{decoder_forward.7} parent=11 // pred_check_branch
        %306 = sbr.rel (%p304) target = $region40
      $region39: #{decoder_forward.7} parent=11 // pred_region
        _
      $region40: #{decoder_forward.7} parent=11 // pred_fallthru
        _
      // Predicated region
      $region41: #{decoder_forward.7} parent=11 // pred_check
        %p307 = pneg %p222
      $region42: #{decoder_forward.7} parent=11 // pred_check_branch
        %309 = sbr.rel (%p307) target = $region44
      $region43: #{decoder_forward.7} parent=11 // pred_region
        _
      $region44: #{decoder_forward.7} parent=11 // pred_fallthru
        _
      // Predicated region
      $region45: #{decoder_forward.7} parent=11 // pred_check
        %p310 = pneg %p243
      $region46: #{decoder_forward.7} parent=11 // pred_check_branch
        %312 = sbr.rel (%p310) target = $region48
      $region47: #{decoder_forward.7} parent=11 // pred_region
        _
      $region48: #{decoder_forward.7} parent=11 // pred_fallthru
        _
    $region12: #{decoder_forward.7} parent=5 // pred_fallthru
      _
    %p313 = scmp.lt.s32.totalorder %s16, 2
    // Predicated region
    $region49: #{decoder_forward.7} parent=5 // pred_check
      %p314 = pneg %p313
    $region50: #{decoder_forward.7} parent=5 // pred_check_branch
      %316 = sbr.rel (%p314) target = $region52
    $region51: #{decoder_forward.7} parent=5 // pred_region
      // Predicated region
      $region53: #{decoder_forward.7} parent=51 // pred_check
        %p317 = pneg %p48
      $region54: #{decoder_forward.7} parent=51 // pred_check_branch
        %319 = sbr.rel (%p317) target = $region56
      $region55: #{decoder_forward.7} parent=51 // pred_region
        %p320 = scmp.lt.s32.totalorder %s23, 1
        %s321 = scalar_select %p320, %s23, 1
        %s322 = smul.addr %s321, 8
        %s323 = scalar_lea.vmem %s0, %s322
      $region56: #{decoder_forward.7} parent=51 // pred_fallthru
        _
    $region52: #{decoder_forward.7} parent=5 // pred_fallthru
      _
    %p324 = scmp.le.s32.totalorder 1, %s16
    %p325 = scmp.lt.s32.totalorder %s16, 3
    %p326 = pnand %p324, %p325
    %p327 = pneg %p326
    // Predicated region
    $region57: #{decoder_forward.7} parent=5 // pred_check
      _
    $region58: #{decoder_forward.7} parent=5 // pred_check_branch
      %329 = sbr.rel (%p326) target = $region60
    $region59: #{decoder_forward.7} parent=5 // pred_region
      %s330 = ssub.s32 %s16, 1
      %p331 = scmp.lt.s32.totalorder %s25, 1
      %s332 = scalar_select %p331, %s25, 1
      %s333 = smul.addr %s332, 8
      %s334 = scalar_lea.vmem %s0, %s333
      %p335 = pneg %p54
      %p336 = pneg %p51
      %p337 = pneg %p75
      %p338 = pneg %p72
      %p339 = pneg %p96
      %p340 = pneg %p93
      %p341 = pneg %p117
      %p342 = pneg %p114
      %p343 = pneg %p138
      %p344 = pneg %p135
      %p345 = pneg %p159
      %p346 = pneg %p156
      %p347 = pneg %p180
      %p348 = pneg %p177
      %p349 = pneg %p201
      %p350 = pneg %p198
      %p351 = pneg %p222
      %p352 = pneg %p219
      %p353 = pneg %p243
      %p354 = pneg %p240
      %p355 = pneg %p271
      %p356 = pneg %p268
      %s357 = sadd.s32 %s25, %s26
      %p358 = scmp.lt.s32.totalorder %s357, 1
      %s359 = scalar_select %p358, %s357, 1
      %s360 = smul.addr %s359, 8
      %s361 = scalar_lea.vmem %s10, %s360
      %p362 = scmp.lt.s32.totalorder %s25, 1
      %s363 = scalar_select %p362, %s25, 1
      %s364 = smul.addr %s363, 8
      %s365 = scalar_lea.vmem %s0, %s364
      %s366 = sadd.s32 %s25, %s26
      %p367 = scmp.lt.s32.totalorder %s366, 1
      %s368 = scalar_select %p367, %s366, 1
      %s369 = smul.addr %s368, 8
      %s370 = scalar_lea.vmem %s10, %s369
      %s371 = sadd.s32 %s25, %s26
      %s373 = smul.u32 %s26, 8
      %v374 = vld [vmem:[%s365] sm:$0xff]
      %v375 = vmul.f32 %v374, 5.656854
      %v376 = vld [vmem:[%s1] sm:$0xff]
      %v377 = vadd.f32 %v375, %v376
      %v378 = vpack.c.bf16 %v377, %v377
      %v379 = vld [vmem:[%s2] sm:$0xff]
      %v380 = vld [vmem:[%s2 + $0x8] sm:$0xff]
      %v381 = vld [vmem:[%s2 + $0x10] sm:$0xff]
      %v382 = vld [vmem:[%s2 + $0x18] sm:$0xff]
      %v383 = vpack.c.bf16 %v380, %v379
      %v384 = vpack.c.bf16 %v382, %v381
      %v385 = vld [vmem:[%s3] sm:$0x1]
      %v387 = vlaneseq
      %v388 = vshrl.u32 %v387, 7
      %v389 = vsub.s32 0, %v388
      %v390 = vrot.slane %v385, %v389
      %vm392 = vcmask 261120
      %v394 = vsel %vm392, %v378, 0
      %396 = vmatprep.subr.bf16.mxu0 0
      %397 = vmatpush1.bf16.msra.mxu0 %v383
      %398 = vmatprep.subr.bf16.mxu0 0
      %399 = vmatpush1.bf16.msra.mxu0 %v384
      %400 = vmatprep.subr.bf16.mxu0 0
      %401 = vmatpush1.bf16.msra.mxu0 0
      %402 = vmatprep.subr.bf16.mxu0 0
      %403 = vmatpush1.bf16.msra.mxu0 0
      %404 = vmatprep.subr.bf16.mxu0 0
      %405 = vmatpush1.bf16.msra.mxu0 0
      %406 = vmatprep.subr.bf16.mxu0 0
      %407 = vmatpush1.bf16.msra.mxu0 0
      %408 = vmatprep.subr.bf16.mxu0 0
      %409 = vmatpush1.bf16.msra.mxu0 0
      %410 = vmatprep.subr.bf16.mxu0 0
      %411 = vmatpush1.bf16.msra.mxu0 0
      %412 = vmatprep.subr.bf16.mxu0 0
      %413 = vmatpush1.bf16.msra.mxu0 0
      %414 = vmatprep.subr.bf16.mxu0 0
      %415 = vmatpush1.bf16.msra.mxu0 0
      %416 = vmatprep.subr.bf16.mxu0 0
      %417 = vmatpush1.bf16.msra.mxu0 0
      %418 = vmatprep.subr.bf16.mxu0 0
      %419 = vmatpush1.bf16.msra.mxu0 0
      %420 = vmatprep.subr.bf16.mxu0 0
      %421 = vmatpush1.bf16.msra.mxu0 0
      %422 = vmatprep.subr.bf16.mxu0 0
      %423 = vmatpush1.bf16.msra.mxu0 0
      %424 = vmatprep.subr.bf16.mxu0 0
      %425 = vmatpush1.bf16.msra.mxu0 0
      %426 = vmatprep.subr.bf16.mxu0 0
      %427 = vmatpush1.bf16.msra.mxu0 0
      %428 = vmatprep.mubr.bf16.mxu0 0
      %429 = vmatmul.mubr.bf16.gmra.mrb[0].mxu0 %v394
      %v430 = vpop.f32.mrb[0].mxu0
      %v431 = vadd.f32 %v390, %v430
      %v432 = vpop.f32.mrb[0].mxu0
      %v433 = vpop.f32.mrb[0].mxu0
      %v434 = vpop.f32.mrb[0].mxu0
      %435 = vdwg.mxu0
      %v436 = vmul.f32 %v431, 0.35355338
      %v437 = vld [vmem:[%s4] sm:$0xff]
      %v438 = vld [vmem:[%s4 + $0x8] sm:$0xff]
      %v439 = vld [vmem:[%s4 + $0x10] sm:$0xff]
      %v440 = vld [vmem:[%s4 + $0x18] sm:$0xff]
      %v441 = vpack.c.bf16 %v438, %v437
      %v442 = vpack.c.bf16 %v440, %v439
      %v443 = vld [vmem:[%s5] sm:$0x1]
      %v445 = vlaneseq
      %v446 = vshrl.u32 %v445, 7
      %v447 = vsub.s32 0, %v446
      %v448 = vrot.slane %v443, %v447
      %450 = vmatprep.subr.bf16.mxu0 0
      %451 = vmatpush1.bf16.msra.mxu0 %v441
      %452 = vmatprep.subr.bf16.mxu0 0
      %453 = vmatpush1.bf16.msra.mxu0 %v442
      %454 = vmatprep.subr.bf16.mxu0 0
      %455 = vmatpush1.bf16.msra.mxu0 0
      %456 = vmatprep.subr.bf16.mxu0 0
      %457 = vmatpush1.bf16.msra.mxu0 0
      %458 = vmatprep.subr.bf16.mxu0 0
      %459 = vmatpush1.bf16.msra.mxu0 0
      %460 = vmatprep.subr.bf16.mxu0 0
      %461 = vmatpush1.bf16.msra.mxu0 0
      %462 = vmatprep.subr.bf16.mxu0 0
      %463 = vmatpush1.bf16.msra.mxu0 0
      %464 = vmatprep.subr.bf16.mxu0 0
      %465 = vmatpush1.bf16.msra.mxu0 0
      %466 = vmatprep.subr.bf16.mxu0 0
      %467 = vmatpush1.bf16.msra.mxu0 0
      %468 = vmatprep.subr.bf16.mxu0 0
      %469 = vmatpush1.bf16.msra.mxu0 0
      %470 = vmatprep.subr.bf16.mxu0 0
      %471 = vmatpush1.bf16.msra.mxu0 0
      %472 = vmatprep.subr.bf16.mxu0 0
      %473 = vmatpush1.bf16.msra.mxu0 0
      %474 = vmatprep.subr.bf16.mxu0 0
      %475 = vmatpush1.bf16.msra.mxu0 0
      %476 = vmatprep.subr.bf16.mxu0 0
      %477 = vmatpush1.bf16.msra.mxu0 0
      %478 = vmatprep.subr.bf16.mxu0 0
      %479 = vmatpush1.bf16.msra.mxu0 0
      %480 = vmatprep.subr.bf16.mxu0 0
      %481 = vmatpush1.bf16.msra.mxu0 0
      %482 = vmatprep.mubr.bf16.mxu0 0
      %483 = vmatmul.mubr.bf16.gmra.mrb[0].mxu0 %v394
      %v484 = vpop.f32.mrb[0].mxu0
      %v485 = vadd.f32 %v448, %v484
      %v486 = vpop.f32.mrb[0].mxu0
      %v487 = vpop.f32.mrb[0].mxu0
      %v488 = vpop.f32.mrb[0].mxu0
      %489 = vdwg.mxu0
      %v490 = vpack.c.bf16 %v436, %v436
      %v491 = vpack.c.bf16 %v485, %v485
      %v492 = vlaneseq
      %v493 = vshrl.u32 %v492, 7
      %v494 = vstv %s373
      %v495 = vadd.s32 %v493, %v494
      %v496 = vlaneseq
      %v497 = vand.u32 %v496, 127
      %vm498 = vcmp.ge.s32.totalorder %v495, %v497
      %vm499 = vcmask 64512
      %v501 = vsel %vm499, %v490, 0
      %v504 = vsel %vm499, %v491, 0
      %506 = vmatprep.subr.bf16.mxu0 0
      %507 = vmatpush1.bf16.xpose.msra.mxu0 %v504
      %508 = vmatprep.subr.bf16.mxu0 0
      %509 = vmatpush1.bf16.xpose.msra.mxu0 0
      %510 = vmatprep.subr.bf16.mxu0 0
      %511 = vmatpush1.bf16.xpose.msra.mxu0 0
      %512 = vmatprep.subr.bf16.mxu0 0
      %513 = vmatpush1.bf16.xpose.msra.mxu0 0
      %514 = vmatprep.subr.bf16.mxu0 0
      %515 = vmatpush1.bf16.xpose.msra.mxu0 0
      %516 = vmatprep.subr.bf16.mxu0 0
      %517 = vmatpush1.bf16.xpose.msra.mxu0 0
      %518 = vmatprep.subr.bf16.mxu0 0
      %519 = vmatpush1.bf16.xpose.msra.mxu0 0
      %520 = vmatprep.subr.bf16.mxu0 0
      %521 = vmatpush1.bf16.xpose.msra.mxu0 0
      %522 = vmatprep.subr.bf16.mxu0 0
      %523 = vmatpush1.bf16.xpose.msra.mxu0 0
      %524 = vmatprep.subr.bf16.mxu0 0
      %525 = vmatpush1.bf16.xpose.msra.mxu0 0
      %526 = vmatprep.subr.bf16.mxu0 0
      %527 = vmatpush1.bf16.xpose.msra.mxu0 0
      %528 = vmatprep.subr.bf16.mxu0 0
      %529 = vmatpush1.bf16.xpose.msra.mxu0 0
      %530 = vmatprep.subr.bf16.mxu0 0
      %531 = vmatpush1.bf16.xpose.msra.mxu0 0
      %532 = vmatprep.subr.bf16.mxu0 0
      %533 = vmatpush1.bf16.xpose.msra.mxu0 0
      %534 = vmatprep.subr.bf16.mxu0 0
      %535 = vmatpush1.bf16.xpose.msra.mxu0 0
      %536 = vmatprep.subr.bf16.mxu0 0
      %537 = vmatpush1.bf16.xpose.msra.mxu0 0
      %538 = vmatprep.mubr.bf16.mxu0 0
      %539 = vmatmul.mubr.bf16.gmra.mrb[0].mxu0 %v501
      %v540 = vpop.f32.mrb[0].mxu0
      %v541 = vadd.f32 0.0, %v540
      %v542 = vpop.f32.mrb[0].mxu0
      %v543 = vpop.f32.mrb[0].mxu0
      %v544 = vpop.f32.mrb[0].mxu0
      %545 = vdwg.mxu0
      %v546 = vsel %vm498, %v541, -1e+10
      %v547 = vsel %vm499, %v546, -inf
      %548 = vmax.xlane.f32.xlu0 %v547
      %v549 = vpop.xlane.xlu0 %548
      %v550 = vsub.f32 %v546, %v549
      %v551 = vmul.f32 %v550, 1.442695
      %v552 = vpow.pop %v551
      %v553 = vsel %vm499, %v552, 0.0
      %554 = vadd.xlane.f32.xlu0 %v553
      %v555 = vpop.xlane.xlu0 %554
      %v556 = vrcp.pop %v555
      %v557 = vmul.f32 %v552, %v556
      %v558 = vpack.c.bf16 %v557, %v557
      %560 = vrot.lane.b32.xlu0 %v491, 96
      %v561 = vpop.permute.xlu0 %560
      %v563 = vsel %vm499, %v558, 0
      %vm565 = vcmask 1043456
      %v567 = vsel %vm565, %v561, 0
      %569 = vmatprep.subr.bf16.mxu0 0
      %570 = vmatpush1.bf16.msra.mxu0 %v567
      %571 = vmatprep.subr.bf16.mxu0 0
      %572 = vmatpush1.bf16.msra.mxu0 0
      %573 = vmatprep.subr.bf16.mxu0 0
      %574 = vmatpush1.bf16.msra.mxu0 0
      %575 = vmatprep.subr.bf16.mxu0 0
      %576 = vmatpush1.bf16.msra.mxu0 0
      %577 = vmatprep.subr.bf16.mxu0 0
      %578 = vmatpush1.bf16.msra.mxu0 0
      %579 = vmatprep.subr.bf16.mxu0 0
      %580 = vmatpush1.bf16.msra.mxu0 0
      %581 = vmatprep.subr.bf16.mxu0 0
      %582 = vmatpush1.bf16.msra.mxu0 0
      %583 = vmatprep.subr.bf16.mxu0 0
      %584 = vmatpush1.bf16.msra.mxu0 0
      %585 = vmatprep.subr.bf16.mxu0 0
      %586 = vmatpush1.bf16.msra.mxu0 0
      %587 = vmatprep.subr.bf16.mxu0 0
      %588 = vmatpush1.bf16.msra.mxu0 0
      %589 = vmatprep.subr.bf16.mxu0 0
      %590 = vmatpush1.bf16.msra.mxu0 0
      %591 = vmatprep.subr.bf16.mxu0 0
      %592 = vmatpush1.bf16.msra.mxu0 0
      %593 = vmatprep.subr.bf16.mxu0 0
      %594 = vmatpush1.bf16.msra.mxu0 0
      %595 = vmatprep.subr.bf16.mxu0 0
      %596 = vmatpush1.bf16.msra.mxu0 0
      %597 = vmatprep.subr.bf16.mxu0 0
      %598 = vmatpush1.bf16.msra.mxu0 0
      %599 = vmatprep.subr.bf16.mxu0 0
      %600 = vmatpush1.bf16.msra.mxu0 0
      %601 = vmatprep.mubr.bf16.mxu0 0
      %602 = vmatmul.mubr.bf16.gmra.mrb[0].mxu0 %v563
      %v603 = vpop.f32.mrb[0].mxu0
      %v604 = vadd.f32 0.0, %v603
      %v605 = vpop.f32.mrb[0].mxu0
      %v606 = vpop.f32.mrb[0].mxu0
      %v607 = vpop.f32.mrb[0].mxu0
      %608 = vdwg.mxu0
      %610 = vrot.lane.b32.xlu0 %v490, 120
      %v611 = vpop.permute.xlu0 %610
      %612 = vrot.lane.b32.xlu0 %v491, 120
      %v613 = vpop.permute.xlu0 %612
      %v615 = vsel %vm499, %v611, 0
      %v618 = vsel %vm499, %v613, 0
      %620 = vmatprep.subr.bf16.mxu0 0
      %621 = vmatpush1.bf16.xpose.msra.mxu0 %v618
      %622 = vmatprep.subr.bf16.mxu0 0
      %623 = vmatpush1.bf16.xpose.msra.mxu0 0
      %624 = vmatprep.subr.bf16.mxu0 0
      %625 = vmatpush1.bf16.xpose.msra.mxu0 0
      %626 = vmatprep.subr.bf16.mxu0 0
      %627 = vmatpush1.bf16.xpose.msra.mxu0 0
      %628 = vmatprep.subr.bf16.mxu0 0
      %629 = vmatpush1.bf16.xpose.msra.mxu0 0
      %630 = vmatprep.subr.bf16.mxu0 0
      %631 = vmatpush1.bf16.xpose.msra.mxu0 0
      %632 = vmatprep.subr.bf16.mxu0 0
      %633 = vmatpush1.bf16.xpose.msra.mxu0 0
      %634 = vmatprep.subr.bf16.mxu0 0
      %635 = vmatpush1.bf16.xpose.msra.mxu0 0
      %636 = vmatprep.subr.bf16.mxu0 0
      %637 = vmatpush1.bf16.xpose.msra.mxu0 0
      %638 = vmatprep.subr.bf16.mxu0 0
      %639 = vmatpush1.bf16.xpose.msra.mxu0 0
      %640 = vmatprep.subr.bf16.mxu0 0
      %641 = vmatpush1.bf16.xpose.msra.mxu0 0
      %642 = vmatprep.subr.bf16.mxu0 0
      %643 = vmatpush1.bf16.xpose.msra.mxu0 0
      %644 = vmatprep.subr.bf16.mxu0 0
      %645 = vmatpush1.bf16.xpose.msra.mxu0 0
      %646 = vmatprep.subr.bf16.mxu0 0
      %647 = vmatpush1.bf16.xpose.msra.mxu0 0
      %648 = vmatprep.subr.bf16.mxu0 0
      %649 = vmatpush1.bf16.xpose.msra.mxu0 0
      %650 = vmatprep.subr.bf16.mxu0 0
      %651 = vmatpush1.bf16.xpose.msra.mxu0 0
      %652 = vmatprep.mubr.bf16.mxu0 0
      %653 = vmatmul.mubr.bf16.gmra.mrb[0].mxu0 %v615
      %v654 = vpop.f32.mrb[0].mxu0
      %v655 = vadd.f32 0.0, %v654
      %v656 = vpop.f32.mrb[0].mxu0
      %v657 = vpop.f32.mrb[0].mxu0
      %v658 = vpop.f32.mrb[0].mxu0
      %659 = vdwg.mxu0
      %v660 = vsel %vm498, %v655, -1e+10
      %v661 = vsel %vm499, %v660, -inf
      %662 = vmax.xlane.f32.xlu0 %v661
      %v663 = vpop.xlane.xlu0 %662
      %v664 = vsub.f32 %v660, %v663
      %v665 = vmul.f32 %v664, 1.442695
      %v666 = vpow.pop %v665
      %v667 = vsel %vm499, %v666, 0.0
      %668 = vadd.xlane.f32.xlu0 %v667
      %v669 = vpop.xlane.xlu0 %668
      %v670 = vrcp.pop %v669
      %v671 = vmul.f32 %v666, %v670
      %v672 = vpack.c.bf16 %v671, %v671
      %673 = vrot.lane.b32.xlu0 %v491, 88
      %v674 = vpop.permute.xlu0 %673
      %v676 = vsel %vm499, %v672, 0
      %v679 = vsel %vm565, %v674, 0
      %681 = vmatprep.subr.bf16.mxu0 0
      %682 = vmatpush1.bf16.msra.mxu0 %v679
      %683 = vmatprep.subr.bf16.mxu0 0
      %684 = vmatpush1.bf16.msra.mxu0 0
      %685 = vmatprep.subr.bf16.mxu0 0
      %686 = vmatpush1.bf16.msra.mxu0 0
      %687 = vmatprep.subr.bf16.mxu0 0
      %688 = vmatpush1.bf16.msra.mxu0 0
      %689 = vmatprep.subr.bf16.mxu0 0
      %690 = vmatpush1.bf16.msra.mxu0 0
      %691 = vmatprep.subr.bf16.mxu0 0
      %692 = vmatpush1.bf16.msra.mxu0 0
      %693 = vmatprep.subr.bf16.mxu0 0
      %694 = vmatpush1.bf16.msra.mxu0 0
      %695 = vmatprep.subr.bf16.mxu0 0
      %696 = vmatpush1.bf16.msra.mxu0 0
      %697 = vmatprep.subr.bf16.mxu0 0
      %698 = vmatpush1.bf16.msra.mxu0 0
      %699 = vmatprep.subr.bf16.mxu0 0
      %700 = vmatpush1.bf16.msra.mxu0 0
      %701 = vmatprep.subr.bf16.mxu0 0
      %702 = vmatpush1.bf16.msra.mxu0 0
      %703 = vmatprep.subr.bf16.mxu0 0
      %704 = vmatpush1.bf16.msra.mxu0 0
      %705 = vmatprep.subr.bf16.mxu0 0
      %706 = vmatpush1.bf16.msra.mxu0 0
      %707 = vmatprep.subr.bf16.mxu0 0
      %708 = vmatpush1.bf16.msra.mxu0 0
      %709 = vmatprep.subr.bf16.mxu0 0
      %710 = vmatpush1.bf16.msra.mxu0 0
      %711 = vmatprep.subr.bf16.mxu0 0
      %712 = vmatpush1.bf16.msra.mxu0 0
      %713 = vmatprep.mubr.bf16.mxu0 0
      %714 = vmatmul.mubr.bf16.gmra.mrb[0].mxu0 %v676
      %v715 = vpop.f32.mrb[0].mxu0
      %v716 = vadd.f32 0.0, %v715
      %v717 = vpop.f32.mrb[0].mxu0
      %v718 = vpop.f32.mrb[0].mxu0
      %v719 = vpop.f32.mrb[0].mxu0
      %720 = vdwg.mxu0
      %721 = vrot.lane.b32.xlu0 %v490, 112
      %v722 = vpop.permute.xlu0 %721
      %723 = vrot.lane.b32.xlu0 %v491, 112
      %v724 = vpop.permute.xlu0 %723
      %v726 = vsel %vm499, %v722, 0
      %v729 = vsel %vm499, %v724, 0
      %731 = vmatprep.subr.bf16.mxu0 0
      %732 = vmatpush1.bf16.xpose.msra.mxu0 %v729
      %733 = vmatprep.subr.bf16.mxu0 0
      %734 = vmatpush1.bf16.xpose.msra.mxu0 0
      %735 = vmatprep.subr.bf16.mxu0 0
      %736 = vmatpush1.bf16.xpose.msra.mxu0 0
      %737 = vmatprep.subr.bf16.mxu0 0
      %738 = vmatpush1.bf16.xpose.msra.mxu0 0
      %739 = vmatprep.subr.bf16.mxu0 0
      %740 = vmatpush1.bf16.xpose.msra.mxu0 0
      %741 = vmatprep.subr.bf16.mxu0 0
      %742 = vmatpush1.bf16.xpose.msra.mxu0 0
      %743 = vmatprep.subr.bf16.mxu0 0
      %744 = vmatpush1.bf16.xpose.msra.mxu0 0
      %745 = vmatprep.subr.bf16.mxu0 0
      %746 = vmatpush1.bf16.xpose.msra.mxu0 0
      %747 = vmatprep.subr.bf16.mxu0 0
      %748 = vmatpush1.bf16.xpose.msra.mxu0 0
      %749 = vmatprep.subr.bf16.mxu0 0
      %750 = vmatpush1.bf16.xpose.msra.mxu0 0
      %751 = vmatprep.subr.bf16.mxu0 0
      %752 = vmatpush1.bf16.xpose.msra.mxu0 0
      %753 = vmatprep.subr.bf16.mxu0 0
      %754 = vmatpush1.bf16.xpose.msra.mxu0 0
      %755 = vmatprep.subr.bf16.mxu0 0
      %756 = vmatpush1.bf16.xpose.msra.mxu0 0
      %757 = vmatprep.subr.bf16.mxu0 0
      %758 = vmatpush1.bf16.xpose.msra.mxu0 0
      %759 = vmatprep.subr.bf16.mxu0 0
      %760 = vmatpush1.bf16.xpose.msra.mxu0 0
      %761 = vmatprep.subr.bf16.mxu0 0
      %762 = vmatpush1.bf16.xpose.msra.mxu0 0
      %763 = vmatprep.mubr.bf16.mxu0 0
      %764 = vmatmul.mubr.bf16.gmra.mrb[0].mxu0 %v726
      %v765 = vpop.f32.mrb[0].mxu0
      %v766 = vadd.f32 0.0, %v765
      %v767 = vpop.f32.mrb[0].mxu0
      %v768 = vpop.f32.mrb[0].mxu0
      %v769 = vpop.f32.mrb[0].mxu0
      %770 = vdwg.mxu0
      %v771 = vsel %vm498, %v766, -1e+10
      %v772 = vsel %vm499, %v771, -inf
      %773 = vmax.xlane.f32.xlu0 %v772
      %v774 = vpop.xlane.xlu0 %773
      %v775 = vsub.f32 %v771, %v774
      %v776 = vmul.f32 %v775, 1.442695
      %v777 = vpow.pop %v776
      %v778 = vsel %vm499, %v777, 0.0
      %779 = vadd.xlane.f32.xlu0 %v778
      %v780 = vpop.xlane.xlu0 %779
      %v781 = vrcp.pop %v780
      %v782 = vmul.f32 %v777, %v781
      %v783 = vpack.c.bf16 %v782, %v782
      %784 = vrot.lane.b32.xlu0 %v491, 80
      %v785 = vpop.permute.xlu0 %784
      %v787 = vsel %vm499, %v783, 0
      %v790 = vsel %vm565, %v785, 0
      %792 = vmatprep.subr.bf16.mxu0 0
      %793 = vmatpush1.bf16.msra.mxu0 %v790
      %794 = vmatprep.subr.bf16.mxu0 0
      %795 = vmatpush1.bf16.msra.mxu0 0
      %796 = vmatprep.subr.bf16.mxu0 0
      %797 = vmatpush1.bf16.msra.mxu0 0
      %798 = vmatprep.subr.bf16.mxu0 0
      %799 = vmatpush1.bf16.msra.mxu0 0
      %800 = vmatprep.subr.bf16.mxu0 0
      %801 = vmatpush1.bf16.msra.mxu0 0
      %802 = vmatprep.subr.bf16.mxu0 0
      %803 = vmatpush1.bf16.msra.mxu0 0
      %804 = vmatprep.subr.bf16.mxu0 0
      %805 = vmatpush1.bf16.msra.mxu0 0
      %806 = vmatprep.subr.bf16.mxu0 0
      %807 = vmatpush1.bf16.msra.mxu0 0
      %808 = vmatprep.subr.bf16.mxu0 0
      %809 = vmatpush1.bf16.msra.mxu0 0
      %810 = vmatprep.subr.bf16.mxu0 0
      %811 = vmatpush1.bf16.msra.mxu0 0
      %812 = vmatprep.subr.bf16.mxu0 0
      %813 = vmatpush1.bf16.msra.mxu0 0
      %814 = vmatprep.subr.bf16.mxu0 0
      %815 = vmatpush1.bf16.msra.mxu0 0
      %816 = vmatprep.subr.bf16.mxu0 0
      %817 = vmatpush1.bf16.msra.mxu0 0
      %818 = vmatprep.subr.bf16.mxu0 0
      %819 = vmatpush1.bf16.msra.mxu0 0
      %820 = vmatprep.subr.bf16.mxu0 0
      %821 = vmatpush1.bf16.msra.mxu0 0
      %822 = vmatprep.subr.bf16.mxu0 0
      %823 = vmatpush1.bf16.msra.mxu0 0
      %824 = vmatprep.mubr.bf16.mxu0 0
      %825 = vmatmul.mubr.bf16.gmra.mrb[0].mxu0 %v787
      %v826 = vpop.f32.mrb[0].mxu0
      %v827 = vadd.f32 0.0, %v826
      %v828 = vpop.f32.mrb[0].mxu0
      %v829 = vpop.f32.mrb[0].mxu0
      %v830 = vpop.f32.mrb[0].mxu0
      %831 = vdwg.mxu0
      %832 = vrot.lane.b32.xlu0 %v490, 104
      %v833 = vpop.permute.xlu0 %832
      %834 = vrot.lane.b32.xlu0 %v491, 104
      %v835 = vpop.permute.xlu0 %834
      %v837 = vsel %vm499, %v833, 0
      %v840 = vsel %vm499, %v835, 0
      %842 = vmatprep.subr.bf16.mxu0 0
      %843 = vmatpush1.bf16.xpose.msra.mxu0 %v840
      %844 = vmatprep.subr.bf16.mxu0 0
      %845 = vmatpush1.bf16.xpose.msra.mxu0 0
      %846 = vmatprep.subr.bf16.mxu0 0
      %847 = vmatpush1.bf16.xpose.msra.mxu0 0
      %848 = vmatprep.subr.bf16.mxu0 0
      %849 = vmatpush1.bf16.xpose.msra.mxu0 0
      %850 = vmatprep.subr.bf16.mxu0 0
      %851 = vmatpush1.bf16.xpose.msra.mxu0 0
      %852 = vmatprep.subr.bf16.mxu0 0
      %853 = vmatpush1.bf16.xpose.msra.mxu0 0
      %854 = vmatprep.subr.bf16.mxu0 0
      %855 = vmatpush1.bf16.xpose.msra.mxu0 0
      %856 = vmatprep.subr.bf16.mxu0 0
      %857 = vmatpush1.bf16.xpose.msra.mxu0 0
      %858 = vmatprep.subr.bf16.mxu0 0
      %859 = vmatpush1.bf16.xpose.msra.mxu0 0
      %860 = vmatprep.subr.bf16.mxu0 0
      %861 = vmatpush1.bf16.xpose.msra.mxu0 0
      %862 = vmatprep.subr.bf16.mxu0 0
      %863 = vmatpush1.bf16.xpose.msra.mxu0 0
      %864 = vmatprep.subr.bf16.mxu0 0
      %865 = vmatpush1.bf16.xpose.msra.mxu0 0
      %866 = vmatprep.subr.bf16.mxu0 0
      %867 = vmatpush1.bf16.xpose.msra.mxu0 0
      %868 = vmatprep.subr.bf16.mxu0 0
      %869 = vmatpush1.bf16.xpose.msra.mxu0 0
      %870 = vmatprep.subr.bf16.mxu0 0
      %871 = vmatpush1.bf16.xpose.msra.mxu0 0
      %872 = vmatprep.subr.bf16.mxu0 0
      %873 = vmatpush1.bf16.xpose.msra.mxu0 0
      %874 = vmatprep.mubr.bf16.mxu0 0
      %875 = vmatmul.mubr.bf16.gmra.mrb[0].mxu0 %v837
      %v876 = vpop.f32.mrb[0].mxu0
      %v877 = vadd.f32 0.0, %v876
      %v878 = vpop.f32.mrb[0].mxu0
      %v879 = vpop.f32.mrb[0].mxu0
      %v880 = vpop.f32.mrb[0].mxu0
      %881 = vdwg.mxu0
      %v882 = vsel %vm498, %v877, -1e+10
      %v883 = vsel %vm499, %v882, -inf
      %884 = vmax.xlane.f32.xlu0 %v883
      %v885 = vpop.xlane.xlu0 %884
      %v886 = vsub.f32 %v882, %v885
      %v887 = vmul.f32 %v886, 1.442695
      %v888 = vpow.pop %v887
      %v889 = vsel %vm499, %v888, 0.0
      %890 = vadd.xlane.f32.xlu0 %v889
      %v891 = vpop.xlane.xlu0 %890
      %v892 = vrcp.pop %v891
      %v893 = vmul.f32 %v888, %v892
      %v894 = vpack.c.bf16 %v893, %v893
      %895 = vrot.lane.b32.xlu0 %v491, 72
      %v896 = vpop.permute.xlu0 %895
      %v898 = vsel %vm499, %v894, 0
      %v901 = vsel %vm565, %v896, 0
      %903 = vmatprep.subr.bf16.mxu0 0
      %904 = vmatpush1.bf16.msra.mxu0 %v901
      %905 = vmatprep.subr.bf16.mxu0 0
      %906 = vmatpush1.bf16.msra.mxu0 0
      %907 = vmatprep.subr.bf16.mxu0 0
      %908 = vmatpush1.bf16.msra.mxu0 0
      %909 = vmatprep.subr.bf16.mxu0 0
      %910 = vmatpush1.bf16.msra.mxu0 0
      %911 = vmatprep.subr.bf16.mxu0 0
      %912 = vmatpush1.bf16.msra.mxu0 0
      %913 = vmatprep.subr.bf16.mxu0 0
      %914 = vmatpush1.bf16.msra.mxu0 0
      %915 = vmatprep.subr.bf16.mxu0 0
      %916 = vmatpush1.bf16.msra.mxu0 0
      %917 = vmatprep.subr.bf16.mxu0 0
      %918 = vmatpush1.bf16.msra.mxu0 0
      %919 = vmatprep.subr.bf16.mxu0 0
      %920 = vmatpush1.bf16.msra.mxu0 0
      %921 = vmatprep.subr.bf16.mxu0 0
      %922 = vmatpush1.bf16.msra.mxu0 0
      %923 = vmatprep.subr.bf16.mxu0 0
      %924 = vmatpush1.bf16.msra.mxu0 0
      %925 = vmatprep.subr.bf16.mxu0 0
      %926 = vmatpush1.bf16.msra.mxu0 0
      %927 = vmatprep.subr.bf16.mxu0 0
      %928 = vmatpush1.bf16.msra.mxu0 0
      %929 = vmatprep.subr.bf16.mxu0 0
      %930 = vmatpush1.bf16.msra.mxu0 0
      %931 = vmatprep.subr.bf16.mxu0 0
      %932 = vmatpush1.bf16.msra.mxu0 0
      %933 = vmatprep.subr.bf16.mxu0 0
      %934 = vmatpush1.bf16.msra.mxu0 0
      %935 = vmatprep.mubr.bf16.mxu0 0
      %936 = vmatmul.mubr.bf16.gmra.mrb[0].mxu0 %v898
      %v937 = vpop.f32.mrb[0].mxu0
      %v938 = vadd.f32 0.0, %v937
      %v939 = vpop.f32.mrb[0].mxu0
      %v940 = vpop.f32.mrb[0].mxu0
      %v941 = vpop.f32.mrb[0].mxu0
      %942 = vdwg.mxu0
      %944 = vrot.lane.b32.xlu0 %v716, 8
      %v945 = vpop.permute.xlu0 %944
      %948 = vrot.lane.b32.xlu0 %v827, 16
      %v949 = vpop.permute.xlu0 %948
      %952 = vrot.lane.b32.xlu0 %v938, 24
      %v953 = vpop.permute.xlu0 %952
      %v955 = vsel %vm499, %v604, %v945
      %vm956 = vcmask 130048
      %v957 = vsel %vm956, %v955, %v949
      %vm958 = vcmask 195584
      %v959 = vsel %vm958, %v957, %v953
      %v960 = vpack.c.bf16 %v959, %v959
      %v961 = vld [vmem:[%s6] sm:$0xff]
      %v962 = vld [vmem:[%s6 + $0x8] sm:$0xff]
      %v963 = vld [vmem:[%s6 + $0x10] sm:$0xff]
      %v964 = vld [vmem:[%s6 + $0x18] sm:$0xff]
      %v965 = vpack.c.bf16 %v962, %v961
      %v966 = vpack.c.bf16 %v964, %v963
      %v968 = vsel %vm392, %v960, 0
      %970 = vmatprep.subr.bf16.mxu0 0
      %971 = vmatpush1.bf16.msra.mxu0 %v965
      %972 = vmatprep.subr.bf16.mxu0 0
      %973 = vmatpush1.bf16.msra.mxu0 %v966
      %974 = vmatprep.subr.bf16.mxu0 0
      %975 = vmatpush1.bf16.msra.mxu0 0
      %976 = vmatprep.subr.bf16.mxu0 0
      %977 = vmatpush1.bf16.msra.mxu0 0
      %978 = vmatprep.subr.bf16.mxu0 0
      %979 = vmatpush1.bf16.msra.mxu0 0
      %980 = vmatprep.subr.bf16.mxu0 0
      %981 = vmatpush1.bf16.msra.mxu0 0
      %982 = vmatprep.subr.bf16.mxu0 0
      %983 = vmatpush1.bf16.msra.mxu0 0
      %984 = vmatprep.subr.bf16.mxu0 0
      %985 = vmatpush1.bf16.msra.mxu0 0
      %986 = vmatprep.subr.bf16.mxu0 0
      %987 = vmatpush1.bf16.msra.mxu0 0
      %988 = vmatprep.subr.bf16.mxu0 0
      %989 = vmatpush1.bf16.msra.mxu0 0
      %990 = vmatprep.subr.bf16.mxu0 0
      %991 = vmatpush1.bf16.msra.mxu0 0
      %992 = vmatprep.subr.bf16.mxu0 0
      %993 = vmatpush1.bf16.msra.mxu0 0
      %994 = vmatprep.subr.bf16.mxu0 0
      %995 = vmatpush1.bf16.msra.mxu0 0
      %996 = vmatprep.subr.bf16.mxu0 0
      %997 = vmatpush1.bf16.msra.mxu0 0
      %998 = vmatprep.subr.bf16.mxu0 0
      %999 = vmatpush1.bf16.msra.mxu0 0
      %1000 = vmatprep.subr.bf16.mxu0 0
      %1001 = vmatpush1.bf16.msra.mxu0 0
      %1002 = vmatprep.mubr.bf16.mxu0 0
      %1003 = vmatmul.mubr.bf16.gmra.mrb[0].mxu0 %v968
      %v1004 = vpop.f32.mrb[0].mxu0
      %v1005 = vadd.f32 0.0, %v1004
      %v1006 = vpop.f32.mrb[0].mxu0
      %v1007 = vpop.f32.mrb[0].mxu0
      %v1008 = vpop.f32.mrb[0].mxu0
      %1009 = vdwg.mxu0
      %v1010 = vadd.f32 %v377, %v1005
      %v1011 = vld [vmem:[%s7] sm:$0x1]
      %v1013 = vlaneseq
      %v1014 = vshrl.u32 %v1013, 7
      %v1015 = vsub.s32 0, %v1014
      %v1016 = vrot.slane %v1011, %v1015
      %v1018 = vadd.f32 %v1010, %v1016
      %v1019 = vsel %vm392, %v1018, 0.0
      %1020 = vadd.xlane.f32.xlu0 %v1019
      %v1021 = vpop.xlane.xlu0 %1020
      %v1022 = vrcp.pop 32.0
      %v1023 = vmul.f32 %v1021, %v1022
      %v1024 = vsub.f32 %v1018, %v1023
      %v1025 = vmul.f32 %v1024, %v1024
      %v1026 = vsel %vm392, %v1025, 0.0
      %1027 = vadd.xlane.f32.xlu0 %v1026
      %v1028 = vpop.xlane.xlu0 %1027
      %v1029 = vmul.f32 %v1028, %v1022
      %v1030 = vadd.f32 %v1029, 1e-05
      %v1031 = vrsqrt.pop %v1030
      %v1032 = vmul.f32 %v1024, %v1031
      %v1033 = vld [vmem:[%s8] sm:$0x1]
      %v1035 = vlaneseq
      %v1036 = vshrl.u32 %v1035, 7
      %v1037 = vsub.s32 0, %v1036
      %v1038 = vrot.slane %v1033, %v1037
      %v1040 = vmul.f32 %v1032, %v1038
      %v1041 = vld [vmem:[%s9] sm:$0x1]
      %v1043 = vlaneseq
      %v1044 = vshrl.u32 %v1043, 7
      %v1045 = vsub.s32 0, %v1044
      %v1046 = vrot.slane %v1041, %v1045
      %v1048 = vadd.f32 %v1040, %v1046
      %1049 = vst.msk [vmem:[%s370] sm:$0xff] %vm392, %v1048
      %s1050 = sadd.s32 %s25, %s26
      %p1051 = scmp.lt.s32.totalorder %s1050, 1
      %s1052 = scalar_select %p1051, %s1050, 1
      %s1053 = smul.addr %s1052, 8
      %s1054 = scalar_lea.vmem %s10, %s1053
      // Predicated region
      $region61: #{decoder_forward.7} parent=59 // pred_check
        %p1055 = pneg %p268
      $region62: #{decoder_forward.7} parent=59 // pred_check_branch
        %1057 = sbr.rel (%p1055) target = $region64
      $region63: #{decoder_forward.7} parent=59 // pred_region
        %s1058 = sadd.s32 %s25, %s26
      $region64: #{decoder_forward.7} parent=59 // pred_fallthru
        _
    $region60: #{decoder_forward.7} parent=5 // pred_fallthru
      _
    %p1059 = scmp.le.s32.totalorder 2, %s16
    // Predicated region
    $region65: #{decoder_forward.7} parent=5 // pred_check
      %p1060 = pneg %p1059
    $region66: #{decoder_forward.7} parent=5 // pred_check_branch
      %1062 = sbr.rel (%p1060) target = $region68
    $region67: #{decoder_forward.7} parent=5 // pred_region
      %s1063 = ssub.s32 %s16, 2
      // Predicated region
      $region69: #{decoder_forward.7} parent=67 // pred_check
        %p1064 = pneg %p274
      $region70: #{decoder_forward.7} parent=67 // pred_check_branch
        %1066 = sbr.rel (%p1064) target = $region72
      $region71: #{decoder_forward.7} parent=67 // pred_region
        %s1067 = sadd.s32 %s27, %s28
        %p1068 = scmp.lt.s32.totalorder %s1067, 1
        %s1069 = scalar_select %p1068, %s1067, 1
        %s1070 = smul.addr %s1069, 8
        %s1071 = scalar_lea.vmem %s10, %s1070
      $region72: #{decoder_forward.7} parent=67 // pred_fallthru
        _
    $region68: #{decoder_forward.7} parent=5 // pred_fallthru
      _
  $region6: #{decoder_forward.7} parent=0 // loop_footer
    %s20 = sadd.s32 1, %s16
  $region7: #{decoder_forward.7} parent=0 // loop_footer_branch
    %15 = sbr.rel target = $region3
  $region8: #{decoder_forward.7} parent=0 // loop_exit
    _

// kernel: decoder_forward.10
$region0: #{decoder_forward.10}
  #allocation0 [shape = 'u32[]', space=smem, size = 0x4, offset = 0x4, fixed_abs, tag = 'smem constant byte address 0x4 - core index']
  #allocation1 [shape = 'u32[144,128]{1,0:T(1,128)}', space=vmem, size = 0x12000, scoped, tag = 'internal scratch']
  %s0 = inlined_call_operand.vmem [shape: f32[16,32], index: 0, kind: input, shape index: {}]
  %s1 = inlined_call_operand.vmem [shape: f32[32,32], index: 1, kind: input, shape index: {}]
  %s2 = inlined_call_operand.vmem [shape: f32[1,32], index: 2, kind: input, shape index: {}]
  %s3 = inlined_call_operand.vmem [shape: f32[32,64], index: 3, kind: input, shape index: {}]
  %s4 = inlined_call_operand.vmem [shape: f32[1,64], index: 4, kind: input, shape index: {}]
  %s5 = inlined_call_operand.vmem [shape: f32[32,32], index: 5, kind: input, shape index: {}]
  %s6 = inlined_call_operand.vmem [shape: f32[1,32], index: 6, kind: input, shape index: {}]
  %s7 = inlined_call_operand.vmem [shape: f32[1,32], index: 7, kind: input, shape index: {}]
  %s8 = inlined_call_operand.vmem [shape: f32[1,32], index: 8, kind: input, shape index: {}]
  %s9 = inlined_call_operand.vmem [shape: f32[16,32], index: 9, kind: output, shape index: {}]
  %s10 = sld [smem:[#allocation0]]
  $region69: #{decoder_forward.10} parent=0
    _
  %s12 = ssub.s32 1, %s10
  %s13 = scalar_select 0, %s12, %s10
  loop: start=0, step=1, limit=4
  $region2: #{decoder_forward.10} parent=0 // loop_pre_header
    _
  $region3: #{decoder_forward.10} parent=0 // loop_header
    %s15 = sphi 0, %s19
    %p16 = scmp.ge.s32.totalorder %s15, 4
    %s22 = sphi 0, %s34
    %s23 = sphi 0, %s30
    %s24 = sphi 0, %s22
    %s25 = sphi 0, %s23
    %s26 = sphi 0, %s24
    %s27 = sphi 0, %s25
    %s37 = sphi 0, %s39
    %s40 = sphi 0, %s37
    %s41 = sphi 0, %s40
    %s57 = sphi 0, %s41
    %s61 = sphi 0, %s61
    %s63 = sphi 0, %s61
    %s64 = sphi 0, %s63
    %s78 = sphi 0, %s64
    %s82 = sphi 0, %s82
    %s84 = sphi 0, %s82
    %s85 = sphi 0, %s84
    %s99 = sphi 0, %s85
    %s103 = sphi 0, %s103
    %s105 = sphi 0, %s103
    %s106 = sphi 0, %s105
    %s120 = sphi 0, %s106
    %s124 = sphi 0, %s124
    %s126 = sphi 0, %s124
    %s127 = sphi 0, %s126
    %s141 = sphi 0, %s127
    %s145 = sphi 0, %s145
    %s147 = sphi 0, %s145
    %s148 = sphi 0, %s147
    %s162 = sphi 0, %s148
    %s166 = sphi 0, %s166
    %s168 = sphi 0, %s166
    %s169 = sphi 0, %s168
    %s183 = sphi 0, %s169
    %s187 = sphi 0, %s187
    %s189 = sphi 0, %s187
    %s190 = sphi 0, %s189
    %s204 = sphi 0, %s190
    %s208 = sphi 0, %s208
    %s210 = sphi 0, %s208
    %s211 = sphi 0, %s210
    %s225 = sphi 0, %s211
    %s233 = sphi 0, %s235
    %s236 = sphi 0, %s233
    %s237 = sphi 0, %s236
    %s253 = sphi 0, %s237
  $region4: #{decoder_forward.10} parent=0 // loop_header_branch
    %18 = sbr.rel (%p16) target = $region8
  $region5: #{decoder_forward.10} parent=0 // loop_body
    %s20 = ssub.s32 %s15, 1
    %s21 = ssub.s32 %s15, 2
    %s28 = sadd.s32 1, %s23
    %p29 = scmp.ge.s32.totalorder %s28, 1
    %s30 = scalar_select %p29, 0, %s28
    %s31 = sadd.s32 1, %s22
    %s32 = scalar_select %p29, %s31, %s22
    %p33 = scmp.ge.s32.totalorder %s32, 2
    %s34 = scalar_select %p33, 0, %s32
    %s35 = ssub.s32 %s22, %s34
    %p36 = scmp.eq.s32.totalorder %s35, 0
    %s38 = sadd.s32 %s37, 1
    %s39 = scalar_select %p36, %s37, %s38
    %p42 = pneg %p36
    %p43 = scmp.eq.s32.totalorder %s15, 1
    %p44 = por %p42, %p43
    %p45 = scmp.ne.s32.totalorder %s37, %s40
    %p46 = scmp.eq.s32.totalorder %s15, 0
    %p47 = por %p45, %p46
    %p48 = scmp.ne.s32.totalorder %s37, %s40
    %p49 = scmp.eq.s32.totalorder %s20, 1
    %p50 = por %p48, %p49
    %p51 = scmp.ne.s32.totalorder %s40, %s41
    %p52 = scmp.eq.s32.totalorder %s20, 0
    %p53 = por %p51, %p52
    %p54 = scmp.ne.s32.totalorder %s40, %s41
    %p55 = scmp.eq.s32.totalorder %s21, 1
    %p56 = por %p54, %p55
    %p58 = scmp.ne.s32.totalorder %s41, %s57
    %p59 = scmp.eq.s32.totalorder %s21, 0
    %p60 = por %p58, %p59
    %s62 = sadd.s32 %s61, 1
    %p65 = scmp.eq.s32.totalorder %s15, 1
    %p66 = scmp.ne.s32.totalorder %s61, %s63
    %p67 = scmp.eq.s32.totalorder %s15, 0
    %p68 = por %p66, %p67
    %p69 = scmp.ne.s32.totalorder %s61, %s63
    %p70 = scmp.eq.s32.totalorder %s20, 1
    %p71 = por %p69, %p70
    %p72 = scmp.ne.s32.totalorder %s63, %s64
    %p73 = scmp.eq.s32.totalorder %s20, 0
    %p74 = por %p72, %p73
    %p75 = scmp.ne.s32.totalorder %s63, %s64
    %p76 = scmp.eq.s32.totalorder %s21, 1
    %p77 = por %p75, %p76
    %p79 = scmp.ne.s32.totalorder %s64, %s78
    %p80 = scmp.eq.s32.totalorder %s21, 0
    %p81 = por %p79, %p80
    %s83 = sadd.s32 %s82, 1
    %p86 = scmp.eq.s32.totalorder %s15, 1
    %p87 = scmp.ne.s32.totalorder %s82, %s84
    %p88 = scmp.eq.s32.totalorder %s15, 0
    %p89 = por %p87, %p88
    %p90 = scmp.ne.s32.totalorder %s82, %s84
    %p91 = scmp.eq.s32.totalorder %s20, 1
    %p92 = por %p90, %p91
    %p93 = scmp.ne.s32.totalorder %s84, %s85
    %p94 = scmp.eq.s32.totalorder %s20, 0
    %p95 = por %p93, %p94
    %p96 = scmp.ne.s32.totalorder %s84, %s85
    %p97 = scmp.eq.s32.totalorder %s21, 1
    %p98 = por %p96, %p97
    %p100 = scmp.ne.s32.totalorder %s85, %s99
    %p101 = scmp.eq.s32.totalorder %s21, 0
    %p102 = por %p100, %p101
    %s104 = sadd.s32 %s103, 1
    %p107 = scmp.eq.s32.totalorder %s15, 1
    %p108 = scmp.ne.s32.totalorder %s103, %s105
    %p109 = scmp.eq.s32.totalorder %s15, 0
    %p110 = por %p108, %p109
    %p111 = scmp.ne.s32.totalorder %s103, %s105
    %p112 = scmp.eq.s32.totalorder %s20, 1
    %p113 = por %p111, %p112
    %p114 = scmp.ne.s32.totalorder %s105, %s106
    %p115 = scmp.eq.s32.totalorder %s20, 0
    %p116 = por %p114, %p115
    %p117 = scmp.ne.s32.totalorder %s105, %s106
    %p118 = scmp.eq.s32.totalorder %s21, 1
    %p119 = por %p117, %p118
    %p121 = scmp.ne.s32.totalorder %s106, %s120
    %p122 = scmp.eq.s32.totalorder %s21, 0
    %p123 = por %p121, %p122
    %s125 = sadd.s32 %s124, 1
    %p128 = scmp.eq.s32.totalorder %s15, 1
    %p129 = scmp.ne.s32.totalorder %s124, %s126
    %p130 = scmp.eq.s32.totalorder %s15, 0
    %p131 = por %p129, %p130
    %p132 = scmp.ne.s32.totalorder %s124, %s126
    %p133 = scmp.eq.s32.totalorder %s20, 1
    %p134 = por %p132, %p133
    %p135 = scmp.ne.s32.totalorder %s126, %s127
    %p136 = scmp.eq.s32.totalorder %s20, 0
    %p137 = por %p135, %p136
    %p138 = scmp.ne.s32.totalorder %s126, %s127
    %p139 = scmp.eq.s32.totalorder %s21, 1
    %p140 = por %p138, %p139
    %p142 = scmp.ne.s32.totalorder %s127, %s141
    %p143 = scmp.eq.s32.totalorder %s21, 0
    %p144 = por %p142, %p143
    %s146 = sadd.s32 %s145, 1
    %p149 = scmp.eq.s32.totalorder %s15, 1
    %p150 = scmp.ne.s32.totalorder %s145, %s147
    %p151 = scmp.eq.s32.totalorder %s15, 0
    %p152 = por %p150, %p151
    %p153 = scmp.ne.s32.totalorder %s145, %s147
    %p154 = scmp.eq.s32.totalorder %s20, 1
    %p155 = por %p153, %p154
    %p156 = scmp.ne.s32.totalorder %s147, %s148
    %p157 = scmp.eq.s32.totalorder %s20, 0
    %p158 = por %p156, %p157
    %p159 = scmp.ne.s32.totalorder %s147, %s148
    %p160 = scmp.eq.s32.totalorder %s21, 1
    %p161 = por %p159, %p160
    %p163 = scmp.ne.s32.totalorder %s148, %s162
    %p164 = scmp.eq.s32.totalorder %s21, 0
    %p165 = por %p163, %p164
    %s167 = sadd.s32 %s166, 1
    %p170 = scmp.eq.s32.totalorder %s15, 1
    %p171 = scmp.ne.s32.totalorder %s166, %s168
    %p172 = scmp.eq.s32.totalorder %s15, 0
    %p173 = por %p171, %p172
    %p174 = scmp.ne.s32.totalorder %s166, %s168
    %p175 = scmp.eq.s32.totalorder %s20, 1
    %p176 = por %p174, %p175
    %p177 = scmp.ne.s32.totalorder %s168, %s169
    %p178 = scmp.eq.s32.totalorder %s20, 0
    %p179 = por %p177, %p178
    %p180 = scmp.ne.s32.totalorder %s168, %s169
    %p181 = scmp.eq.s32.totalorder %s21, 1
    %p182 = por %p180, %p181
    %p184 = scmp.ne.s32.totalorder %s169, %s183
    %p185 = scmp.eq.s32.totalorder %s21, 0
    %p186 = por %p184, %p185
    %s188 = sadd.s32 %s187, 1
    %p191 = scmp.eq.s32.totalorder %s15, 1
    %p192 = scmp.ne.s32.totalorder %s187, %s189
    %p193 = scmp.eq.s32.totalorder %s15, 0
    %p194 = por %p192, %p193
    %p195 = scmp.ne.s32.totalorder %s187, %s189
    %p196 = scmp.eq.s32.totalorder %s20, 1
    %p197 = por %p195, %p196
    %p198 = scmp.ne.s32.totalorder %s189, %s190
    %p199 = scmp.eq.s32.totalorder %s20, 0
    %p200 = por %p198, %p199
    %p201 = scmp.ne.s32.totalorder %s189, %s190
    %p202 = scmp.eq.s32.totalorder %s21, 1
    %p203 = por %p201, %p202
    %p205 = scmp.ne.s32.totalorder %s190, %s204
    %p206 = scmp.eq.s32.totalorder %s21, 0
    %p207 = por %p205, %p206
    %s209 = sadd.s32 %s208, 1
    %p212 = scmp.eq.s32.totalorder %s15, 1
    %p213 = scmp.ne.s32.totalorder %s208, %s210
    %p214 = scmp.eq.s32.totalorder %s15, 0
    %p215 = por %p213, %p214
    %p216 = scmp.ne.s32.totalorder %s208, %s210
    %p217 = scmp.eq.s32.totalorder %s20, 1
    %p218 = por %p216, %p217
    %p219 = scmp.ne.s32.totalorder %s210, %s211
    %p220 = scmp.eq.s32.totalorder %s20, 0
    %p221 = por %p219, %p220
    %p222 = scmp.ne.s32.totalorder %s210, %s211
    %p223 = scmp.eq.s32.totalorder %s21, 1
    %p224 = por %p222, %p223
    %p226 = scmp.ne.s32.totalorder %s211, %s225
    %p227 = scmp.eq.s32.totalorder %s21, 0
    %p228 = por %p226, %p227
    %s229 = sadd.s32 %s22, %s23
    %s230 = sadd.s32 %s34, %s30
    %s231 = ssub.s32 %s229, %s230
    %p232 = scmp.eq.s32.totalorder %s231, 0
    %s234 = sadd.s32 %s233, 1
    %s235 = scalar_select %p232, %s233, %s234
    %p238 = pneg %p232
    %p239 = scmp.eq.s32.totalorder %s15, 1
    %p240 = por %p238, %p239
    %p241 = scmp.ne.s32.totalorder %s233, %s236
    %p242 = scmp.eq.s32.totalorder %s15, 0
    %p243 = por %p241, %p242
    %p244 = scmp.ne.s32.totalorder %s233, %s236
    %p245 = scmp.eq.s32.totalorder %s20, 1
    %p246 = por %p244, %p245
    %p247 = scmp.ne.s32.totalorder %s236, %s237
    %p248 = scmp.eq.s32.totalorder %s20, 0
    %p249 = por %p247, %p248
    %p250 = scmp.ne.s32.totalorder %s236, %s237
    %p251 = scmp.eq.s32.totalorder %s21, 1
    %p252 = por %p250, %p251
    %p254 = scmp.ne.s32.totalorder %s237, %s253
    %p255 = scmp.eq.s32.totalorder %s21, 0
    %p256 = por %p254, %p255
    %p257 = scmp.le.s32.totalorder 1, %s15
    %p258 = scmp.lt.s32.totalorder %s15, 3
    %p259 = pnand %p257, %p258
    %p260 = pneg %p259
    // Predicated region
    $region9: #{decoder_forward.10} parent=5 // pred_check
      _
    $region10: #{decoder_forward.10} parent=5 // pred_check_branch
      %262 = sbr.rel (%p259) target = $region12
    $region11: #{decoder_forward.10} parent=5 // pred_region
      %s263 = ssub.s32 %s15, 1
      // Predicated region
      $region13: #{decoder_forward.10} parent=11 // pred_check
        %p264 = pneg %p74
      $region14: #{decoder_forward.10} parent=11 // pred_check_branch
        %266 = sbr.rel (%p264) target = $region16
      $region15: #{decoder_forward.10} parent=11 // pred_region
        _
      $region16: #{decoder_forward.10} parent=11 // pred_fallthru
        _
      // Predicated region
      $region17: #{decoder_forward.10} parent=11 // pred_check
        %p267 = pneg %p95
      $region18: #{decoder_forward.10} parent=11 // pred_check_branch
        %269 = sbr.rel (%p267) target = $region20
      $region19: #{decoder_forward.10} parent=11 // pred_region
        _
      $region20: #{decoder_forward.10} parent=11 // pred_fallthru
        _
      // Predicated region
      $region21: #{decoder_forward.10} parent=11 // pred_check
        %p270 = pneg %p116
      $region22: #{decoder_forward.10} parent=11 // pred_check_branch
        %272 = sbr.rel (%p270) target = $region24
      $region23: #{decoder_forward.10} parent=11 // pred_region
        _
      $region24: #{decoder_forward.10} parent=11 // pred_fallthru
        _
      // Predicated region
      $region25: #{decoder_forward.10} parent=11 // pred_check
        %p273 = pneg %p137
      $region26: #{decoder_forward.10} parent=11 // pred_check_branch
        %275 = sbr.rel (%p273) target = $region28
      $region27: #{decoder_forward.10} parent=11 // pred_region
        _
      $region28: #{decoder_forward.10} parent=11 // pred_fallthru
        _
      // Predicated region
      $region29: #{decoder_forward.10} parent=11 // pred_check
        %p276 = pneg %p158
      $region30: #{decoder_forward.10} parent=11 // pred_check_branch
        %278 = sbr.rel (%p276) target = $region32
      $region31: #{decoder_forward.10} parent=11 // pred_region
        _
      $region32: #{decoder_forward.10} parent=11 // pred_fallthru
        _
      // Predicated region
      $region33: #{decoder_forward.10} parent=11 // pred_check
        %p279 = pneg %p179
      $region34: #{decoder_forward.10} parent=11 // pred_check_branch
        %281 = sbr.rel (%p279) target = $region36
      $region35: #{decoder_forward.10} parent=11 // pred_region
        _
      $region36: #{decoder_forward.10} parent=11 // pred_fallthru
        _
      // Predicated region
      $region37: #{decoder_forward.10} parent=11 // pred_check
        %p282 = pneg %p200
      $region38: #{decoder_forward.10} parent=11 // pred_check_branch
        %284 = sbr.rel (%p282) target = $region40
      $region39: #{decoder_forward.10} parent=11 // pred_region
        _
      $region40: #{decoder_forward.10} parent=11 // pred_fallthru
        _
      // Predicated region
      $region41: #{decoder_forward.10} parent=11 // pred_check
        %p285 = pneg %p221
      $region42: #{decoder_forward.10} parent=11 // pred_check_branch
        %287 = sbr.rel (%p285) target = $region44
      $region43: #{decoder_forward.10} parent=11 // pred_region
        _
      $region44: #{decoder_forward.10} parent=11 // pred_fallthru
        _
    $region12: #{decoder_forward.10} parent=5 // pred_fallthru
      _
    %p288 = scmp.lt.s32.totalorder %s15, 2
    // Predicated region
    $region45: #{decoder_forward.10} parent=5 // pred_check
      %p289 = pneg %p288
    $region46: #{decoder_forward.10} parent=5 // pred_check_branch
      %291 = sbr.rel (%p289) target = $region48
    $region47: #{decoder_forward.10} parent=5 // pred_region
      // Predicated region
      $region49: #{decoder_forward.10} parent=47 // pred_check
        %p292 = pneg %p47
      $region50: #{decoder_forward.10} parent=47 // pred_check_branch
        %294 = sbr.rel (%p292) target = $region52
      $region51: #{decoder_forward.10} parent=47 // pred_region
        %p295 = scmp.lt.s32.totalorder %s22, 1
        %s296 = scalar_select %p295, %s22, 1
        %s297 = smul.addr %s296, 8
        %s298 = scalar_lea.vmem %s0, %s297
      $region52: #{decoder_forward.10} parent=47 // pred_fallthru
        _
    $region48: #{decoder_forward.10} parent=5 // pred_fallthru
      _
    %p299 = scmp.le.s32.totalorder 1, %s15
    %p300 = scmp.lt.s32.totalorder %s15, 3
    %p301 = pnand %p299, %p300
    %p302 = pneg %p301
    // Predicated region
    $region53: #{decoder_forward.10} parent=5 // pred_check
      _
    $region54: #{decoder_forward.10} parent=5 // pred_check_branch
      %304 = sbr.rel (%p301) target = $region56
    $region55: #{decoder_forward.10} parent=5 // pred_region
      %s305 = ssub.s32 %s15, 1
      %p306 = scmp.lt.s32.totalorder %s24, 1
      %s307 = scalar_select %p306, %s24, 1
      %s308 = smul.addr %s307, 8
      %s309 = scalar_lea.vmem %s0, %s308
      %p310 = pneg %p53
      %p311 = pneg %p50
      %p312 = pneg %p74
      %p313 = pneg %p71
      %p314 = pneg %p95
      %p315 = pneg %p92
      %p316 = pneg %p116
      %p317 = pneg %p113
      %p318 = pneg %p137
      %p319 = pneg %p134
      %p320 = pneg %p158
      %p321 = pneg %p155
      %p322 = pneg %p179
      %p323 = pneg %p176
      %p324 = pneg %p200
      %p325 = pneg %p197
      %p326 = pneg %p221
      %p327 = pneg %p218
      %p328 = pneg %p249
      %p329 = pneg %p246
      %s330 = sadd.s32 %s24, %s25
      %p331 = scmp.lt.s32.totalorder %s330, 1
      %s332 = scalar_select %p331, %s330, 1
      %s333 = smul.addr %s332, 8
      %s334 = scalar_lea.vmem %s9, %s333
      %p335 = scmp.lt.s32.totalorder %s24, 1
      %s336 = scalar_select %p335, %s24, 1
      %s337 = smul.addr %s336, 8
      %s338 = scalar_lea.vmem %s0, %s337
      %s339 = sadd.s32 %s24, %s25
      %p340 = scmp.lt.s32.totalorder %s339, 1
      %s341 = scalar_select %p340, %s339, 1
      %s342 = smul.addr %s341, 8
      %s343 = scalar_lea.vmem %s9, %s342
      %s344 = sadd.s32 %s24, %s25
      %s346 = smul.u32 %s25, 8
      %v347 = vld [vmem:[%s338] sm:$0xff]
      %v348 = vpack.c.bf16 %v347, %v347
      %v349 = vld [vmem:[%s1] sm:$0xff]
      %v350 = vld [vmem:[%s1 + $0x8] sm:$0xff]
      %v351 = vld [vmem:[%s1 + $0x10] sm:$0xff]
      %v352 = vld [vmem:[%s1 + $0x18] sm:$0xff]
      %v353 = vpack.c.bf16 %v350, %v349
      %v354 = vpack.c.bf16 %v352, %v351
      %v355 = vld [vmem:[%s2] sm:$0x1]
      %v357 = vlaneseq
      %v358 = vshrl.u32 %v357, 7
      %v359 = vsub.s32 0, %v358
      %v360 = vrot.slane %v355, %v359
      %vm362 = vcmask 261120
      %v364 = vsel %vm362, %v348, 0
      %366 = vmatprep.subr.bf16.mxu0 0
      %367 = vmatpush1.bf16.msra.mxu0 %v353
      %368 = vmatprep.subr.bf16.mxu0 0
      %369 = vmatpush1.bf16.msra.mxu0 %v354
      %370 = vmatprep.subr.bf16.mxu0 0
      %371 = vmatpush1.bf16.msra.mxu0 0
      %372 = vmatprep.subr.bf16.mxu0 0
      %373 = vmatpush1.bf16.msra.mxu0 0
      %374 = vmatprep.subr.bf16.mxu0 0
      %375 = vmatpush1.bf16.msra.mxu0 0
      %376 = vmatprep.subr.bf16.mxu0 0
      %377 = vmatpush1.bf16.msra.mxu0 0
      %378 = vmatprep.subr.bf16.mxu0 0
      %379 = vmatpush1.bf16.msra.mxu0 0
      %380 = vmatprep.subr.bf16.mxu0 0
      %381 = vmatpush1.bf16.msra.mxu0 0
      %382 = vmatprep.subr.bf16.mxu0 0
      %383 = vmatpush1.bf16.msra.mxu0 0
      %384 = vmatprep.subr.bf16.mxu0 0
      %385 = vmatpush1.bf16.msra.mxu0 0
      %386 = vmatprep.subr.bf16.mxu0 0
      %387 = vmatpush1.bf16.msra.mxu0 0
      %388 = vmatprep.subr.bf16.mxu0 0
      %389 = vmatpush1.bf16.msra.mxu0 0
      %390 = vmatprep.subr.bf16.mxu0 0
      %391 = vmatpush1.bf16.msra.mxu0 0
      %392 = vmatprep.subr.bf16.mxu0 0
      %393 = vmatpush1.bf16.msra.mxu0 0
      %394 = vmatprep.subr.bf16.mxu0 0
      %395 = vmatpush1.bf16.msra.mxu0 0
      %396 = vmatprep.subr.bf16.mxu0 0
      %397 = vmatpush1.bf16.msra.mxu0 0
      %398 = vmatprep.mubr.bf16.mxu0 0
      %399 = vmatmul.mubr.bf16.gmra.mrb[0].mxu0 %v364
      %v400 = vpop.f32.mrb[0].mxu0
      %v401 = vadd.f32 %v360, %v400
      %v402 = vpop.f32.mrb[0].mxu0
      %v403 = vpop.f32.mrb[0].mxu0
      %v404 = vpop.f32.mrb[0].mxu0
      %405 = vdwg.mxu0
      %v406 = vmul.f32 %v401, 0.35355338
      %v407 = vld [vmem:[%s3] sm:$0xff]
      %v408 = vld [vmem:[%s3 + $0x8] sm:$0xff]
      %v409 = vld [vmem:[%s3 + $0x10] sm:$0xff]
      %v410 = vld [vmem:[%s3 + $0x18] sm:$0xff]
      %v411 = vpack.c.bf16 %v408, %v407
      %v412 = vpack.c.bf16 %v410, %v409
      %v413 = vld [vmem:[%s4] sm:$0x1]
      %v415 = vlaneseq
      %v416 = vshrl.u32 %v415, 7
      %v417 = vsub.s32 0, %v416
      %v418 = vrot.slane %v413, %v417
      %420 = vmatprep.subr.bf16.mxu0 0
      %421 = vmatpush1.bf16.msra.mxu0 %v411
      %422 = vmatprep.subr.bf16.mxu0 0
      %423 = vmatpush1.bf16.msra.mxu0 %v412
      %424 = vmatprep.subr.bf16.mxu0 0
      %425 = vmatpush1.bf16.msra.mxu0 0
      %426 = vmatprep.subr.bf16.mxu0 0
      %427 = vmatpush1.bf16.msra.mxu0 0
      %428 = vmatprep.subr.bf16.mxu0 0
      %429 = vmatpush1.bf16.msra.mxu0 0
      %430 = vmatprep.subr.bf16.mxu0 0
      %431 = vmatpush1.bf16.msra.mxu0 0
      %432 = vmatprep.subr.bf16.mxu0 0
      %433 = vmatpush1.bf16.msra.mxu0 0
      %434 = vmatprep.subr.bf16.mxu0 0
      %435 = vmatpush1.bf16.msra.mxu0 0
      %436 = vmatprep.subr.bf16.mxu0 0
      %437 = vmatpush1.bf16.msra.mxu0 0
      %438 = vmatprep.subr.bf16.mxu0 0
      %439 = vmatpush1.bf16.msra.mxu0 0
      %440 = vmatprep.subr.bf16.mxu0 0
      %441 = vmatpush1.bf16.msra.mxu0 0
      %442 = vmatprep.subr.bf16.mxu0 0
      %443 = vmatpush1.bf16.msra.mxu0 0
      %444 = vmatprep.subr.bf16.mxu0 0
      %445 = vmatpush1.bf16.msra.mxu0 0
      %446 = vmatprep.subr.bf16.mxu0 0
      %447 = vmatpush1.bf16.msra.mxu0 0
      %448 = vmatprep.subr.bf16.mxu0 0
      %449 = vmatpush1.bf16.msra.mxu0 0
      %450 = vmatprep.subr.bf16.mxu0 0
      %451 = vmatpush1.bf16.msra.mxu0 0
      %452 = vmatprep.mubr.bf16.mxu0 0
      %453 = vmatmul.mubr.bf16.gmra.mrb[0].mxu0 %v364
      %v454 = vpop.f32.mrb[0].mxu0
      %v455 = vadd.f32 %v418, %v454
      %v456 = vpop.f32.mrb[0].mxu0
      %v457 = vpop.f32.mrb[0].mxu0
      %v458 = vpop.f32.mrb[0].mxu0
      %459 = vdwg.mxu0
      %v460 = vpack.c.bf16 %v406, %v406
      %v461 = vpack.c.bf16 %v455, %v455
      %v462 = vlaneseq
      %v463 = vshrl.u32 %v462, 7
      %v464 = vstv %s346
      %v465 = vadd.s32 %v463, %v464
      %v466 = vlaneseq
      %v467 = vand.u32 %v466, 127
      %vm468 = vcmp.ge.s32.totalorder %v465, %v467
      %vm469 = vcmask 64512
      %v471 = vsel %vm469, %v460, 0
      %v474 = vsel %vm469, %v461, 0
      %476 = vmatprep.subr.bf16.mxu0 0
      %477 = vmatpush1.bf16.xpose.msra.mxu0 %v474
      %478 = vmatprep.subr.bf16.mxu0 0
      %479 = vmatpush1.bf16.xpose.msra.mxu0 0
      %480 = vmatprep.subr.bf16.mxu0 0
      %481 = vmatpush1.bf16.xpose.msra.mxu0 0
      %482 = vmatprep.subr.bf16.mxu0 0
      %483 = vmatpush1.bf16.xpose.msra.mxu0 0
      %484 = vmatprep.subr.bf16.mxu0 0
      %485 = vmatpush1.bf16.xpose.msra.mxu0 0
      %486 = vmatprep.subr.bf16.mxu0 0
      %487 = vmatpush1.bf16.xpose.msra.mxu0 0
      %488 = vmatprep.subr.bf16.mxu0 0
      %489 = vmatpush1.bf16.xpose.msra.mxu0 0
      %490 = vmatprep.subr.bf16.mxu0 0
      %491 = vmatpush1.bf16.xpose.msra.mxu0 0
      %492 = vmatprep.subr.bf16.mxu0 0
      %493 = vmatpush1.bf16.xpose.msra.mxu0 0
      %494 = vmatprep.subr.bf16.mxu0 0
      %495 = vmatpush1.bf16.xpose.msra.mxu0 0
      %496 = vmatprep.subr.bf16.mxu0 0
      %497 = vmatpush1.bf16.xpose.msra.mxu0 0
      %498 = vmatprep.subr.bf16.mxu0 0
      %499 = vmatpush1.bf16.xpose.msra.mxu0 0
      %500 = vmatprep.subr.bf16.mxu0 0
      %501 = vmatpush1.bf16.xpose.msra.mxu0 0
      %502 = vmatprep.subr.bf16.mxu0 0
      %503 = vmatpush1.bf16.xpose.msra.mxu0 0
      %504 = vmatprep.subr.bf16.mxu0 0
      %505 = vmatpush1.bf16.xpose.msra.mxu0 0
      %506 = vmatprep.subr.bf16.mxu0 0
      %507 = vmatpush1.bf16.xpose.msra.mxu0 0
      %508 = vmatprep.mubr.bf16.mxu0 0
      %509 = vmatmul.mubr.bf16.gmra.mrb[0].mxu0 %v471
      %v510 = vpop.f32.mrb[0].mxu0
      %v511 = vadd.f32 0.0, %v510
      %v512 = vpop.f32.mrb[0].mxu0
      %v513 = vpop.f32.mrb[0].mxu0
      %v514 = vpop.f32.mrb[0].mxu0
      %515 = vdwg.mxu0
      %v516 = vsel %vm468, %v511, -1e+10
      %v517 = vsel %vm469, %v516, -inf
      %518 = vmax.xlane.f32.xlu0 %v517
      %v519 = vpop.xlane.xlu0 %518
      %v520 = vsub.f32 %v516, %v519
      %v521 = vmul.f32 %v520, 1.442695
      %v522 = vpow.pop %v521
      %v523 = vsel %vm469, %v522, 0.0
      %524 = vadd.xlane.f32.xlu0 %v523
      %v525 = vpop.xlane.xlu0 %524
      %v526 = vrcp.pop %v525
      %v527 = vmul.f32 %v522, %v526
      %v528 = vpack.c.bf16 %v527, %v527
      %530 = vrot.lane.b32.xlu0 %v461, 96
      %v531 = vpop.permute.xlu0 %530
      %v533 = vsel %vm469, %v528, 0
      %vm535 = vcmask 1043456
      %v537 = vsel %vm535, %v531, 0
      %539 = vmatprep.subr.bf16.mxu0 0
      %540 = vmatpush1.bf16.msra.mxu0 %v537
      %541 = vmatprep.subr.bf16.mxu0 0
      %542 = vmatpush1.bf16.msra.mxu0 0
      %543 = vmatprep.subr.bf16.mxu0 0
      %544 = vmatpush1.bf16.msra.mxu0 0
      %545 = vmatprep.subr.bf16.mxu0 0
      %546 = vmatpush1.bf16.msra.mxu0 0
      %547 = vmatprep.subr.bf16.mxu0 0
      %548 = vmatpush1.bf16.msra.mxu0 0
      %549 = vmatprep.subr.bf16.mxu0 0
      %550 = vmatpush1.bf16.msra.mxu0 0
      %551 = vmatprep.subr.bf16.mxu0 0
      %552 = vmatpush1.bf16.msra.mxu0 0
      %553 = vmatprep.subr.bf16.mxu0 0
      %554 = vmatpush1.bf16.msra.mxu0 0
      %555 = vmatprep.subr.bf16.mxu0 0
      %556 = vmatpush1.bf16.msra.mxu0 0
      %557 = vmatprep.subr.bf16.mxu0 0
      %558 = vmatpush1.bf16.msra.mxu0 0
      %559 = vmatprep.subr.bf16.mxu0 0
      %560 = vmatpush1.bf16.msra.mxu0 0
      %561 = vmatprep.subr.bf16.mxu0 0
      %562 = vmatpush1.bf16.msra.mxu0 0
      %563 = vmatprep.subr.bf16.mxu0 0
      %564 = vmatpush1.bf16.msra.mxu0 0
      %565 = vmatprep.subr.bf16.mxu0 0
      %566 = vmatpush1.bf16.msra.mxu0 0
      %567 = vmatprep.subr.bf16.mxu0 0
      %568 = vmatpush1.bf16.msra.mxu0 0
      %569 = vmatprep.subr.bf16.mxu0 0
      %570 = vmatpush1.bf16.msra.mxu0 0
      %571 = vmatprep.mubr.bf16.mxu0 0
      %572 = vmatmul.mubr.bf16.gmra.mrb[0].mxu0 %v533
      %v573 = vpop.f32.mrb[0].mxu0
      %v574 = vadd.f32 0.0, %v573
      %v575 = vpop.f32.mrb[0].mxu0
      %v576 = vpop.f32.mrb[0].mxu0
      %v577 = vpop.f32.mrb[0].mxu0
      %578 = vdwg.mxu0
      %580 = vrot.lane.b32.xlu0 %v460, 120
      %v581 = vpop.permute.xlu0 %580
      %582 = vrot.lane.b32.xlu0 %v461, 120
      %v583 = vpop.permute.xlu0 %582
      %v585 = vsel %vm469, %v581, 0
      %v588 = vsel %vm469, %v583, 0
      %590 = vmatprep.subr.bf16.mxu0 0
      %591 = vmatpush1.bf16.xpose.msra.mxu0 %v588
      %592 = vmatprep.subr.bf16.mxu0 0
      %593 = vmatpush1.bf16.xpose.msra.mxu0 0
      %594 = vmatprep.subr.bf16.mxu0 0
      %595 = vmatpush1.bf16.xpose.msra.mxu0 0
      %596 = vmatprep.subr.bf16.mxu0 0
      %597 = vmatpush1.bf16.xpose.msra.mxu0 0
      %598 = vmatprep.subr.bf16.mxu0 0
      %599 = vmatpush1.bf16.xpose.msra.mxu0 0
      %600 = vmatprep.subr.bf16.mxu0 0
      %601 = vmatpush1.bf16.xpose.msra.mxu0 0
      %602 = vmatprep.subr.bf16.mxu0 0
      %603 = vmatpush1.bf16.xpose.msra.mxu0 0
      %604 = vmatprep.subr.bf16.mxu0 0
      %605 = vmatpush1.bf16.xpose.msra.mxu0 0
      %606 = vmatprep.subr.bf16.mxu0 0
      %607 = vmatpush1.bf16.xpose.msra.mxu0 0
      %608 = vmatprep.subr.bf16.mxu0 0
      %609 = vmatpush1.bf16.xpose.msra.mxu0 0
      %610 = vmatprep.subr.bf16.mxu0 0
      %611 = vmatpush1.bf16.xpose.msra.mxu0 0
      %612 = vmatprep.subr.bf16.mxu0 0
      %613 = vmatpush1.bf16.xpose.msra.mxu0 0
      %614 = vmatprep.subr.bf16.mxu0 0
      %615 = vmatpush1.bf16.xpose.msra.mxu0 0
      %616 = vmatprep.subr.bf16.mxu0 0
      %617 = vmatpush1.bf16.xpose.msra.mxu0 0
      %618 = vmatprep.subr.bf16.mxu0 0
      %619 = vmatpush1.bf16.xpose.msra.mxu0 0
      %620 = vmatprep.subr.bf16.mxu0 0
      %621 = vmatpush1.bf16.xpose.msra.mxu0 0
      %622 = vmatprep.mubr.bf16.mxu0 0
      %623 = vmatmul.mubr.bf16.gmra.mrb[0].mxu0 %v585
      %v624 = vpop.f32.mrb[0].mxu0
      %v625 = vadd.f32 0.0, %v624
      %v626 = vpop.f32.mrb[0].mxu0
      %v627 = vpop.f32.mrb[0].mxu0
      %v628 = vpop.f32.mrb[0].mxu0
      %629 = vdwg.mxu0
      %v630 = vsel %vm468, %v625, -1e+10
      %v631 = vsel %vm469, %v630, -inf
      %632 = vmax.xlane.f32.xlu0 %v631
      %v633 = vpop.xlane.xlu0 %632
      %v634 = vsub.f32 %v630, %v633
      %v635 = vmul.f32 %v634, 1.442695
      %v636 = vpow.pop %v635
      %v637 = vsel %vm469, %v636, 0.0
      %638 = vadd.xlane.f32.xlu0 %v637
      %v639 = vpop.xlane.xlu0 %638
      %v640 = vrcp.pop %v639
      %v641 = vmul.f32 %v636, %v640
      %v642 = vpack.c.bf16 %v641, %v641
      %643 = vrot.lane.b32.xlu0 %v461, 88
      %v644 = vpop.permute.xlu0 %643
      %v646 = vsel %vm469, %v642, 0
      %v649 = vsel %vm535, %v644, 0
      %651 = vmatprep.subr.bf16.mxu0 0
      %652 = vmatpush1.bf16.msra.mxu0 %v649
      %653 = vmatprep.subr.bf16.mxu0 0
      %654 = vmatpush1.bf16.msra.mxu0 0
      %655 = vmatprep.subr.bf16.mxu0 0
      %656 = vmatpush1.bf16.msra.mxu0 0
      %657 = vmatprep.subr.bf16.mxu0 0
      %658 = vmatpush1.bf16.msra.mxu0 0
      %659 = vmatprep.subr.bf16.mxu0 0
      %660 = vmatpush1.bf16.msra.mxu0 0
      %661 = vmatprep.subr.bf16.mxu0 0
      %662 = vmatpush1.bf16.msra.mxu0 0
      %663 = vmatprep.subr.bf16.mxu0 0
      %664 = vmatpush1.bf16.msra.mxu0 0
      %665 = vmatprep.subr.bf16.mxu0 0
      %666 = vmatpush1.bf16.msra.mxu0 0
      %667 = vmatprep.subr.bf16.mxu0 0
      %668 = vmatpush1.bf16.msra.mxu0 0
      %669 = vmatprep.subr.bf16.mxu0 0
      %670 = vmatpush1.bf16.msra.mxu0 0
      %671 = vmatprep.subr.bf16.mxu0 0
      %672 = vmatpush1.bf16.msra.mxu0 0
      %673 = vmatprep.subr.bf16.mxu0 0
      %674 = vmatpush1.bf16.msra.mxu0 0
      %675 = vmatprep.subr.bf16.mxu0 0
      %676 = vmatpush1.bf16.msra.mxu0 0
      %677 = vmatprep.subr.bf16.mxu0 0
      %678 = vmatpush1.bf16.msra.mxu0 0
      %679 = vmatprep.subr.bf16.mxu0 0
      %680 = vmatpush1.bf16.msra.mxu0 0
      %681 = vmatprep.subr.bf16.mxu0 0
      %682 = vmatpush1.bf16.msra.mxu0 0
      %683 = vmatprep.mubr.bf16.mxu0 0
      %684 = vmatmul.mubr.bf16.gmra.mrb[0].mxu0 %v646
      %v685 = vpop.f32.mrb[0].mxu0
      %v686 = vadd.f32 0.0, %v685
      %v687 = vpop.f32.mrb[0].mxu0
      %v688 = vpop.f32.mrb[0].mxu0
      %v689 = vpop.f32.mrb[0].mxu0
      %690 = vdwg.mxu0
      %691 = vrot.lane.b32.xlu0 %v460, 112
      %v692 = vpop.permute.xlu0 %691
      %693 = vrot.lane.b32.xlu0 %v461, 112
      %v694 = vpop.permute.xlu0 %693
      %v696 = vsel %vm469, %v692, 0
      %v699 = vsel %vm469, %v694, 0
      %701 = vmatprep.subr.bf16.mxu0 0
      %702 = vmatpush1.bf16.xpose.msra.mxu0 %v699
      %703 = vmatprep.subr.bf16.mxu0 0
      %704 = vmatpush1.bf16.xpose.msra.mxu0 0
      %705 = vmatprep.subr.bf16.mxu0 0
      %706 = vmatpush1.bf16.xpose.msra.mxu0 0
      %707 = vmatprep.subr.bf16.mxu0 0
      %708 = vmatpush1.bf16.xpose.msra.mxu0 0
      %709 = vmatprep.subr.bf16.mxu0 0
      %710 = vmatpush1.bf16.xpose.msra.mxu0 0
      %711 = vmatprep.subr.bf16.mxu0 0
      %712 = vmatpush1.bf16.xpose.msra.mxu0 0
      %713 = vmatprep.subr.bf16.mxu0 0
      %714 = vmatpush1.bf16.xpose.msra.mxu0 0
      %715 = vmatprep.subr.bf16.mxu0 0
      %716 = vmatpush1.bf16.xpose.msra.mxu0 0
      %717 = vmatprep.subr.bf16.mxu0 0
      %718 = vmatpush1.bf16.xpose.msra.mxu0 0
      %719 = vmatprep.subr.bf16.mxu0 0
      %720 = vmatpush1.bf16.xpose.msra.mxu0 0
      %721 = vmatprep.subr.bf16.mxu0 0
      %722 = vmatpush1.bf16.xpose.msra.mxu0 0
      %723 = vmatprep.subr.bf16.mxu0 0
      %724 = vmatpush1.bf16.xpose.msra.mxu0 0
      %725 = vmatprep.subr.bf16.mxu0 0
      %726 = vmatpush1.bf16.xpose.msra.mxu0 0
      %727 = vmatprep.subr.bf16.mxu0 0
      %728 = vmatpush1.bf16.xpose.msra.mxu0 0
      %729 = vmatprep.subr.bf16.mxu0 0
      %730 = vmatpush1.bf16.xpose.msra.mxu0 0
      %731 = vmatprep.subr.bf16.mxu0 0
      %732 = vmatpush1.bf16.xpose.msra.mxu0 0
      %733 = vmatprep.mubr.bf16.mxu0 0
      %734 = vmatmul.mubr.bf16.gmra.mrb[0].mxu0 %v696
      %v735 = vpop.f32.mrb[0].mxu0
      %v736 = vadd.f32 0.0, %v735
      %v737 = vpop.f32.mrb[0].mxu0
      %v738 = vpop.f32.mrb[0].mxu0
      %v739 = vpop.f32.mrb[0].mxu0
      %740 = vdwg.mxu0
      %v741 = vsel %vm468, %v736, -1e+10
      %v742 = vsel %vm469, %v741, -inf
      %743 = vmax.xlane.f32.xlu0 %v742
      %v744 = vpop.xlane.xlu0 %743
      %v745 = vsub.f32 %v741, %v744
      %v746 = vmul.f32 %v745, 1.442695
      %v747 = vpow.pop %v746
      %v748 = vsel %vm469, %v747, 0.0
      %749 = vadd.xlane.f32.xlu0 %v748
      %v750 = vpop.xlane.xlu0 %749
      %v751 = vrcp.pop %v750
      %v752 = vmul.f32 %v747, %v751
      %v753 = vpack.c.bf16 %v752, %v752
      %754 = vrot.lane.b32.xlu0 %v461, 80
      %v755 = vpop.permute.xlu0 %754
      %v757 = vsel %vm469, %v753, 0
      %v760 = vsel %vm535, %v755, 0
      %762 = vmatprep.subr.bf16.mxu0 0
      %763 = vmatpush1.bf16.msra.mxu0 %v760
      %764 = vmatprep.subr.bf16.mxu0 0
      %765 = vmatpush1.bf16.msra.mxu0 0
      %766 = vmatprep.subr.bf16.mxu0 0
      %767 = vmatpush1.bf16.msra.mxu0 0
      %768 = vmatprep.subr.bf16.mxu0 0
      %769 = vmatpush1.bf16.msra.mxu0 0
      %770 = vmatprep.subr.bf16.mxu0 0
      %771 = vmatpush1.bf16.msra.mxu0 0
      %772 = vmatprep.subr.bf16.mxu0 0
      %773 = vmatpush1.bf16.msra.mxu0 0
      %774 = vmatprep.subr.bf16.mxu0 0
      %775 = vmatpush1.bf16.msra.mxu0 0
      %776 = vmatprep.subr.bf16.mxu0 0
      %777 = vmatpush1.bf16.msra.mxu0 0
      %778 = vmatprep.subr.bf16.mxu0 0
      %779 = vmatpush1.bf16.msra.mxu0 0
      %780 = vmatprep.subr.bf16.mxu0 0
      %781 = vmatpush1.bf16.msra.mxu0 0
      %782 = vmatprep.subr.bf16.mxu0 0
      %783 = vmatpush1.bf16.msra.mxu0 0
      %784 = vmatprep.subr.bf16.mxu0 0
      %785 = vmatpush1.bf16.msra.mxu0 0
      %786 = vmatprep.subr.bf16.mxu0 0
      %787 = vmatpush1.bf16.msra.mxu0 0
      %788 = vmatprep.subr.bf16.mxu0 0
      %789 = vmatpush1.bf16.msra.mxu0 0
      %790 = vmatprep.subr.bf16.mxu0 0
      %791 = vmatpush1.bf16.msra.mxu0 0
      %792 = vmatprep.subr.bf16.mxu0 0
      %793 = vmatpush1.bf16.msra.mxu0 0
      %794 = vmatprep.mubr.bf16.mxu0 0
      %795 = vmatmul.mubr.bf16.gmra.mrb[0].mxu0 %v757
      %v796 = vpop.f32.mrb[0].mxu0
      %v797 = vadd.f32 0.0, %v796
      %v798 = vpop.f32.mrb[0].mxu0
      %v799 = vpop.f32.mrb[0].mxu0
      %v800 = vpop.f32.mrb[0].mxu0
      %801 = vdwg.mxu0
      %802 = vrot.lane.b32.xlu0 %v460, 104
      %v803 = vpop.permute.xlu0 %802
      %804 = vrot.lane.b32.xlu0 %v461, 104
      %v805 = vpop.permute.xlu0 %804
      %v807 = vsel %vm469, %v803, 0
      %v810 = vsel %vm469, %v805, 0
      %812 = vmatprep.subr.bf16.mxu0 0
      %813 = vmatpush1.bf16.xpose.msra.mxu0 %v810
      %814 = vmatprep.subr.bf16.mxu0 0
      %815 = vmatpush1.bf16.xpose.msra.mxu0 0
      %816 = vmatprep.subr.bf16.mxu0 0
      %817 = vmatpush1.bf16.xpose.msra.mxu0 0
      %818 = vmatprep.subr.bf16.mxu0 0
      %819 = vmatpush1.bf16.xpose.msra.mxu0 0
      %820 = vmatprep.subr.bf16.mxu0 0
      %821 = vmatpush1.bf16.xpose.msra.mxu0 0
      %822 = vmatprep.subr.bf16.mxu0 0
      %823 = vmatpush1.bf16.xpose.msra.mxu0 0
      %824 = vmatprep.subr.bf16.mxu0 0
      %825 = vmatpush1.bf16.xpose.msra.mxu0 0
      %826 = vmatprep.subr.bf16.mxu0 0
      %827 = vmatpush1.bf16.xpose.msra.mxu0 0
      %828 = vmatprep.subr.bf16.mxu0 0
      %829 = vmatpush1.bf16.xpose.msra.mxu0 0
      %830 = vmatprep.subr.bf16.mxu0 0
      %831 = vmatpush1.bf16.xpose.msra.mxu0 0
      %832 = vmatprep.subr.bf16.mxu0 0
      %833 = vmatpush1.bf16.xpose.msra.mxu0 0
      %834 = vmatprep.subr.bf16.mxu0 0
      %835 = vmatpush1.bf16.xpose.msra.mxu0 0
      %836 = vmatprep.subr.bf16.mxu0 0
      %837 = vmatpush1.bf16.xpose.msra.mxu0 0
      %838 = vmatprep.subr.bf16.mxu0 0
      %839 = vmatpush1.bf16.xpose.msra.mxu0 0
      %840 = vmatprep.subr.bf16.mxu0 0
      %841 = vmatpush1.bf16.xpose.msra.mxu0 0
      %842 = vmatprep.subr.bf16.mxu0 0
      %843 = vmatpush1.bf16.xpose.msra.mxu0 0
      %844 = vmatprep.mubr.bf16.mxu0 0
      %845 = vmatmul.mubr.bf16.gmra.mrb[0].mxu0 %v807
      %v846 = vpop.f32.mrb[0].mxu0
      %v847 = vadd.f32 0.0, %v846
      %v848 = vpop.f32.mrb[0].mxu0
      %v849 = vpop.f32.mrb[0].mxu0
      %v850 = vpop.f32.mrb[0].mxu0
      %851 = vdwg.mxu0
      %v852 = vsel %vm468, %v847, -1e+10
      %v853 = vsel %vm469, %v852, -inf
      %854 = vmax.xlane.f32.xlu0 %v853
      %v855 = vpop.xlane.xlu0 %854
      %v856 = vsub.f32 %v852, %v855
      %v857 = vmul.f32 %v856, 1.442695
      %v858 = vpow.pop %v857
      %v859 = vsel %vm469, %v858, 0.0
      %860 = vadd.xlane.f32.xlu0 %v859
      %v861 = vpop.xlane.xlu0 %860
      %v862 = vrcp.pop %v861
      %v863 = vmul.f32 %v858, %v862
      %v864 = vpack.c.bf16 %v863, %v863
      %865 = vrot.lane.b32.xlu0 %v461, 72
      %v866 = vpop.permute.xlu0 %865
      %v868 = vsel %vm469, %v864, 0
      %v871 = vsel %vm535, %v866, 0
      %873 = vmatprep.subr.bf16.mxu0 0
      %874 = vmatpush1.bf16.msra.mxu0 %v871
      %875 = vmatprep.subr.bf16.mxu0 0
      %876 = vmatpush1.bf16.msra.mxu0 0
      %877 = vmatprep.subr.bf16.mxu0 0
      %878 = vmatpush1.bf16.msra.mxu0 0
      %879 = vmatprep.subr.bf16.mxu0 0
      %880 = vmatpush1.bf16.msra.mxu0 0
      %881 = vmatprep.subr.bf16.mxu0 0
      %882 = vmatpush1.bf16.msra.mxu0 0
      %883 = vmatprep.subr.bf16.mxu0 0
      %884 = vmatpush1.bf16.msra.mxu0 0
      %885 = vmatprep.subr.bf16.mxu0 0
      %886 = vmatpush1.bf16.msra.mxu0 0
      %887 = vmatprep.subr.bf16.mxu0 0
      %888 = vmatpush1.bf16.msra.mxu0 0
      %889 = vmatprep.subr.bf16.mxu0 0
      %890 = vmatpush1.bf16.msra.mxu0 0
      %891 = vmatprep.subr.bf16.mxu0 0
      %892 = vmatpush1.bf16.msra.mxu0 0
      %893 = vmatprep.subr.bf16.mxu0 0
      %894 = vmatpush1.bf16.msra.mxu0 0
      %895 = vmatprep.subr.bf16.mxu0 0
      %896 = vmatpush1.bf16.msra.mxu0 0
      %897 = vmatprep.subr.bf16.mxu0 0
      %898 = vmatpush1.bf16.msra.mxu0 0
      %899 = vmatprep.subr.bf16.mxu0 0
      %900 = vmatpush1.bf16.msra.mxu0 0
      %901 = vmatprep.subr.bf16.mxu0 0
      %902 = vmatpush1.bf16.msra.mxu0 0
      %903 = vmatprep.subr.bf16.mxu0 0
      %904 = vmatpush1.bf16.msra.mxu0 0
      %905 = vmatprep.mubr.bf16.mxu0 0
      %906 = vmatmul.mubr.bf16.gmra.mrb[0].mxu0 %v868
      %v907 = vpop.f32.mrb[0].mxu0
      %v908 = vadd.f32 0.0, %v907
      %v909 = vpop.f32.mrb[0].mxu0
      %v910 = vpop.f32.mrb[0].mxu0
      %v911 = vpop.f32.mrb[0].mxu0
      %912 = vdwg.mxu0
      %914 = vrot.lane.b32.xlu0 %v686, 8
      %v915 = vpop.permute.xlu0 %914
      %918 = vrot.lane.b32.xlu0 %v797, 16
      %v919 = vpop.permute.xlu0 %918
      %922 = vrot.lane.b32.xlu0 %v908, 24
      %v923 = vpop.permute.xlu0 %922
      %v925 = vsel %vm469, %v574, %v915
      %vm926 = vcmask 130048
      %v927 = vsel %vm926, %v925, %v919
      %vm928 = vcmask 195584
      %v929 = vsel %vm928, %v927, %v923
      %v930 = vpack.c.bf16 %v929, %v929
      %v931 = vld [vmem:[%s5] sm:$0xff]
      %v932 = vld [vmem:[%s5 + $0x8] sm:$0xff]
      %v933 = vld [vmem:[%s5 + $0x10] sm:$0xff]
      %v934 = vld [vmem:[%s5 + $0x18] sm:$0xff]
      %v935 = vpack.c.bf16 %v932, %v931
      %v936 = vpack.c.bf16 %v934, %v933
      %v938 = vsel %vm362, %v930, 0
      %940 = vmatprep.subr.bf16.mxu0 0
      %941 = vmatpush1.bf16.msra.mxu0 %v935
      %942 = vmatprep.subr.bf16.mxu0 0
      %943 = vmatpush1.bf16.msra.mxu0 %v936
      %944 = vmatprep.subr.bf16.mxu0 0
      %945 = vmatpush1.bf16.msra.mxu0 0
      %946 = vmatprep.subr.bf16.mxu0 0
      %947 = vmatpush1.bf16.msra.mxu0 0
      %948 = vmatprep.subr.bf16.mxu0 0
      %949 = vmatpush1.bf16.msra.mxu0 0
      %950 = vmatprep.subr.bf16.mxu0 0
      %951 = vmatpush1.bf16.msra.mxu0 0
      %952 = vmatprep.subr.bf16.mxu0 0
      %953 = vmatpush1.bf16.msra.mxu0 0
      %954 = vmatprep.subr.bf16.mxu0 0
      %955 = vmatpush1.bf16.msra.mxu0 0
      %956 = vmatprep.subr.bf16.mxu0 0
      %957 = vmatpush1.bf16.msra.mxu0 0
      %958 = vmatprep.subr.bf16.mxu0 0
      %959 = vmatpush1.bf16.msra.mxu0 0
      %960 = vmatprep.subr.bf16.mxu0 0
      %961 = vmatpush1.bf16.msra.mxu0 0
      %962 = vmatprep.subr.bf16.mxu0 0
      %963 = vmatpush1.bf16.msra.mxu0 0
      %964 = vmatprep.subr.bf16.mxu0 0
      %965 = vmatpush1.bf16.msra.mxu0 0
      %966 = vmatprep.subr.bf16.mxu0 0
      %967 = vmatpush1.bf16.msra.mxu0 0
      %968 = vmatprep.subr.bf16.mxu0 0
      %969 = vmatpush1.bf16.msra.mxu0 0
      %970 = vmatprep.subr.bf16.mxu0 0
      %971 = vmatpush1.bf16.msra.mxu0 0
      %972 = vmatprep.mubr.bf16.mxu0 0
      %973 = vmatmul.mubr.bf16.gmra.mrb[0].mxu0 %v938
      %v974 = vpop.f32.mrb[0].mxu0
      %v975 = vadd.f32 0.0, %v974
      %v976 = vpop.f32.mrb[0].mxu0
      %v977 = vpop.f32.mrb[0].mxu0
      %v978 = vpop.f32.mrb[0].mxu0
      %979 = vdwg.mxu0
      %v980 = vadd.f32 %v347, %v975
      %v981 = vld [vmem:[%s6] sm:$0x1]
      %v983 = vlaneseq
      %v984 = vshrl.u32 %v983, 7
      %v985 = vsub.s32 0, %v984
      %v986 = vrot.slane %v981, %v985
      %v988 = vadd.f32 %v980, %v986
      %v989 = vsel %vm362, %v988, 0.0
      %990 = vadd.xlane.f32.xlu0 %v989
      %v991 = vpop.xlane.xlu0 %990
      %v992 = vrcp.pop 32.0
      %v993 = vmul.f32 %v991, %v992
      %v994 = vsub.f32 %v988, %v993
      %v995 = vmul.f32 %v994, %v994
      %v996 = vsel %vm362, %v995, 0.0
      %997 = vadd.xlane.f32.xlu0 %v996
      %v998 = vpop.xlane.xlu0 %997
      %v999 = vmul.f32 %v998, %v992
      %v1000 = vadd.f32 %v999, 1e-05
      %v1001 = vrsqrt.pop %v1000
      %v1002 = vmul.f32 %v994, %v1001
      %v1003 = vld [vmem:[%s7] sm:$0x1]
      %v1005 = vlaneseq
      %v1006 = vshrl.u32 %v1005, 7
      %v1007 = vsub.s32 0, %v1006
      %v1008 = vrot.slane %v1003, %v1007
      %v1010 = vmul.f32 %v1002, %v1008
      %v1011 = vld [vmem:[%s8] sm:$0x1]
      %v1013 = vlaneseq
      %v1014 = vshrl.u32 %v1013, 7
      %v1015 = vsub.s32 0, %v1014
      %v1016 = vrot.slane %v1011, %v1015
      %v1018 = vadd.f32 %v1010, %v1016
      %1019 = vst.msk [vmem:[%s343] sm:$0xff] %vm362, %v1018
      %s1020 = sadd.s32 %s24, %s25
      %p1021 = scmp.lt.s32.totalorder %s1020, 1
      %s1022 = scalar_select %p1021, %s1020, 1
      %s1023 = smul.addr %s1022, 8
      %s1024 = scalar_lea.vmem %s9, %s1023
      // Predicated region
      $region57: #{decoder_forward.10} parent=55 // pred_check
        %p1025 = pneg %p246
      $region58: #{decoder_forward.10} parent=55 // pred_check_branch
        %1027 = sbr.rel (%p1025) target = $region60
      $region59: #{decoder_forward.10} parent=55 // pred_region
        %s1028 = sadd.s32 %s24, %s25
      $region60: #{decoder_forward.10} parent=55 // pred_fallthru
        _
    $region56: #{decoder_forward.10} parent=5 // pred_fallthru
      _
    %p1029 = scmp.le.s32.totalorder 2, %s15
    // Predicated region
    $region61: #{decoder_forward.10} parent=5 // pred_check
      %p1030 = pneg %p1029
    $region62: #{decoder_forward.10} parent=5 // pred_check_branch
      %1032 = sbr.rel (%p1030) target = $region64
    $region63: #{decoder_forward.10} parent=5 // pred_region
      %s1033 = ssub.s32 %s15, 2
      // Predicated region
      $region65: #{decoder_forward.10} parent=63 // pred_check
        %p1034 = pneg %p252
      $region66: #{decoder_forward.10} parent=63 // pred_check_branch
        %1036 = sbr.rel (%p1034) target = $region68
      $region67: #{decoder_forward.10} parent=63 // pred_region
        %s1037 = sadd.s32 %s26, %s27
        %p1038 = scmp.lt.s32.totalorder %s1037, 1
        %s1039 = scalar_select %p1038, %s1037, 1
        %s1040 = smul.addr %s1039, 8
        %s1041 = scalar_lea.vmem %s9, %s1040
      $region68: #{decoder_forward.10} parent=63 // pred_fallthru
        _
    $region64: #{decoder_forward.10} parent=5 // pred_fallthru
      _
  $region6: #{decoder_forward.10} parent=0 // loop_footer
    %s19 = sadd.s32 1, %s15
  $region7: #{decoder_forward.10} parent=0 // loop_footer_branch
    %14 = sbr.rel target = $region3
  $region8: #{decoder_forward.10} parent=0 // loop_exit
    _

// kernel: decoder_forward.8
$region0: #{decoder_forward.8}
  #allocation0 [shape = 'u32[]', space=smem, size = 0x4, offset = 0x4, fixed_abs, tag = 'smem constant byte address 0x4 - core index']
  #allocation1 [shape = 'u32[144,128]{1,0:T(1,128)}', space=vmem, size = 0x12000, scoped, tag = 'internal scratch']
  %s0 = inlined_call_operand.vmem [shape: f32[16,32], index: 0, kind: input, shape index: {}]
  %s1 = inlined_call_operand.vmem [shape: f32[16,32], index: 1, kind: input, shape index: {}]
  %s2 = inlined_call_operand.vmem [shape: f32[2,1,8], index: 2, kind: input, shape index: {}]
  %s3 = inlined_call_operand.vmem [shape: f32[32,32], index: 3, kind: input, shape index: {}]
  %s4 = inlined_call_operand.vmem [shape: f32[1,32], index: 4, kind: input, shape index: {}]
  %s5 = inlined_call_operand.vmem [shape: f32[32,64], index: 5, kind: input, shape index: {}]
  %s6 = inlined_call_operand.vmem [shape: f32[1,64], index: 6, kind: input, shape index: {}]
  %s7 = inlined_call_operand.vmem [shape: f32[32,32], index: 7, kind: input, shape index: {}]
  %s8 = inlined_call_operand.vmem [shape: f32[1,32], index: 8, kind: input, shape index: {}]
  %s9 = inlined_call_operand.vmem [shape: f32[1,32], index: 9, kind: input, shape index: {}]
  %s10 = inlined_call_operand.vmem [shape: f32[1,32], index: 10, kind: input, shape index: {}]
  %s11 = inlined_call_operand.vmem [shape: f32[16,32], index: 11, kind: output, shape index: {}]
  %s12 = sld [smem:[#allocation0]]
  $region77: #{decoder_forward.8} parent=0
    _
  %s14 = ssub.s32 1, %s12
  %s15 = scalar_select 0, %s14, %s12
  loop: start=0, step=1, limit=4
  $region2: #{decoder_forward.8} parent=0 // loop_pre_header
    _
  $region3: #{decoder_forward.8} parent=0 // loop_header
    %s17 = sphi 0, %s21
    %p18 = scmp.ge.s32.totalorder %s17, 4
    %s24 = sphi 0, %s36
    %s25 = sphi 0, %s32
    %s26 = sphi 0, %s24
    %s27 = sphi 0, %s25
    %s28 = sphi 0, %s26
    %s29 = sphi 0, %s27
    %s41 = sphi 0, %s43
    %s44 = sphi 0, %s41
    %s45 = sphi 0, %s44
    %s61 = sphi 0, %s45
    %s67 = sphi 0, %s69
    %s70 = sphi 0, %s67
    %s71 = sphi 0, %s70
    %s87 = sphi 0, %s71
    %s93 = sphi 0, %s95
    %s96 = sphi 0, %s93
    %s97 = sphi 0, %s96
    %s113 = sphi 0, %s97
    %s117 = sphi 0, %s117
    %s119 = sphi 0, %s117
    %s120 = sphi 0, %s119
    %s134 = sphi 0, %s120
    %s138 = sphi 0, %s138
    %s140 = sphi 0, %s138
    %s141 = sphi 0, %s140
    %s155 = sphi 0, %s141
    %s159 = sphi 0, %s159
    %s161 = sphi 0, %s159
    %s162 = sphi 0, %s161
    %s176 = sphi 0, %s162
    %s180 = sphi 0, %s180
    %s182 = sphi 0, %s180
    %s183 = sphi 0, %s182
    %s197 = sphi 0, %s183
    %s201 = sphi 0, %s201
    %s203 = sphi 0, %s201
    %s204 = sphi 0, %s203
    %s218 = sphi 0, %s204
    %s222 = sphi 0, %s222
    %s224 = sphi 0, %s222
    %s225 = sphi 0, %s224
    %s239 = sphi 0, %s225
    %s243 = sphi 0, %s243
    %s245 = sphi 0, %s243
    %s246 = sphi 0, %s245
    %s260 = sphi 0, %s246
    %s264 = sphi 0, %s264
    %s266 = sphi 0, %s264
    %s267 = sphi 0, %s266
    %s281 = sphi 0, %s267
    %s289 = sphi 0, %s291
    %s292 = sphi 0, %s289
    %s293 = sphi 0, %s292
    %s309 = sphi 0, %s293
  $region4: #{decoder_forward.8} parent=0 // loop_header_branch
    %20 = sbr.rel (%p18) target = $region8
  $region5: #{decoder_forward.8} parent=0 // loop_body
    %s22 = ssub.s32 %s17, 1
    %s23 = ssub.s32 %s17, 2
    %s30 = sadd.s32 1, %s25
    %p31 = scmp.ge.s32.totalorder %s30, 1
    %s32 = scalar_select %p31, 0, %s30
    %s33 = sadd.s32 1, %s24
    %s34 = scalar_select %p31, %s33, %s24
    %p35 = scmp.ge.s32.totalorder %s34, 2
    %s36 = scalar_select %p35, 0, %s34
    %s37 = sadd.s32 %s24, %s25
    %s38 = sadd.s32 %s36, %s32
    %s39 = ssub.s32 %s37, %s38
    %p40 = scmp.eq.s32.totalorder %s39, 0
    %s42 = sadd.s32 %s41, 1
    %s43 = scalar_select %p40, %s41, %s42
    %p46 = pneg %p40
    %p47 = scmp.eq.s32.totalorder %s17, 1
    %p48 = por %p46, %p47
    %p49 = scmp.ne.s32.totalorder %s41, %s44
    %p50 = scmp.eq.s32.totalorder %s17, 0
    %p51 = por %p49, %p50
    %p52 = scmp.ne.s32.totalorder %s41, %s44
    %p53 = scmp.eq.s32.totalorder %s22, 1
    %p54 = por %p52, %p53
    %p55 = scmp.ne.s32.totalorder %s44, %s45
    %p56 = scmp.eq.s32.totalorder %s22, 0
    %p57 = por %p55, %p56
    %p58 = scmp.ne.s32.totalorder %s44, %s45
    %p59 = scmp.eq.s32.totalorder %s23, 1
    %p60 = por %p58, %p59
    %p62 = scmp.ne.s32.totalorder %s45, %s61
    %p63 = scmp.eq.s32.totalorder %s23, 0
    %p64 = por %p62, %p63
    %s65 = ssub.s32 %s24, %s36
    %p66 = scmp.eq.s32.totalorder %s65, 0
    %s68 = sadd.s32 %s67, 1
    %s69 = scalar_select %p66, %s67, %s68
    %p72 = pneg %p66
    %p73 = scmp.eq.s32.totalorder %s17, 1
    %p74 = por %p72, %p73
    %p75 = scmp.ne.s32.totalorder %s67, %s70
    %p76 = scmp.eq.s32.totalorder %s17, 0
    %p77 = por %p75, %p76
    %p78 = scmp.ne.s32.totalorder %s67, %s70
    %p79 = scmp.eq.s32.totalorder %s22, 1
    %p80 = por %p78, %p79
    %p81 = scmp.ne.s32.totalorder %s70, %s71
    %p82 = scmp.eq.s32.totalorder %s22, 0
    %p83 = por %p81, %p82
    %p84 = scmp.ne.s32.totalorder %s70, %s71
    %p85 = scmp.eq.s32.totalorder %s23, 1
    %p86 = por %p84, %p85
    %p88 = scmp.ne.s32.totalorder %s71, %s87
    %p89 = scmp.eq.s32.totalorder %s23, 0
    %p90 = por %p88, %p89
    %s91 = ssub.s32 %s24, %s36
    %p92 = scmp.eq.s32.totalorder %s91, 0
    %s94 = sadd.s32 %s93, 1
    %s95 = scalar_select %p92, %s93, %s94
    %p98 = pneg %p92
    %p99 = scmp.eq.s32.totalorder %s17, 1
    %p100 = por %p98, %p99
    %p101 = scmp.ne.s32.totalorder %s93, %s96
    %p102 = scmp.eq.s32.totalorder %s17, 0
    %p103 = por %p101, %p102
    %p104 = scmp.ne.s32.totalorder %s93, %s96
    %p105 = scmp.eq.s32.totalorder %s22, 1
    %p106 = por %p104, %p105
    %p107 = scmp.ne.s32.totalorder %s96, %s97
    %p108 = scmp.eq.s32.totalorder %s22, 0
    %p109 = por %p107, %p108
    %p110 = scmp.ne.s32.totalorder %s96, %s97
    %p111 = scmp.eq.s32.totalorder %s23, 1
    %p112 = por %p110, %p111
    %p114 = scmp.ne.s32.totalorder %s97, %s113
    %p115 = scmp.eq.s32.totalorder %s23, 0
    %p116 = por %p114, %p115
    %s118 = sadd.s32 %s117, 1
    %p121 = scmp.eq.s32.totalorder %s17, 1
    %p122 = scmp.ne.s32.totalorder %s117, %s119
    %p123 = scmp.eq.s32.totalorder %s17, 0
    %p124 = por %p122, %p123
    %p125 = scmp.ne.s32.totalorder %s117, %s119
    %p126 = scmp.eq.s32.totalorder %s22, 1
    %p127 = por %p125, %p126
    %p128 = scmp.ne.s32.totalorder %s119, %s120
    %p129 = scmp.eq.s32.totalorder %s22, 0
    %p130 = por %p128, %p129
    %p131 = scmp.ne.s32.totalorder %s119, %s120
    %p132 = scmp.eq.s32.totalorder %s23, 1
    %p133 = por %p131, %p132
    %p135 = scmp.ne.s32.totalorder %s120, %s134
    %p136 = scmp.eq.s32.totalorder %s23, 0
    %p137 = por %p135, %p136
    %s139 = sadd.s32 %s138, 1
    %p142 = scmp.eq.s32.totalorder %s17, 1
    %p143 = scmp.ne.s32.totalorder %s138, %s140
    %p144 = scmp.eq.s32.totalorder %s17, 0
    %p145 = por %p143, %p144
    %p146 = scmp.ne.s32.totalorder %s138, %s140
    %p147 = scmp.eq.s32.totalorder %s22, 1
    %p148 = por %p146, %p147
    %p149 = scmp.ne.s32.totalorder %s140, %s141
    %p150 = scmp.eq.s32.totalorder %s22, 0
    %p151 = por %p149, %p150
    %p152 = scmp.ne.s32.totalorder %s140, %s141
    %p153 = scmp.eq.s32.totalorder %s23, 1
    %p154 = por %p152, %p153
    %p156 = scmp.ne.s32.totalorder %s141, %s155
    %p157 = scmp.eq.s32.totalorder %s23, 0
    %p158 = por %p156, %p157
    %s160 = sadd.s32 %s159, 1
    %p163 = scmp.eq.s32.totalorder %s17, 1
    %p164 = scmp.ne.s32.totalorder %s159, %s161
    %p165 = scmp.eq.s32.totalorder %s17, 0
    %p166 = por %p164, %p165
    %p167 = scmp.ne.s32.totalorder %s159, %s161
    %p168 = scmp.eq.s32.totalorder %s22, 1
    %p169 = por %p167, %p168
    %p170 = scmp.ne.s32.totalorder %s161, %s162
    %p171 = scmp.eq.s32.totalorder %s22, 0
    %p172 = por %p170, %p171
    %p173 = scmp.ne.s32.totalorder %s161, %s162
    %p174 = scmp.eq.s32.totalorder %s23, 1
    %p175 = por %p173, %p174
    %p177 = scmp.ne.s32.totalorder %s162, %s176
    %p178 = scmp.eq.s32.totalorder %s23, 0
    %p179 = por %p177, %p178
    %s181 = sadd.s32 %s180, 1
    %p184 = scmp.eq.s32.totalorder %s17, 1
    %p185 = scmp.ne.s32.totalorder %s180, %s182
    %p186 = scmp.eq.s32.totalorder %s17, 0
    %p187 = por %p185, %p186
    %p188 = scmp.ne.s32.totalorder %s180, %s182
    %p189 = scmp.eq.s32.totalorder %s22, 1
    %p190 = por %p188, %p189
    %p191 = scmp.ne.s32.totalorder %s182, %s183
    %p192 = scmp.eq.s32.totalorder %s22, 0
    %p193 = por %p191, %p192
    %p194 = scmp.ne.s32.totalorder %s182, %s183
    %p195 = scmp.eq.s32.totalorder %s23, 1
    %p196 = por %p194, %p195
    %p198 = scmp.ne.s32.totalorder %s183, %s197
    %p199 = scmp.eq.s32.totalorder %s23, 0
    %p200 = por %p198, %p199
    %s202 = sadd.s32 %s201, 1
    %p205 = scmp.eq.s32.totalorder %s17, 1
    %p206 = scmp.ne.s32.totalorder %s201, %s203
    %p207 = scmp.eq.s32.totalorder %s17, 0
    %p208 = por %p206, %p207
    %p209 = scmp.ne.s32.totalorder %s201, %s203
    %p210 = scmp.eq.s32.totalorder %s22, 1
    %p211 = por %p209, %p210
    %p212 = scmp.ne.s32.totalorder %s203, %s204
    %p213 = scmp.eq.s32.totalorder %s22, 0
    %p214 = por %p212, %p213
    %p215 = scmp.ne.s32.totalorder %s203, %s204
    %p216 = scmp.eq.s32.totalorder %s23, 1
    %p217 = por %p215, %p216
    %p219 = scmp.ne.s32.totalorder %s204, %s218
    %p220 = scmp.eq.s32.totalorder %s23, 0
    %p221 = por %p219, %p220
    %s223 = sadd.s32 %s222, 1
    %p226 = scmp.eq.s32.totalorder %s17, 1
    %p227 = scmp.ne.s32.totalorder %s222, %s224
    %p228 = scmp.eq.s32.totalorder %s17, 0
    %p229 = por %p227, %p228
    %p230 = scmp.ne.s32.totalorder %s222, %s224
    %p231 = scmp.eq.s32.totalorder %s22, 1
    %p232 = por %p230, %p231
    %p233 = scmp.ne.s32.totalorder %s224, %s225
    %p234 = scmp.eq.s32.totalorder %s22, 0
    %p235 = por %p233, %p234
    %p236 = scmp.ne.s32.totalorder %s224, %s225
    %p237 = scmp.eq.s32.totalorder %s23, 1
    %p238 = por %p236, %p237
    %p240 = scmp.ne.s32.totalorder %s225, %s239
    %p241 = scmp.eq.s32.totalorder %s23, 0
    %p242 = por %p240, %p241
    %s244 = sadd.s32 %s243, 1
    %p247 = scmp.eq.s32.totalorder %s17, 1
    %p248 = scmp.ne.s32.totalorder %s243, %s245
    %p249 = scmp.eq.s32.totalorder %s17, 0
    %p250 = por %p248, %p249
    %p251 = scmp.ne.s32.totalorder %s243, %s245
    %p252 = scmp.eq.s32.totalorder %s22, 1
    %p253 = por %p251, %p252
    %p254 = scmp.ne.s32.totalorder %s245, %s246
    %p255 = scmp.eq.s32.totalorder %s22, 0
    %p256 = por %p254, %p255
    %p257 = scmp.ne.s32.totalorder %s245, %s246
    %p258 = scmp.eq.s32.totalorder %s23, 1
    %p259 = por %p257, %p258
    %p261 = scmp.ne.s32.totalorder %s246, %s260
    %p262 = scmp.eq.s32.totalorder %s23, 0
    %p263 = por %p261, %p262
    %s265 = sadd.s32 %s264, 1
    %p268 = scmp.eq.s32.totalorder %s17, 1
    %p269 = scmp.ne.s32.totalorder %s264, %s266
    %p270 = scmp.eq.s32.totalorder %s17, 0
    %p271 = por %p269, %p270
    %p272 = scmp.ne.s32.totalorder %s264, %s266
    %p273 = scmp.eq.s32.totalorder %s22, 1
    %p274 = por %p272, %p273
    %p275 = scmp.ne.s32.totalorder %s266, %s267
    %p276 = scmp.eq.s32.totalorder %s22, 0
    %p277 = por %p275, %p276
    %p278 = scmp.ne.s32.totalorder %s266, %s267
    %p279 = scmp.eq.s32.totalorder %s23, 1
    %p280 = por %p278, %p279
    %p282 = scmp.ne.s32.totalorder %s267, %s281
    %p283 = scmp.eq.s32.totalorder %s23, 0
    %p284 = por %p282, %p283
    %s285 = sadd.s32 %s24, %s25
    %s286 = sadd.s32 %s36, %s32
    %s287 = ssub.s32 %s285, %s286
    %p288 = scmp.eq.s32.totalorder %s287, 0
    %s290 = sadd.s32 %s289, 1
    %s291 = scalar_select %p288, %s289, %s290
    %p294 = pneg %p288
    %p295 = scmp.eq.s32.totalorder %s17, 1
    %p296 = por %p294, %p295
    %p297 = scmp.ne.s32.totalorder %s289, %s292
    %p298 = scmp.eq.s32.totalorder %s17, 0
    %p299 = por %p297, %p298
    %p300 = scmp.ne.s32.totalorder %s289, %s292
    %p301 = scmp.eq.s32.totalorder %s22, 1
    %p302 = por %p300, %p301
    %p303 = scmp.ne.s32.totalorder %s292, %s293
    %p304 = scmp.eq.s32.totalorder %s22, 0
    %p305 = por %p303, %p304
    %p306 = scmp.ne.s32.totalorder %s292, %s293
    %p307 = scmp.eq.s32.totalorder %s23, 1
    %p308 = por %p306, %p307
    %p310 = scmp.ne.s32.totalorder %s293, %s309
    %p311 = scmp.eq.s32.totalorder %s23, 0
    %p312 = por %p310, %p311
    %p313 = scmp.le.s32.totalorder 1, %s17
    %p314 = scmp.lt.s32.totalorder %s17, 3
    %p315 = pnand %p313, %p314
    %p316 = pneg %p315
    // Predicated region
    $region9: #{decoder_forward.8} parent=5 // pred_check
      _
    $region10: #{decoder_forward.8} parent=5 // pred_check_branch
      %318 = sbr.rel (%p315) target = $region12
    $region11: #{decoder_forward.8} parent=5 // pred_region
      %s319 = ssub.s32 %s17, 1
      // Predicated region
      $region13: #{decoder_forward.8} parent=11 // pred_check
        %p320 = pneg %p130
      $region14: #{decoder_forward.8} parent=11 // pred_check_branch
        %322 = sbr.rel (%p320) target = $region16
      $region15: #{decoder_forward.8} parent=11 // pred_region
        _
      $region16: #{decoder_forward.8} parent=11 // pred_fallthru
        _
      // Predicated region
      $region17: #{decoder_forward.8} parent=11 // pred_check
        %p323 = pneg %p151
      $region18: #{decoder_forward.8} parent=11 // pred_check_branch
        %325 = sbr.rel (%p323) target = $region20
      $region19: #{decoder_forward.8} parent=11 // pred_region
        _
      $region20: #{decoder_forward.8} parent=11 // pred_fallthru
        _
      // Predicated region
      $region21: #{decoder_forward.8} parent=11 // pred_check
        %p326 = pneg %p172
      $region22: #{decoder_forward.8} parent=11 // pred_check_branch
        %328 = sbr.rel (%p326) target = $region24
      $region23: #{decoder_forward.8} parent=11 // pred_region
        _
      $region24: #{decoder_forward.8} parent=11 // pred_fallthru
        _
      // Predicated region
      $region25: #{decoder_forward.8} parent=11 // pred_check
        %p329 = pneg %p193
      $region26: #{decoder_forward.8} parent=11 // pred_check_branch
        %331 = sbr.rel (%p329) target = $region28
      $region27: #{decoder_forward.8} parent=11 // pred_region
        _
      $region28: #{decoder_forward.8} parent=11 // pred_fallthru
        _
      // Predicated region
      $region29: #{decoder_forward.8} parent=11 // pred_check
        %p332 = pneg %p214
      $region30: #{decoder_forward.8} parent=11 // pred_check_branch
        %334 = sbr.rel (%p332) target = $region32
      $region31: #{decoder_forward.8} parent=11 // pred_region
        _
      $region32: #{decoder_forward.8} parent=11 // pred_fallthru
        _
      // Predicated region
      $region33: #{decoder_forward.8} parent=11 // pred_check
        %p335 = pneg %p235
      $region34: #{decoder_forward.8} parent=11 // pred_check_branch
        %337 = sbr.rel (%p335) target = $region36
      $region35: #{decoder_forward.8} parent=11 // pred_region
        _
      $region36: #{decoder_forward.8} parent=11 // pred_fallthru
        _
      // Predicated region
      $region37: #{decoder_forward.8} parent=11 // pred_check
        %p338 = pneg %p256
      $region38: #{decoder_forward.8} parent=11 // pred_check_branch
        %340 = sbr.rel (%p338) target = $region40
      $region39: #{decoder_forward.8} parent=11 // pred_region
        _
      $region40: #{decoder_forward.8} parent=11 // pred_fallthru
        _
      // Predicated region
      $region41: #{decoder_forward.8} parent=11 // pred_check
        %p341 = pneg %p277
      $region42: #{decoder_forward.8} parent=11 // pred_check_branch
        %343 = sbr.rel (%p341) target = $region44
      $region43: #{decoder_forward.8} parent=11 // pred_region
        _
      $region44: #{decoder_forward.8} parent=11 // pred_fallthru
        _
    $region12: #{decoder_forward.8} parent=5 // pred_fallthru
      _
    %p344 = scmp.lt.s32.totalorder %s17, 2
    // Predicated region
    $region45: #{decoder_forward.8} parent=5 // pred_check
      %p345 = pneg %p344
    $region46: #{decoder_forward.8} parent=5 // pred_check_branch
      %347 = sbr.rel (%p345) target = $region48
    $region47: #{decoder_forward.8} parent=5 // pred_region
      // Predicated region
      $region49: #{decoder_forward.8} parent=47 // pred_check
        %p348 = pneg %p51
      $region50: #{decoder_forward.8} parent=47 // pred_check_branch
        %350 = sbr.rel (%p348) target = $region52
      $region51: #{decoder_forward.8} parent=47 // pred_region
        %s351 = sadd.s32 %s24, %s25
        %p352 = scmp.lt.s32.totalorder %s351, 1
        %s353 = scalar_select %p352, %s351, 1
        %s354 = smul.addr %s353, 8
        %s355 = scalar_lea.vmem %s0, %s354
        %s356 = sadd.s32 %s24, %s25
      $region52: #{decoder_forward.8} parent=47 // pred_fallthru
        _
      // Predicated region
      $region53: #{decoder_forward.8} parent=47 // pred_check
        %p357 = pneg %p77
      $region54: #{decoder_forward.8} parent=47 // pred_check_branch
        %359 = sbr.rel (%p357) target = $region56
      $region55: #{decoder_forward.8} parent=47 // pred_region
        %p360 = scmp.lt.s32.totalorder %s24, 1
        %s361 = scalar_select %p360, %s24, 1
        %s362 = smul.addr %s361, 8
        %s363 = scalar_lea.vmem %s1, %s362
      $region56: #{decoder_forward.8} parent=47 // pred_fallthru
        _
      // Predicated region
      $region57: #{decoder_forward.8} parent=47 // pred_check
        %p364 = pneg %p103
      $region58: #{decoder_forward.8} parent=47 // pred_check_branch
        %366 = sbr.rel (%p364) target = $region60
      $region59: #{decoder_forward.8} parent=47 // pred_region
        %p367 = scmp.lt.s32.totalorder %s24, 1
        %s368 = scalar_select %p367, %s24, 1
        %s369 = scalar_lea.vmem %s2, %s368
      $region60: #{decoder_forward.8} parent=47 // pred_fallthru
        _
    $region48: #{decoder_forward.8} parent=5 // pred_fallthru
      _
    %p370 = scmp.le.s32.totalorder 1, %s17
    %p371 = scmp.lt.s32.totalorder %s17, 3
    %p372 = pnand %p370, %p371
    %p373 = pneg %p372
    // Predicated region
    $region61: #{decoder_forward.8} parent=5 // pred_check
      _
    $region62: #{decoder_forward.8} parent=5 // pred_check_branch
      %375 = sbr.rel (%p372) target = $region64
    $region63: #{decoder_forward.8} parent=5 // pred_region
      %s376 = ssub.s32 %s17, 1
      %s377 = sadd.s32 %s26, %s27
      %p378 = scmp.lt.s32.totalorder %s377, 1
      %s379 = scalar_select %p378, %s377, 1
      %s380 = smul.addr %s379, 8
      %s381 = scalar_lea.vmem %s0, %s380
      %p382 = pneg %p57
      %p383 = pneg %p54
      %p384 = scmp.lt.s32.totalorder %s26, 1
      %s385 = scalar_select %p384, %s26, 1
      %s386 = smul.addr %s385, 8
      %s387 = scalar_lea.vmem %s1, %s386
      %p388 = pneg %p83
      %p389 = pneg %p80
      %p390 = scmp.lt.s32.totalorder %s26, 1
      %s391 = scalar_select %p390, %s26, 1
      %s392 = scalar_lea.vmem %s2, %s391
      %p393 = pneg %p109
      %p394 = pneg %p106
      %p395 = pneg %p130
      %p396 = pneg %p127
      %p397 = pneg %p151
      %p398 = pneg %p148
      %p399 = pneg %p172
      %p400 = pneg %p169
      %p401 = pneg %p193
      %p402 = pneg %p190
      %p403 = pneg %p214
      %p404 = pneg %p211
      %p405 = pneg %p235
      %p406 = pneg %p232
      %p407 = pneg %p256
      %p408 = pneg %p253
      %p409 = pneg %p277
      %p410 = pneg %p274
      %p411 = pneg %p305
      %p412 = pneg %p302
      %s413 = sadd.s32 %s26, %s27
      %p414 = scmp.lt.s32.totalorder %s413, 1
      %s415 = scalar_select %p414, %s413, 1
      %s416 = smul.addr %s415, 8
      %s417 = scalar_lea.vmem %s11, %s416
      %s418 = sadd.s32 %s26, %s27
      %p419 = scmp.lt.s32.totalorder %s418, 1
      %s420 = scalar_select %p419, %s418, 1
      %s421 = smul.addr %s420, 8
      %s422 = scalar_lea.vmem %s0, %s421
      %s423 = sadd.s32 %s26, %s27
      %p424 = scmp.lt.s32.totalorder %s26, 1
      %s425 = scalar_select %p424, %s26, 1
      %s426 = smul.addr %s425, 8
      %s427 = scalar_lea.vmem %s1, %s426
      %p428 = scmp.lt.s32.totalorder %s26, 1
      %s429 = scalar_select %p428, %s26, 1
      %s430 = scalar_lea.vmem %s2, %s429
      %s431 = sadd.s32 %s26, %s27
      %p432 = scmp.lt.s32.totalorder %s431, 1
      %s433 = scalar_select %p432, %s431, 1
      %s434 = smul.addr %s433, 8
      %s435 = scalar_lea.vmem %s11, %s434
      %s436 = sadd.s32 %s26, %s27
      %v438 = vld [vmem:[%s422] sm:$0xff]
      %v439 = vld [vmem:[%s427] sm:$0xff]
      %v440 = vpack.c.bf16 %v438, %v438
      %v441 = vld [vmem:[%s3] sm:$0xff]
      %v442 = vld [vmem:[%s3 + $0x8] sm:$0xff]
      %v443 = vld [vmem:[%s3 + $0x10] sm:$0xff]
      %v444 = vld [vmem:[%s3 + $0x18] sm:$0xff]
      %v445 = vpack.c.bf16 %v442, %v441
      %v446 = vpack.c.bf16 %v444, %v443
      %v447 = vld [vmem:[%s4] sm:$0x1]
      %v449 = vlaneseq
      %v450 = vshrl.u32 %v449, 7
      %v451 = vsub.s32 0, %v450
      %v452 = vrot.slane %v447, %v451
      %vm454 = vcmask 261120
      %v456 = vsel %vm454, %v440, 0
      %458 = vmatprep.subr.bf16.mxu0 0
      %459 = vmatpush1.bf16.msra.mxu0 %v445
      %460 = vmatprep.subr.bf16.mxu0 0
      %461 = vmatpush1.bf16.msra.mxu0 %v446
      %462 = vmatprep.subr.bf16.mxu0 0
      %463 = vmatpush1.bf16.msra.mxu0 0
      %464 = vmatprep.subr.bf16.mxu0 0
      %465 = vmatpush1.bf16.msra.mxu0 0
      %466 = vmatprep.subr.bf16.mxu0 0
      %467 = vmatpush1.bf16.msra.mxu0 0
      %468 = vmatprep.subr.bf16.mxu0 0
      %469 = vmatpush1.bf16.msra.mxu0 0
      %470 = vmatprep.subr.bf16.mxu0 0
      %471 = vmatpush1.bf16.msra.mxu0 0
      %472 = vmatprep.subr.bf16.mxu0 0
      %473 = vmatpush1.bf16.msra.mxu0 0
      %474 = vmatprep.subr.bf16.mxu0 0
      %475 = vmatpush1.bf16.msra.mxu0 0
      %476 = vmatprep.subr.bf16.mxu0 0
      %477 = vmatpush1.bf16.msra.mxu0 0
      %478 = vmatprep.subr.bf16.mxu0 0
      %479 = vmatpush1.bf16.msra.mxu0 0
      %480 = vmatprep.subr.bf16.mxu0 0
      %481 = vmatpush1.bf16.msra.mxu0 0
      %482 = vmatprep.subr.bf16.mxu0 0
      %483 = vmatpush1.bf16.msra.mxu0 0
      %484 = vmatprep.subr.bf16.mxu0 0
      %485 = vmatpush1.bf16.msra.mxu0 0
      %486 = vmatprep.subr.bf16.mxu0 0
      %487 = vmatpush1.bf16.msra.mxu0 0
      %488 = vmatprep.subr.bf16.mxu0 0
      %489 = vmatpush1.bf16.msra.mxu0 0
      %490 = vmatprep.mubr.bf16.mxu0 0
      %491 = vmatmul.mubr.bf16.gmra.mrb[0].mxu0 %v456
      %v492 = vpop.f32.mrb[0].mxu0
      %v493 = vadd.f32 %v452, %v492
      %v494 = vpop.f32.mrb[0].mxu0
      %v495 = vpop.f32.mrb[0].mxu0
      %v496 = vpop.f32.mrb[0].mxu0
      %497 = vdwg.mxu0
      %v498 = vmul.f32 %v493, 0.35355338
      %v499 = vpack.c.bf16 %v439, %v439
      %v500 = vld [vmem:[%s5] sm:$0xff]
      %v501 = vld [vmem:[%s5 + $0x8] sm:$0xff]
      %v502 = vld [vmem:[%s5 + $0x10] sm:$0xff]
      %v503 = vld [vmem:[%s5 + $0x18] sm:$0xff]
      %v504 = vpack.c.bf16 %v501, %v500
      %v505 = vpack.c.bf16 %v503, %v502
      %v506 = vld [vmem:[%s6] sm:$0x1]
      %v508 = vlaneseq
      %v509 = vshrl.u32 %v508, 7
      %v510 = vsub.s32 0, %v509
      %v511 = vrot.slane %v506, %v510
      %v514 = vsel %vm454, %v499, 0
      %516 = vmatprep.subr.bf16.mxu0 0
      %517 = vmatpush1.bf16.msra.mxu0 %v504
      %518 = vmatprep.subr.bf16.mxu0 0
      %519 = vmatpush1.bf16.msra.mxu0 %v505
      %520 = vmatprep.subr.bf16.mxu0 0
      %521 = vmatpush1.bf16.msra.mxu0 0
      %522 = vmatprep.subr.bf16.mxu0 0
      %523 = vmatpush1.bf16.msra.mxu0 0
      %524 = vmatprep.subr.bf16.mxu0 0
      %525 = vmatpush1.bf16.msra.mxu0 0
      %526 = vmatprep.subr.bf16.mxu0 0
      %527 = vmatpush1.bf16.msra.mxu0 0
      %528 = vmatprep.subr.bf16.mxu0 0
      %529 = vmatpush1.bf16.msra.mxu0 0
      %530 = vmatprep.subr.bf16.mxu0 0
      %531 = vmatpush1.bf16.msra.mxu0 0
      %532 = vmatprep.subr.bf16.mxu0 0
      %533 = vmatpush1.bf16.msra.mxu0 0
      %534 = vmatprep.subr.bf16.mxu0 0
      %535 = vmatpush1.bf16.msra.mxu0 0
      %536 = vmatprep.subr.bf16.mxu0 0
      %537 = vmatpush1.bf16.msra.mxu0 0
      %538 = vmatprep.subr.bf16.mxu0 0
      %539 = vmatpush1.bf16.msra.mxu0 0
      %540 = vmatprep.subr.bf16.mxu0 0
      %541 = vmatpush1.bf16.msra.mxu0 0
      %542 = vmatprep.subr.bf16.mxu0 0
      %543 = vmatpush1.bf16.msra.mxu0 0
      %544 = vmatprep.subr.bf16.mxu0 0
      %545 = vmatpush1.bf16.msra.mxu0 0
      %546 = vmatprep.subr.bf16.mxu0 0
      %547 = vmatpush1.bf16.msra.mxu0 0
      %548 = vmatprep.mubr.bf16.mxu0 0
      %549 = vmatmul.mubr.bf16.gmra.mrb[0].mxu0 %v514
      %v550 = vpop.f32.mrb[0].mxu0
      %v551 = vadd.f32 %v511, %v550
      %v552 = vpop.f32.mrb[0].mxu0
      %v553 = vpop.f32.mrb[0].mxu0
      %v554 = vpop.f32.mrb[0].mxu0
      %555 = vdwg.mxu0
      %v556 = vpack.c.bf16 %v498, %v498
      %v557 = vpack.c.bf16 %v551, %v551
      %v558 = vld [vmem:[%s430] sm:$0x1]
      %vm559 = vcmp.gt.f32.partialorder %v558, 0.0
      %vm560 = vcmask 64512
      %v562 = vsel %vm560, %v556, 0
      %v565 = vsel %vm560, %v557, 0
      %567 = vmatprep.subr.bf16.mxu0 0
      %568 = vmatpush1.bf16.xpose.msra.mxu0 %v565
      %569 = vmatprep.subr.bf16.mxu0 0
      %570 = vmatpush1.bf16.xpose.msra.mxu0 0
      %571 = vmatprep.subr.bf16.mxu0 0
      %572 = vmatpush1.bf16.xpose.msra.mxu0 0
      %573 = vmatprep.subr.bf16.mxu0 0
      %574 = vmatpush1.bf16.xpose.msra.mxu0 0
      %575 = vmatprep.subr.bf16.mxu0 0
      %576 = vmatpush1.bf16.xpose.msra.mxu0 0
      %577 = vmatprep.subr.bf16.mxu0 0
      %578 = vmatpush1.bf16.xpose.msra.mxu0 0
      %579 = vmatprep.subr.bf16.mxu0 0
      %580 = vmatpush1.bf16.xpose.msra.mxu0 0
      %581 = vmatprep.subr.bf16.mxu0 0
      %582 = vmatpush1.bf16.xpose.msra.mxu0 0
      %583 = vmatprep.subr.bf16.mxu0 0
      %584 = vmatpush1.bf16.xpose.msra.mxu0 0
      %585 = vmatprep.subr.bf16.mxu0 0
      %586 = vmatpush1.bf16.xpose.msra.mxu0 0
      %587 = vmatprep.subr.bf16.mxu0 0
      %588 = vmatpush1.bf16.xpose.msra.mxu0 0
      %589 = vmatprep.subr.bf16.mxu0 0
      %590 = vmatpush1.bf16.xpose.msra.mxu0 0
      %591 = vmatprep.subr.bf16.mxu0 0
      %592 = vmatpush1.bf16.xpose.msra.mxu0 0
      %593 = vmatprep.subr.bf16.mxu0 0
      %594 = vmatpush1.bf16.xpose.msra.mxu0 0
      %595 = vmatprep.subr.bf16.mxu0 0
      %596 = vmatpush1.bf16.xpose.msra.mxu0 0
      %597 = vmatprep.subr.bf16.mxu0 0
      %598 = vmatpush1.bf16.xpose.msra.mxu0 0
      %599 = vmatprep.mubr.bf16.mxu0 0
      %600 = vmatmul.mubr.bf16.gmra.mrb[0].mxu0 %v562
      %v601 = vpop.f32.mrb[0].mxu0
      %v602 = vadd.f32 0.0, %v601
      %v603 = vpop.f32.mrb[0].mxu0
      %v604 = vpop.f32.mrb[0].mxu0
      %v605 = vpop.f32.mrb[0].mxu0
      %606 = vdwg.mxu0
      %v607 = vsel %vm559, 1, 0
      %v608 = vlaneseq
      %v609 = vshrl.u32 %v608, 7
      %v610 = vsub.s32 0, %v609
      %v611 = vrot.slane %v607, %v610
      %vm612 = vcmp.eq.s32.totalorder %v611, 1
      %v613 = vsel %vm612, %v602, -1e+10
      %v614 = vsel %vm560, %v613, -inf
      %615 = vmax.xlane.f32.xlu0 %v614
      %v616 = vpop.xlane.xlu0 %615
      %v617 = vsub.f32 %v613, %v616
      %v618 = vmul.f32 %v617, 1.442695
      %v619 = vpow.pop %v618
      %v620 = vsel %vm560, %v619, 0.0
      %621 = vadd.xlane.f32.xlu0 %v620
      %v622 = vpop.xlane.xlu0 %621
      %v623 = vrcp.pop %v622
      %v624 = vmul.f32 %v619, %v623
      %v625 = vpack.c.bf16 %v624, %v624
      %627 = vrot.lane.b32.xlu0 %v557, 96
      %v628 = vpop.permute.xlu0 %627
      %v630 = vsel %vm560, %v625, 0
      %vm632 = vcmask 1043456
      %v634 = vsel %vm632, %v628, 0
      %636 = vmatprep.subr.bf16.mxu0 0
      %637 = vmatpush1.bf16.msra.mxu0 %v634
      %638 = vmatprep.subr.bf16.mxu0 0
      %639 = vmatpush1.bf16.msra.mxu0 0
      %640 = vmatprep.subr.bf16.mxu0 0
      %641 = vmatpush1.bf16.msra.mxu0 0
      %642 = vmatprep.subr.bf16.mxu0 0
      %643 = vmatpush1.bf16.msra.mxu0 0
      %644 = vmatprep.subr.bf16.mxu0 0
      %645 = vmatpush1.bf16.msra.mxu0 0
      %646 = vmatprep.subr.bf16.mxu0 0
      %647 = vmatpush1.bf16.msra.mxu0 0
      %648 = vmatprep.subr.bf16.mxu0 0
      %649 = vmatpush1.bf16.msra.mxu0 0
      %650 = vmatprep.subr.bf16.mxu0 0
      %651 = vmatpush1.bf16.msra.mxu0 0
      %652 = vmatprep.subr.bf16.mxu0 0
      %653 = vmatpush1.bf16.msra.mxu0 0
      %654 = vmatprep.subr.bf16.mxu0 0
      %655 = vmatpush1.bf16.msra.mxu0 0
      %656 = vmatprep.subr.bf16.mxu0 0
      %657 = vmatpush1.bf16.msra.mxu0 0
      %658 = vmatprep.subr.bf16.mxu0 0
      %659 = vmatpush1.bf16.msra.mxu0 0
      %660 = vmatprep.subr.bf16.mxu0 0
      %661 = vmatpush1.bf16.msra.mxu0 0
      %662 = vmatprep.subr.bf16.mxu0 0
      %663 = vmatpush1.bf16.msra.mxu0 0
      %664 = vmatprep.subr.bf16.mxu0 0
      %665 = vmatpush1.bf16.msra.mxu0 0
      %666 = vmatprep.subr.bf16.mxu0 0
      %667 = vmatpush1.bf16.msra.mxu0 0
      %668 = vmatprep.mubr.bf16.mxu0 0
      %669 = vmatmul.mubr.bf16.gmra.mrb[0].mxu0 %v630
      %v670 = vpop.f32.mrb[0].mxu0
      %v671 = vadd.f32 0.0, %v670
      %v672 = vpop.f32.mrb[0].mxu0
      %v673 = vpop.f32.mrb[0].mxu0
      %v674 = vpop.f32.mrb[0].mxu0
      %675 = vdwg.mxu0
      %677 = vrot.lane.b32.xlu0 %v556, 120
      %v678 = vpop.permute.xlu0 %677
      %679 = vrot.lane.b32.xlu0 %v557, 120
      %v680 = vpop.permute.xlu0 %679
      %v682 = vsel %vm560, %v678, 0
      %v685 = vsel %vm560, %v680, 0
      %687 = vmatprep.subr.bf16.mxu0 0
      %688 = vmatpush1.bf16.xpose.msra.mxu0 %v685
      %689 = vmatprep.subr.bf16.mxu0 0
      %690 = vmatpush1.bf16.xpose.msra.mxu0 0
      %691 = vmatprep.subr.bf16.mxu0 0
      %692 = vmatpush1.bf16.xpose.msra.mxu0 0
      %693 = vmatprep.subr.bf16.mxu0 0
      %694 = vmatpush1.bf16.xpose.msra.mxu0 0
      %695 = vmatprep.subr.bf16.mxu0 0
      %696 = vmatpush1.bf16.xpose.msra.mxu0 0
      %697 = vmatprep.subr.bf16.mxu0 0
      %698 = vmatpush1.bf16.xpose.msra.mxu0 0
      %699 = vmatprep.subr.bf16.mxu0 0
      %700 = vmatpush1.bf16.xpose.msra.mxu0 0
      %701 = vmatprep.subr.bf16.mxu0 0
      %702 = vmatpush1.bf16.xpose.msra.mxu0 0
      %703 = vmatprep.subr.bf16.mxu0 0
      %704 = vmatpush1.bf16.xpose.msra.mxu0 0
      %705 = vmatprep.subr.bf16.mxu0 0
      %706 = vmatpush1.bf16.xpose.msra.mxu0 0
      %707 = vmatprep.subr.bf16.mxu0 0
      %708 = vmatpush1.bf16.xpose.msra.mxu0 0
      %709 = vmatprep.subr.bf16.mxu0 0
      %710 = vmatpush1.bf16.xpose.msra.mxu0 0
      %711 = vmatprep.subr.bf16.mxu0 0
      %712 = vmatpush1.bf16.xpose.msra.mxu0 0
      %713 = vmatprep.subr.bf16.mxu0 0
      %714 = vmatpush1.bf16.xpose.msra.mxu0 0
      %715 = vmatprep.subr.bf16.mxu0 0
      %716 = vmatpush1.bf16.xpose.msra.mxu0 0
      %717 = vmatprep.subr.bf16.mxu0 0
      %718 = vmatpush1.bf16.xpose.msra.mxu0 0
      %719 = vmatprep.mubr.bf16.mxu0 0
      %720 = vmatmul.mubr.bf16.gmra.mrb[0].mxu0 %v682
      %v721 = vpop.f32.mrb[0].mxu0
      %v722 = vadd.f32 0.0, %v721
      %v723 = vpop.f32.mrb[0].mxu0
      %v724 = vpop.f32.mrb[0].mxu0
      %v725 = vpop.f32.mrb[0].mxu0
      %726 = vdwg.mxu0
      %v727 = vsel %vm612, %v722, -1e+10
      %v728 = vsel %vm560, %v727, -inf
      %729 = vmax.xlane.f32.xlu0 %v728
      %v730 = vpop.xlane.xlu0 %729
      %v731 = vsub.f32 %v727, %v730
      %v732 = vmul.f32 %v731, 1.442695
      %v733 = vpow.pop %v732
      %v734 = vsel %vm560, %v733, 0.0
      %735 = vadd.xlane.f32.xlu0 %v734
      %v736 = vpop.xlane.xlu0 %735
      %v737 = vrcp.pop %v736
      %v738 = vmul.f32 %v733, %v737
      %v739 = vpack.c.bf16 %v738, %v738
      %740 = vrot.lane.b32.xlu0 %v557, 88
      %v741 = vpop.permute.xlu0 %740
      %v743 = vsel %vm560, %v739, 0
      %v746 = vsel %vm632, %v741, 0
      %748 = vmatprep.subr.bf16.mxu0 0
      %749 = vmatpush1.bf16.msra.mxu0 %v746
      %750 = vmatprep.subr.bf16.mxu0 0
      %751 = vmatpush1.bf16.msra.mxu0 0
      %752 = vmatprep.subr.bf16.mxu0 0
      %753 = vmatpush1.bf16.msra.mxu0 0
      %754 = vmatprep.subr.bf16.mxu0 0
      %755 = vmatpush1.bf16.msra.mxu0 0
      %756 = vmatprep.subr.bf16.mxu0 0
      %757 = vmatpush1.bf16.msra.mxu0 0
      %758 = vmatprep.subr.bf16.mxu0 0
      %759 = vmatpush1.bf16.msra.mxu0 0
      %760 = vmatprep.subr.bf16.mxu0 0
      %761 = vmatpush1.bf16.msra.mxu0 0
      %762 = vmatprep.subr.bf16.mxu0 0
      %763 = vmatpush1.bf16.msra.mxu0 0
      %764 = vmatprep.subr.bf16.mxu0 0
      %765 = vmatpush1.bf16.msra.mxu0 0
      %766 = vmatprep.subr.bf16.mxu0 0
      %767 = vmatpush1.bf16.msra.mxu0 0
      %768 = vmatprep.subr.bf16.mxu0 0
      %769 = vmatpush1.bf16.msra.mxu0 0
      %770 = vmatprep.subr.bf16.mxu0 0
      %771 = vmatpush1.bf16.msra.mxu0 0
      %772 = vmatprep.subr.bf16.mxu0 0
      %773 = vmatpush1.bf16.msra.mxu0 0
      %774 = vmatprep.subr.bf16.mxu0 0
      %775 = vmatpush1.bf16.msra.mxu0 0
      %776 = vmatprep.subr.bf16.mxu0 0
      %777 = vmatpush1.bf16.msra.mxu0 0
      %778 = vmatprep.subr.bf16.mxu0 0
      %779 = vmatpush1.bf16.msra.mxu0 0
      %780 = vmatprep.mubr.bf16.mxu0 0
      %781 = vmatmul.mubr.bf16.gmra.mrb[0].mxu0 %v743
      %v782 = vpop.f32.mrb[0].mxu0
      %v783 = vadd.f32 0.0, %v782
      %v784 = vpop.f32.mrb[0].mxu0
      %v785 = vpop.f32.mrb[0].mxu0
      %v786 = vpop.f32.mrb[0].mxu0
      %787 = vdwg.mxu0
      %788 = vrot.lane.b32.xlu0 %v556, 112
      %v789 = vpop.permute.xlu0 %788
      %790 = vrot.lane.b32.xlu0 %v557, 112
      %v791 = vpop.permute.xlu0 %790
      %v793 = vsel %vm560, %v789, 0
      %v796 = vsel %vm560, %v791, 0
      %798 = vmatprep.subr.bf16.mxu0 0
      %799 = vmatpush1.bf16.xpose.msra.mxu0 %v796
      %800 = vmatprep.subr.bf16.mxu0 0
      %801 = vmatpush1.bf16.xpose.msra.mxu0 0
      %802 = vmatprep.subr.bf16.mxu0 0
      %803 = vmatpush1.bf16.xpose.msra.mxu0 0
      %804 = vmatprep.subr.bf16.mxu0 0
      %805 = vmatpush1.bf16.xpose.msra.mxu0 0
      %806 = vmatprep.subr.bf16.mxu0 0
      %807 = vmatpush1.bf16.xpose.msra.mxu0 0
      %808 = vmatprep.subr.bf16.mxu0 0
      %809 = vmatpush1.bf16.xpose.msra.mxu0 0
      %810 = vmatprep.subr.bf16.mxu0 0
      %811 = vmatpush1.bf16.xpose.msra.mxu0 0
      %812 = vmatprep.subr.bf16.mxu0 0
      %813 = vmatpush1.bf16.xpose.msra.mxu0 0
      %814 = vmatprep.subr.bf16.mxu0 0
      %815 = vmatpush1.bf16.xpose.msra.mxu0 0
      %816 = vmatprep.subr.bf16.mxu0 0
      %817 = vmatpush1.bf16.xpose.msra.mxu0 0
      %818 = vmatprep.subr.bf16.mxu0 0
      %819 = vmatpush1.bf16.xpose.msra.mxu0 0
      %820 = vmatprep.subr.bf16.mxu0 0
      %821 = vmatpush1.bf16.xpose.msra.mxu0 0
      %822 = vmatprep.subr.bf16.mxu0 0
      %823 = vmatpush1.bf16.xpose.msra.mxu0 0
      %824 = vmatprep.subr.bf16.mxu0 0
      %825 = vmatpush1.bf16.xpose.msra.mxu0 0
      %826 = vmatprep.subr.bf16.mxu0 0
      %827 = vmatpush1.bf16.xpose.msra.mxu0 0
      %828 = vmatprep.subr.bf16.mxu0 0
      %829 = vmatpush1.bf16.xpose.msra.mxu0 0
      %830 = vmatprep.mubr.bf16.mxu0 0
      %831 = vmatmul.mubr.bf16.gmra.mrb[0].mxu0 %v793
      %v832 = vpop.f32.mrb[0].mxu0
      %v833 = vadd.f32 0.0, %v832
      %v834 = vpop.f32.mrb[0].mxu0
      %v835 = vpop.f32.mrb[0].mxu0
      %v836 = vpop.f32.mrb[0].mxu0
      %837 = vdwg.mxu0
      %v838 = vsel %vm612, %v833, -1e+10
      %v839 = vsel %vm560, %v838, -inf
      %840 = vmax.xlane.f32.xlu0 %v839
      %v841 = vpop.xlane.xlu0 %840
      %v842 = vsub.f32 %v838, %v841
      %v843 = vmul.f32 %v842, 1.442695
      %v844 = vpow.pop %v843
      %v845 = vsel %vm560, %v844, 0.0
      %846 = vadd.xlane.f32.xlu0 %v845
      %v847 = vpop.xlane.xlu0 %846
      %v848 = vrcp.pop %v847
      %v849 = vmul.f32 %v844, %v848
      %v850 = vpack.c.bf16 %v849, %v849
      %851 = vrot.lane.b32.xlu0 %v557, 80
      %v852 = vpop.permute.xlu0 %851
      %v854 = vsel %vm560, %v850, 0
      %v857 = vsel %vm632, %v852, 0
      %859 = vmatprep.subr.bf16.mxu0 0
      %860 = vmatpush1.bf16.msra.mxu0 %v857
      %861 = vmatprep.subr.bf16.mxu0 0
      %862 = vmatpush1.bf16.msra.mxu0 0
      %863 = vmatprep.subr.bf16.mxu0 0
      %864 = vmatpush1.bf16.msra.mxu0 0
      %865 = vmatprep.subr.bf16.mxu0 0
      %866 = vmatpush1.bf16.msra.mxu0 0
      %867 = vmatprep.subr.bf16.mxu0 0
      %868 = vmatpush1.bf16.msra.mxu0 0
      %869 = vmatprep.subr.bf16.mxu0 0
      %870 = vmatpush1.bf16.msra.mxu0 0
      %871 = vmatprep.subr.bf16.mxu0 0
      %872 = vmatpush1.bf16.msra.mxu0 0
      %873 = vmatprep.subr.bf16.mxu0 0
      %874 = vmatpush1.bf16.msra.mxu0 0
      %875 = vmatprep.subr.bf16.mxu0 0
      %876 = vmatpush1.bf16.msra.mxu0 0
      %877 = vmatprep.subr.bf16.mxu0 0
      %878 = vmatpush1.bf16.msra.mxu0 0
      %879 = vmatprep.subr.bf16.mxu0 0
      %880 = vmatpush1.bf16.msra.mxu0 0
      %881 = vmatprep.subr.bf16.mxu0 0
      %882 = vmatpush1.bf16.msra.mxu0 0
      %883 = vmatprep.subr.bf16.mxu0 0
      %884 = vmatpush1.bf16.msra.mxu0 0
      %885 = vmatprep.subr.bf16.mxu0 0
      %886 = vmatpush1.bf16.msra.mxu0 0
      %887 = vmatprep.subr.bf16.mxu0 0
      %888 = vmatpush1.bf16.msra.mxu0 0
      %889 = vmatprep.subr.bf16.mxu0 0
      %890 = vmatpush1.bf16.msra.mxu0 0
      %891 = vmatprep.mubr.bf16.mxu0 0
      %892 = vmatmul.mubr.bf16.gmra.mrb[0].mxu0 %v854
      %v893 = vpop.f32.mrb[0].mxu0
      %v894 = vadd.f32 0.0, %v893
      %v895 = vpop.f32.mrb[0].mxu0
      %v896 = vpop.f32.mrb[0].mxu0
      %v897 = vpop.f32.mrb[0].mxu0
      %898 = vdwg.mxu0
      %899 = vrot.lane.b32.xlu0 %v556, 104
      %v900 = vpop.permute.xlu0 %899
      %901 = vrot.lane.b32.xlu0 %v557, 104
      %v902 = vpop.permute.xlu0 %901
      %v904 = vsel %vm560, %v900, 0
      %v907 = vsel %vm560, %v902, 0
      %909 = vmatprep.subr.bf16.mxu0 0
      %910 = vmatpush1.bf16.xpose.msra.mxu0 %v907
      %911 = vmatprep.subr.bf16.mxu0 0
      %912 = vmatpush1.bf16.xpose.msra.mxu0 0
      %913 = vmatprep.subr.bf16.mxu0 0
      %914 = vmatpush1.bf16.xpose.msra.mxu0 0
      %915 = vmatprep.subr.bf16.mxu0 0
      %916 = vmatpush1.bf16.xpose.msra.mxu0 0
      %917 = vmatprep.subr.bf16.mxu0 0
      %918 = vmatpush1.bf16.xpose.msra.mxu0 0
      %919 = vmatprep.subr.bf16.mxu0 0
      %920 = vmatpush1.bf16.xpose.msra.mxu0 0
      %921 = vmatprep.subr.bf16.mxu0 0
      %922 = vmatpush1.bf16.xpose.msra.mxu0 0
      %923 = vmatprep.subr.bf16.mxu0 0
      %924 = vmatpush1.bf16.xpose.msra.mxu0 0
      %925 = vmatprep.subr.bf16.mxu0 0
      %926 = vmatpush1.bf16.xpose.msra.mxu0 0
      %927 = vmatprep.subr.bf16.mxu0 0
      %928 = vmatpush1.bf16.xpose.msra.mxu0 0
      %929 = vmatprep.subr.bf16.mxu0 0
      %930 = vmatpush1.bf16.xpose.msra.mxu0 0
      %931 = vmatprep.subr.bf16.mxu0 0
      %932 = vmatpush1.bf16.xpose.msra.mxu0 0
      %933 = vmatprep.subr.bf16.mxu0 0
      %934 = vmatpush1.bf16.xpose.msra.mxu0 0
      %935 = vmatprep.subr.bf16.mxu0 0
      %936 = vmatpush1.bf16.xpose.msra.mxu0 0
      %937 = vmatprep.subr.bf16.mxu0 0
      %938 = vmatpush1.bf16.xpose.msra.mxu0 0
      %939 = vmatprep.subr.bf16.mxu0 0
      %940 = vmatpush1.bf16.xpose.msra.mxu0 0
      %941 = vmatprep.mubr.bf16.mxu0 0
      %942 = vmatmul.mubr.bf16.gmra.mrb[0].mxu0 %v904
      %v943 = vpop.f32.mrb[0].mxu0
      %v944 = vadd.f32 0.0, %v943
      %v945 = vpop.f32.mrb[0].mxu0
      %v946 = vpop.f32.mrb[0].mxu0
      %v947 = vpop.f32.mrb[0].mxu0
      %948 = vdwg.mxu0
      %v949 = vsel %vm612, %v944, -1e+10
      %v950 = vsel %vm560, %v949, -inf
      %951 = vmax.xlane.f32.xlu0 %v950
      %v952 = vpop.xlane.xlu0 %951
      %v953 = vsub.f32 %v949, %v952
      %v954 = vmul.f32 %v953, 1.442695
      %v955 = vpow.pop %v954
      %v956 = vsel %vm560, %v955, 0.0
      %957 = vadd.xlane.f32.xlu0 %v956
      %v958 = vpop.xlane.xlu0 %957
      %v959 = vrcp.pop %v958
      %v960 = vmul.f32 %v955, %v959
      %v961 = vpack.c.bf16 %v960, %v960
      %962 = vrot.lane.b32.xlu0 %v557, 72
      %v963 = vpop.permute.xlu0 %962
      %v965 = vsel %vm560, %v961, 0
      %v968 = vsel %vm632, %v963, 0
      %970 = vmatprep.subr.bf16.mxu0 0
      %971 = vmatpush1.bf16.msra.mxu0 %v968
      %972 = vmatprep.subr.bf16.mxu0 0
      %973 = vmatpush1.bf16.msra.mxu0 0
      %974 = vmatprep.subr.bf16.mxu0 0
      %975 = vmatpush1.bf16.msra.mxu0 0
      %976 = vmatprep.subr.bf16.mxu0 0
      %977 = vmatpush1.bf16.msra.mxu0 0
      %978 = vmatprep.subr.bf16.mxu0 0
      %979 = vmatpush1.bf16.msra.mxu0 0
      %980 = vmatprep.subr.bf16.mxu0 0
      %981 = vmatpush1.bf16.msra.mxu0 0
      %982 = vmatprep.subr.bf16.mxu0 0
      %983 = vmatpush1.bf16.msra.mxu0 0
      %984 = vmatprep.subr.bf16.mxu0 0
      %985 = vmatpush1.bf16.msra.mxu0 0
      %986 = vmatprep.subr.bf16.mxu0 0
      %987 = vmatpush1.bf16.msra.mxu0 0
      %988 = vmatprep.subr.bf16.mxu0 0
      %989 = vmatpush1.bf16.msra.mxu0 0
      %990 = vmatprep.subr.bf16.mxu0 0
      %991 = vmatpush1.bf16.msra.mxu0 0
      %992 = vmatprep.subr.bf16.mxu0 0
      %993 = vmatpush1.bf16.msra.mxu0 0
      %994 = vmatprep.subr.bf16.mxu0 0
      %995 = vmatpush1.bf16.msra.mxu0 0
      %996 = vmatprep.subr.bf16.mxu0 0
      %997 = vmatpush1.bf16.msra.mxu0 0
      %998 = vmatprep.subr.bf16.mxu0 0
      %999 = vmatpush1.bf16.msra.mxu0 0
      %1000 = vmatprep.subr.bf16.mxu0 0
      %1001 = vmatpush1.bf16.msra.mxu0 0
      %1002 = vmatprep.mubr.bf16.mxu0 0
      %1003 = vmatmul.mubr.bf16.gmra.mrb[0].mxu0 %v965
      %v1004 = vpop.f32.mrb[0].mxu0
      %v1005 = vadd.f32 0.0, %v1004
      %v1006 = vpop.f32.mrb[0].mxu0
      %v1007 = vpop.f32.mrb[0].mxu0
      %v1008 = vpop.f32.mrb[0].mxu0
      %1009 = vdwg.mxu0
      %1011 = vrot.lane.b32.xlu0 %v783, 8
      %v1012 = vpop.permute.xlu0 %1011
      %1015 = vrot.lane.b32.xlu0 %v894, 16
      %v1016 = vpop.permute.xlu0 %1015
      %1019 = vrot.lane.b32.xlu0 %v1005, 24
      %v1020 = vpop.permute.xlu0 %1019
      %v1022 = vsel %vm560, %v671, %v1012
      %vm1023 = vcmask 130048
      %v1024 = vsel %vm1023, %v1022, %v1016
      %vm1025 = vcmask 195584
      %v1026 = vsel %vm1025, %v1024, %v1020
      %v1027 = vpack.c.bf16 %v1026, %v1026
      %v1028 = vld [vmem:[%s7] sm:$0xff]
      %v1029 = vld [vmem:[%s7 + $0x8] sm:$0xff]
      %v1030 = vld [vmem:[%s7 + $0x10] sm:$0xff]
      %v1031 = vld [vmem:[%s7 + $0x18] sm:$0xff]
      %v1032 = vpack.c.bf16 %v1029, %v1028
      %v1033 = vpack.c.bf16 %v1031, %v1030
      %v1035 = vsel %vm454, %v1027, 0
      %1037 = vmatprep.subr.bf16.mxu0 0
      %1038 = vmatpush1.bf16.msra.mxu0 %v1032
      %1039 = vmatprep.subr.bf16.mxu0 0
      %1040 = vmatpush1.bf16.msra.mxu0 %v1033
      %1041 = vmatprep.subr.bf16.mxu0 0
      %1042 = vmatpush1.bf16.msra.mxu0 0
      %1043 = vmatprep.subr.bf16.mxu0 0
      %1044 = vmatpush1.bf16.msra.mxu0 0
      %1045 = vmatprep.subr.bf16.mxu0 0
      %1046 = vmatpush1.bf16.msra.mxu0 0
      %1047 = vmatprep.subr.bf16.mxu0 0
      %1048 = vmatpush1.bf16.msra.mxu0 0
      %1049 = vmatprep.subr.bf16.mxu0 0
      %1050 = vmatpush1.bf16.msra.mxu0 0
      %1051 = vmatprep.subr.bf16.mxu0 0
      %1052 = vmatpush1.bf16.msra.mxu0 0
      %1053 = vmatprep.subr.bf16.mxu0 0
      %1054 = vmatpush1.bf16.msra.mxu0 0
      %1055 = vmatprep.subr.bf16.mxu0 0
      %1056 = vmatpush1.bf16.msra.mxu0 0
      %1057 = vmatprep.subr.bf16.mxu0 0
      %1058 = vmatpush1.bf16.msra.mxu0 0
      %1059 = vmatprep.subr.bf16.mxu0 0
      %1060 = vmatpush1.bf16.msra.mxu0 0
      %1061 = vmatprep.subr.bf16.mxu0 0
      %1062 = vmatpush1.bf16.msra.mxu0 0
      %1063 = vmatprep.subr.bf16.mxu0 0
      %1064 = vmatpush1.bf16.msra.mxu0 0
      %1065 = vmatprep.subr.bf16.mxu0 0
      %1066 = vmatpush1.bf16.msra.mxu0 0
      %1067 = vmatprep.subr.bf16.mxu0 0
      %1068 = vmatpush1.bf16.msra.mxu0 0
      %1069 = vmatprep.mubr.bf16.mxu0 0
      %1070 = vmatmul.mubr.bf16.gmra.mrb[0].mxu0 %v1035
      %v1071 = vpop.f32.mrb[0].mxu0
      %v1072 = vadd.f32 0.0, %v1071
      %v1073 = vpop.f32.mrb[0].mxu0
      %v1074 = vpop.f32.mrb[0].mxu0
      %v1075 = vpop.f32.mrb[0].mxu0
      %1076 = vdwg.mxu0
      %v1077 = vadd.f32 %v438, %v1072
      %v1078 = vld [vmem:[%s8] sm:$0x1]
      %v1080 = vlaneseq
      %v1081 = vshrl.u32 %v1080, 7
      %v1082 = vsub.s32 0, %v1081
      %v1083 = vrot.slane %v1078, %v1082
      %v1085 = vadd.f32 %v1077, %v1083
      %v1086 = vsel %vm454, %v1085, 0.0
      %1087 = vadd.xlane.f32.xlu0 %v1086
      %v1088 = vpop.xlane.xlu0 %1087
      %v1089 = vrcp.pop 32.0
      %v1090 = vmul.f32 %v1088, %v1089
      %v1091 = vsub.f32 %v1085, %v1090
      %v1092 = vmul.f32 %v1091, %v1091
      %v1093 = vsel %vm454, %v1092, 0.0
      %1094 = vadd.xlane.f32.xlu0 %v1093
      %v1095 = vpop.xlane.xlu0 %1094
      %v1096 = vmul.f32 %v1095, %v1089
      %v1097 = vadd.f32 %v1096, 1e-05
      %v1098 = vrsqrt.pop %v1097
      %v1099 = vmul.f32 %v1091, %v1098
      %v1100 = vld [vmem:[%s9] sm:$0x1]
      %v1102 = vlaneseq
      %v1103 = vshrl.u32 %v1102, 7
      %v1104 = vsub.s32 0, %v1103
      %v1105 = vrot.slane %v1100, %v1104
      %v1107 = vmul.f32 %v1099, %v1105
      %v1108 = vld [vmem:[%s10] sm:$0x1]
      %v1110 = vlaneseq
      %v1111 = vshrl.u32 %v1110, 7
      %v1112 = vsub.s32 0, %v1111
      %v1113 = vrot.slane %v1108, %v1112
      %v1115 = vadd.f32 %v1107, %v1113
      %1116 = vst.msk [vmem:[%s435] sm:$0xff] %vm454, %v1115
      %s1117 = sadd.s32 %s26, %s27
      %p1118 = scmp.lt.s32.totalorder %s1117, 1
      %s1119 = scalar_select %p1118, %s1117, 1
      %s1120 = smul.addr %s1119, 8
      %s1121 = scalar_lea.vmem %s11, %s1120
      // Predicated region
      $region65: #{decoder_forward.8} parent=63 // pred_check
        %p1122 = pneg %p302
      $region66: #{decoder_forward.8} parent=63 // pred_check_branch
        %1124 = sbr.rel (%p1122) target = $region68
      $region67: #{decoder_forward.8} parent=63 // pred_region
        %s1125 = sadd.s32 %s26, %s27
      $region68: #{decoder_forward.8} parent=63 // pred_fallthru
        _
    $region64: #{decoder_forward.8} parent=5 // pred_fallthru
      _
    %p1126 = scmp.le.s32.totalorder 2, %s17
    // Predicated region
    $region69: #{decoder_forward.8} parent=5 // pred_check
      %p1127 = pneg %p1126
    $region70: #{decoder_forward.8} parent=5 // pred_check_branch
      %1129 = sbr.rel (%p1127) target = $region72
    $region71: #{decoder_forward.8} parent=5 // pred_region
      %s1130 = ssub.s32 %s17, 2
      // Predicated region
      $region73: #{decoder_forward.8} parent=71 // pred_check
        %p1131 = pneg %p308
      $region74: #{decoder_forward.8} parent=71 // pred_check_branch
        %1133 = sbr.rel (%p1131) target = $region76
      $region75: #{decoder_forward.8} parent=71 // pred_region
        %s1134 = sadd.s32 %s28, %s29
        %p1135 = scmp.lt.s32.totalorder %s1134, 1
        %s1136 = scalar_select %p1135, %s1134, 1
        %s1137 = smul.addr %s1136, 8
        %s1138 = scalar_lea.vmem %s11, %s1137
      $region76: #{decoder_forward.8} parent=71 // pred_fallthru
        _
    $region72: #{decoder_forward.8} parent=5 // pred_fallthru
      _
  $region6: #{decoder_forward.8} parent=0 // loop_footer
    %s21 = sadd.s32 1, %s17
  $region7: #{decoder_forward.8} parent=0 // loop_footer_branch
    %16 = sbr.rel target = $region3
  $region8: #{decoder_forward.8} parent=0 // loop_exit
    _

// kernel: decoder_forward.11
$region0: #{decoder_forward.11}
  #allocation0 [shape = 'u32[]', space=smem, size = 0x4, offset = 0x4, fixed_abs, tag = 'smem constant byte address 0x4 - core index']
  #allocation1 [shape = 'u32[144,128]{1,0:T(1,128)}', space=vmem, size = 0x12000, scoped, tag = 'internal scratch']
  %s0 = inlined_call_operand.vmem [shape: f32[16,32], index: 0, kind: input, shape index: {}]
  %s1 = inlined_call_operand.vmem [shape: f32[16,32], index: 1, kind: input, shape index: {}]
  %s2 = inlined_call_operand.vmem [shape: f32[2,1,8], index: 2, kind: input, shape index: {}]
  %s3 = inlined_call_operand.vmem [shape: f32[32,32], index: 3, kind: input, shape index: {}]
  %s4 = inlined_call_operand.vmem [shape: f32[1,32], index: 4, kind: input, shape index: {}]
  %s5 = inlined_call_operand.vmem [shape: f32[32,64], index: 5, kind: input, shape index: {}]
  %s6 = inlined_call_operand.vmem [shape: f32[1,64], index: 6, kind: input, shape index: {}]
  %s7 = inlined_call_operand.vmem [shape: f32[32,32], index: 7, kind: input, shape index: {}]
  %s8 = inlined_call_operand.vmem [shape: f32[1,32], index: 8, kind: input, shape index: {}]
  %s9 = inlined_call_operand.vmem [shape: f32[1,32], index: 9, kind: input, shape index: {}]
  %s10 = inlined_call_operand.vmem [shape: f32[1,32], index: 10, kind: input, shape index: {}]
  %s11 = inlined_call_operand.vmem [shape: f32[16,32], index: 11, kind: output, shape index: {0}]
  %s12 = inlined_call_operand.hbm [shape: f32[8,8,8], index: 12, kind: output, shape index: {1}]
  %13 = xla_tuple %s11, %s12
  %s14 = sld [smem:[#allocation0]]
  $region85: #{decoder_forward.11} parent=0
    _
  %s16 = ssub.s32 1, %s14
  %s17 = scalar_select 0, %s16, %s14
  $region1: #{decoder_forward.11} parent=0
    #allocation2 [shape = 'u8[32768]{0}', space=vmem, size = 0x8000, scoped, tag = 'output window, operand 1']
    #allocation3 [shape = 's32[2]{0}', space=sflag, size = 0x8, scoped, tag = 'scoped memory for decoder_forward.11']
    %18 = vsyncpa [#allocation3], 0
    %s19 = scalar_lea.sflag [#allocation3], 1
    %20 = vsyncpa %s19, 0
    loop: start=0, step=1, limit=4
    $region2: #{decoder_forward.11} parent=1 // loop_pre_header
      _
    $region3: #{decoder_forward.11} parent=1 // loop_header
      %s22 = sphi 0, %s26
      %p23 = scmp.ge.s32.totalorder %s22, 4
      %s29 = sphi 0, %s41
      %s30 = sphi 0, %s37
      %s31 = sphi 0, %s29
      %s32 = sphi 0, %s30
      %s33 = sphi 0, %s31
      %s34 = sphi 0, %s32
      %s46 = sphi 0, %s48
      %s49 = sphi 0, %s46
      %s50 = sphi 0, %s49
      %s66 = sphi 0, %s50
      %s72 = sphi 0, %s74
      %s75 = sphi 0, %s72
      %s76 = sphi 0, %s75
      %s92 = sphi 0, %s76
      %s98 = sphi 0, %s100
      %s101 = sphi 0, %s98
      %s102 = sphi 0, %s101
      %s118 = sphi 0, %s102
      %s122 = sphi 0, %s122
      %s124 = sphi 0, %s122
      %s125 = sphi 0, %s124
      %s139 = sphi 0, %s125
      %s143 = sphi 0, %s143
      %s145 = sphi 0, %s143
      %s146 = sphi 0, %s145
      %s160 = sphi 0, %s146
      %s164 = sphi 0, %s164
      %s166 = sphi 0, %s164
      %s167 = sphi 0, %s166
      %s181 = sphi 0, %s167
      %s185 = sphi 0, %s185
      %s187 = sphi 0, %s185
      %s188 = sphi 0, %s187
      %s202 = sphi 0, %s188
      %s206 = sphi 0, %s206
      %s208 = sphi 0, %s206
      %s209 = sphi 0, %s208
      %s223 = sphi 0, %s209
      %s227 = sphi 0, %s227
      %s229 = sphi 0, %s227
      %s230 = sphi 0, %s229
      %s244 = sphi 0, %s230
      %s248 = sphi 0, %s248
      %s250 = sphi 0, %s248
      %s251 = sphi 0, %s250
      %s265 = sphi 0, %s251
      %s269 = sphi 0, %s269
      %s271 = sphi 0, %s269
      %s272 = sphi 0, %s271
      %s286 = sphi 0, %s272
      %s294 = sphi 0, %s296
      %s297 = sphi 0, %s294
      %s298 = sphi 0, %s297
      %s314 = sphi 0, %s298
      %s322 = sphi 0, %s324
      %s325 = sphi 0, %s322
      %s326 = sphi 0, %s325
      %s342 = sphi 0, %s326
    $region4: #{decoder_forward.11} parent=1 // loop_header_branch
      %25 = sbr.rel (%p23) target = $region8
    $region5: #{decoder_forward.11} parent=1 // loop_body
      %s27 = ssub.s32 %s22, 1
      %s28 = ssub.s32 %s22, 2
      %s35 = sadd.s32 1, %s30
      %p36 = scmp.ge.s32.totalorder %s35, 1
      %s37 = scalar_select %p36, 0, %s35
      %s38 = sadd.s32 1, %s29
      %s39 = scalar_select %p36, %s38, %s29
      %p40 = scmp.ge.s32.totalorder %s39, 2
      %s41 = scalar_select %p40, 0, %s39
      %s42 = sadd.s32 %s29, %s30
      %s43 = sadd.s32 %s41, %s37
      %s44 = ssub.s32 %s42, %s43
      %p45 = scmp.eq.s32.totalorder %s44, 0
      %s47 = sadd.s32 %s46, 1
      %s48 = scalar_select %p45, %s46, %s47
      %p51 = pneg %p45
      %p52 = scmp.eq.s32.totalorder %s22, 1
      %p53 = por %p51, %p52
      %p54 = scmp.ne.s32.totalorder %s46, %s49
      %p55 = scmp.eq.s32.totalorder %s22, 0
      %p56 = por %p54, %p55
      %p57 = scmp.ne.s32.totalorder %s46, %s49
      %p58 = scmp.eq.s32.totalorder %s27, 1
      %p59 = por %p57, %p58
      %p60 = scmp.ne.s32.totalorder %s49, %s50
      %p61 = scmp.eq.s32.totalorder %s27, 0
      %p62 = por %p60, %p61
      %p63 = scmp.ne.s32.totalorder %s49, %s50
      %p64 = scmp.eq.s32.totalorder %s28, 1
      %p65 = por %p63, %p64
      %p67 = scmp.ne.s32.totalorder %s50, %s66
      %p68 = scmp.eq.s32.totalorder %s28, 0
      %p69 = por %p67, %p68
      %s70 = ssub.s32 %s29, %s41
      %p71 = scmp.eq.s32.totalorder %s70, 0
      %s73 = sadd.s32 %s72, 1
      %s74 = scalar_select %p71, %s72, %s73
      %p77 = pneg %p71
      %p78 = scmp.eq.s32.totalorder %s22, 1
      %p79 = por %p77, %p78
      %p80 = scmp.ne.s32.totalorder %s72, %s75
      %p81 = scmp.eq.s32.totalorder %s22, 0
      %p82 = por %p80, %p81
      %p83 = scmp.ne.s32.totalorder %s72, %s75
      %p84 = scmp.eq.s32.totalorder %s27, 1
      %p85 = por %p83, %p84
      %p86 = scmp.ne.s32.totalorder %s75, %s76
      %p87 = scmp.eq.s32.totalorder %s27, 0
      %p88 = por %p86, %p87
      %p89 = scmp.ne.s32.totalorder %s75, %s76
      %p90 = scmp.eq.s32.totalorder %s28, 1
      %p91 = por %p89, %p90
      %p93 = scmp.ne.s32.totalorder %s76, %s92
      %p94 = scmp.eq.s32.totalorder %s28, 0
      %p95 = por %p93, %p94
      %s96 = ssub.s32 %s29, %s41
      %p97 = scmp.eq.s32.totalorder %s96, 0
      %s99 = sadd.s32 %s98, 1
      %s100 = scalar_select %p97, %s98, %s99
      %p103 = pneg %p97
      %p104 = scmp.eq.s32.totalorder %s22, 1
      %p105 = por %p103, %p104
      %p106 = scmp.ne.s32.totalorder %s98, %s101
      %p107 = scmp.eq.s32.totalorder %s22, 0
      %p108 = por %p106, %p107
      %p109 = scmp.ne.s32.totalorder %s98, %s101
      %p110 = scmp.eq.s32.totalorder %s27, 1
      %p111 = por %p109, %p110
      %p112 = scmp.ne.s32.totalorder %s101, %s102
      %p113 = scmp.eq.s32.totalorder %s27, 0
      %p114 = por %p112, %p113
      %p115 = scmp.ne.s32.totalorder %s101, %s102
      %p116 = scmp.eq.s32.totalorder %s28, 1
      %p117 = por %p115, %p116
      %p119 = scmp.ne.s32.totalorder %s102, %s118
      %p120 = scmp.eq.s32.totalorder %s28, 0
      %p121 = por %p119, %p120
      %s123 = sadd.s32 %s122, 1
      %p126 = scmp.eq.s32.totalorder %s22, 1
      %p127 = scmp.ne.s32.totalorder %s122, %s124
      %p128 = scmp.eq.s32.totalorder %s22, 0
      %p129 = por %p127, %p128
      %p130 = scmp.ne.s32.totalorder %s122, %s124
      %p131 = scmp.eq.s32.totalorder %s27, 1
      %p132 = por %p130, %p131
      %p133 = scmp.ne.s32.totalorder %s124, %s125
      %p134 = scmp.eq.s32.totalorder %s27, 0
      %p135 = por %p133, %p134
      %p136 = scmp.ne.s32.totalorder %s124, %s125
      %p137 = scmp.eq.s32.totalorder %s28, 1
      %p138 = por %p136, %p137
      %p140 = scmp.ne.s32.totalorder %s125, %s139
      %p141 = scmp.eq.s32.totalorder %s28, 0
      %p142 = por %p140, %p141
      %s144 = sadd.s32 %s143, 1
      %p147 = scmp.eq.s32.totalorder %s22, 1
      %p148 = scmp.ne.s32.totalorder %s143, %s145
      %p149 = scmp.eq.s32.totalorder %s22, 0
      %p150 = por %p148, %p149
      %p151 = scmp.ne.s32.totalorder %s143, %s145
      %p152 = scmp.eq.s32.totalorder %s27, 1
      %p153 = por %p151, %p152
      %p154 = scmp.ne.s32.totalorder %s145, %s146
      %p155 = scmp.eq.s32.totalorder %s27, 0
      %p156 = por %p154, %p155
      %p157 = scmp.ne.s32.totalorder %s145, %s146
      %p158 = scmp.eq.s32.totalorder %s28, 1
      %p159 = por %p157, %p158
      %p161 = scmp.ne.s32.totalorder %s146, %s160
      %p162 = scmp.eq.s32.totalorder %s28, 0
      %p163 = por %p161, %p162
      %s165 = sadd.s32 %s164, 1
      %p168 = scmp.eq.s32.totalorder %s22, 1
      %p169 = scmp.ne.s32.totalorder %s164, %s166
      %p170 = scmp.eq.s32.totalorder %s22, 0
      %p171 = por %p169, %p170
      %p172 = scmp.ne.s32.totalorder %s164, %s166
      %p173 = scmp.eq.s32.totalorder %s27, 1
      %p174 = por %p172, %p173
      %p175 = scmp.ne.s32.totalorder %s166, %s167
      %p176 = scmp.eq.s32.totalorder %s27, 0
      %p177 = por %p175, %p176
      %p178 = scmp.ne.s32.totalorder %s166, %s167
      %p179 = scmp.eq.s32.totalorder %s28, 1
      %p180 = por %p178, %p179
      %p182 = scmp.ne.s32.totalorder %s167, %s181
      %p183 = scmp.eq.s32.totalorder %s28, 0
      %p184 = por %p182, %p183
      %s186 = sadd.s32 %s185, 1
      %p189 = scmp.eq.s32.totalorder %s22, 1
      %p190 = scmp.ne.s32.totalorder %s185, %s187
      %p191 = scmp.eq.s32.totalorder %s22, 0
      %p192 = por %p190, %p191
      %p193 = scmp.ne.s32.totalorder %s185, %s187
      %p194 = scmp.eq.s32.totalorder %s27, 1
      %p195 = por %p193, %p194
      %p196 = scmp.ne.s32.totalorder %s187, %s188
      %p197 = scmp.eq.s32.totalorder %s27, 0
      %p198 = por %p196, %p197
      %p199 = scmp.ne.s32.totalorder %s187, %s188
      %p200 = scmp.eq.s32.totalorder %s28, 1
      %p201 = por %p199, %p200
      %p203 = scmp.ne.s32.totalorder %s188, %s202
      %p204 = scmp.eq.s32.totalorder %s28, 0
      %p205 = por %p203, %p204
      %s207 = sadd.s32 %s206, 1
      %p210 = scmp.eq.s32.totalorder %s22, 1
      %p211 = scmp.ne.s32.totalorder %s206, %s208
      %p212 = scmp.eq.s32.totalorder %s22, 0
      %p213 = por %p211, %p212
      %p214 = scmp.ne.s32.totalorder %s206, %s208
      %p215 = scmp.eq.s32.totalorder %s27, 1
      %p216 = por %p214, %p215
      %p217 = scmp.ne.s32.totalorder %s208, %s209
      %p218 = scmp.eq.s32.totalorder %s27, 0
      %p219 = por %p217, %p218
      %p220 = scmp.ne.s32.totalorder %s208, %s209
      %p221 = scmp.eq.s32.totalorder %s28, 1
      %p222 = por %p220, %p221
      %p224 = scmp.ne.s32.totalorder %s209, %s223
      %p225 = scmp.eq.s32.totalorder %s28, 0
      %p226 = por %p224, %p225
      %s228 = sadd.s32 %s227, 1
      %p231 = scmp.eq.s32.totalorder %s22, 1
      %p232 = scmp.ne.s32.totalorder %s227, %s229
      %p233 = scmp.eq.s32.totalorder %s22, 0
      %p234 = por %p232, %p233
      %p235 = scmp.ne.s32.totalorder %s227, %s229
      %p236 = scmp.eq.s32.totalorder %s27, 1
      %p237 = por %p235, %p236
      %p238 = scmp.ne.s32.totalorder %s229, %s230
      %p239 = scmp.eq.s32.totalorder %s27, 0
      %p240 = por %p238, %p239
      %p241 = scmp.ne.s32.totalorder %s229, %s230
      %p242 = scmp.eq.s32.totalorder %s28, 1
      %p243 = por %p241, %p242
      %p245 = scmp.ne.s32.totalorder %s230, %s244
      %p246 = scmp.eq.s32.totalorder %s28, 0
      %p247 = por %p245, %p246
      %s249 = sadd.s32 %s248, 1
      %p252 = scmp.eq.s32.totalorder %s22, 1
      %p253 = scmp.ne.s32.totalorder %s248, %s250
      %p254 = scmp.eq.s32.totalorder %s22, 0
      %p255 = por %p253, %p254
      %p256 = scmp.ne.s32.totalorder %s248, %s250
      %p257 = scmp.eq.s32.totalorder %s27, 1
      %p258 = por %p256, %p257
      %p259 = scmp.ne.s32.totalorder %s250, %s251
      %p260 = scmp.eq.s32.totalorder %s27, 0
      %p261 = por %p259, %p260
      %p262 = scmp.ne.s32.totalorder %s250, %s251
      %p263 = scmp.eq.s32.totalorder %s28, 1
      %p264 = por %p262, %p263
      %p266 = scmp.ne.s32.totalorder %s251, %s265
      %p267 = scmp.eq.s32.totalorder %s28, 0
      %p268 = por %p266, %p267
      %s270 = sadd.s32 %s269, 1
      %p273 = scmp.eq.s32.totalorder %s22, 1
      %p274 = scmp.ne.s32.totalorder %s269, %s271
      %p275 = scmp.eq.s32.totalorder %s22, 0
      %p276 = por %p274, %p275
      %p277 = scmp.ne.s32.totalorder %s269, %s271
      %p278 = scmp.eq.s32.totalorder %s27, 1
      %p279 = por %p277, %p278
      %p280 = scmp.ne.s32.totalorder %s271, %s272
      %p281 = scmp.eq.s32.totalorder %s27, 0
      %p282 = por %p280, %p281
      %p283 = scmp.ne.s32.totalorder %s271, %s272
      %p284 = scmp.eq.s32.totalorder %s28, 1
      %p285 = por %p283, %p284
      %p287 = scmp.ne.s32.totalorder %s272, %s286
      %p288 = scmp.eq.s32.totalorder %s28, 0
      %p289 = por %p287, %p288
      %s290 = sadd.s32 %s29, %s30
      %s291 = sadd.s32 %s41, %s37
      %s292 = ssub.s32 %s290, %s291
      %p293 = scmp.eq.s32.totalorder %s292, 0
      %s295 = sadd.s32 %s294, 1
      %s296 = scalar_select %p293, %s294, %s295
      %p299 = pneg %p293
      %p300 = scmp.eq.s32.totalorder %s22, 1
      %p301 = por %p299, %p300
      %p302 = scmp.ne.s32.totalorder %s294, %s297
      %p303 = scmp.eq.s32.totalorder %s22, 0
      %p304 = por %p302, %p303
      %p305 = scmp.ne.s32.totalorder %s294, %s297
      %p306 = scmp.eq.s32.totalorder %s27, 1
      %p307 = por %p305, %p306
      %p308 = scmp.ne.s32.totalorder %s297, %s298
      %p309 = scmp.eq.s32.totalorder %s27, 0
      %p310 = por %p308, %p309
      %p311 = scmp.ne.s32.totalorder %s297, %s298
      %p312 = scmp.eq.s32.totalorder %s28, 1
      %p313 = por %p311, %p312
      %p315 = scmp.ne.s32.totalorder %s298, %s314
      %p316 = scmp.eq.s32.totalorder %s28, 0
      %p317 = por %p315, %p316
      %s318 = ssub.s32 %s29, %s41
      %s319 = ssub.s32 %s30, %s37
      %s320 = sor.u32 %s318, %s319
      %p321 = scmp.eq.s32.totalorder %s320, 0
      %s323 = sadd.s32 %s322, 1
      %s324 = scalar_select %p321, %s322, %s323
      %p327 = pneg %p321
      %p328 = scmp.eq.s32.totalorder %s22, 1
      %p329 = por %p327, %p328
      %p330 = scmp.ne.s32.totalorder %s322, %s325
      %p331 = scmp.eq.s32.totalorder %s22, 0
      %p332 = por %p330, %p331
      %p333 = scmp.ne.s32.totalorder %s322, %s325
      %p334 = scmp.eq.s32.totalorder %s27, 1
      %p335 = por %p333, %p334
      %p336 = scmp.ne.s32.totalorder %s325, %s326
      %p337 = scmp.eq.s32.totalorder %s27, 0
      %p338 = por %p336, %p337
      %p339 = scmp.ne.s32.totalorder %s325, %s326
      %p340 = scmp.eq.s32.totalorder %s28, 1
      %p341 = por %p339, %p340
      %p343 = scmp.ne.s32.totalorder %s326, %s342
      %p344 = scmp.eq.s32.totalorder %s28, 0
      %p345 = por %p343, %p344
      %p346 = scmp.le.s32.totalorder 1, %s22
      %p347 = scmp.lt.s32.totalorder %s22, 3
      %p348 = pnand %p346, %p347
      %p349 = pneg %p348
      // Predicated region
      $region9: #{decoder_forward.11} parent=5 // pred_check
        _
      $region10: #{decoder_forward.11} parent=5 // pred_check_branch
        %351 = sbr.rel (%p348) target = $region12
      $region11: #{decoder_forward.11} parent=5 // pred_region
        %s352 = ssub.s32 %s22, 1
        // Predicated region
        $region13: #{decoder_forward.11} parent=11 // pred_check
          %p353 = pneg %p135
        $region14: #{decoder_forward.11} parent=11 // pred_check_branch
          %355 = sbr.rel (%p353) target = $region16
        $region15: #{decoder_forward.11} parent=11 // pred_region
          _
        $region16: #{decoder_forward.11} parent=11 // pred_fallthru
          _
        // Predicated region
        $region17: #{decoder_forward.11} parent=11 // pred_check
          %p356 = pneg %p156
        $region18: #{decoder_forward.11} parent=11 // pred_check_branch
          %358 = sbr.rel (%p356) target = $region20
        $region19: #{decoder_forward.11} parent=11 // pred_region
          _
        $region20: #{decoder_forward.11} parent=11 // pred_fallthru
          _
        // Predicated region
        $region21: #{decoder_forward.11} parent=11 // pred_check
          %p359 = pneg %p177
        $region22: #{decoder_forward.11} parent=11 // pred_check_branch
          %361 = sbr.rel (%p359) target = $region24
        $region23: #{decoder_forward.11} parent=11 // pred_region
          _
        $region24: #{decoder_forward.11} parent=11 // pred_fallthru
          _
        // Predicated region
        $region25: #{decoder_forward.11} parent=11 // pred_check
          %p362 = pneg %p198
        $region26: #{decoder_forward.11} parent=11 // pred_check_branch
          %364 = sbr.rel (%p362) target = $region28
        $region27: #{decoder_forward.11} parent=11 // pred_region
          _
        $region28: #{decoder_forward.11} parent=11 // pred_fallthru
          _
        // Predicated region
        $region29: #{decoder_forward.11} parent=11 // pred_check
          %p365 = pneg %p219
        $region30: #{decoder_forward.11} parent=11 // pred_check_branch
          %367 = sbr.rel (%p365) target = $region32
        $region31: #{decoder_forward.11} parent=11 // pred_region
          _
        $region32: #{decoder_forward.11} parent=11 // pred_fallthru
          _
        // Predicated region
        $region33: #{decoder_forward.11} parent=11 // pred_check
          %p368 = pneg %p240
        $region34: #{decoder_forward.11} parent=11 // pred_check_branch
          %370 = sbr.rel (%p368) target = $region36
        $region35: #{decoder_forward.11} parent=11 // pred_region
          _
        $region36: #{decoder_forward.11} parent=11 // pred_fallthru
          _
        // Predicated region
        $region37: #{decoder_forward.11} parent=11 // pred_check
          %p371 = pneg %p261
        $region38: #{decoder_forward.11} parent=11 // pred_check_branch
          %373 = sbr.rel (%p371) target = $region40
        $region39: #{decoder_forward.11} parent=11 // pred_region
          _
        $region40: #{decoder_forward.11} parent=11 // pred_fallthru
          _
        // Predicated region
        $region41: #{decoder_forward.11} parent=11 // pred_check
          %p374 = pneg %p282
        $region42: #{decoder_forward.11} parent=11 // pred_check_branch
          %376 = sbr.rel (%p374) target = $region44
        $region43: #{decoder_forward.11} parent=11 // pred_region
          _
        $region44: #{decoder_forward.11} parent=11 // pred_fallthru
          _
      $region12: #{decoder_forward.11} parent=5 // pred_fallthru
        _
      %p377 = scmp.lt.s32.totalorder %s22, 2
      // Predicated region
      $region45: #{decoder_forward.11} parent=5 // pred_check
        %p378 = pneg %p377
      $region46: #{decoder_forward.11} parent=5 // pred_check_branch
        %380 = sbr.rel (%p378) target = $region48
      $region47: #{decoder_forward.11} parent=5 // pred_region
        // Predicated region
        $region49: #{decoder_forward.11} parent=47 // pred_check
          %p381 = pneg %p56
        $region50: #{decoder_forward.11} parent=47 // pred_check_branch
          %383 = sbr.rel (%p381) target = $region52
        $region51: #{decoder_forward.11} parent=47 // pred_region
          %s384 = sadd.s32 %s29, %s30
          %p385 = scmp.lt.s32.totalorder %s384, 1
          %s386 = scalar_select %p385, %s384, 1
          %s387 = smul.addr %s386, 8
          %s388 = scalar_lea.vmem %s0, %s387
          %s389 = sadd.s32 %s29, %s30
        $region52: #{decoder_forward.11} parent=47 // pred_fallthru
          _
        // Predicated region
        $region53: #{decoder_forward.11} parent=47 // pred_check
          %p390 = pneg %p82
        $region54: #{decoder_forward.11} parent=47 // pred_check_branch
          %392 = sbr.rel (%p390) target = $region56
        $region55: #{decoder_forward.11} parent=47 // pred_region
          %p393 = scmp.lt.s32.totalorder %s29, 1
          %s394 = scalar_select %p393, %s29, 1
          %s395 = smul.addr %s394, 8
          %s396 = scalar_lea.vmem %s1, %s395
        $region56: #{decoder_forward.11} parent=47 // pred_fallthru
          _
        // Predicated region
        $region57: #{decoder_forward.11} parent=47 // pred_check
          %p397 = pneg %p108
        $region58: #{decoder_forward.11} parent=47 // pred_check_branch
          %399 = sbr.rel (%p397) target = $region60
        $region59: #{decoder_forward.11} parent=47 // pred_region
          %p400 = scmp.lt.s32.totalorder %s29, 1
          %s401 = scalar_select %p400, %s29, 1
          %s402 = scalar_lea.vmem %s2, %s401
        $region60: #{decoder_forward.11} parent=47 // pred_fallthru
          _
      $region48: #{decoder_forward.11} parent=5 // pred_fallthru
        _
      %p403 = scmp.le.s32.totalorder 1, %s22
      %p404 = scmp.lt.s32.totalorder %s22, 3
      %p405 = pnand %p403, %p404
      %p406 = pneg %p405
      // Predicated region
      $region61: #{decoder_forward.11} parent=5 // pred_check
        _
      $region62: #{decoder_forward.11} parent=5 // pred_check_branch
        %408 = sbr.rel (%p405) target = $region64
      $region63: #{decoder_forward.11} parent=5 // pred_region
        %s409 = ssub.s32 %s22, 1
        %s410 = sadd.s32 %s31, %s32
        %p411 = scmp.lt.s32.totalorder %s410, 1
        %s412 = scalar_select %p411, %s410, 1
        %s413 = smul.addr %s412, 8
        %s414 = scalar_lea.vmem %s0, %s413
        %p415 = pneg %p62
        %p416 = pneg %p59
        %p417 = scmp.lt.s32.totalorder %s31, 1
        %s418 = scalar_select %p417, %s31, 1
        %s419 = smul.addr %s418, 8
        %s420 = scalar_lea.vmem %s1, %s419
        %p421 = pneg %p88
        %p422 = pneg %p85
        %p423 = scmp.lt.s32.totalorder %s31, 1
        %s424 = scalar_select %p423, %s31, 1
        %s425 = scalar_lea.vmem %s2, %s424
        %p426 = pneg %p114
        %p427 = pneg %p111
        %p428 = pneg %p135
        %p429 = pneg %p132
        %p430 = pneg %p156
        %p431 = pneg %p153
        %p432 = pneg %p177
        %p433 = pneg %p174
        %p434 = pneg %p198
        %p435 = pneg %p195
        %p436 = pneg %p219
        %p437 = pneg %p216
        %p438 = pneg %p240
        %p439 = pneg %p237
        %p440 = pneg %p261
        %p441 = pneg %p258
        %p442 = pneg %p282
        %p443 = pneg %p279
        %p444 = pneg %p310
        %p445 = pneg %p307
        %s446 = sadd.s32 %s31, %s32
        %p447 = scmp.lt.s32.totalorder %s446, 1
        %s448 = scalar_select %p447, %s446, 1
        %s449 = smul.addr %s448, 8
        %s450 = scalar_lea.vmem %s11, %s449
        %p451 = pneg %p338
        %p452 = pneg %p335
        %s453 = sand.u32 %s325, 1
        %s454 = scalar_lea.sflag [#allocation3], %s453
        %s455 = sand.u32 %s325, 1
        %s456 = smul.addr %s455, 32
        %s457 = scalar_lea.vmem [#allocation2], %s456
        %s458 = sadd.s32 %s31, %s32
        %p459 = scmp.lt.s32.totalorder %s458, 1
        %s460 = scalar_select %p459, %s458, 1
        %s461 = smul.addr %s460, 8
        %s462 = scalar_lea.vmem %s0, %s461
        %s463 = sadd.s32 %s31, %s32
        %p464 = scmp.lt.s32.totalorder %s31, 1
        %s465 = scalar_select %p464, %s31, 1
        %s466 = smul.addr %s465, 8
        %s467 = scalar_lea.vmem %s1, %s466
        %p468 = scmp.lt.s32.totalorder %s31, 1
        %s469 = scalar_select %p468, %s31, 1
        %s470 = scalar_lea.vmem %s2, %s469
        %s471 = sadd.s32 %s31, %s32
        %p472 = scmp.lt.s32.totalorder %s471, 1
        %s473 = scalar_select %p472, %s471, 1
        %s474 = smul.addr %s473, 8
        %s475 = scalar_lea.vmem %s11, %s474
        %s476 = sadd.s32 %s31, %s32
        %s477 = smul.u32 4, %s31
        %v479 = vld [vmem:[%s462] sm:$0xff]
        %v480 = vld [vmem:[%s467] sm:$0xff]
        %v481 = vpack.c.bf16 %v479, %v479
        %v482 = vld [vmem:[%s3] sm:$0xff]
        %v483 = vld [vmem:[%s3 + $0x8] sm:$0xff]
        %v484 = vld [vmem:[%s3 + $0x10] sm:$0xff]
        %v485 = vld [vmem:[%s3 + $0x18] sm:$0xff]
        %v486 = vpack.c.bf16 %v483, %v482
        %v487 = vpack.c.bf16 %v485, %v484
        %v488 = vld [vmem:[%s4] sm:$0x1]
        %v490 = vlaneseq
        %v491 = vshrl.u32 %v490, 7
        %v492 = vsub.s32 0, %v491
        %v493 = vrot.slane %v488, %v492
        %vm495 = vcmask 261120
        %v497 = vsel %vm495, %v481, 0
        %499 = vmatprep.subr.bf16.mxu0 0
        %500 = vmatpush1.bf16.msra.mxu0 %v486
        %501 = vmatprep.subr.bf16.mxu0 0
        %502 = vmatpush1.bf16.msra.mxu0 %v487
        %503 = vmatprep.subr.bf16.mxu0 0
        %504 = vmatpush1.bf16.msra.mxu0 0
        %505 = vmatprep.subr.bf16.mxu0 0
        %506 = vmatpush1.bf16.msra.mxu0 0
        %507 = vmatprep.subr.bf16.mxu0 0
        %508 = vmatpush1.bf16.msra.mxu0 0
        %509 = vmatprep.subr.bf16.mxu0 0
        %510 = vmatpush1.bf16.msra.mxu0 0
        %511 = vmatprep.subr.bf16.mxu0 0
        %512 = vmatpush1.bf16.msra.mxu0 0
        %513 = vmatprep.subr.bf16.mxu0 0
        %514 = vmatpush1.bf16.msra.mxu0 0
        %515 = vmatprep.subr.bf16.mxu0 0
        %516 = vmatpush1.bf16.msra.mxu0 0
        %517 = vmatprep.subr.bf16.mxu0 0
        %518 = vmatpush1.bf16.msra.mxu0 0
        %519 = vmatprep.subr.bf16.mxu0 0
        %520 = vmatpush1.bf16.msra.mxu0 0
        %521 = vmatprep.subr.bf16.mxu0 0
        %522 = vmatpush1.bf16.msra.mxu0 0
        %523 = vmatprep.subr.bf16.mxu0 0
        %524 = vmatpush1.bf16.msra.mxu0 0
        %525 = vmatprep.subr.bf16.mxu0 0
        %526 = vmatpush1.bf16.msra.mxu0 0
        %527 = vmatprep.subr.bf16.mxu0 0
        %528 = vmatpush1.bf16.msra.mxu0 0
        %529 = vmatprep.subr.bf16.mxu0 0
        %530 = vmatpush1.bf16.msra.mxu0 0
        %531 = vmatprep.mubr.bf16.mxu0 0
        %532 = vmatmul.mubr.bf16.gmra.mrb[0].mxu0 %v497
        %v533 = vpop.f32.mrb[0].mxu0
        %v534 = vadd.f32 %v493, %v533
        %v535 = vpop.f32.mrb[0].mxu0
        %v536 = vpop.f32.mrb[0].mxu0
        %v537 = vpop.f32.mrb[0].mxu0
        %538 = vdwg.mxu0
        %v539 = vmul.f32 %v534, 0.35355338
        %v540 = vpack.c.bf16 %v480, %v480
        %v541 = vld [vmem:[%s5] sm:$0xff]
        %v542 = vld [vmem:[%s5 + $0x8] sm:$0xff]
        %v543 = vld [vmem:[%s5 + $0x10] sm:$0xff]
        %v544 = vld [vmem:[%s5 + $0x18] sm:$0xff]
        %v545 = vpack.c.bf16 %v542, %v541
        %v546 = vpack.c.bf16 %v544, %v543
        %v547 = vld [vmem:[%s6] sm:$0x1]
        %v549 = vlaneseq
        %v550 = vshrl.u32 %v549, 7
        %v551 = vsub.s32 0, %v550
        %v552 = vrot.slane %v547, %v551
        %v555 = vsel %vm495, %v540, 0
        %557 = vmatprep.subr.bf16.mxu0 0
        %558 = vmatpush1.bf16.msra.mxu0 %v545
        %559 = vmatprep.subr.bf16.mxu0 0
        %560 = vmatpush1.bf16.msra.mxu0 %v546
        %561 = vmatprep.subr.bf16.mxu0 0
        %562 = vmatpush1.bf16.msra.mxu0 0
        %563 = vmatprep.subr.bf16.mxu0 0
        %564 = vmatpush1.bf16.msra.mxu0 0
        %565 = vmatprep.subr.bf16.mxu0 0
        %566 = vmatpush1.bf16.msra.mxu0 0
        %567 = vmatprep.subr.bf16.mxu0 0
        %568 = vmatpush1.bf16.msra.mxu0 0
        %569 = vmatprep.subr.bf16.mxu0 0
        %570 = vmatpush1.bf16.msra.mxu0 0
        %571 = vmatprep.subr.bf16.mxu0 0
        %572 = vmatpush1.bf16.msra.mxu0 0
        %573 = vmatprep.subr.bf16.mxu0 0
        %574 = vmatpush1.bf16.msra.mxu0 0
        %575 = vmatprep.subr.bf16.mxu0 0
        %576 = vmatpush1.bf16.msra.mxu0 0
        %577 = vmatprep.subr.bf16.mxu0 0
        %578 = vmatpush1.bf16.msra.mxu0 0
        %579 = vmatprep.subr.bf16.mxu0 0
        %580 = vmatpush1.bf16.msra.mxu0 0
        %581 = vmatprep.subr.bf16.mxu0 0
        %582 = vmatpush1.bf16.msra.mxu0 0
        %583 = vmatprep.subr.bf16.mxu0 0
        %584 = vmatpush1.bf16.msra.mxu0 0
        %585 = vmatprep.subr.bf16.mxu0 0
        %586 = vmatpush1.bf16.msra.mxu0 0
        %587 = vmatprep.subr.bf16.mxu0 0
        %588 = vmatpush1.bf16.msra.mxu0 0
        %589 = vmatprep.mubr.bf16.mxu0 0
        %590 = vmatmul.mubr.bf16.gmra.mrb[0].mxu0 %v555
        %v591 = vpop.f32.mrb[0].mxu0
        %v592 = vadd.f32 %v552, %v591
        %v593 = vpop.f32.mrb[0].mxu0
        %v594 = vpop.f32.mrb[0].mxu0
        %v595 = vpop.f32.mrb[0].mxu0
        %596 = vdwg.mxu0
        %v597 = vpack.c.bf16 %v539, %v539
        %v598 = vpack.c.bf16 %v592, %v592
        %v599 = vld [vmem:[%s470] sm:$0x1]
        %vm600 = vcmp.gt.f32.partialorder %v599, 0.0
        %vm601 = vcmask 64512
        %v603 = vsel %vm601, %v597, 0
        %v606 = vsel %vm601, %v598, 0
        %608 = vmatprep.subr.bf16.mxu0 0
        %609 = vmatpush1.bf16.xpose.msra.mxu0 %v606
        %610 = vmatprep.subr.bf16.mxu0 0
        %611 = vmatpush1.bf16.xpose.msra.mxu0 0
        %612 = vmatprep.subr.bf16.mxu0 0
        %613 = vmatpush1.bf16.xpose.msra.mxu0 0
        %614 = vmatprep.subr.bf16.mxu0 0
        %615 = vmatpush1.bf16.xpose.msra.mxu0 0
        %616 = vmatprep.subr.bf16.mxu0 0
        %617 = vmatpush1.bf16.xpose.msra.mxu0 0
        %618 = vmatprep.subr.bf16.mxu0 0
        %619 = vmatpush1.bf16.xpose.msra.mxu0 0
        %620 = vmatprep.subr.bf16.mxu0 0
        %621 = vmatpush1.bf16.xpose.msra.mxu0 0
        %622 = vmatprep.subr.bf16.mxu0 0
        %623 = vmatpush1.bf16.xpose.msra.mxu0 0
        %624 = vmatprep.subr.bf16.mxu0 0
        %625 = vmatpush1.bf16.xpose.msra.mxu0 0
        %626 = vmatprep.subr.bf16.mxu0 0
        %627 = vmatpush1.bf16.xpose.msra.mxu0 0
        %628 = vmatprep.subr.bf16.mxu0 0
        %629 = vmatpush1.bf16.xpose.msra.mxu0 0
        %630 = vmatprep.subr.bf16.mxu0 0
        %631 = vmatpush1.bf16.xpose.msra.mxu0 0
        %632 = vmatprep.subr.bf16.mxu0 0
        %633 = vmatpush1.bf16.xpose.msra.mxu0 0
        %634 = vmatprep.subr.bf16.mxu0 0
        %635 = vmatpush1.bf16.xpose.msra.mxu0 0
        %636 = vmatprep.subr.bf16.mxu0 0
        %637 = vmatpush1.bf16.xpose.msra.mxu0 0
        %638 = vmatprep.subr.bf16.mxu0 0
        %639 = vmatpush1.bf16.xpose.msra.mxu0 0
        %640 = vmatprep.mubr.bf16.mxu0 0
        %641 = vmatmul.mubr.bf16.gmra.mrb[0].mxu0 %v603
        %v642 = vpop.f32.mrb[0].mxu0
        %v643 = vadd.f32 0.0, %v642
        %v644 = vpop.f32.mrb[0].mxu0
        %v645 = vpop.f32.mrb[0].mxu0
        %v646 = vpop.f32.mrb[0].mxu0
        %647 = vdwg.mxu0
        %v648 = vsel %vm600, 1, 0
        %v649 = vlaneseq
        %v650 = vshrl.u32 %v649, 7
        %v651 = vsub.s32 0, %v650
        %v652 = vrot.slane %v648, %v651
        %vm653 = vcmp.eq.s32.totalorder %v652, 1
        %v654 = vsel %vm653, %v643, -1e+10
        %v655 = vsel %vm601, %v654, -inf
        %656 = vmax.xlane.f32.xlu0 %v655
        %v657 = vpop.xlane.xlu0 %656
        %v658 = vsub.f32 %v654, %v657
        %v659 = vmul.f32 %v658, 1.442695
        %v660 = vpow.pop %v659
        %v661 = vsel %vm601, %v660, 0.0
        %662 = vadd.xlane.f32.xlu0 %v661
        %v663 = vpop.xlane.xlu0 %662
        %v664 = vrcp.pop %v663
        %v665 = vmul.f32 %v660, %v664
        %666 = vst.msk [vmem:[%s457] sm:$0xff] %vm601, %v665
        %v667 = vpack.c.bf16 %v665, %v665
        %669 = vrot.lane.b32.xlu0 %v598, 96
        %v670 = vpop.permute.xlu0 %669
        %v672 = vsel %vm601, %v667, 0
        %vm674 = vcmask 1043456
        %v676 = vsel %vm674, %v670, 0
        %678 = vmatprep.subr.bf16.mxu0 0
        %679 = vmatpush1.bf16.msra.mxu0 %v676
        %680 = vmatprep.subr.bf16.mxu0 0
        %681 = vmatpush1.bf16.msra.mxu0 0
        %682 = vmatprep.subr.bf16.mxu0 0
        %683 = vmatpush1.bf16.msra.mxu0 0
        %684 = vmatprep.subr.bf16.mxu0 0
        %685 = vmatpush1.bf16.msra.mxu0 0
        %686 = vmatprep.subr.bf16.mxu0 0
        %687 = vmatpush1.bf16.msra.mxu0 0
        %688 = vmatprep.subr.bf16.mxu0 0
        %689 = vmatpush1.bf16.msra.mxu0 0
        %690 = vmatprep.subr.bf16.mxu0 0
        %691 = vmatpush1.bf16.msra.mxu0 0
        %692 = vmatprep.subr.bf16.mxu0 0
        %693 = vmatpush1.bf16.msra.mxu0 0
        %694 = vmatprep.subr.bf16.mxu0 0
        %695 = vmatpush1.bf16.msra.mxu0 0
        %696 = vmatprep.subr.bf16.mxu0 0
        %697 = vmatpush1.bf16.msra.mxu0 0
        %698 = vmatprep.subr.bf16.mxu0 0
        %699 = vmatpush1.bf16.msra.mxu0 0
        %700 = vmatprep.subr.bf16.mxu0 0
        %701 = vmatpush1.bf16.msra.mxu0 0
        %702 = vmatprep.subr.bf16.mxu0 0
        %703 = vmatpush1.bf16.msra.mxu0 0
        %704 = vmatprep.subr.bf16.mxu0 0
        %705 = vmatpush1.bf16.msra.mxu0 0
        %706 = vmatprep.subr.bf16.mxu0 0
        %707 = vmatpush1.bf16.msra.mxu0 0
        %708 = vmatprep.subr.bf16.mxu0 0
        %709 = vmatpush1.bf16.msra.mxu0 0
        %710 = vmatprep.mubr.bf16.mxu0 0
        %711 = vmatmul.mubr.bf16.gmra.mrb[0].mxu0 %v672
        %v712 = vpop.f32.mrb[0].mxu0
        %v713 = vadd.f32 0.0, %v712
        %v714 = vpop.f32.mrb[0].mxu0
        %v715 = vpop.f32.mrb[0].mxu0
        %v716 = vpop.f32.mrb[0].mxu0
        %717 = vdwg.mxu0
        %719 = vrot.lane.b32.xlu0 %v597, 120
        %v720 = vpop.permute.xlu0 %719
        %721 = vrot.lane.b32.xlu0 %v598, 120
        %v722 = vpop.permute.xlu0 %721
        %v724 = vsel %vm601, %v720, 0
        %v727 = vsel %vm601, %v722, 0
        %729 = vmatprep.subr.bf16.mxu0 0
        %730 = vmatpush1.bf16.xpose.msra.mxu0 %v727
        %731 = vmatprep.subr.bf16.mxu0 0
        %732 = vmatpush1.bf16.xpose.msra.mxu0 0
        %733 = vmatprep.subr.bf16.mxu0 0
        %734 = vmatpush1.bf16.xpose.msra.mxu0 0
        %735 = vmatprep.subr.bf16.mxu0 0
        %736 = vmatpush1.bf16.xpose.msra.mxu0 0
        %737 = vmatprep.subr.bf16.mxu0 0
        %738 = vmatpush1.bf16.xpose.msra.mxu0 0
        %739 = vmatprep.subr.bf16.mxu0 0
        %740 = vmatpush1.bf16.xpose.msra.mxu0 0
        %741 = vmatprep.subr.bf16.mxu0 0
        %742 = vmatpush1.bf16.xpose.msra.mxu0 0
        %743 = vmatprep.subr.bf16.mxu0 0
        %744 = vmatpush1.bf16.xpose.msra.mxu0 0
        %745 = vmatprep.subr.bf16.mxu0 0
        %746 = vmatpush1.bf16.xpose.msra.mxu0 0
        %747 = vmatprep.subr.bf16.mxu0 0
        %748 = vmatpush1.bf16.xpose.msra.mxu0 0
        %749 = vmatprep.subr.bf16.mxu0 0
        %750 = vmatpush1.bf16.xpose.msra.mxu0 0
        %751 = vmatprep.subr.bf16.mxu0 0
        %752 = vmatpush1.bf16.xpose.msra.mxu0 0
        %753 = vmatprep.subr.bf16.mxu0 0
        %754 = vmatpush1.bf16.xpose.msra.mxu0 0
        %755 = vmatprep.subr.bf16.mxu0 0
        %756 = vmatpush1.bf16.xpose.msra.mxu0 0
        %757 = vmatprep.subr.bf16.mxu0 0
        %758 = vmatpush1.bf16.xpose.msra.mxu0 0
        %759 = vmatprep.subr.bf16.mxu0 0
        %760 = vmatpush1.bf16.xpose.msra.mxu0 0
        %761 = vmatprep.mubr.bf16.mxu0 0
        %762 = vmatmul.mubr.bf16.gmra.mrb[0].mxu0 %v724
        %v763 = vpop.f32.mrb[0].mxu0
        %v764 = vadd.f32 0.0, %v763
        %v765 = vpop.f32.mrb[0].mxu0
        %v766 = vpop.f32.mrb[0].mxu0
        %v767 = vpop.f32.mrb[0].mxu0
        %768 = vdwg.mxu0
        %v769 = vsel %vm653, %v764, -1e+10
        %v770 = vsel %vm601, %v769, -inf
        %771 = vmax.xlane.f32.xlu0 %v770
        %v772 = vpop.xlane.xlu0 %771
        %v773 = vsub.f32 %v769, %v772
        %v774 = vmul.f32 %v773, 1.442695
        %v775 = vpow.pop %v774
        %v776 = vsel %vm601, %v775, 0.0
        %777 = vadd.xlane.f32.xlu0 %v776
        %v778 = vpop.xlane.xlu0 %777
        %v779 = vrcp.pop %v778
        %v780 = vmul.f32 %v775, %v779
        %s781 = scalar_lea.vmem %s457, 8 [#allocation2]
        %782 = vst.msk [vmem:[%s781] sm:$0xff] %vm601, %v780
        %v783 = vpack.c.bf16 %v780, %v780
        %784 = vrot.lane.b32.xlu0 %v598, 88
        %v785 = vpop.permute.xlu0 %784
        %v787 = vsel %vm601, %v783, 0
        %v790 = vsel %vm674, %v785, 0
        %792 = vmatprep.subr.bf16.mxu0 0
        %793 = vmatpush1.bf16.msra.mxu0 %v790
        %794 = vmatprep.subr.bf16.mxu0 0
        %795 = vmatpush1.bf16.msra.mxu0 0
        %796 = vmatprep.subr.bf16.mxu0 0
        %797 = vmatpush1.bf16.msra.mxu0 0
        %798 = vmatprep.subr.bf16.mxu0 0
        %799 = vmatpush1.bf16.msra.mxu0 0
        %800 = vmatprep.subr.bf16.mxu0 0
        %801 = vmatpush1.bf16.msra.mxu0 0
        %802 = vmatprep.subr.bf16.mxu0 0
        %803 = vmatpush1.bf16.msra.mxu0 0
        %804 = vmatprep.subr.bf16.mxu0 0
        %805 = vmatpush1.bf16.msra.mxu0 0
        %806 = vmatprep.subr.bf16.mxu0 0
        %807 = vmatpush1.bf16.msra.mxu0 0
        %808 = vmatprep.subr.bf16.mxu0 0
        %809 = vmatpush1.bf16.msra.mxu0 0
        %810 = vmatprep.subr.bf16.mxu0 0
        %811 = vmatpush1.bf16.msra.mxu0 0
        %812 = vmatprep.subr.bf16.mxu0 0
        %813 = vmatpush1.bf16.msra.mxu0 0
        %814 = vmatprep.subr.bf16.mxu0 0
        %815 = vmatpush1.bf16.msra.mxu0 0
        %816 = vmatprep.subr.bf16.mxu0 0
        %817 = vmatpush1.bf16.msra.mxu0 0
        %818 = vmatprep.subr.bf16.mxu0 0
        %819 = vmatpush1.bf16.msra.mxu0 0
        %820 = vmatprep.subr.bf16.mxu0 0
        %821 = vmatpush1.bf16.msra.mxu0 0
        %822 = vmatprep.subr.bf16.mxu0 0
        %823 = vmatpush1.bf16.msra.mxu0 0
        %824 = vmatprep.mubr.bf16.mxu0 0
        %825 = vmatmul.mubr.bf16.gmra.mrb[0].mxu0 %v787
        %v826 = vpop.f32.mrb[0].mxu0
        %v827 = vadd.f32 0.0, %v826
        %v828 = vpop.f32.mrb[0].mxu0
        %v829 = vpop.f32.mrb[0].mxu0
        %v830 = vpop.f32.mrb[0].mxu0
        %831 = vdwg.mxu0
        %832 = vrot.lane.b32.xlu0 %v597, 112
        %v833 = vpop.permute.xlu0 %832
        %834 = vrot.lane.b32.xlu0 %v598, 112
        %v835 = vpop.permute.xlu0 %834
        %v837 = vsel %vm601, %v833, 0
        %v840 = vsel %vm601, %v835, 0
        %842 = vmatprep.subr.bf16.mxu0 0
        %843 = vmatpush1.bf16.xpose.msra.mxu0 %v840
        %844 = vmatprep.subr.bf16.mxu0 0
        %845 = vmatpush1.bf16.xpose.msra.mxu0 0
        %846 = vmatprep.subr.bf16.mxu0 0
        %847 = vmatpush1.bf16.xpose.msra.mxu0 0
        %848 = vmatprep.subr.bf16.mxu0 0
        %849 = vmatpush1.bf16.xpose.msra.mxu0 0
        %850 = vmatprep.subr.bf16.mxu0 0
        %851 = vmatpush1.bf16.xpose.msra.mxu0 0
        %852 = vmatprep.subr.bf16.mxu0 0
        %853 = vmatpush1.bf16.xpose.msra.mxu0 0
        %854 = vmatprep.subr.bf16.mxu0 0
        %855 = vmatpush1.bf16.xpose.msra.mxu0 0
        %856 = vmatprep.subr.bf16.mxu0 0
        %857 = vmatpush1.bf16.xpose.msra.mxu0 0
        %858 = vmatprep.subr.bf16.mxu0 0
        %859 = vmatpush1.bf16.xpose.msra.mxu0 0
        %860 = vmatprep.subr.bf16.mxu0 0
        %861 = vmatpush1.bf16.xpose.msra.mxu0 0
        %862 = vmatprep.subr.bf16.mxu0 0
        %863 = vmatpush1.bf16.xpose.msra.mxu0 0
        %864 = vmatprep.subr.bf16.mxu0 0
        %865 = vmatpush1.bf16.xpose.msra.mxu0 0
        %866 = vmatprep.subr.bf16.mxu0 0
        %867 = vmatpush1.bf16.xpose.msra.mxu0 0
        %868 = vmatprep.subr.bf16.mxu0 0
        %869 = vmatpush1.bf16.xpose.msra.mxu0 0
        %870 = vmatprep.subr.bf16.mxu0 0
        %871 = vmatpush1.bf16.xpose.msra.mxu0 0
        %872 = vmatprep.subr.bf16.mxu0 0
        %873 = vmatpush1.bf16.xpose.msra.mxu0 0
        %874 = vmatprep.mubr.bf16.mxu0 0
        %875 = vmatmul.mubr.bf16.gmra.mrb[0].mxu0 %v837
        %v876 = vpop.f32.mrb[0].mxu0
        %v877 = vadd.f32 0.0, %v876
        %v878 = vpop.f32.mrb[0].mxu0
        %v879 = vpop.f32.mrb[0].mxu0
        %v880 = vpop.f32.mrb[0].mxu0
        %881 = vdwg.mxu0
        %v882 = vsel %vm653, %v877, -1e+10
        %v883 = vsel %vm601, %v882, -inf
        %884 = vmax.xlane.f32.xlu0 %v883
        %v885 = vpop.xlane.xlu0 %884
        %v886 = vsub.f32 %v882, %v885
        %v887 = vmul.f32 %v886, 1.442695
        %v888 = vpow.pop %v887
        %v889 = vsel %vm601, %v888, 0.0
        %890 = vadd.xlane.f32.xlu0 %v889
        %v891 = vpop.xlane.xlu0 %890
        %v892 = vrcp.pop %v891
        %v893 = vmul.f32 %v888, %v892
        %s894 = scalar_lea.vmem %s457, 16 [#allocation2]
        %895 = vst.msk [vmem:[%s894] sm:$0xff] %vm601, %v893
        %v896 = vpack.c.bf16 %v893, %v893
        %897 = vrot.lane.b32.xlu0 %v598, 80
        %v898 = vpop.permute.xlu0 %897
        %v900 = vsel %vm601, %v896, 0
        %v903 = vsel %vm674, %v898, 0
        %905 = vmatprep.subr.bf16.mxu0 0
        %906 = vmatpush1.bf16.msra.mxu0 %v903
        %907 = vmatprep.subr.bf16.mxu0 0
        %908 = vmatpush1.bf16.msra.mxu0 0
        %909 = vmatprep.subr.bf16.mxu0 0
        %910 = vmatpush1.bf16.msra.mxu0 0
        %911 = vmatprep.subr.bf16.mxu0 0
        %912 = vmatpush1.bf16.msra.mxu0 0
        %913 = vmatprep.subr.bf16.mxu0 0
        %914 = vmatpush1.bf16.msra.mxu0 0
        %915 = vmatprep.subr.bf16.mxu0 0
        %916 = vmatpush1.bf16.msra.mxu0 0
        %917 = vmatprep.subr.bf16.mxu0 0
        %918 = vmatpush1.bf16.msra.mxu0 0
        %919 = vmatprep.subr.bf16.mxu0 0
        %920 = vmatpush1.bf16.msra.mxu0 0
        %921 = vmatprep.subr.bf16.mxu0 0
        %922 = vmatpush1.bf16.msra.mxu0 0
        %923 = vmatprep.subr.bf16.mxu0 0
        %924 = vmatpush1.bf16.msra.mxu0 0
        %925 = vmatprep.subr.bf16.mxu0 0
        %926 = vmatpush1.bf16.msra.mxu0 0
        %927 = vmatprep.subr.bf16.mxu0 0
        %928 = vmatpush1.bf16.msra.mxu0 0
        %929 = vmatprep.subr.bf16.mxu0 0
        %930 = vmatpush1.bf16.msra.mxu0 0
        %931 = vmatprep.subr.bf16.mxu0 0
        %932 = vmatpush1.bf16.msra.mxu0 0
        %933 = vmatprep.subr.bf16.mxu0 0
        %934 = vmatpush1.bf16.msra.mxu0 0
        %935 = vmatprep.subr.bf16.mxu0 0
        %936 = vmatpush1.bf16.msra.mxu0 0
        %937 = vmatprep.mubr.bf16.mxu0 0
        %938 = vmatmul.mubr.bf16.gmra.mrb[0].mxu0 %v900
        %v939 = vpop.f32.mrb[0].mxu0
        %v940 = vadd.f32 0.0, %v939
        %v941 = vpop.f32.mrb[0].mxu0
        %v942 = vpop.f32.mrb[0].mxu0
        %v943 = vpop.f32.mrb[0].mxu0
        %944 = vdwg.mxu0
        %945 = vrot.lane.b32.xlu0 %v597, 104
        %v946 = vpop.permute.xlu0 %945
        %947 = vrot.lane.b32.xlu0 %v598, 104
        %v948 = vpop.permute.xlu0 %947
        %v950 = vsel %vm601, %v946, 0
        %v953 = vsel %vm601, %v948, 0
        %955 = vmatprep.subr.bf16.mxu0 0
        %956 = vmatpush1.bf16.xpose.msra.mxu0 %v953
        %957 = vmatprep.subr.bf16.mxu0 0
        %958 = vmatpush1.bf16.xpose.msra.mxu0 0
        %959 = vmatprep.subr.bf16.mxu0 0
        %960 = vmatpush1.bf16.xpose.msra.mxu0 0
        %961 = vmatprep.subr.bf16.mxu0 0
        %962 = vmatpush1.bf16.xpose.msra.mxu0 0
        %963 = vmatprep.subr.bf16.mxu0 0
        %964 = vmatpush1.bf16.xpose.msra.mxu0 0
        %965 = vmatprep.subr.bf16.mxu0 0
        %966 = vmatpush1.bf16.xpose.msra.mxu0 0
        %967 = vmatprep.subr.bf16.mxu0 0
        %968 = vmatpush1.bf16.xpose.msra.mxu0 0
        %969 = vmatprep.subr.bf16.mxu0 0
        %970 = vmatpush1.bf16.xpose.msra.mxu0 0
        %971 = vmatprep.subr.bf16.mxu0 0
        %972 = vmatpush1.bf16.xpose.msra.mxu0 0
        %973 = vmatprep.subr.bf16.mxu0 0
        %974 = vmatpush1.bf16.xpose.msra.mxu0 0
        %975 = vmatprep.subr.bf16.mxu0 0
        %976 = vmatpush1.bf16.xpose.msra.mxu0 0
        %977 = vmatprep.subr.bf16.mxu0 0
        %978 = vmatpush1.bf16.xpose.msra.mxu0 0
        %979 = vmatprep.subr.bf16.mxu0 0
        %980 = vmatpush1.bf16.xpose.msra.mxu0 0
        %981 = vmatprep.subr.bf16.mxu0 0
        %982 = vmatpush1.bf16.xpose.msra.mxu0 0
        %983 = vmatprep.subr.bf16.mxu0 0
        %984 = vmatpush1.bf16.xpose.msra.mxu0 0
        %985 = vmatprep.subr.bf16.mxu0 0
        %986 = vmatpush1.bf16.xpose.msra.mxu0 0
        %987 = vmatprep.mubr.bf16.mxu0 0
        %988 = vmatmul.mubr.bf16.gmra.mrb[0].mxu0 %v950
        %v989 = vpop.f32.mrb[0].mxu0
        %v990 = vadd.f32 0.0, %v989
        %v991 = vpop.f32.mrb[0].mxu0
        %v992 = vpop.f32.mrb[0].mxu0
        %v993 = vpop.f32.mrb[0].mxu0
        %994 = vdwg.mxu0
        %v995 = vsel %vm653, %v990, -1e+10
        %v996 = vsel %vm601, %v995, -inf
        %997 = vmax.xlane.f32.xlu0 %v996
        %v998 = vpop.xlane.xlu0 %997
        %v999 = vsub.f32 %v995, %v998
        %v1000 = vmul.f32 %v999, 1.442695
        %v1001 = vpow.pop %v1000
        %v1002 = vsel %vm601, %v1001, 0.0
        %1003 = vadd.xlane.f32.xlu0 %v1002
        %v1004 = vpop.xlane.xlu0 %1003
        %v1005 = vrcp.pop %v1004
        %v1006 = vmul.f32 %v1001, %v1005
        %s1007 = scalar_lea.vmem %s457, 24 [#allocation2]
        %1008 = vst.msk [vmem:[%s1007] sm:$0xff] %vm601, %v1006
        %v1009 = vpack.c.bf16 %v1006, %v1006
        %1010 = vrot.lane.b32.xlu0 %v598, 72
        %v1011 = vpop.permute.xlu0 %1010
        %v1013 = vsel %vm601, %v1009, 0
        %v1016 = vsel %vm674, %v1011, 0
        %1018 = vmatprep.subr.bf16.mxu0 0
        %1019 = vmatpush1.bf16.msra.mxu0 %v1016
        %1020 = vmatprep.subr.bf16.mxu0 0
        %1021 = vmatpush1.bf16.msra.mxu0 0
        %1022 = vmatprep.subr.bf16.mxu0 0
        %1023 = vmatpush1.bf16.msra.mxu0 0
        %1024 = vmatprep.subr.bf16.mxu0 0
        %1025 = vmatpush1.bf16.msra.mxu0 0
        %1026 = vmatprep.subr.bf16.mxu0 0
        %1027 = vmatpush1.bf16.msra.mxu0 0
        %1028 = vmatprep.subr.bf16.mxu0 0
        %1029 = vmatpush1.bf16.msra.mxu0 0
        %1030 = vmatprep.subr.bf16.mxu0 0
        %1031 = vmatpush1.bf16.msra.mxu0 0
        %1032 = vmatprep.subr.bf16.mxu0 0
        %1033 = vmatpush1.bf16.msra.mxu0 0
        %1034 = vmatprep.subr.bf16.mxu0 0
        %1035 = vmatpush1.bf16.msra.mxu0 0
        %1036 = vmatprep.subr.bf16.mxu0 0
        %1037 = vmatpush1.bf16.msra.mxu0 0
        %1038 = vmatprep.subr.bf16.mxu0 0
        %1039 = vmatpush1.bf16.msra.mxu0 0
        %1040 = vmatprep.subr.bf16.mxu0 0
        %1041 = vmatpush1.bf16.msra.mxu0 0
        %1042 = vmatprep.subr.bf16.mxu0 0
        %1043 = vmatpush1.bf16.msra.mxu0 0
        %1044 = vmatprep.subr.bf16.mxu0 0
        %1045 = vmatpush1.bf16.msra.mxu0 0
        %1046 = vmatprep.subr.bf16.mxu0 0
        %1047 = vmatpush1.bf16.msra.mxu0 0
        %1048 = vmatprep.subr.bf16.mxu0 0
        %1049 = vmatpush1.bf16.msra.mxu0 0
        %1050 = vmatprep.mubr.bf16.mxu0 0
        %1051 = vmatmul.mubr.bf16.gmra.mrb[0].mxu0 %v1013
        %v1052 = vpop.f32.mrb[0].mxu0
        %v1053 = vadd.f32 0.0, %v1052
        %v1054 = vpop.f32.mrb[0].mxu0
        %v1055 = vpop.f32.mrb[0].mxu0
        %v1056 = vpop.f32.mrb[0].mxu0
        %1057 = vdwg.mxu0
        %1059 = vrot.lane.b32.xlu0 %v827, 8
        %v1060 = vpop.permute.xlu0 %1059
        %1063 = vrot.lane.b32.xlu0 %v940, 16
        %v1064 = vpop.permute.xlu0 %1063
        %1067 = vrot.lane.b32.xlu0 %v1053, 24
        %v1068 = vpop.permute.xlu0 %1067
        %v1070 = vsel %vm601, %v713, %v1060
        %vm1071 = vcmask 130048
        %v1072 = vsel %vm1071, %v1070, %v1064
        %vm1073 = vcmask 195584
        %v1074 = vsel %vm1073, %v1072, %v1068
        %v1075 = vpack.c.bf16 %v1074, %v1074
        %v1076 = vld [vmem:[%s7] sm:$0xff]
        %v1077 = vld [vmem:[%s7 + $0x8] sm:$0xff]
        %v1078 = vld [vmem:[%s7 + $0x10] sm:$0xff]
        %v1079 = vld [vmem:[%s7 + $0x18] sm:$0xff]
        %v1080 = vpack.c.bf16 %v1077, %v1076
        %v1081 = vpack.c.bf16 %v1079, %v1078
        %v1083 = vsel %vm495, %v1075, 0
        %1085 = vmatprep.subr.bf16.mxu0 0
        %1086 = vmatpush1.bf16.msra.mxu0 %v1080
        %1087 = vmatprep.subr.bf16.mxu0 0
        %1088 = vmatpush1.bf16.msra.mxu0 %v1081
        %1089 = vmatprep.subr.bf16.mxu0 0
        %1090 = vmatpush1.bf16.msra.mxu0 0
        %1091 = vmatprep.subr.bf16.mxu0 0
        %1092 = vmatpush1.bf16.msra.mxu0 0
        %1093 = vmatprep.subr.bf16.mxu0 0
        %1094 = vmatpush1.bf16.msra.mxu0 0
        %1095 = vmatprep.subr.bf16.mxu0 0
        %1096 = vmatpush1.bf16.msra.mxu0 0
        %1097 = vmatprep.subr.bf16.mxu0 0
        %1098 = vmatpush1.bf16.msra.mxu0 0
        %1099 = vmatprep.subr.bf16.mxu0 0
        %1100 = vmatpush1.bf16.msra.mxu0 0
        %1101 = vmatprep.subr.bf16.mxu0 0
        %1102 = vmatpush1.bf16.msra.mxu0 0
        %1103 = vmatprep.subr.bf16.mxu0 0
        %1104 = vmatpush1.bf16.msra.mxu0 0
        %1105 = vmatprep.subr.bf16.mxu0 0
        %1106 = vmatpush1.bf16.msra.mxu0 0
        %1107 = vmatprep.subr.bf16.mxu0 0
        %1108 = vmatpush1.bf16.msra.mxu0 0
        %1109 = vmatprep.subr.bf16.mxu0 0
        %1110 = vmatpush1.bf16.msra.mxu0 0
        %1111 = vmatprep.subr.bf16.mxu0 0
        %1112 = vmatpush1.bf16.msra.mxu0 0
        %1113 = vmatprep.subr.bf16.mxu0 0
        %1114 = vmatpush1.bf16.msra.mxu0 0
        %1115 = vmatprep.subr.bf16.mxu0 0
        %1116 = vmatpush1.bf16.msra.mxu0 0
        %1117 = vmatprep.mubr.bf16.mxu0 0
        %1118 = vmatmul.mubr.bf16.gmra.mrb[0].mxu0 %v1083
        %v1119 = vpop.f32.mrb[0].mxu0
        %v1120 = vadd.f32 0.0, %v1119
        %v1121 = vpop.f32.mrb[0].mxu0
        %v1122 = vpop.f32.mrb[0].mxu0
        %v1123 = vpop.f32.mrb[0].mxu0
        %1124 = vdwg.mxu0
        %v1125 = vadd.f32 %v479, %v1120
        %v1126 = vld [vmem:[%s8] sm:$0x1]
        %v1128 = vlaneseq
        %v1129 = vshrl.u32 %v1128, 7
        %v1130 = vsub.s32 0, %v1129
        %v1131 = vrot.slane %v1126, %v1130
        %v1133 = vadd.f32 %v1125, %v1131
        %v1134 = vsel %vm495, %v1133, 0.0
        %1135 = vadd.xlane.f32.xlu0 %v1134
        %v1136 = vpop.xlane.xlu0 %1135
        %v1137 = vrcp.pop 32.0
        %v1138 = vmul.f32 %v1136, %v1137
        %v1139 = vsub.f32 %v1133, %v1138
        %v1140 = vmul.f32 %v1139, %v1139
        %v1141 = vsel %vm495, %v1140, 0.0
        %1142 = vadd.xlane.f32.xlu0 %v1141
        %v1143 = vpop.xlane.xlu0 %1142
        %v1144 = vmul.f32 %v1143, %v1137
        %v1145 = vadd.f32 %v1144, 1e-05
        %v1146 = vrsqrt.pop %v1145
        %v1147 = vmul.f32 %v1139, %v1146
        %v1148 = vld [vmem:[%s9] sm:$0x1]
        %v1150 = vlaneseq
        %v1151 = vshrl.u32 %v1150, 7
        %v1152 = vsub.s32 0, %v1151
        %v1153 = vrot.slane %v1148, %v1152
        %v1155 = vmul.f32 %v1147, %v1153
        %v1156 = vld [vmem:[%s10] sm:$0x1]
        %v1158 = vlaneseq
        %v1159 = vshrl.u32 %v1158, 7
        %v1160 = vsub.s32 0, %v1159
        %v1161 = vrot.slane %v1156, %v1160
        %v1163 = vadd.f32 %v1155, %v1161
        %1164 = vst.msk [vmem:[%s475] sm:$0xff] %vm495, %v1163
        %s1165 = sadd.s32 %s31, %s32
        %p1166 = scmp.lt.s32.totalorder %s1165, 1
        %s1167 = scalar_select %p1166, %s1165, 1
        %s1168 = smul.addr %s1167, 8
        %s1169 = scalar_lea.vmem %s11, %s1168
        %s1170 = sand.u32 %s325, 1
        %s1171 = scalar_lea.sflag [#allocation3], %s1170
        %s1172 = sand.u32 %s325, 1
        %s1173 = smul.addr %s1172, 32
        %s1174 = scalar_lea.vmem [#allocation2], %s1173
        // Predicated region
        $region65: #{decoder_forward.11} parent=63 // pred_check
          %p1175 = pneg %p307
        $region66: #{decoder_forward.11} parent=63 // pred_check_branch
          %1177 = sbr.rel (%p1175) target = $region68
        $region67: #{decoder_forward.11} parent=63 // pred_region
          %s1178 = sadd.s32 %s31, %s32
        $region68: #{decoder_forward.11} parent=63 // pred_fallthru
          _
        // Predicated region
        $region69: #{decoder_forward.11} parent=63 // pred_check
          %p1179 = pneg %p335
        $region70: #{decoder_forward.11} parent=63 // pred_check_branch
          %1181 = sbr.rel (%p1179) target = $region72
        $region71: #{decoder_forward.11} parent=63 // pred_region
          %s1182 = smul.u32 4, %s31
          %s1184 = ssub.s32 512, 512
          %1185 = vsyncadd %s1171, %s1184
          %s1186 = sadd.s32 %s32, %s1182
          %s1187 = smul.addr %s1186, 128
          %s1188 = scalar_lea.hbm %s12, %s1187
          %s1189 = sshll.u32 %s1174, 4
          %s1190 = int_to_ptr.vmem [resolvable:$true] %s1189
          %1195 = dma.vmem_to_hbm [thread:$0]  %s1190, 512, %s1188, %s1171, 128, 128, 8
        $region72: #{decoder_forward.11} parent=63 // pred_fallthru
          _
      $region64: #{decoder_forward.11} parent=5 // pred_fallthru
        _
      %p1196 = scmp.le.s32.totalorder 2, %s22
      // Predicated region
      $region73: #{decoder_forward.11} parent=5 // pred_check
        %p1197 = pneg %p1196
      $region74: #{decoder_forward.11} parent=5 // pred_check_branch
        %1199 = sbr.rel (%p1197) target = $region76
      $region75: #{decoder_forward.11} parent=5 // pred_region
        %s1200 = ssub.s32 %s22, 2
        // Predicated region
        $region77: #{decoder_forward.11} parent=75 // pred_check
          %p1201 = pneg %p313
        $region78: #{decoder_forward.11} parent=75 // pred_check_branch
          %1203 = sbr.rel (%p1201) target = $region80
        $region79: #{decoder_forward.11} parent=75 // pred_region
          %s1204 = sadd.s32 %s33, %s34
          %p1205 = scmp.lt.s32.totalorder %s1204, 1
          %s1206 = scalar_select %p1205, %s1204, 1
          %s1207 = smul.addr %s1206, 8
          %s1208 = scalar_lea.vmem %s11, %s1207
        $region80: #{decoder_forward.11} parent=75 // pred_fallthru
          _
        // Predicated region
        $region81: #{decoder_forward.11} parent=75 // pred_check
          %p1209 = pneg %p341
        $region82: #{decoder_forward.11} parent=75 // pred_check_branch
          %1211 = sbr.rel (%p1209) target = $region84
        $region83: #{decoder_forward.11} parent=75 // pred_region
          %s1212 = sand.u32 %s326, 1
          %s1213 = scalar_lea.sflag [#allocation3], %s1212
          %s1214 = sand.u32 %s326, 1
          %s1215 = smul.addr %s1214, 32
          %s1216 = scalar_lea.vmem [#allocation2], %s1215
          %1217 = dma.done %s1213, 512
        $region84: #{decoder_forward.11} parent=75 // pred_fallthru
          _
      $region76: #{decoder_forward.11} parent=5 // pred_fallthru
        _
    $region6: #{decoder_forward.11} parent=1 // loop_footer
      %s26 = sadd.s32 1, %s22
    $region7: #{decoder_forward.11} parent=1 // loop_footer_branch
      %21 = sbr.rel target = $region3
    $region8: #{decoder_forward.11} parent=1 // loop_exit
      _
    %1218 = vsyncpa [#allocation3], 1
    %s1219 = scalar_lea.sflag [#allocation3], 1
    %1220 = vsyncpa %s1219, 1

// kernel: decoder_forward.13
$region0: #{decoder_forward.13}
  #allocation0 [shape = 'u32[]', space=smem, size = 0x4, offset = 0x4, fixed_abs, tag = 'smem constant byte address 0x4 - core index']
  #allocation1 [shape = 'u32[144,128]{1,0:T(1,128)}', space=vmem, size = 0x12000, scoped, tag = 'internal scratch']
  %s0 = inlined_call_operand.vmem [shape: f32[16,32], index: 0, kind: input, shape index: {}]
  %s1 = inlined_call_operand.vmem [shape: f32[32,128], index: 1, kind: input, shape index: {}]
  %s2 = inlined_call_operand.vmem [shape: f32[1,128], index: 2, kind: input, shape index: {}]
  %s3 = inlined_call_operand.hbm [shape: f32[16,128], index: 3, kind: output, shape index: {}]
  %s4 = sld [smem:[#allocation0]]
  $region22: #{decoder_forward.13} parent=0
    _
  %s6 = ssub.s32 1, %s4
  %s7 = scalar_select 0, %s6, %s4
  $region1: #{decoder_forward.13} parent=0
    #allocation2 [shape = 'u8[8192]{0}', space=vmem, size = 0x2000, scoped, tag = 'output window, operand 0, single buffered']
    #allocation3 [shape = 's32[1]{0}', space=sflag, size = 0x4, scoped, tag = 'scoped memory for decoder_forward.13']
    %8 = vsyncpa [#allocation3], 0
    // Predicated region
    $region2: #{decoder_forward.13} parent=1 // pred_check
      _
    $region3: #{decoder_forward.13} parent=1 // pred_check_branch
      %10 = sbr.rel (0) target = $region5
    $region4: #{decoder_forward.13} parent=1 // pred_region
      _
    $region5: #{decoder_forward.13} parent=1 // pred_fallthru
      _
    // Predicated region
    $region6: #{decoder_forward.13} parent=1 // pred_check
      _
    $region7: #{decoder_forward.13} parent=1 // pred_check_branch
      %12 = sbr.rel (0) target = $region9
    $region8: #{decoder_forward.13} parent=1 // pred_region
      _
    $region9: #{decoder_forward.13} parent=1 // pred_fallthru
      _
    // Predicated region
    $region10: #{decoder_forward.13} parent=1 // pred_check
      _
    $region11: #{decoder_forward.13} parent=1 // pred_check_branch
      %14 = sbr.rel (0) target = $region13
    $region12: #{decoder_forward.13} parent=1 // pred_region
      _
    $region13: #{decoder_forward.13} parent=1 // pred_fallthru
      _
    %v16 = vld [vmem:[%s0] sm:$0xff]
    %v17 = vld [vmem:[%s0 + $0x8] sm:$0xff]
    %v18 = vpack.c.bf16 %v17, %v16
    %v19 = vld [vmem:[%s1] sm:$0xff]
    %v20 = vld [vmem:[%s1 + $0x8] sm:$0xff]
    %v21 = vld [vmem:[%s1 + $0x10] sm:$0xff]
    %v22 = vld [vmem:[%s1 + $0x18] sm:$0xff]
    %v23 = vpack.c.bf16 %v20, %v19
    %v24 = vpack.c.bf16 %v22, %v21
    %v25 = vld [vmem:[%s2] sm:$0x1]
    %v27 = vlaneseq
    %v28 = vshrl.u32 %v27, 7
    %v29 = vsub.s32 0, %v28
    %v30 = vrot.slane %v25, %v29
    %vm32 = vcmask 261120
    %v34 = vsel %vm32, %v18, 0
    %36 = vmatprep.subr.bf16.mxu0 0
    %37 = vmatpush1.bf16.msra.mxu0 %v23
    %38 = vmatprep.subr.bf16.mxu0 0
    %39 = vmatpush1.bf16.msra.mxu0 %v24
    %40 = vmatprep.subr.bf16.mxu0 0
    %41 = vmatpush1.bf16.msra.mxu0 0
    %42 = vmatprep.subr.bf16.mxu0 0
    %43 = vmatpush1.bf16.msra.mxu0 0
    %44 = vmatprep.subr.bf16.mxu0 0
    %45 = vmatpush1.bf16.msra.mxu0 0
    %46 = vmatprep.subr.bf16.mxu0 0
    %47 = vmatpush1.bf16.msra.mxu0 0
    %48 = vmatprep.subr.bf16.mxu0 0
    %49 = vmatpush1.bf16.msra.mxu0 0
    %50 = vmatprep.subr.bf16.mxu0 0
    %51 = vmatpush1.bf16.msra.mxu0 0
    %52 = vmatprep.subr.bf16.mxu0 0
    %53 = vmatpush1.bf16.msra.mxu0 0
    %54 = vmatprep.subr.bf16.mxu0 0
    %55 = vmatpush1.bf16.msra.mxu0 0
    %56 = vmatprep.subr.bf16.mxu0 0
    %57 = vmatpush1.bf16.msra.mxu0 0
    %58 = vmatprep.subr.bf16.mxu0 0
    %59 = vmatpush1.bf16.msra.mxu0 0
    %60 = vmatprep.subr.bf16.mxu0 0
    %61 = vmatpush1.bf16.msra.mxu0 0
    %62 = vmatprep.subr.bf16.mxu0 0
    %63 = vmatpush1.bf16.msra.mxu0 0
    %64 = vmatprep.subr.bf16.mxu0 0
    %65 = vmatpush1.bf16.msra.mxu0 0
    %66 = vmatprep.subr.bf16.mxu0 0
    %67 = vmatpush1.bf16.msra.mxu0 0
    %68 = vmatprep.mubr.bf16.mxu0 0
    %69 = vmatmul.mubr.bf16.gmra.mrb[0].mxu0 %v34
    %v70 = vpop.f32.mrb[0].mxu0
    %v71 = vadd.f32 %v30, %v70
    %v72 = vpop.f32.mrb[0].mxu0
    %v73 = vpop.f32.mrb[0].mxu0
    %v74 = vadd.f32 %v30, %v73
    %v75 = vpop.f32.mrb[0].mxu0
    %76 = vdwg.mxu0
    %77 = vst [vmem:[#allocation2] sm:$0xff] %v71
    %78 = vst [vmem:[#allocation2 + $0x8] sm:$0xff] %v74
    // Predicated region
    $region14: #{decoder_forward.13} parent=1 // pred_check
      _
    $region15: #{decoder_forward.13} parent=1 // pred_check_branch
      %80 = sbr.rel (0) target = $region17
    $region16: #{decoder_forward.13} parent=1 // pred_region
      %s82 = ssub.s32 256, 256
      %83 = vsyncadd [#allocation3], %s82
      %s84 = sshll.u32 [#allocation2], 4
      %s85 = int_to_ptr.vmem [resolvable:$true] %s84
      %90 = dma.vmem_to_hbm [thread:$0]  %s85, 256, %s3, [#allocation3], 128, 128, 8
    $region17: #{decoder_forward.13} parent=1 // pred_fallthru
      _
    // Predicated region
    $region18: #{decoder_forward.13} parent=1 // pred_check
      _
    $region19: #{decoder_forward.13} parent=1 // pred_check_branch
      %92 = sbr.rel (0) target = $region21
    $region20: #{decoder_forward.13} parent=1 // pred_region
      %93 = dma.done [#allocation3], 256
    $region21: #{decoder_forward.13} parent=1 // pred_fallthru
      _
    %94 = vsyncpa [#allocation3], 1

</llo_original>
